<compile_context>
chip_gen: v7x
topology: tpu7x:2x2x1
jax: 0.10.0
libtpu: 0.0.40
codegen_flags: <defaults>
</compile_context>

<pallas_src>
import functools

import jax
import jax.numpy as jnp
from jax.experimental import pallas as pl
from jax.experimental.pallas import tpu as pltpu


def _round_up(x, m):
    return ((x + m - 1) // m) * m


def _cdiv(a, b):
    return -(-a // b)


def _tpu_tuning():
    """Per-generation tuning: (tm_max, vmem_cap_bytes, min_grid_steps)."""
    try:
        kind = jax.devices()[0].device_kind.lower()
    except Exception:
        kind = ""
    if "v7" in kind:
        # v7x: 64 MiB physical VMEM per TC, 2 TCs/chip -> require >=4 grid
        # steps (>=2 per core) so each core's DMA stays double-buffered.
        return 512, 48 * 2**20, 4
    if "v5" in kind or "v6" in kind:
        # 128 MiB physical VMEM: larger tiles amortize per-step overhead.
        return 1024, 96 * 2**20, 2
    # Unknown generation: conservative defaults.
    return 512, 48 * 2**20, 2


def _choose_tm(M, tm_max, min_steps):
    """Row tile: multiple of 8, <= tm_max, >= min_steps grid steps if possible."""
    tm = max(8, min(tm_max, _round_up(M, 8)))
    while tm > 8 and M >= 8 * min_steps and _cdiv(M, tm) < min_steps:
        tm = max(8, _round_up(_cdiv(tm, 2), 8))
    return tm


def _lstm_cell_kernel(h_ref, z_ref, c_ref, m_ref, n_ref, wh_ref, wz_ref, b_ref,
                      c_out, m_out, h_out, n_out, *, dff, approx_recip):
    # Fused gate projections on the MXU: bf16 operands (cast in-kernel, hidden
    # under the tile DMA), f32 accumulation.  Gate columns = [I | F | O | Z].
    gates = jnp.dot(h_ref[...].astype(jnp.bfloat16), wh_ref[...],
                    preferred_element_type=jnp.float32)
    gates = gates + jnp.dot(z_ref[...].astype(jnp.bfloat16), wz_ref[...],
                            preferred_element_type=jnp.float32)
    gates = gates + b_ref[...]

    # Elementwise recurrence in f32 (v5e VPU/EUP have no bf16 support); each
    # gates slice is consumed as soon as possible so the (tm, 4*dff) buffer's
    # live range / VMEM round-trips stay short.
    i_tilde = gates[:, 0 * dff:1 * dff]
    fm = gates[:, 1 * dff:2 * dff] + m_ref[...].astype(jnp.float32)  # F~ + M_prev
    m_t = jnp.maximum(fm, i_tilde)
    m_out[...] = m_t.astype(m_out.dtype)                 # retire M_t early

    i_t = jnp.exp(i_tilde - m_t)                         # EUP
    f_t = jnp.exp(fm - m_t)                              # EUP

    # NOTE: relies on N_prev > 0 (true for the sLSTM recurrence: N is a
    # positive combination of exp() terms) so n_t > 0 and 1/n_t stays finite.
    n_t = f_t * n_ref[...].astype(jnp.float32) + i_t
    n_out[...] = n_t.astype(n_out.dtype)                 # retire N_t

    z_t = jnp.tanh(gates[:, 3 * dff:4 * dff])            # EUP
    c_t = c_ref[...].astype(jnp.float32) * f_t + z_t * i_t
    c_out[...] = c_t.astype(c_out.dtype)                 # retire C_t

    # sigmoid(x) == 0.5 * (tanh(0.5 x) + 1): a single EUP tanh + cheap VPU ops
    # (avoids a multi-op logistic lowering; EUP co-binds with DMA on v7x).
    o_t = 0.5 * (jnp.tanh(0.5 * gates[:, 2 * dff:3 * dff]) + 1.0)
    if approx_recip:
        h_t = o_t * (c_t * pl.reciprocal(n_t, approx=True))   # EUP vrcp
    else:
        h_t = o_t * (c_t / n_t)                                # exact divide
    h_out[...] = h_t.astype(h_out.dtype)


def pack_params(w_gates, r_gates, wb_gates, rb_gates, *,
                weight_dtype=jnp.bfloat16):
    """Pack the 8 nn.Linear layers into fused kernel parameters.

    Call ONCE at parameter-init time (not per step).
      w_gates:  (WI, WF, WO, WZ) weights, PyTorch (out=dff, in=dff) layout.
      r_gates:  (RI, RF, RO, RZ) weights, PyTorch (out=dff, in=d_model) layout.
      wb_gates / rb_gates: the matching (dff,) biases.
    Returns:
      W_h (dff, 4*dff) weight_dtype, W_z (d_model, 4*dff) weight_dtype,
      b (1, 4*dff) f32, columns ordered [I | F | O | Z].
    """
    W_h = jnp.concatenate([w.T for w in w_gates], axis=1).astype(weight_dtype)
    W_z = jnp.concatenate([r.T for r in r_gates], axis=1).astype(weight_dtype)
    b = jnp.concatenate([wb + rb for wb, rb in zip(wb_gates, rb_gates)])
    return W_h, W_z, b.reshape(1, -1).astype(jnp.float32)


def custom_lstm_cell(Zi, Ci, Mi, Hi, Ni, W_h, W_z, b, *,
                     patch_size, d_model, dff,
                     h_dtype=jnp.bfloat16, state_dtype=jnp.float32,
                     approx_reciprocal=True, donate_states=False):
    """Pallas implementation of CustomLSTMCell.forward.

    Zi: (..., patch_size, d_model); Ci/Mi/Hi/Ni: (..., patch_size, dff).
    W_h/W_z/b: packed parameters from pack_params (W_* ideally bf16).
    Returns (C_t, M_t, H_t, N_t) with C/M/N in `state_dtype`, H in `h_dtype`.
    For exact parity with the PyTorch f32 forward use h_dtype=jnp.float32 and
    approx_reciprocal=False (bf16 MXU operands remain; error ~1e-2 absolute).
    """
    # Flatten (batch, patch) -> rows (sublanes); features stay on lanes.
    z2 = Zi.reshape(-1, d_model)
    h2 = Hi.reshape(-1, dff)
    c2 = Ci.reshape(-1, dff)
    m2 = Mi.reshape(-1, dff)
    n2 = Ni.reshape(-1, dff)
    M = z2.shape[0]
    B = M // patch_size
    gate_cols = 4 * dff
    b = b.reshape(1, gate_cols)

    tm_max, vmem_cap, min_steps = _tpu_tuning()
    tm = _choose_tm(M, tm_max, min_steps)
    # Ragged last tile (M % tm != 0) is handled by the pipeline: OOB reads are
    # unspecified (purely elementwise -> no cross-row contamination), OOB
    # writes are dropped.  No wrapper-side jnp.pad / extra HBM pass.
    grid = (_cdiv(M, tm),)

    row_spec = lambda cols: pl.BlockSpec((tm, cols), lambda i: (i, 0))
    # Constant (0, 0) index_map: grid-invariant blocks, not re-fetched per step.
    const_spec = lambda r, c: pl.BlockSpec((r, c), lambda i: (0, 0))

    out_shape = (jax.ShapeDtypeStruct((M, dff), state_dtype),   # C_t
                 jax.ShapeDtypeStruct((M, dff), state_dtype),   # M_t
                 jax.ShapeDtypeStruct((M, dff), h_dtype),       # H_t
                 jax.ShapeDtypeStruct((M, dff), state_dtype))   # N_t

    # Optional state-buffer donation (inputs 2,3,4 = C,M,N -> outputs 0,1,3).
    aliases = {}
    if donate_states:
        for in_idx, out_idx, arr in ((2, 0, c2), (3, 1, m2), (4, 3, n2)):
            if arr.dtype == jnp.dtype(state_dtype):
                aliases[in_idx] = out_idx

    # VMEM budget: double-buffered I/O + grid-invariant weights + gate temps.
    isz = lambda a: jnp.dtype(a.dtype).itemsize
    vmem_bytes = (
        2 * tm * (dff * isz(h2) + d_model * isz(z2))                  # H, Z in
        + 2 * tm * dff * (isz(c2) + isz(m2) + isz(n2))                # C,M,N in
        + 2 * tm * dff * (3 * jnp.dtype(state_dtype).itemsize
                          + jnp.dtype(h_dtype).itemsize)              # outputs
        + 2 * ((dff + d_model) * gate_cols * isz(W_h) + gate_cols * 4)  # W, b
        + 6 * tm * gate_cols * 4)                                     # gates/tmp
    vmem_limit = int(min(max(vmem_bytes, 32 * 2**20), vmem_cap))

    kernel = functools.partial(_lstm_cell_kernel, dff=dff,
                               approx_recip=approx_reciprocal)

    c_t, m_t, h_t, n_t = pl.pallas_call(
        kernel,
        out_shape=out_shape,
        grid_spec=pltpu.PrefetchScalarGridSpec(
            num_scalar_prefetch=0,
            grid=grid,
            in_specs=[row_spec(dff),                  # H_prev
                      row_spec(d_model),              # Z
                      row_spec(dff),                  # C_prev
                      row_spec(dff),                  # M_prev
                      row_spec(dff),                  # N_prev
                      const_spec(dff, gate_cols),     # W_h
                      const_spec(d_model, gate_cols),  # W_z
                      const_spec(1, gate_cols)],      # b
            out_specs=[row_spec(dff)] * 4,
        ),
        input_output_aliases=aliases,
        compiler_params=pltpu.CompilerParams(
            dimension_semantics=("parallel",),
            vmem_limit_bytes=vmem_limit),
    )(h2, z2, c2, m2, n2, W_h, W_z, b)

    unflat = lambda a: a.reshape(B, patch_size, dff)
    return unflat(c_t), unflat(m_t), unflat(h_t), unflat(n_t)


def _reference(Zi, Ci, Mi, Hi, Ni, W_h, W_z, b, *, patch_size, d_model, dff,
               matmul_dtype=jnp.float32):
    """Pure-JAX reference of the PyTorch forward.

    matmul_dtype=jnp.bfloat16 mirrors the kernel's bf16 MXU operands while all
    accumulation and elementwise math stays f32.
    """
    Zi = Zi.reshape(-1, patch_size, d_model)
    Ci = Ci.reshape(-1, patch_size, dff)
    Mi = Mi.reshape(-1, patch_size, dff)
    Hi = Hi.reshape(-1, patch_size, dff)
    Ni = Ni.reshape(-1, patch_size, dff)
    q = lambda a: a.astype(matmul_dtype).astype(jnp.float32)
    gates = (jnp.einsum("bpd,df->bpf", q(Hi), q(W_h),
                        preferred_element_type=jnp.float32)
             + jnp.einsum("bpd,df->bpf", q(Zi), q(W_z),
                          preferred_element_type=jnp.float32)
             + b.reshape(-1))
    i_tilde = gates[..., 0 * dff:1 * dff]
    f_tilde = gates[..., 1 * dff:2 * dff]
    o_tilde = gates[..., 2 * dff:3 * dff]
    z_tilde = gates[..., 3 * dff:4 * dff]
    m_t = jnp.maximum(f_tilde + Mi, i_tilde)
    i_t = jnp.exp(i_tilde - m_t)
    f_t = jnp.exp(f_tilde + Mi - m_t)
    o_t = jax.nn.sigmoid(o_tilde)
    n_t = f_t * Ni + i_t
    z_t = jnp.tanh(z_tilde)
    c_t = Ci * f_t + z_t * i_t
    h_t = o_t * (c_t / n_t)
    return c_t, m_t, h_t, n_t


if __name__ == "__main__":
    batch = 8
    patch_size = 128
    d_model = 64
    dff = 256

    key = jax.random.PRNGKey(0)
    ks = jax.random.split(key, 24)

    # The 8 nn.Linear layers in PyTorch (out_features, in_features) layout.
    w_gates = tuple(0.05 * jax.random.normal(ks[i], (dff, dff), jnp.float32)
                    for i in range(4))                       # WI, WF, WO, WZ
    r_gates = tuple(0.05 * jax.random.normal(ks[4 + i], (dff, d_model),
                                             jnp.float32) for i in range(4))
    wb_gates = tuple(0.01 * jax.random.normal(ks[8 + i], (dff,), jnp.float32)
                     for i in range(4))
    rb_gates = tuple(0.01 * jax.random.normal(ks[12 + i], (dff,), jnp.float32)
                     for i in range(4))

    # Pack ONCE at init time (bf16 for the kernel, f32 copy for the reference).
    W_h, W_z, b = pack_params(w_gates, r_gates, wb_gates, rb_gates)
    W_h32, W_z32, _ = pack_params(w_gates, r_gates, wb_gates, rb_gates,
                                  weight_dtype=jnp.float32)

    # Deterministic inputs / states.
    Zi = jax.random.normal(ks[16], (batch, patch_size, d_model), jnp.float32)
    Ci = jax.random.normal(ks[17], (batch, patch_size, dff), jnp.float32)
    Mi = jax.random.normal(ks[18], (batch, patch_size, dff), jnp.float32)
    Hi = jax.random.normal(ks[19], (batch, patch_size, dff), jnp.float32)
    Ni = jnp.abs(jax.random.normal(ks[20], (batch, patch_size, dff),
                                   jnp.float32)) + 1.0       # N stays positive

    run = jax.jit(functools.partial(custom_lstm_cell, patch_size=patch_size,
                                    d_model=d_model, dff=dff))
    C_t, M_t, H_t, N_t = run(Zi, Ci, Mi, Hi, Ni, W_h, W_z, b)
    jax.block_until_ready((C_t, M_t, H_t, N_t))

    # (1) Tight check vs a bf16-operand reference (same matmul rounding).
    rC, rM, rH, rN = _reference(Zi, Ci, Mi, Hi, Ni, W_h32, W_z32, b,
                                patch_size=patch_size, d_model=d_model,
                                dff=dff, matmul_dtype=jnp.bfloat16)
    assert jnp.allclose(C_t, rC, atol=2e-3, rtol=2e-3), "C_t mismatch (bf16 ref)"
    assert jnp.allclose(M_t, rM, atol=2e-3, rtol=2e-3), "M_t mismatch (bf16 ref)"
    assert jnp.allclose(N_t, rN, atol=2e-3, rtol=2e-3), "N_t mismatch (bf16 ref)"
    assert jnp.allclose(H_t.astype(jnp.float32), rH, atol=2e-2, rtol=2e-2), \
        "H_t mismatch (bf16 ref)"

    # (2) Documented error vs the exact f32 PyTorch numerics: the bf16 MXU
    #     operands bound the error at roughly 1e-2 absolute on these scales;
    #     assert a generous 1e-1 envelope.
    fC, fM, fH, fN = _reference(Zi, Ci, Mi, Hi, Ni, W_h32, W_z32, b,
                                patch_size=patch_size, d_model=d_model,
                                dff=dff, matmul_dtype=jnp.float32)
    for got, want, name in ((C_t, fC, "C_t"), (M_t, fM, "M_t"),
                            (N_t, fN, "N_t"),
                            (H_t.astype(jnp.float32), fH, "H_t")):
        assert jnp.allclose(got, want, atol=1e-1, rtol=1e-1), \
            f"{name} mismatch (f32 ref)"

    # (3) Parity mode for long recurrent rollouts: exact divide + f32 H_t.
    run_parity = jax.jit(functools.partial(custom_lstm_cell,
                                           patch_size=patch_size,
                                           d_model=d_model, dff=dff,
                                           h_dtype=jnp.float32,
                                           approx_reciprocal=False))
    _, _, H_px, _ = run_parity(Zi, Ci, Mi, Hi, Ni, W_h, W_z, b)
    jax.block_until_ready(H_px)
    assert jnp.allclose(H_px, rH, atol=5e-3, rtol=5e-3), "H_t mismatch (parity)"

    # TODO(synk): validate the reduced-precision state path (state_dtype=bf16 +
    # donate_states=True) over multi-timestep rollouts before enabling it.

    print("KERNEL_OK")
</pallas_src>

<mosaic_0001>
module attributes {stable_mosaic.version = 11 : i64} {
  func.func @_lstm_cell_kernel(%arg0: i32, %arg1: memref<512x256xf32, #tpu.memory_space<vmem>>, %arg2: memref<512x64xf32, #tpu.memory_space<vmem>>, %arg3: memref<512x256xf32, #tpu.memory_space<vmem>>, %arg4: memref<512x256xf32, #tpu.memory_space<vmem>>, %arg5: memref<512x256xf32, #tpu.memory_space<vmem>>, %arg6: memref<256x1024xbf16, #tpu.memory_space<vmem>>, %arg7: memref<64x1024xbf16, #tpu.memory_space<vmem>>, %arg8: memref<1x1024xf32, #tpu.memory_space<vmem>>, %arg9: memref<512x256xf32, #tpu.memory_space<vmem>>, %arg10: memref<512x256xf32, #tpu.memory_space<vmem>>, %arg11: memref<512x256xbf16, #tpu.memory_space<vmem>>, %arg12: memref<512x256xf32, #tpu.memory_space<vmem>>) attributes {dimension_semantics = [#tpu.dimension_semantics<parallel>], iteration_bounds = array<i64: 2>, scalar_prefetch = 0 : i64, scratch_operands = 0 : i64, tpu.core_type = #tpu.core_type<tc>, window_params = [{transform_indices = @transform_0, window_bounds = array<i64: 512, 256>}, {transform_indices = @transform_1, window_bounds = array<i64: 512, 64>}, {transform_indices = @transform_2, window_bounds = array<i64: 512, 256>}, {transform_indices = @transform_3, window_bounds = array<i64: 512, 256>}, {transform_indices = @transform_4, window_bounds = array<i64: 512, 256>}, {pipeline_mode = #tpu.pipeline_mode<synchronous>, transform_indices = @transform_5, window_bounds = array<i64: 256, 1024>}, {pipeline_mode = #tpu.pipeline_mode<synchronous>, transform_indices = @transform_6, window_bounds = array<i64: 64, 1024>}, {pipeline_mode = #tpu.pipeline_mode<synchronous>, transform_indices = @transform_7, window_bounds = array<i64: 1, 1024>}, {transform_indices = @transform_8, window_bounds = array<i64: 512, 256>}, {transform_indices = @transform_9, window_bounds = array<i64: 512, 256>}, {transform_indices = @transform_10, window_bounds = array<i64: 512, 256>}, {transform_indices = @transform_11, window_bounds = array<i64: 512, 256>}]} {
    %c0 = arith.constant 0 : index
    %c0_0 = arith.constant 0 : index
    %0 = vector.load %arg1[%c0, %c0_0] : memref<512x256xf32, #tpu.memory_space<vmem>>, vector<512x256xf32>
    %1 = arith.truncf %0 : vector<512x256xf32> to vector<512x256xbf16>
    %c0_1 = arith.constant 0 : index
    %c0_2 = arith.constant 0 : index
    %2 = vector.load %arg6[%c0_1, %c0_2] : memref<256x1024xbf16, #tpu.memory_space<vmem>>, vector<256x1024xbf16>
    %cst = arith.constant dense<0.000000e+00> : vector<512x1024xf32>
    %3 = tpu.matmul %1, %2, %cst {dimension_numbers = #tpu.dot_dimension_numbers<[1], [0], [0], [1], [0, 0, 1, 1], [], []>} : vector<512x256xbf16>, vector<256x1024xbf16>, vector<512x1024xf32> -> vector<512x1024xf32>
    %c0_3 = arith.constant 0 : index
    %c0_4 = arith.constant 0 : index
    %4 = vector.load %arg2[%c0_3, %c0_4] : memref<512x64xf32, #tpu.memory_space<vmem>>, vector<512x64xf32>
    %5 = arith.truncf %4 : vector<512x64xf32> to vector<512x64xbf16>
    %c0_5 = arith.constant 0 : index
    %c0_6 = arith.constant 0 : index
    %6 = vector.load %arg7[%c0_5, %c0_6] : memref<64x1024xbf16, #tpu.memory_space<vmem>>, vector<64x1024xbf16>
    %cst_7 = arith.constant dense<0.000000e+00> : vector<512x1024xf32>
    %7 = tpu.matmul %5, %6, %cst_7 {dimension_numbers = #tpu.dot_dimension_numbers<[1], [0], [0], [1], [0, 0, 1, 1], [], []>} : vector<512x64xbf16>, vector<64x1024xbf16>, vector<512x1024xf32> -> vector<512x1024xf32>
    %8 = arith.addf %3, %7 : vector<512x1024xf32>
    %c0_8 = arith.constant 0 : index
    %c0_9 = arith.constant 0 : index
    %9 = vector.load %arg8[%c0_8, %c0_9] : memref<1x1024xf32, #tpu.memory_space<vmem>>, vector<1x1024xf32>
    %10 = vector.broadcast %9 : vector<1x1024xf32> to vector<512x1024xf32>
    %11 = arith.addf %8, %10 : vector<512x1024xf32>
    %12 = vector.extract_strided_slice %11 {offsets = [0, 0], sizes = [512, 256], strides = [1, 1]} : vector<512x1024xf32> to vector<512x256xf32>
    %13 = vector.extract_strided_slice %11 {offsets = [0, 256], sizes = [512, 256], strides = [1, 1]} : vector<512x1024xf32> to vector<512x256xf32>
    %c0_10 = arith.constant 0 : index
    %c0_11 = arith.constant 0 : index
    %14 = vector.load %arg4[%c0_10, %c0_11] : memref<512x256xf32, #tpu.memory_space<vmem>>, vector<512x256xf32>
    %15 = arith.addf %13, %14 : vector<512x256xf32>
    %16 = arith.maximumf %15, %12 : vector<512x256xf32>
    %c0_12 = arith.constant 0 : index
    %c0_13 = arith.constant 0 : index
    %17 = vector.load %arg10[%c0_12, %c0_13] : memref<512x256xf32, #tpu.memory_space<vmem>>, vector<512x256xf32>
    tpu.vector_store %arg10[%c0_12, %c0_13], %16 {strides = array<i32>} : memref<512x256xf32, #tpu.memory_space<vmem>>, vector<512x256xf32>,
    %18 = arith.subf %12, %16 : vector<512x256xf32>
    %19 = math.exp %18 : vector<512x256xf32>
    %20 = arith.subf %15, %16 : vector<512x256xf32>
    %21 = math.exp %20 : vector<512x256xf32>
    %c0_14 = arith.constant 0 : index
    %c0_15 = arith.constant 0 : index
    %22 = vector.load %arg5[%c0_14, %c0_15] : memref<512x256xf32, #tpu.memory_space<vmem>>, vector<512x256xf32>
    %23 = arith.mulf %21, %22 : vector<512x256xf32>
    %24 = arith.addf %23, %19 : vector<512x256xf32>
    %c0_16 = arith.constant 0 : index
    %c0_17 = arith.constant 0 : index
    %25 = vector.load %arg12[%c0_16, %c0_17] : memref<512x256xf32, #tpu.memory_space<vmem>>, vector<512x256xf32>
    tpu.vector_store %arg12[%c0_16, %c0_17], %24 {strides = array<i32>} : memref<512x256xf32, #tpu.memory_space<vmem>>, vector<512x256xf32>,
    %26 = vector.extract_strided_slice %11 {offsets = [0, 768], sizes = [512, 256], strides = [1, 1]} : vector<512x1024xf32> to vector<512x256xf32>
    %27 = math.tanh %26 : vector<512x256xf32>
    %c0_18 = arith.constant 0 : index
    %c0_19 = arith.constant 0 : index
    %28 = vector.load %arg3[%c0_18, %c0_19] : memref<512x256xf32, #tpu.memory_space<vmem>>, vector<512x256xf32>
    %29 = arith.mulf %28, %21 : vector<512x256xf32>
    %30 = arith.mulf %27, %19 : vector<512x256xf32>
    %31 = arith.addf %29, %30 : vector<512x256xf32>
    %c0_20 = arith.constant 0 : index
    %c0_21 = arith.constant 0 : index
    %32 = vector.load %arg9[%c0_20, %c0_21] : memref<512x256xf32, #tpu.memory_space<vmem>>, vector<512x256xf32>
    tpu.vector_store %arg9[%c0_20, %c0_21], %31 {strides = array<i32>} : memref<512x256xf32, #tpu.memory_space<vmem>>, vector<512x256xf32>,
    %33 = vector.extract_strided_slice %11 {offsets = [0, 512], sizes = [512, 256], strides = [1, 1]} : vector<512x1024xf32> to vector<512x256xf32>
    %cst_22 = arith.constant 5.000000e-01 : f32
    %34 = vector.broadcast %cst_22 : f32 to vector<512x256xf32>
    %35 = arith.mulf %34, %33 : vector<512x256xf32>
    %36 = math.tanh %35 : vector<512x256xf32>
    %cst_23 = arith.constant 1.000000e+00 : f32
    %37 = vector.broadcast %cst_23 : f32 to vector<512x256xf32>
    %38 = arith.addf %36, %37 : vector<512x256xf32>
    %cst_24 = arith.constant 5.000000e-01 : f32
    %39 = vector.broadcast %cst_24 : f32 to vector<512x256xf32>
    %40 = arith.mulf %39, %38 : vector<512x256xf32>
    %41 = tpu.reciprocal %24 {approx = true} : vector<512x256xf32> -> vector<512x256xf32>
    %42 = arith.mulf %31, %41 : vector<512x256xf32>
    %43 = arith.mulf %40, %42 : vector<512x256xf32>
    %44 = arith.truncf %43 : vector<512x256xf32> to vector<512x256xbf16>
    %c0_25 = arith.constant 0 : index
    %c0_26 = arith.constant 0 : index
    %45 = vector.load %arg11[%c0_25, %c0_26] : memref<512x256xbf16, #tpu.memory_space<vmem>>, vector<512x256xbf16>
    tpu.vector_store %arg11[%c0_25, %c0_26], %44 {strides = array<i32>} : memref<512x256xbf16, #tpu.memory_space<vmem>>, vector<512x256xbf16>,
    return
  }
  func.func @transform_0(%arg0: i32) -> (i32, i32) {
    %c0_i32 = arith.constant 0 : i32
    %c0_i32_0 = arith.constant 0 : i32
    return %arg0, %c0_i32 : i32, i32
  }
  func.func @transform_1(%arg0: i32) -> (i32, i32) {
    %c0_i32 = arith.constant 0 : i32
    %c0_i32_0 = arith.constant 0 : i32
    return %arg0, %c0_i32 : i32, i32
  }
  func.func @transform_2(%arg0: i32) -> (i32, i32) {
    %c0_i32 = arith.constant 0 : i32
    %c0_i32_0 = arith.constant 0 : i32
    return %arg0, %c0_i32 : i32, i32
  }
  func.func @transform_3(%arg0: i32) -> (i32, i32) {
    %c0_i32 = arith.constant 0 : i32
    %c0_i32_0 = arith.constant 0 : i32
    return %arg0, %c0_i32 : i32, i32
  }
  func.func @transform_4(%arg0: i32) -> (i32, i32) {
    %c0_i32 = arith.constant 0 : i32
    %c0_i32_0 = arith.constant 0 : i32
    return %arg0, %c0_i32 : i32, i32
  }
  func.func @transform_5(%arg0: i32) -> (i32, i32) {
    %c0_i32 = arith.constant 0 : i32
    %c0_i32_0 = arith.constant 0 : i32
    %c0_i32_1 = arith.constant 0 : i32
    return %c0_i32, %c0_i32_0 : i32, i32
  }
  func.func @transform_6(%arg0: i32) -> (i32, i32) {
    %c0_i32 = arith.constant 0 : i32
    %c0_i32_0 = arith.constant 0 : i32
    %c0_i32_1 = arith.constant 0 : i32
    return %c0_i32, %c0_i32_0 : i32, i32
  }
  func.func @transform_7(%arg0: i32) -> (i32, i32) {
    %c0_i32 = arith.constant 0 : i32
    %c0_i32_0 = arith.constant 0 : i32
    %c0_i32_1 = arith.constant 0 : i32
    return %c0_i32, %c0_i32_0 : i32, i32
  }
  func.func @transform_8(%arg0: i32) -> (i32, i32) {
    %c0_i32 = arith.constant 0 : i32
    %c0_i32_0 = arith.constant 0 : i32
    return %arg0, %c0_i32 : i32, i32
  }
  func.func @transform_9(%arg0: i32) -> (i32, i32) {
    %c0_i32 = arith.constant 0 : i32
    %c0_i32_0 = arith.constant 0 : i32
    return %arg0, %c0_i32 : i32, i32
  }
  func.func @transform_10(%arg0: i32) -> (i32, i32) {
    %c0_i32 = arith.constant 0 : i32
    %c0_i32_0 = arith.constant 0 : i32
    return %arg0, %c0_i32 : i32, i32
  }
  func.func @transform_11(%arg0: i32) -> (i32, i32) {
    %c0_i32 = arith.constant 0 : i32
    %c0_i32_0 = arith.constant 0 : i32
    return %arg0, %c0_i32 : i32, i32
  }
}

</mosaic_0001>

<llo_original>
// kernel: custom_lstm_cell.1
$region0: #{custom_lstm_cell.1}
  #allocation0 [shape = 'u32[]', space=smem, size = 0x4, offset = 0x4, fixed_abs, tag = 'smem constant byte address 0x4 - core index']
  #allocation1 [shape = 'u32[144,128]{1,0:T(1,128)}', space=vmem, size = 0x12000, scoped, tag = 'internal scratch']
  %s0 = inlined_call_operand.hbm [shape: f32[1024,256], index: 0, kind: input, shape index: {}]
  %s1 = inlined_call_operand.vmem [shape: f32[1024,64], index: 1, kind: input, shape index: {}]
  %s2 = inlined_call_operand.hbm [shape: f32[1024,256], index: 2, kind: input, shape index: {}]
  %s3 = inlined_call_operand.hbm [shape: f32[1024,256], index: 3, kind: input, shape index: {}]
  %s4 = inlined_call_operand.hbm [shape: f32[1024,256], index: 4, kind: input, shape index: {}]
  %s5 = inlined_call_operand.vmem [shape: bf16[256,1024], index: 5, kind: input, shape index: {}]
  %s6 = inlined_call_operand.vmem [shape: bf16[64,1024], index: 6, kind: input, shape index: {}]
  %s7 = inlined_call_operand.vmem [shape: f32[1,1024], index: 7, kind: input, shape index: {}]
  %s8 = inlined_call_operand.hbm [shape: f32[1024,256], index: 8, kind: output, shape index: {0}]
  %s9 = inlined_call_operand.hbm [shape: f32[1024,256], index: 9, kind: output, shape index: {1}]
  %s10 = inlined_call_operand.hbm [shape: bf16[1024,256], index: 10, kind: output, shape index: {2}]
  %s11 = inlined_call_operand.hbm [shape: f32[1024,256], index: 11, kind: output, shape index: {3}]
  %12 = xla_tuple %s8, %s9, %s10, %s11
  %s13 = sld [smem:[#allocation0]]
  $region105: #{custom_lstm_cell.1} parent=0
    _
  %s15 = ssub.s32 1, %s13
  %s16 = scalar_select 0, %s15, %s13
  $region1: #{custom_lstm_cell.1} parent=0
    #allocation2 [shape = 'u8[1048576]{0}', space=vmem, size = 0x100000, scoped, tag = 'input window, operand 0']
    #allocation3 [shape = 's32[2]{0}', space=sflag, size = 0x8, scoped, tag = 'scoped memory for custom_lstm_cell.1']
    #allocation4 [shape = 's32[2]{0}', space=sflag, size = 0x8, scoped, tag = 'scoped memory for custom_lstm_cell.1']
    #allocation5 [shape = 'u8[1048576]{0}', space=vmem, size = 0x100000, scoped, tag = 'input window, operand 2']
    #allocation6 [shape = 's32[2]{0}', space=sflag, size = 0x8, scoped, tag = 'scoped memory for custom_lstm_cell.1']
    #allocation7 [shape = 'u8[1048576]{0}', space=vmem, size = 0x100000, scoped, tag = 'input window, operand 3']
    #allocation8 [shape = 'u8[1048576]{0}', space=vmem, size = 0x100000, scoped, tag = 'input window, operand 4']
    #allocation9 [shape = 's32[2]{0}', space=sflag, size = 0x8, scoped, tag = 'scoped memory for custom_lstm_cell.1']
    #allocation10 [shape = 'u8[1048576]{0}', space=vmem, size = 0x100000, scoped, tag = 'output window, operand 0']
    #allocation11 [shape = 'u8[1048576]{0}', space=vmem, size = 0x100000, scoped, tag = 'output window, operand 1']
    #allocation12 [shape = 's32[2]{0}', space=sflag, size = 0x8, scoped, tag = 'scoped memory for custom_lstm_cell.1']
    #allocation13 [shape = 'u8[524288]{0}', space=vmem, size = 0x80000, scoped, tag = 'output window, operand 2']
    #allocation14 [shape = 'u8[1048576]{0}', space=vmem, size = 0x100000, scoped, tag = 'output window, operand 3']
    #allocation15 [shape = 's32[2]{0}', space=sflag, size = 0x8, scoped, tag = 'scoped memory for custom_lstm_cell.1']
    %17 = vsyncpa [#allocation3], 0
    %s18 = scalar_lea.sflag [#allocation3], 1
    %19 = vsyncpa %s18, 0
    %20 = vsyncpa [#allocation6], 0
    %s21 = scalar_lea.sflag [#allocation6], 1
    %22 = vsyncpa %s21, 0
    %23 = vsyncpa [#allocation9], 0
    %s24 = scalar_lea.sflag [#allocation9], 1
    %25 = vsyncpa %s24, 0
    %26 = vsyncpa [#allocation4], 0
    %s27 = scalar_lea.sflag [#allocation4], 1
    %28 = vsyncpa %s27, 0
    %29 = vsyncpa [#allocation12], 0
    %s30 = scalar_lea.sflag [#allocation12], 1
    %31 = vsyncpa %s30, 0
    %32 = vsyncpa [#allocation15], 0
    %s33 = scalar_lea.sflag [#allocation15], 1
    %34 = vsyncpa %s33, 0
    loop: start=0, step=1, limit=4
    $region2: #{custom_lstm_cell.1} parent=1 // loop_pre_header
      _
    $region3: #{custom_lstm_cell.1} parent=1 // loop_header
      %s36 = sphi 0, %s40
      %p37 = scmp.ge.s32.totalorder %s36, 4
      %s46 = sphi 0, %s48
      %s49 = sphi 0, %s46
      %s50 = sphi 0, %s49
      %s66 = sphi 0, %s50
      %s72 = sphi 0, %s74
      %s75 = sphi 0, %s72
      %s76 = sphi 0, %s75
      %s92 = sphi 0, %s76
      %s98 = sphi 0, %s100
      %s101 = sphi 0, %s98
      %s102 = sphi 0, %s101
      %s118 = sphi 0, %s102
      %s124 = sphi 0, %s126
      %s127 = sphi 0, %s124
      %s128 = sphi 0, %s127
      %s144 = sphi 0, %s128
      %s150 = sphi 0, %s152
      %s153 = sphi 0, %s150
      %s154 = sphi 0, %s153
      %s170 = sphi 0, %s154
      %s174 = sphi 0, %s174
      %s176 = sphi 0, %s174
      %s177 = sphi 0, %s176
      %s191 = sphi 0, %s177
      %s195 = sphi 0, %s195
      %s197 = sphi 0, %s195
      %s198 = sphi 0, %s197
      %s212 = sphi 0, %s198
      %s216 = sphi 0, %s216
      %s218 = sphi 0, %s216
      %s219 = sphi 0, %s218
      %s233 = sphi 0, %s219
      %s239 = sphi 0, %s241
      %s242 = sphi 0, %s239
      %s243 = sphi 0, %s242
      %s259 = sphi 0, %s243
      %s265 = sphi 0, %s267
      %s268 = sphi 0, %s265
      %s269 = sphi 0, %s268
      %s285 = sphi 0, %s269
      %s291 = sphi 0, %s293
      %s294 = sphi 0, %s291
      %s295 = sphi 0, %s294
      %s311 = sphi 0, %s295
      %s317 = sphi 0, %s319
      %s320 = sphi 0, %s317
      %s321 = sphi 0, %s320
      %s337 = sphi 0, %s321
    $region4: #{custom_lstm_cell.1} parent=1 // loop_header_branch
      %39 = sbr.rel (%p37) target = $region8
    $region5: #{custom_lstm_cell.1} parent=1 // loop_body
      %s41 = ssub.s32 %s36, 1
      %s42 = ssub.s32 %s36, 2
      %s43 = sadd.s32 %s36, 1
      %s44 = ssub.s32 %s36, %s43
      %p45 = scmp.eq.s32.totalorder %s44, 0
      %s47 = sadd.s32 %s46, 1
      %s48 = scalar_select %p45, %s46, %s47
      %p51 = pneg %p45
      %p52 = scmp.eq.s32.totalorder %s36, 1
      %p53 = por %p51, %p52
      %p54 = scmp.ne.s32.totalorder %s46, %s49
      %p55 = scmp.eq.s32.totalorder %s36, 0
      %p56 = por %p54, %p55
      %p57 = scmp.ne.s32.totalorder %s46, %s49
      %p58 = scmp.eq.s32.totalorder %s41, 1
      %p59 = por %p57, %p58
      %p60 = scmp.ne.s32.totalorder %s49, %s50
      %p61 = scmp.eq.s32.totalorder %s41, 0
      %p62 = por %p60, %p61
      %p63 = scmp.ne.s32.totalorder %s49, %s50
      %p64 = scmp.eq.s32.totalorder %s42, 1
      %p65 = por %p63, %p64
      %p67 = scmp.ne.s32.totalorder %s50, %s66
      %p68 = scmp.eq.s32.totalorder %s42, 0
      %p69 = por %p67, %p68
      %s70 = ssub.s32 %s36, %s43
      %p71 = scmp.eq.s32.totalorder %s70, 0
      %s73 = sadd.s32 %s72, 1
      %s74 = scalar_select %p71, %s72, %s73
      %p77 = pneg %p71
      %p78 = scmp.eq.s32.totalorder %s36, 1
      %p79 = por %p77, %p78
      %p80 = scmp.ne.s32.totalorder %s72, %s75
      %p81 = scmp.eq.s32.totalorder %s36, 0
      %p82 = por %p80, %p81
      %p83 = scmp.ne.s32.totalorder %s72, %s75
      %p84 = scmp.eq.s32.totalorder %s41, 1
      %p85 = por %p83, %p84
      %p86 = scmp.ne.s32.totalorder %s75, %s76
      %p87 = scmp.eq.s32.totalorder %s41, 0
      %p88 = por %p86, %p87
      %p89 = scmp.ne.s32.totalorder %s75, %s76
      %p90 = scmp.eq.s32.totalorder %s42, 1
      %p91 = por %p89, %p90
      %p93 = scmp.ne.s32.totalorder %s76, %s92
      %p94 = scmp.eq.s32.totalorder %s42, 0
      %p95 = por %p93, %p94
      %s96 = ssub.s32 %s36, %s43
      %p97 = scmp.eq.s32.totalorder %s96, 0
      %s99 = sadd.s32 %s98, 1
      %s100 = scalar_select %p97, %s98, %s99
      %p103 = pneg %p97
      %p104 = scmp.eq.s32.totalorder %s36, 1
      %p105 = por %p103, %p104
      %p106 = scmp.ne.s32.totalorder %s98, %s101
      %p107 = scmp.eq.s32.totalorder %s36, 0
      %p108 = por %p106, %p107
      %p109 = scmp.ne.s32.totalorder %s98, %s101
      %p110 = scmp.eq.s32.totalorder %s41, 1
      %p111 = por %p109, %p110
      %p112 = scmp.ne.s32.totalorder %s101, %s102
      %p113 = scmp.eq.s32.totalorder %s41, 0
      %p114 = por %p112, %p113
      %p115 = scmp.ne.s32.totalorder %s101, %s102
      %p116 = scmp.eq.s32.totalorder %s42, 1
      %p117 = por %p115, %p116
      %p119 = scmp.ne.s32.totalorder %s102, %s118
      %p120 = scmp.eq.s32.totalorder %s42, 0
      %p121 = por %p119, %p120
      %s122 = ssub.s32 %s36, %s43
      %p123 = scmp.eq.s32.totalorder %s122, 0
      %s125 = sadd.s32 %s124, 1
      %s126 = scalar_select %p123, %s124, %s125
      %p129 = pneg %p123
      %p130 = scmp.eq.s32.totalorder %s36, 1
      %p131 = por %p129, %p130
      %p132 = scmp.ne.s32.totalorder %s124, %s127
      %p133 = scmp.eq.s32.totalorder %s36, 0
      %p134 = por %p132, %p133
      %p135 = scmp.ne.s32.totalorder %s124, %s127
      %p136 = scmp.eq.s32.totalorder %s41, 1
      %p137 = por %p135, %p136
      %p138 = scmp.ne.s32.totalorder %s127, %s128
      %p139 = scmp.eq.s32.totalorder %s41, 0
      %p140 = por %p138, %p139
      %p141 = scmp.ne.s32.totalorder %s127, %s128
      %p142 = scmp.eq.s32.totalorder %s42, 1
      %p143 = por %p141, %p142
      %p145 = scmp.ne.s32.totalorder %s128, %s144
      %p146 = scmp.eq.s32.totalorder %s42, 0
      %p147 = por %p145, %p146
      %s148 = ssub.s32 %s36, %s43
      %p149 = scmp.eq.s32.totalorder %s148, 0
      %s151 = sadd.s32 %s150, 1
      %s152 = scalar_select %p149, %s150, %s151
      %p155 = pneg %p149
      %p156 = scmp.eq.s32.totalorder %s36, 1
      %p157 = por %p155, %p156
      %p158 = scmp.ne.s32.totalorder %s150, %s153
      %p159 = scmp.eq.s32.totalorder %s36, 0
      %p160 = por %p158, %p159
      %p161 = scmp.ne.s32.totalorder %s150, %s153
      %p162 = scmp.eq.s32.totalorder %s41, 1
      %p163 = por %p161, %p162
      %p164 = scmp.ne.s32.totalorder %s153, %s154
      %p165 = scmp.eq.s32.totalorder %s41, 0
      %p166 = por %p164, %p165
      %p167 = scmp.ne.s32.totalorder %s153, %s154
      %p168 = scmp.eq.s32.totalorder %s42, 1
      %p169 = por %p167, %p168
      %p171 = scmp.ne.s32.totalorder %s154, %s170
      %p172 = scmp.eq.s32.totalorder %s42, 0
      %p173 = por %p171, %p172
      %s175 = sadd.s32 %s174, 1
      %p178 = scmp.eq.s32.totalorder %s36, 1
      %p179 = scmp.ne.s32.totalorder %s174, %s176
      %p180 = scmp.eq.s32.totalorder %s36, 0
      %p181 = por %p179, %p180
      %p182 = scmp.ne.s32.totalorder %s174, %s176
      %p183 = scmp.eq.s32.totalorder %s41, 1
      %p184 = por %p182, %p183
      %p185 = scmp.ne.s32.totalorder %s176, %s177
      %p186 = scmp.eq.s32.totalorder %s41, 0
      %p187 = por %p185, %p186
      %p188 = scmp.ne.s32.totalorder %s176, %s177
      %p189 = scmp.eq.s32.totalorder %s42, 1
      %p190 = por %p188, %p189
      %p192 = scmp.ne.s32.totalorder %s177, %s191
      %p193 = scmp.eq.s32.totalorder %s42, 0
      %p194 = por %p192, %p193
      %s196 = sadd.s32 %s195, 1
      %p199 = scmp.eq.s32.totalorder %s36, 1
      %p200 = scmp.ne.s32.totalorder %s195, %s197
      %p201 = scmp.eq.s32.totalorder %s36, 0
      %p202 = por %p200, %p201
      %p203 = scmp.ne.s32.totalorder %s195, %s197
      %p204 = scmp.eq.s32.totalorder %s41, 1
      %p205 = por %p203, %p204
      %p206 = scmp.ne.s32.totalorder %s197, %s198
      %p207 = scmp.eq.s32.totalorder %s41, 0
      %p208 = por %p206, %p207
      %p209 = scmp.ne.s32.totalorder %s197, %s198
      %p210 = scmp.eq.s32.totalorder %s42, 1
      %p211 = por %p209, %p210
      %p213 = scmp.ne.s32.totalorder %s198, %s212
      %p214 = scmp.eq.s32.totalorder %s42, 0
      %p215 = por %p213, %p214
      %s217 = sadd.s32 %s216, 1
      %p220 = scmp.eq.s32.totalorder %s36, 1
      %p221 = scmp.ne.s32.totalorder %s216, %s218
      %p222 = scmp.eq.s32.totalorder %s36, 0
      %p223 = por %p221, %p222
      %p224 = scmp.ne.s32.totalorder %s216, %s218
      %p225 = scmp.eq.s32.totalorder %s41, 1
      %p226 = por %p224, %p225
      %p227 = scmp.ne.s32.totalorder %s218, %s219
      %p228 = scmp.eq.s32.totalorder %s41, 0
      %p229 = por %p227, %p228
      %p230 = scmp.ne.s32.totalorder %s218, %s219
      %p231 = scmp.eq.s32.totalorder %s42, 1
      %p232 = por %p230, %p231
      %p234 = scmp.ne.s32.totalorder %s219, %s233
      %p235 = scmp.eq.s32.totalorder %s42, 0
      %p236 = por %p234, %p235
      %s237 = ssub.s32 %s36, %s43
      %p238 = scmp.eq.s32.totalorder %s237, 0
      %s240 = sadd.s32 %s239, 1
      %s241 = scalar_select %p238, %s239, %s240
      %p244 = pneg %p238
      %p245 = scmp.eq.s32.totalorder %s36, 1
      %p246 = por %p244, %p245
      %p247 = scmp.ne.s32.totalorder %s239, %s242
      %p248 = scmp.eq.s32.totalorder %s36, 0
      %p249 = por %p247, %p248
      %p250 = scmp.ne.s32.totalorder %s239, %s242
      %p251 = scmp.eq.s32.totalorder %s41, 1
      %p252 = por %p250, %p251
      %p253 = scmp.ne.s32.totalorder %s242, %s243
      %p254 = scmp.eq.s32.totalorder %s41, 0
      %p255 = por %p253, %p254
      %p256 = scmp.ne.s32.totalorder %s242, %s243
      %p257 = scmp.eq.s32.totalorder %s42, 1
      %p258 = por %p256, %p257
      %p260 = scmp.ne.s32.totalorder %s243, %s259
      %p261 = scmp.eq.s32.totalorder %s42, 0
      %p262 = por %p260, %p261
      %s263 = ssub.s32 %s36, %s43
      %p264 = scmp.eq.s32.totalorder %s263, 0
      %s266 = sadd.s32 %s265, 1
      %s267 = scalar_select %p264, %s265, %s266
      %p270 = pneg %p264
      %p271 = scmp.eq.s32.totalorder %s36, 1
      %p272 = por %p270, %p271
      %p273 = scmp.ne.s32.totalorder %s265, %s268
      %p274 = scmp.eq.s32.totalorder %s36, 0
      %p275 = por %p273, %p274
      %p276 = scmp.ne.s32.totalorder %s265, %s268
      %p277 = scmp.eq.s32.totalorder %s41, 1
      %p278 = por %p276, %p277
      %p279 = scmp.ne.s32.totalorder %s268, %s269
      %p280 = scmp.eq.s32.totalorder %s41, 0
      %p281 = por %p279, %p280
      %p282 = scmp.ne.s32.totalorder %s268, %s269
      %p283 = scmp.eq.s32.totalorder %s42, 1
      %p284 = por %p282, %p283
      %p286 = scmp.ne.s32.totalorder %s269, %s285
      %p287 = scmp.eq.s32.totalorder %s42, 0
      %p288 = por %p286, %p287
      %s289 = ssub.s32 %s36, %s43
      %p290 = scmp.eq.s32.totalorder %s289, 0
      %s292 = sadd.s32 %s291, 1
      %s293 = scalar_select %p290, %s291, %s292
      %p296 = pneg %p290
      %p297 = scmp.eq.s32.totalorder %s36, 1
      %p298 = por %p296, %p297
      %p299 = scmp.ne.s32.totalorder %s291, %s294
      %p300 = scmp.eq.s32.totalorder %s36, 0
      %p301 = por %p299, %p300
      %p302 = scmp.ne.s32.totalorder %s291, %s294
      %p303 = scmp.eq.s32.totalorder %s41, 1
      %p304 = por %p302, %p303
      %p305 = scmp.ne.s32.totalorder %s294, %s295
      %p306 = scmp.eq.s32.totalorder %s41, 0
      %p307 = por %p305, %p306
      %p308 = scmp.ne.s32.totalorder %s294, %s295
      %p309 = scmp.eq.s32.totalorder %s42, 1
      %p310 = por %p308, %p309
      %p312 = scmp.ne.s32.totalorder %s295, %s311
      %p313 = scmp.eq.s32.totalorder %s42, 0
      %p314 = por %p312, %p313
      %s315 = ssub.s32 %s36, %s43
      %p316 = scmp.eq.s32.totalorder %s315, 0
      %s318 = sadd.s32 %s317, 1
      %s319 = scalar_select %p316, %s317, %s318
      %p322 = pneg %p316
      %p323 = scmp.eq.s32.totalorder %s36, 1
      %p324 = por %p322, %p323
      %p325 = scmp.ne.s32.totalorder %s317, %s320
      %p326 = scmp.eq.s32.totalorder %s36, 0
      %p327 = por %p325, %p326
      %p328 = scmp.ne.s32.totalorder %s317, %s320
      %p329 = scmp.eq.s32.totalorder %s41, 1
      %p330 = por %p328, %p329
      %p331 = scmp.ne.s32.totalorder %s320, %s321
      %p332 = scmp.eq.s32.totalorder %s41, 0
      %p333 = por %p331, %p332
      %p334 = scmp.ne.s32.totalorder %s320, %s321
      %p335 = scmp.eq.s32.totalorder %s42, 1
      %p336 = por %p334, %p335
      %p338 = scmp.ne.s32.totalorder %s321, %s337
      %p339 = scmp.eq.s32.totalorder %s42, 0
      %p340 = por %p338, %p339
      %p341 = scmp.le.s32.totalorder 1, %s36
      %p342 = scmp.lt.s32.totalorder %s36, 3
      %p343 = pnand %p341, %p342
      %p344 = pneg %p343
      // Predicated region
      $region9: #{custom_lstm_cell.1} parent=5 // pred_check
        _
      $region10: #{custom_lstm_cell.1} parent=5 // pred_check_branch
        %346 = sbr.rel (%p343) target = $region12
      $region11: #{custom_lstm_cell.1} parent=5 // pred_region
        %s347 = ssub.s32 %s36, 1
        // Predicated region
        $region13: #{custom_lstm_cell.1} parent=11 // pred_check
          %p348 = pneg %p187
        $region14: #{custom_lstm_cell.1} parent=11 // pred_check_branch
          %350 = sbr.rel (%p348) target = $region16
        $region15: #{custom_lstm_cell.1} parent=11 // pred_region
          _
        $region16: #{custom_lstm_cell.1} parent=11 // pred_fallthru
          _
        // Predicated region
        $region17: #{custom_lstm_cell.1} parent=11 // pred_check
          %p351 = pneg %p208
        $region18: #{custom_lstm_cell.1} parent=11 // pred_check_branch
          %353 = sbr.rel (%p351) target = $region20
        $region19: #{custom_lstm_cell.1} parent=11 // pred_region
          _
        $region20: #{custom_lstm_cell.1} parent=11 // pred_fallthru
          _
        // Predicated region
        $region21: #{custom_lstm_cell.1} parent=11 // pred_check
          %p354 = pneg %p229
        $region22: #{custom_lstm_cell.1} parent=11 // pred_check_branch
          %356 = sbr.rel (%p354) target = $region24
        $region23: #{custom_lstm_cell.1} parent=11 // pred_region
          _
        $region24: #{custom_lstm_cell.1} parent=11 // pred_fallthru
          _
      $region12: #{custom_lstm_cell.1} parent=5 // pred_fallthru
        _
      %p357 = scmp.lt.s32.totalorder %s36, 2
      // Predicated region
      $region25: #{custom_lstm_cell.1} parent=5 // pred_check
        %p358 = pneg %p357
      $region26: #{custom_lstm_cell.1} parent=5 // pred_check_branch
        %360 = sbr.rel (%p358) target = $region28
      $region27: #{custom_lstm_cell.1} parent=5 // pred_region
        // Predicated region
        $region29: #{custom_lstm_cell.1} parent=27 // pred_check
          %p361 = pneg %p56
        $region30: #{custom_lstm_cell.1} parent=27 // pred_check_branch
          %363 = sbr.rel (%p361) target = $region32
        $region31: #{custom_lstm_cell.1} parent=27 // pred_region
          %s364 = sand.u32 %s46, 1
          %s365 = scalar_lea.sflag [#allocation3], %s364
          %s366 = sand.u32 %s46, 1
          %s367 = smul.addr %s366, 1024
          %s368 = scalar_lea.vmem [#allocation2], %s367
          %s369 = smul.u32 64, %s36
          %s371 = ssub.s32 16384, 16384
          %372 = vsyncadd %s365, %s371
          %s373 = smul.addr %s369, 2
          %s374 = smul.addr %s373, 128
          %s375 = scalar_lea.hbm %s0, %s374
          %s376 = sshll.u32 %s368, 4
          %s377 = int_to_ptr.vmem [resolvable:$true] %s376
          %382 = dma.hbm_to_vmem [thread:$0]  %s375, 16384, %s377, %s365, 256, 256, 16
        $region32: #{custom_lstm_cell.1} parent=27 // pred_fallthru
          _
        // Predicated region
        $region33: #{custom_lstm_cell.1} parent=27 // pred_check
          %p383 = pneg %p82
        $region34: #{custom_lstm_cell.1} parent=27 // pred_check_branch
          %385 = sbr.rel (%p383) target = $region36
        $region35: #{custom_lstm_cell.1} parent=27 // pred_region
          %s386 = smul.u32 64, %s36
          %p387 = scmp.lt.s32.totalorder %s386, 127
          %s388 = scalar_select %p387, %s386, 127
          %s389 = smul.addr %s388, 8
          %s390 = scalar_lea.vmem %s1, %s389
          %s391 = smul.u32 64, %s36
        $region36: #{custom_lstm_cell.1} parent=27 // pred_fallthru
          _
        // Predicated region
        $region37: #{custom_lstm_cell.1} parent=27 // pred_check
          %p392 = pneg %p108
        $region38: #{custom_lstm_cell.1} parent=27 // pred_check_branch
          %394 = sbr.rel (%p392) target = $region40
        $region39: #{custom_lstm_cell.1} parent=27 // pred_region
          %s395 = sand.u32 %s36, 1
          %s396 = scalar_lea.sflag [#allocation6], %s395
          %s397 = sand.u32 %s98, 1
          %s398 = smul.addr %s397, 1024
          %s399 = scalar_lea.vmem [#allocation5], %s398
          %s400 = smul.u32 64, %s36
          %s402 = ssub.s32 16384, 16384
          %403 = vsyncadd %s396, %s402
          %s404 = smul.addr %s400, 2
          %s405 = smul.addr %s404, 128
          %s406 = scalar_lea.hbm %s2, %s405
          %s407 = sshll.u32 %s399, 4
          %s408 = int_to_ptr.vmem [resolvable:$true] %s407
          %413 = dma.hbm_to_vmem [thread:$0]  %s406, 16384, %s408, %s396, 256, 256, 16
        $region40: #{custom_lstm_cell.1} parent=27 // pred_fallthru
          _
        // Predicated region
        $region41: #{custom_lstm_cell.1} parent=27 // pred_check
          %p414 = pneg %p134
        $region42: #{custom_lstm_cell.1} parent=27 // pred_check_branch
          %416 = sbr.rel (%p414) target = $region44
        $region43: #{custom_lstm_cell.1} parent=27 // pred_region
          %s417 = sand.u32 %s36, 1
          %s418 = scalar_lea.sflag [#allocation6], %s417
          %s419 = sand.u32 %s124, 1
          %s420 = smul.addr %s419, 1024
          %s421 = scalar_lea.vmem [#allocation7], %s420
          %s422 = smul.u32 64, %s36
          %s424 = ssub.s32 16384, 16384
          %425 = vsyncadd %s418, %s424
          %s426 = smul.addr %s422, 2
          %s427 = smul.addr %s426, 128
          %s428 = scalar_lea.hbm %s3, %s427
          %s429 = sshll.u32 %s421, 4
          %s430 = int_to_ptr.vmem [resolvable:$true] %s429
          %435 = dma.hbm_to_vmem [thread:$0]  %s428, 16384, %s430, %s418, 256, 256, 16
        $region44: #{custom_lstm_cell.1} parent=27 // pred_fallthru
          _
        // Predicated region
        $region45: #{custom_lstm_cell.1} parent=27 // pred_check
          %p436 = pneg %p160
        $region46: #{custom_lstm_cell.1} parent=27 // pred_check_branch
          %438 = sbr.rel (%p436) target = $region48
        $region47: #{custom_lstm_cell.1} parent=27 // pred_region
          %s439 = sand.u32 %s150, 1
          %s440 = scalar_lea.sflag [#allocation9], %s439
          %s441 = sand.u32 %s150, 1
          %s442 = smul.addr %s441, 1024
          %s443 = scalar_lea.vmem [#allocation8], %s442
          %s444 = smul.u32 64, %s36
          %s446 = ssub.s32 16384, 16384
          %447 = vsyncadd %s440, %s446
          %s448 = smul.addr %s444, 2
          %s449 = smul.addr %s448, 128
          %s450 = scalar_lea.hbm %s4, %s449
          %s451 = sshll.u32 %s443, 4
          %s452 = int_to_ptr.vmem [resolvable:$true] %s451
          %457 = dma.hbm_to_vmem [thread:$0]  %s450, 16384, %s452, %s440, 256, 256, 16
        $region48: #{custom_lstm_cell.1} parent=27 // pred_fallthru
          _
      $region28: #{custom_lstm_cell.1} parent=5 // pred_fallthru
        _
      %p458 = scmp.le.s32.totalorder 1, %s36
      %p459 = scmp.lt.s32.totalorder %s36, 3
      %p460 = pnand %p458, %p459
      %p461 = pneg %p460
      // Predicated region
      $region49: #{custom_lstm_cell.1} parent=5 // pred_check
        _
      $region50: #{custom_lstm_cell.1} parent=5 // pred_check_branch
        %463 = sbr.rel (%p460) target = $region52
      $region51: #{custom_lstm_cell.1} parent=5 // pred_region
        %s464 = ssub.s32 %s36, 1
        %s465 = sand.u32 %s49, 1
        %s466 = scalar_lea.sflag [#allocation3], %s465
        %s467 = sand.u32 %s49, 1
        %s468 = smul.addr %s467, 1024
        %s469 = scalar_lea.vmem [#allocation2], %s468
        // Predicated region
        $region53: #{custom_lstm_cell.1} parent=51 // pred_check
          %p470 = pneg %p62
        $region54: #{custom_lstm_cell.1} parent=51 // pred_check_branch
          %472 = sbr.rel (%p470) target = $region56
        $region55: #{custom_lstm_cell.1} parent=51 // pred_region
          %473 = dma.done %s466, 16384
        $region56: #{custom_lstm_cell.1} parent=51 // pred_fallthru
          _
        %s474 = sand.u32 %s41, 1
        %s475 = scalar_lea.sflag [#allocation6], %s474
        %s476 = sand.u32 %s101, 1
        %s477 = smul.addr %s476, 1024
        %s478 = scalar_lea.vmem [#allocation5], %s477
        // Predicated region
        $region57: #{custom_lstm_cell.1} parent=51 // pred_check
          %p479 = pneg %p114
        $region58: #{custom_lstm_cell.1} parent=51 // pred_check_branch
          %481 = sbr.rel (%p479) target = $region60
        $region59: #{custom_lstm_cell.1} parent=51 // pred_region
          %482 = dma.done %s475, 16384
        $region60: #{custom_lstm_cell.1} parent=51 // pred_fallthru
          _
        %s483 = sand.u32 %s41, 1
        %s484 = scalar_lea.sflag [#allocation6], %s483
        %s485 = sand.u32 %s127, 1
        %s486 = smul.addr %s485, 1024
        %s487 = scalar_lea.vmem [#allocation7], %s486
        // Predicated region
        $region61: #{custom_lstm_cell.1} parent=51 // pred_check
          %p488 = pneg %p140
        $region62: #{custom_lstm_cell.1} parent=51 // pred_check_branch
          %490 = sbr.rel (%p488) target = $region64
        $region63: #{custom_lstm_cell.1} parent=51 // pred_region
          %491 = dma.done %s484, 16384
        $region64: #{custom_lstm_cell.1} parent=51 // pred_fallthru
          _
        %s492 = sand.u32 %s153, 1
        %s493 = scalar_lea.sflag [#allocation9], %s492
        %s494 = sand.u32 %s153, 1
        %s495 = smul.addr %s494, 1024
        %s496 = scalar_lea.vmem [#allocation8], %s495
        // Predicated region
        $region65: #{custom_lstm_cell.1} parent=51 // pred_check
          %p497 = pneg %p166
        $region66: #{custom_lstm_cell.1} parent=51 // pred_check_branch
          %499 = sbr.rel (%p497) target = $region68
        $region67: #{custom_lstm_cell.1} parent=51 // pred_region
          %500 = dma.done %s493, 16384
        $region68: #{custom_lstm_cell.1} parent=51 // pred_fallthru
          _
        %s501 = sand.u32 %s49, 1
        %s502 = scalar_lea.sflag [#allocation3], %s501
        %s503 = sand.u32 %s49, 1
        %s504 = smul.addr %s503, 1024
        %s505 = scalar_lea.vmem [#allocation2], %s504
        %p506 = pneg %p62
        %p507 = pneg %p59
        %s508 = smul.u32 64, %s41
        %p509 = scmp.lt.s32.totalorder %s508, 127
        %s510 = scalar_select %p509, %s508, 127
        %s511 = smul.addr %s510, 8
        %s512 = scalar_lea.vmem %s1, %s511
        %p513 = pneg %p88
        %p514 = pneg %p85
        %s515 = sand.u32 %s41, 1
        %s516 = scalar_lea.sflag [#allocation6], %s515
        %s517 = sand.u32 %s101, 1
        %s518 = smul.addr %s517, 1024
        %s519 = scalar_lea.vmem [#allocation5], %s518
        %p520 = pneg %p114
        %p521 = pneg %p111
        %s522 = sand.u32 %s41, 1
        %s523 = scalar_lea.sflag [#allocation6], %s522
        %s524 = sand.u32 %s127, 1
        %s525 = smul.addr %s524, 1024
        %s526 = scalar_lea.vmem [#allocation7], %s525
        %p527 = pneg %p140
        %p528 = pneg %p137
        %s529 = sand.u32 %s153, 1
        %s530 = scalar_lea.sflag [#allocation9], %s529
        %s531 = sand.u32 %s153, 1
        %s532 = smul.addr %s531, 1024
        %s533 = scalar_lea.vmem [#allocation8], %s532
        %p534 = pneg %p166
        %p535 = pneg %p163
        %p536 = pneg %p187
        %p537 = pneg %p184
        %p538 = pneg %p208
        %p539 = pneg %p205
        %p540 = pneg %p229
        %p541 = pneg %p226
        %p542 = pneg %p255
        %p543 = pneg %p252
        %s544 = sand.u32 %s242, 1
        %s545 = scalar_lea.sflag [#allocation4], %s544
        %s546 = sand.u32 %s242, 1
        %s547 = smul.addr %s546, 1024
        %s548 = scalar_lea.vmem [#allocation10], %s547
        %p549 = pneg %p281
        %p550 = pneg %p278
        %s551 = sand.u32 %s41, 1
        %s552 = scalar_lea.sflag [#allocation12], %s551
        %s553 = sand.u32 %s268, 1
        %s554 = smul.addr %s553, 1024
        %s555 = scalar_lea.vmem [#allocation11], %s554
        %p556 = pneg %p307
        %p557 = pneg %p304
        %s558 = sand.u32 %s41, 1
        %s559 = scalar_lea.sflag [#allocation12], %s558
        %s560 = sand.u32 %s294, 1
        %s561 = smul.addr %s560, 512
        %s562 = scalar_lea.vmem [#allocation13], %s561
        %p563 = pneg %p333
        %p564 = pneg %p330
        %s565 = sand.u32 %s320, 1
        %s566 = scalar_lea.sflag [#allocation15], %s565
        %s567 = sand.u32 %s320, 1
        %s568 = smul.addr %s567, 1024
        %s569 = scalar_lea.vmem [#allocation14], %s568
        %s570 = smul.u32 64, %s41
        %s571 = smul.u32 64, %s41
        %p572 = scmp.lt.s32.totalorder %s571, 127
        %s573 = scalar_select %p572, %s571, 127
        %s574 = smul.addr %s573, 8
        %s575 = scalar_lea.vmem %s1, %s574
        %s576 = smul.u32 64, %s41
        %s577 = smul.u32 64, %s41
        %s578 = smul.u32 64, %s41
        %s579 = smul.u32 64, %s41
        %s580 = smul.u32 64, %s41
        %s581 = smul.u32 64, %s41
        %s582 = smul.u32 64, %s41
        %s583 = smul.u32 64, %s41
        %v585 = vld [vmem:[%s469] sm:$0xff]
        %v586 = vld [vmem:[%s469 + $0x8] sm:$0xff]
        %v587 = vld [vmem:[%s469 + $0x10] sm:$0xff]
        %v588 = vld [vmem:[%s469 + $0x18] sm:$0xff]
        %v589 = vld [vmem:[%s469 + $0x20] sm:$0xff]
        %v590 = vld [vmem:[%s469 + $0x28] sm:$0xff]
        %v591 = vld [vmem:[%s469 + $0x30] sm:$0xff]
        %v592 = vld [vmem:[%s469 + $0x38] sm:$0xff]
        %v593 = vld [vmem:[%s469 + $0x40] sm:$0xff]
        %v594 = vld [vmem:[%s469 + $0x48] sm:$0xff]
        %v595 = vld [vmem:[%s469 + $0x50] sm:$0xff]
        %v596 = vld [vmem:[%s469 + $0x58] sm:$0xff]
        %v597 = vld [vmem:[%s469 + $0x60] sm:$0xff]
        %v598 = vld [vmem:[%s469 + $0x68] sm:$0xff]
        %v599 = vld [vmem:[%s469 + $0x70] sm:$0xff]
        %v600 = vld [vmem:[%s469 + $0x78] sm:$0xff]
        %v601 = vld [vmem:[%s469 + $0x80] sm:$0xff]
        %v602 = vld [vmem:[%s469 + $0x88] sm:$0xff]
        %v603 = vld [vmem:[%s469 + $0x90] sm:$0xff]
        %v604 = vld [vmem:[%s469 + $0x98] sm:$0xff]
        %v605 = vld [vmem:[%s469 + $0xa0] sm:$0xff]
        %v606 = vld [vmem:[%s469 + $0xa8] sm:$0xff]
        %v607 = vld [vmem:[%s469 + $0xb0] sm:$0xff]
        %v608 = vld [vmem:[%s469 + $0xb8] sm:$0xff]
        %v609 = vld [vmem:[%s469 + $0xc0] sm:$0xff]
        %v610 = vld [vmem:[%s469 + $0xc8] sm:$0xff]
        %v611 = vld [vmem:[%s469 + $0xd0] sm:$0xff]
        %v612 = vld [vmem:[%s469 + $0xd8] sm:$0xff]
        %v613 = vld [vmem:[%s469 + $0xe0] sm:$0xff]
        %v614 = vld [vmem:[%s469 + $0xe8] sm:$0xff]
        %v615 = vld [vmem:[%s469 + $0xf0] sm:$0xff]
        %v616 = vld [vmem:[%s469 + $0xf8] sm:$0xff]
        %v617 = vld [vmem:[%s469 + $0x100] sm:$0xff]
        %v618 = vld [vmem:[%s469 + $0x108] sm:$0xff]
        %v619 = vld [vmem:[%s469 + $0x110] sm:$0xff]
        %v620 = vld [vmem:[%s469 + $0x118] sm:$0xff]
        %v621 = vld [vmem:[%s469 + $0x120] sm:$0xff]
        %v622 = vld [vmem:[%s469 + $0x128] sm:$0xff]
        %v623 = vld [vmem:[%s469 + $0x130] sm:$0xff]
        %v624 = vld [vmem:[%s469 + $0x138] sm:$0xff]
        %v625 = vld [vmem:[%s469 + $0x140] sm:$0xff]
        %v626 = vld [vmem:[%s469 + $0x148] sm:$0xff]
        %v627 = vld [vmem:[%s469 + $0x150] sm:$0xff]
        %v628 = vld [vmem:[%s469 + $0x158] sm:$0xff]
        %v629 = vld [vmem:[%s469 + $0x160] sm:$0xff]
        %v630 = vld [vmem:[%s469 + $0x168] sm:$0xff]
        %v631 = vld [vmem:[%s469 + $0x170] sm:$0xff]
        %v632 = vld [vmem:[%s469 + $0x178] sm:$0xff]
        %v633 = vld [vmem:[%s469 + $0x180] sm:$0xff]
        %v634 = vld [vmem:[%s469 + $0x188] sm:$0xff]
        %v635 = vld [vmem:[%s469 + $0x190] sm:$0xff]
        %v636 = vld [vmem:[%s469 + $0x198] sm:$0xff]
        %v637 = vld [vmem:[%s469 + $0x1a0] sm:$0xff]
        %v638 = vld [vmem:[%s469 + $0x1a8] sm:$0xff]
        %v639 = vld [vmem:[%s469 + $0x1b0] sm:$0xff]
        %v640 = vld [vmem:[%s469 + $0x1b8] sm:$0xff]
        %v641 = vld [vmem:[%s469 + $0x1c0] sm:$0xff]
        %v642 = vld [vmem:[%s469 + $0x1c8] sm:$0xff]
        %v643 = vld [vmem:[%s469 + $0x1d0] sm:$0xff]
        %v644 = vld [vmem:[%s469 + $0x1d8] sm:$0xff]
        %v645 = vld [vmem:[%s469 + $0x1e0] sm:$0xff]
        %v646 = vld [vmem:[%s469 + $0x1e8] sm:$0xff]
        %v647 = vld [vmem:[%s469 + $0x1f0] sm:$0xff]
        %v648 = vld [vmem:[%s469 + $0x1f8] sm:$0xff]
        %v649 = vld [vmem:[%s469 + $0x200] sm:$0xff]
        %v650 = vld [vmem:[%s469 + $0x208] sm:$0xff]
        %v651 = vld [vmem:[%s469 + $0x210] sm:$0xff]
        %v652 = vld [vmem:[%s469 + $0x218] sm:$0xff]
        %v653 = vld [vmem:[%s469 + $0x220] sm:$0xff]
        %v654 = vld [vmem:[%s469 + $0x228] sm:$0xff]
        %v655 = vld [vmem:[%s469 + $0x230] sm:$0xff]
        %v656 = vld [vmem:[%s469 + $0x238] sm:$0xff]
        %v657 = vld [vmem:[%s469 + $0x240] sm:$0xff]
        %v658 = vld [vmem:[%s469 + $0x248] sm:$0xff]
        %v659 = vld [vmem:[%s469 + $0x250] sm:$0xff]
        %v660 = vld [vmem:[%s469 + $0x258] sm:$0xff]
        %v661 = vld [vmem:[%s469 + $0x260] sm:$0xff]
        %v662 = vld [vmem:[%s469 + $0x268] sm:$0xff]
        %v663 = vld [vmem:[%s469 + $0x270] sm:$0xff]
        %v664 = vld [vmem:[%s469 + $0x278] sm:$0xff]
        %v665 = vld [vmem:[%s469 + $0x280] sm:$0xff]
        %v666 = vld [vmem:[%s469 + $0x288] sm:$0xff]
        %v667 = vld [vmem:[%s469 + $0x290] sm:$0xff]
        %v668 = vld [vmem:[%s469 + $0x298] sm:$0xff]
        %v669 = vld [vmem:[%s469 + $0x2a0] sm:$0xff]
        %v670 = vld [vmem:[%s469 + $0x2a8] sm:$0xff]
        %v671 = vld [vmem:[%s469 + $0x2b0] sm:$0xff]
        %v672 = vld [vmem:[%s469 + $0x2b8] sm:$0xff]
        %v673 = vld [vmem:[%s469 + $0x2c0] sm:$0xff]
        %v674 = vld [vmem:[%s469 + $0x2c8] sm:$0xff]
        %v675 = vld [vmem:[%s469 + $0x2d0] sm:$0xff]
        %v676 = vld [vmem:[%s469 + $0x2d8] sm:$0xff]
        %v677 = vld [vmem:[%s469 + $0x2e0] sm:$0xff]
        %v678 = vld [vmem:[%s469 + $0x2e8] sm:$0xff]
        %v679 = vld [vmem:[%s469 + $0x2f0] sm:$0xff]
        %v680 = vld [vmem:[%s469 + $0x2f8] sm:$0xff]
        %v681 = vld [vmem:[%s469 + $0x300] sm:$0xff]
        %v682 = vld [vmem:[%s469 + $0x308] sm:$0xff]
        %v683 = vld [vmem:[%s469 + $0x310] sm:$0xff]
        %v684 = vld [vmem:[%s469 + $0x318] sm:$0xff]
        %v685 = vld [vmem:[%s469 + $0x320] sm:$0xff]
        %v686 = vld [vmem:[%s469 + $0x328] sm:$0xff]
        %v687 = vld [vmem:[%s469 + $0x330] sm:$0xff]
        %v688 = vld [vmem:[%s469 + $0x338] sm:$0xff]
        %v689 = vld [vmem:[%s469 + $0x340] sm:$0xff]
        %v690 = vld [vmem:[%s469 + $0x348] sm:$0xff]
        %v691 = vld [vmem:[%s469 + $0x350] sm:$0xff]
        %v692 = vld [vmem:[%s469 + $0x358] sm:$0xff]
        %v693 = vld [vmem:[%s469 + $0x360] sm:$0xff]
        %v694 = vld [vmem:[%s469 + $0x368] sm:$0xff]
        %v695 = vld [vmem:[%s469 + $0x370] sm:$0xff]
        %v696 = vld [vmem:[%s469 + $0x378] sm:$0xff]
        %v697 = vld [vmem:[%s469 + $0x380] sm:$0xff]
        %v698 = vld [vmem:[%s469 + $0x388] sm:$0xff]
        %v699 = vld [vmem:[%s469 + $0x390] sm:$0xff]
        %v700 = vld [vmem:[%s469 + $0x398] sm:$0xff]
        %v701 = vld [vmem:[%s469 + $0x3a0] sm:$0xff]
        %v702 = vld [vmem:[%s469 + $0x3a8] sm:$0xff]
        %v703 = vld [vmem:[%s469 + $0x3b0] sm:$0xff]
        %v704 = vld [vmem:[%s469 + $0x3b8] sm:$0xff]
        %v705 = vld [vmem:[%s469 + $0x3c0] sm:$0xff]
        %v706 = vld [vmem:[%s469 + $0x3c8] sm:$0xff]
        %v707 = vld [vmem:[%s469 + $0x3d0] sm:$0xff]
        %v708 = vld [vmem:[%s469 + $0x3d8] sm:$0xff]
        %v709 = vld [vmem:[%s469 + $0x3e0] sm:$0xff]
        %v710 = vld [vmem:[%s469 + $0x3e8] sm:$0xff]
        %v711 = vld [vmem:[%s469 + $0x3f0] sm:$0xff]
        %v712 = vld [vmem:[%s469 + $0x3f8] sm:$0xff]
        %v713 = vpack.c.bf16 %v587, %v585
        %v714 = vpack.c.bf16 %v588, %v586
        %v715 = vpack.c.bf16 %v591, %v589
        %v716 = vpack.c.bf16 %v592, %v590
        %v717 = vpack.c.bf16 %v595, %v593
        %v718 = vpack.c.bf16 %v596, %v594
        %v719 = vpack.c.bf16 %v599, %v597
        %v720 = vpack.c.bf16 %v600, %v598
        %v721 = vpack.c.bf16 %v603, %v601
        %v722 = vpack.c.bf16 %v604, %v602
        %v723 = vpack.c.bf16 %v607, %v605
        %v724 = vpack.c.bf16 %v608, %v606
        %v725 = vpack.c.bf16 %v611, %v609
        %v726 = vpack.c.bf16 %v612, %v610
        %v727 = vpack.c.bf16 %v615, %v613
        %v728 = vpack.c.bf16 %v616, %v614
        %v729 = vpack.c.bf16 %v619, %v617
        %v730 = vpack.c.bf16 %v620, %v618
        %v731 = vpack.c.bf16 %v623, %v621
        %v732 = vpack.c.bf16 %v624, %v622
        %v733 = vpack.c.bf16 %v627, %v625
        %v734 = vpack.c.bf16 %v628, %v626
        %v735 = vpack.c.bf16 %v631, %v629
        %v736 = vpack.c.bf16 %v632, %v630
        %v737 = vpack.c.bf16 %v635, %v633
        %v738 = vpack.c.bf16 %v636, %v634
        %v739 = vpack.c.bf16 %v639, %v637
        %v740 = vpack.c.bf16 %v640, %v638
        %v741 = vpack.c.bf16 %v643, %v641
        %v742 = vpack.c.bf16 %v644, %v642
        %v743 = vpack.c.bf16 %v647, %v645
        %v744 = vpack.c.bf16 %v648, %v646
        %v745 = vpack.c.bf16 %v651, %v649
        %v746 = vpack.c.bf16 %v652, %v650
        %v747 = vpack.c.bf16 %v655, %v653
        %v748 = vpack.c.bf16 %v656, %v654
        %v749 = vpack.c.bf16 %v659, %v657
        %v750 = vpack.c.bf16 %v660, %v658
        %v751 = vpack.c.bf16 %v663, %v661
        %v752 = vpack.c.bf16 %v664, %v662
        %v753 = vpack.c.bf16 %v667, %v665
        %v754 = vpack.c.bf16 %v668, %v666
        %v755 = vpack.c.bf16 %v671, %v669
        %v756 = vpack.c.bf16 %v672, %v670
        %v757 = vpack.c.bf16 %v675, %v673
        %v758 = vpack.c.bf16 %v676, %v674
        %v759 = vpack.c.bf16 %v679, %v677
        %v760 = vpack.c.bf16 %v680, %v678
        %v761 = vpack.c.bf16 %v683, %v681
        %v762 = vpack.c.bf16 %v684, %v682
        %v763 = vpack.c.bf16 %v687, %v685
        %v764 = vpack.c.bf16 %v688, %v686
        %v765 = vpack.c.bf16 %v691, %v689
        %v766 = vpack.c.bf16 %v692, %v690
        %v767 = vpack.c.bf16 %v695, %v693
        %v768 = vpack.c.bf16 %v696, %v694
        %v769 = vpack.c.bf16 %v699, %v697
        %v770 = vpack.c.bf16 %v700, %v698
        %v771 = vpack.c.bf16 %v703, %v701
        %v772 = vpack.c.bf16 %v704, %v702
        %v773 = vpack.c.bf16 %v707, %v705
        %v774 = vpack.c.bf16 %v708, %v706
        %v775 = vpack.c.bf16 %v711, %v709
        %v776 = vpack.c.bf16 %v712, %v710
        %v777 = vld [vmem:[%s5] sm:$0xff]
        %v778 = vld [vmem:[%s5 + $0x8] sm:$0xff]
        %v779 = vld [vmem:[%s5 + $0x10] sm:$0xff]
        %v780 = vld [vmem:[%s5 + $0x18] sm:$0xff]
        %v781 = vld [vmem:[%s5 + $0x20] sm:$0xff]
        %v782 = vld [vmem:[%s5 + $0x28] sm:$0xff]
        %v783 = vld [vmem:[%s5 + $0x30] sm:$0xff]
        %v784 = vld [vmem:[%s5 + $0x38] sm:$0xff]
        %v785 = vld [vmem:[%s5 + $0x40] sm:$0xff]
        %v786 = vld [vmem:[%s5 + $0x48] sm:$0xff]
        %v787 = vld [vmem:[%s5 + $0x50] sm:$0xff]
        %v788 = vld [vmem:[%s5 + $0x58] sm:$0xff]
        %v789 = vld [vmem:[%s5 + $0x60] sm:$0xff]
        %v790 = vld [vmem:[%s5 + $0x68] sm:$0xff]
        %v791 = vld [vmem:[%s5 + $0x70] sm:$0xff]
        %v792 = vld [vmem:[%s5 + $0x78] sm:$0xff]
        %v793 = vld [vmem:[%s5 + $0x80] sm:$0xff]
        %v794 = vld [vmem:[%s5 + $0x88] sm:$0xff]
        %v795 = vld [vmem:[%s5 + $0x90] sm:$0xff]
        %v796 = vld [vmem:[%s5 + $0x98] sm:$0xff]
        %v797 = vld [vmem:[%s5 + $0xa0] sm:$0xff]
        %v798 = vld [vmem:[%s5 + $0xa8] sm:$0xff]
        %v799 = vld [vmem:[%s5 + $0xb0] sm:$0xff]
        %v800 = vld [vmem:[%s5 + $0xb8] sm:$0xff]
        %v801 = vld [vmem:[%s5 + $0xc0] sm:$0xff]
        %v802 = vld [vmem:[%s5 + $0xc8] sm:$0xff]
        %v803 = vld [vmem:[%s5 + $0xd0] sm:$0xff]
        %v804 = vld [vmem:[%s5 + $0xd8] sm:$0xff]
        %v805 = vld [vmem:[%s5 + $0xe0] sm:$0xff]
        %v806 = vld [vmem:[%s5 + $0xe8] sm:$0xff]
        %v807 = vld [vmem:[%s5 + $0xf0] sm:$0xff]
        %v808 = vld [vmem:[%s5 + $0xf8] sm:$0xff]
        %v809 = vld [vmem:[%s5 + $0x100] sm:$0xff]
        %v810 = vld [vmem:[%s5 + $0x108] sm:$0xff]
        %v811 = vld [vmem:[%s5 + $0x110] sm:$0xff]
        %v812 = vld [vmem:[%s5 + $0x118] sm:$0xff]
        %v813 = vld [vmem:[%s5 + $0x120] sm:$0xff]
        %v814 = vld [vmem:[%s5 + $0x128] sm:$0xff]
        %v815 = vld [vmem:[%s5 + $0x130] sm:$0xff]
        %v816 = vld [vmem:[%s5 + $0x138] sm:$0xff]
        %v817 = vld [vmem:[%s5 + $0x140] sm:$0xff]
        %v818 = vld [vmem:[%s5 + $0x148] sm:$0xff]
        %v819 = vld [vmem:[%s5 + $0x150] sm:$0xff]
        %v820 = vld [vmem:[%s5 + $0x158] sm:$0xff]
        %v821 = vld [vmem:[%s5 + $0x160] sm:$0xff]
        %v822 = vld [vmem:[%s5 + $0x168] sm:$0xff]
        %v823 = vld [vmem:[%s5 + $0x170] sm:$0xff]
        %v824 = vld [vmem:[%s5 + $0x178] sm:$0xff]
        %v825 = vld [vmem:[%s5 + $0x180] sm:$0xff]
        %v826 = vld [vmem:[%s5 + $0x188] sm:$0xff]
        %v827 = vld [vmem:[%s5 + $0x190] sm:$0xff]
        %v828 = vld [vmem:[%s5 + $0x198] sm:$0xff]
        %v829 = vld [vmem:[%s5 + $0x1a0] sm:$0xff]
        %v830 = vld [vmem:[%s5 + $0x1a8] sm:$0xff]
        %v831 = vld [vmem:[%s5 + $0x1b0] sm:$0xff]
        %v832 = vld [vmem:[%s5 + $0x1b8] sm:$0xff]
        %v833 = vld [vmem:[%s5 + $0x1c0] sm:$0xff]
        %v834 = vld [vmem:[%s5 + $0x1c8] sm:$0xff]
        %v835 = vld [vmem:[%s5 + $0x1d0] sm:$0xff]
        %v836 = vld [vmem:[%s5 + $0x1d8] sm:$0xff]
        %v837 = vld [vmem:[%s5 + $0x1e0] sm:$0xff]
        %v838 = vld [vmem:[%s5 + $0x1e8] sm:$0xff]
        %v839 = vld [vmem:[%s5 + $0x1f0] sm:$0xff]
        %v840 = vld [vmem:[%s5 + $0x1f8] sm:$0xff]
        %v841 = vld [vmem:[%s5 + $0x200] sm:$0xff]
        %v842 = vld [vmem:[%s5 + $0x208] sm:$0xff]
        %v843 = vld [vmem:[%s5 + $0x210] sm:$0xff]
        %v844 = vld [vmem:[%s5 + $0x218] sm:$0xff]
        %v845 = vld [vmem:[%s5 + $0x220] sm:$0xff]
        %v846 = vld [vmem:[%s5 + $0x228] sm:$0xff]
        %v847 = vld [vmem:[%s5 + $0x230] sm:$0xff]
        %v848 = vld [vmem:[%s5 + $0x238] sm:$0xff]
        %v849 = vld [vmem:[%s5 + $0x240] sm:$0xff]
        %v850 = vld [vmem:[%s5 + $0x248] sm:$0xff]
        %v851 = vld [vmem:[%s5 + $0x250] sm:$0xff]
        %v852 = vld [vmem:[%s5 + $0x258] sm:$0xff]
        %v853 = vld [vmem:[%s5 + $0x260] sm:$0xff]
        %v854 = vld [vmem:[%s5 + $0x268] sm:$0xff]
        %v855 = vld [vmem:[%s5 + $0x270] sm:$0xff]
        %v856 = vld [vmem:[%s5 + $0x278] sm:$0xff]
        %v857 = vld [vmem:[%s5 + $0x280] sm:$0xff]
        %v858 = vld [vmem:[%s5 + $0x288] sm:$0xff]
        %v859 = vld [vmem:[%s5 + $0x290] sm:$0xff]
        %v860 = vld [vmem:[%s5 + $0x298] sm:$0xff]
        %v861 = vld [vmem:[%s5 + $0x2a0] sm:$0xff]
        %v862 = vld [vmem:[%s5 + $0x2a8] sm:$0xff]
        %v863 = vld [vmem:[%s5 + $0x2b0] sm:$0xff]
        %v864 = vld [vmem:[%s5 + $0x2b8] sm:$0xff]
        %v865 = vld [vmem:[%s5 + $0x2c0] sm:$0xff]
        %v866 = vld [vmem:[%s5 + $0x2c8] sm:$0xff]
        %v867 = vld [vmem:[%s5 + $0x2d0] sm:$0xff]
        %v868 = vld [vmem:[%s5 + $0x2d8] sm:$0xff]
        %v869 = vld [vmem:[%s5 + $0x2e0] sm:$0xff]
        %v870 = vld [vmem:[%s5 + $0x2e8] sm:$0xff]
        %v871 = vld [vmem:[%s5 + $0x2f0] sm:$0xff]
        %v872 = vld [vmem:[%s5 + $0x2f8] sm:$0xff]
        %v873 = vld [vmem:[%s5 + $0x300] sm:$0xff]
        %v874 = vld [vmem:[%s5 + $0x308] sm:$0xff]
        %v875 = vld [vmem:[%s5 + $0x310] sm:$0xff]
        %v876 = vld [vmem:[%s5 + $0x318] sm:$0xff]
        %v877 = vld [vmem:[%s5 + $0x320] sm:$0xff]
        %v878 = vld [vmem:[%s5 + $0x328] sm:$0xff]
        %v879 = vld [vmem:[%s5 + $0x330] sm:$0xff]
        %v880 = vld [vmem:[%s5 + $0x338] sm:$0xff]
        %v881 = vld [vmem:[%s5 + $0x340] sm:$0xff]
        %v882 = vld [vmem:[%s5 + $0x348] sm:$0xff]
        %v883 = vld [vmem:[%s5 + $0x350] sm:$0xff]
        %v884 = vld [vmem:[%s5 + $0x358] sm:$0xff]
        %v885 = vld [vmem:[%s5 + $0x360] sm:$0xff]
        %v886 = vld [vmem:[%s5 + $0x368] sm:$0xff]
        %v887 = vld [vmem:[%s5 + $0x370] sm:$0xff]
        %v888 = vld [vmem:[%s5 + $0x378] sm:$0xff]
        %v889 = vld [vmem:[%s5 + $0x380] sm:$0xff]
        %v890 = vld [vmem:[%s5 + $0x388] sm:$0xff]
        %v891 = vld [vmem:[%s5 + $0x390] sm:$0xff]
        %v892 = vld [vmem:[%s5 + $0x398] sm:$0xff]
        %v893 = vld [vmem:[%s5 + $0x3a0] sm:$0xff]
        %v894 = vld [vmem:[%s5 + $0x3a8] sm:$0xff]
        %v895 = vld [vmem:[%s5 + $0x3b0] sm:$0xff]
        %v896 = vld [vmem:[%s5 + $0x3b8] sm:$0xff]
        %v897 = vld [vmem:[%s5 + $0x3c0] sm:$0xff]
        %v898 = vld [vmem:[%s5 + $0x3c8] sm:$0xff]
        %v899 = vld [vmem:[%s5 + $0x3d0] sm:$0xff]
        %v900 = vld [vmem:[%s5 + $0x3d8] sm:$0xff]
        %v901 = vld [vmem:[%s5 + $0x3e0] sm:$0xff]
        %v902 = vld [vmem:[%s5 + $0x3e8] sm:$0xff]
        %v903 = vld [vmem:[%s5 + $0x3f0] sm:$0xff]
        %v904 = vld [vmem:[%s5 + $0x3f8] sm:$0xff]
        %v905 = vld [vmem:[%s575] sm:$0xff]
        %v906 = vld [vmem:[%s575 + $0x8] sm:$0xff]
        %v907 = vld [vmem:[%s575 + $0x10] sm:$0xff]
        %v908 = vld [vmem:[%s575 + $0x18] sm:$0xff]
        %v909 = vld [vmem:[%s575 + $0x20] sm:$0xff]
        %v910 = vld [vmem:[%s575 + $0x28] sm:$0xff]
        %v911 = vld [vmem:[%s575 + $0x30] sm:$0xff]
        %v912 = vld [vmem:[%s575 + $0x38] sm:$0xff]
        %v913 = vld [vmem:[%s575 + $0x40] sm:$0xff]
        %v914 = vld [vmem:[%s575 + $0x48] sm:$0xff]
        %v915 = vld [vmem:[%s575 + $0x50] sm:$0xff]
        %v916 = vld [vmem:[%s575 + $0x58] sm:$0xff]
        %v917 = vld [vmem:[%s575 + $0x60] sm:$0xff]
        %v918 = vld [vmem:[%s575 + $0x68] sm:$0xff]
        %v919 = vld [vmem:[%s575 + $0x70] sm:$0xff]
        %v920 = vld [vmem:[%s575 + $0x78] sm:$0xff]
        %v921 = vld [vmem:[%s575 + $0x80] sm:$0xff]
        %v922 = vld [vmem:[%s575 + $0x88] sm:$0xff]
        %v923 = vld [vmem:[%s575 + $0x90] sm:$0xff]
        %v924 = vld [vmem:[%s575 + $0x98] sm:$0xff]
        %v925 = vld [vmem:[%s575 + $0xa0] sm:$0xff]
        %v926 = vld [vmem:[%s575 + $0xa8] sm:$0xff]
        %v927 = vld [vmem:[%s575 + $0xb0] sm:$0xff]
        %v928 = vld [vmem:[%s575 + $0xb8] sm:$0xff]
        %v929 = vld [vmem:[%s575 + $0xc0] sm:$0xff]
        %v930 = vld [vmem:[%s575 + $0xc8] sm:$0xff]
        %v931 = vld [vmem:[%s575 + $0xd0] sm:$0xff]
        %v932 = vld [vmem:[%s575 + $0xd8] sm:$0xff]
        %v933 = vld [vmem:[%s575 + $0xe0] sm:$0xff]
        %v934 = vld [vmem:[%s575 + $0xe8] sm:$0xff]
        %v935 = vld [vmem:[%s575 + $0xf0] sm:$0xff]
        %v936 = vld [vmem:[%s575 + $0xf8] sm:$0xff]
        %v937 = vld [vmem:[%s575 + $0x100] sm:$0xff]
        %v938 = vld [vmem:[%s575 + $0x108] sm:$0xff]
        %v939 = vld [vmem:[%s575 + $0x110] sm:$0xff]
        %v940 = vld [vmem:[%s575 + $0x118] sm:$0xff]
        %v941 = vld [vmem:[%s575 + $0x120] sm:$0xff]
        %v942 = vld [vmem:[%s575 + $0x128] sm:$0xff]
        %v943 = vld [vmem:[%s575 + $0x130] sm:$0xff]
        %v944 = vld [vmem:[%s575 + $0x138] sm:$0xff]
        %v945 = vld [vmem:[%s575 + $0x140] sm:$0xff]
        %v946 = vld [vmem:[%s575 + $0x148] sm:$0xff]
        %v947 = vld [vmem:[%s575 + $0x150] sm:$0xff]
        %v948 = vld [vmem:[%s575 + $0x158] sm:$0xff]
        %v949 = vld [vmem:[%s575 + $0x160] sm:$0xff]
        %v950 = vld [vmem:[%s575 + $0x168] sm:$0xff]
        %v951 = vld [vmem:[%s575 + $0x170] sm:$0xff]
        %v952 = vld [vmem:[%s575 + $0x178] sm:$0xff]
        %v953 = vld [vmem:[%s575 + $0x180] sm:$0xff]
        %v954 = vld [vmem:[%s575 + $0x188] sm:$0xff]
        %v955 = vld [vmem:[%s575 + $0x190] sm:$0xff]
        %v956 = vld [vmem:[%s575 + $0x198] sm:$0xff]
        %v957 = vld [vmem:[%s575 + $0x1a0] sm:$0xff]
        %v958 = vld [vmem:[%s575 + $0x1a8] sm:$0xff]
        %v959 = vld [vmem:[%s575 + $0x1b0] sm:$0xff]
        %v960 = vld [vmem:[%s575 + $0x1b8] sm:$0xff]
        %v961 = vld [vmem:[%s575 + $0x1c0] sm:$0xff]
        %v962 = vld [vmem:[%s575 + $0x1c8] sm:$0xff]
        %v963 = vld [vmem:[%s575 + $0x1d0] sm:$0xff]
        %v964 = vld [vmem:[%s575 + $0x1d8] sm:$0xff]
        %v965 = vld [vmem:[%s575 + $0x1e0] sm:$0xff]
        %v966 = vld [vmem:[%s575 + $0x1e8] sm:$0xff]
        %v967 = vld [vmem:[%s575 + $0x1f0] sm:$0xff]
        %v968 = vld [vmem:[%s575 + $0x1f8] sm:$0xff]
        %v969 = vpack.c.bf16 %v906, %v905
        %v970 = vpack.c.bf16 %v908, %v907
        %v971 = vpack.c.bf16 %v910, %v909
        %v972 = vpack.c.bf16 %v912, %v911
        %v973 = vpack.c.bf16 %v914, %v913
        %v974 = vpack.c.bf16 %v916, %v915
        %v975 = vpack.c.bf16 %v918, %v917
        %v976 = vpack.c.bf16 %v920, %v919
        %v977 = vpack.c.bf16 %v922, %v921
        %v978 = vpack.c.bf16 %v924, %v923
        %v979 = vpack.c.bf16 %v926, %v925
        %v980 = vpack.c.bf16 %v928, %v927
        %v981 = vpack.c.bf16 %v930, %v929
        %v982 = vpack.c.bf16 %v932, %v931
        %v983 = vpack.c.bf16 %v934, %v933
        %v984 = vpack.c.bf16 %v936, %v935
        %v985 = vpack.c.bf16 %v938, %v937
        %v986 = vpack.c.bf16 %v940, %v939
        %v987 = vpack.c.bf16 %v942, %v941
        %v988 = vpack.c.bf16 %v944, %v943
        %v989 = vpack.c.bf16 %v946, %v945
        %v990 = vpack.c.bf16 %v948, %v947
        %v991 = vpack.c.bf16 %v950, %v949
        %v992 = vpack.c.bf16 %v952, %v951
        %v993 = vpack.c.bf16 %v954, %v953
        %v994 = vpack.c.bf16 %v956, %v955
        %v995 = vpack.c.bf16 %v958, %v957
        %v996 = vpack.c.bf16 %v960, %v959
        %v997 = vpack.c.bf16 %v962, %v961
        %v998 = vpack.c.bf16 %v964, %v963
        %v999 = vpack.c.bf16 %v966, %v965
        %v1000 = vpack.c.bf16 %v968, %v967
        %v1001 = vld [vmem:[%s6] sm:$0xff]
        %v1002 = vld [vmem:[%s6 + $0x8] sm:$0xff]
        %v1003 = vld [vmem:[%s6 + $0x10] sm:$0xff]
        %v1004 = vld [vmem:[%s6 + $0x18] sm:$0xff]
        %v1005 = vld [vmem:[%s6 + $0x20] sm:$0xff]
        %v1006 = vld [vmem:[%s6 + $0x28] sm:$0xff]
        %v1007 = vld [vmem:[%s6 + $0x30] sm:$0xff]
        %v1008 = vld [vmem:[%s6 + $0x38] sm:$0xff]
        %v1009 = vld [vmem:[%s6 + $0x40] sm:$0xff]
        %v1010 = vld [vmem:[%s6 + $0x48] sm:$0xff]
        %v1011 = vld [vmem:[%s6 + $0x50] sm:$0xff]
        %v1012 = vld [vmem:[%s6 + $0x58] sm:$0xff]
        %v1013 = vld [vmem:[%s6 + $0x60] sm:$0xff]
        %v1014 = vld [vmem:[%s6 + $0x68] sm:$0xff]
        %v1015 = vld [vmem:[%s6 + $0x70] sm:$0xff]
        %v1016 = vld [vmem:[%s6 + $0x78] sm:$0xff]
        %v1017 = vld [vmem:[%s6 + $0x80] sm:$0xff]
        %v1018 = vld [vmem:[%s6 + $0x88] sm:$0xff]
        %v1019 = vld [vmem:[%s6 + $0x90] sm:$0xff]
        %v1020 = vld [vmem:[%s6 + $0x98] sm:$0xff]
        %v1021 = vld [vmem:[%s6 + $0xa0] sm:$0xff]
        %v1022 = vld [vmem:[%s6 + $0xa8] sm:$0xff]
        %v1023 = vld [vmem:[%s6 + $0xb0] sm:$0xff]
        %v1024 = vld [vmem:[%s6 + $0xb8] sm:$0xff]
        %v1025 = vld [vmem:[%s6 + $0xc0] sm:$0xff]
        %v1026 = vld [vmem:[%s6 + $0xc8] sm:$0xff]
        %v1027 = vld [vmem:[%s6 + $0xd0] sm:$0xff]
        %v1028 = vld [vmem:[%s6 + $0xd8] sm:$0xff]
        %v1029 = vld [vmem:[%s6 + $0xe0] sm:$0xff]
        %v1030 = vld [vmem:[%s6 + $0xe8] sm:$0xff]
        %v1031 = vld [vmem:[%s6 + $0xf0] sm:$0xff]
        %v1032 = vld [vmem:[%s6 + $0xf8] sm:$0xff]
        %v1065 = vunpack.c.l.b16 %v1001
        %v1066 = vunpack.c.h.b16 %v1001
        %v1067 = vunpack.c.l.b16 %v1002
        %v1068 = vunpack.c.h.b16 %v1002
        %v1069 = vunpack.c.l.b16 %v1003
        %v1070 = vunpack.c.h.b16 %v1003
        %v1071 = vunpack.c.l.b16 %v1004
        %v1072 = vunpack.c.h.b16 %v1004
        %v1073 = vunpack.c.l.b16 %v1005
        %v1074 = vunpack.c.h.b16 %v1005
        %v1075 = vunpack.c.l.b16 %v1006
        %v1076 = vunpack.c.h.b16 %v1006
        %v1077 = vunpack.c.l.b16 %v1007
        %v1078 = vunpack.c.h.b16 %v1007
        %v1079 = vunpack.c.l.b16 %v1008
        %v1080 = vunpack.c.h.b16 %v1008
        %v1081 = vunpack.c.l.b16 %v1009
        %v1082 = vunpack.c.h.b16 %v1009
        %v1083 = vunpack.c.l.b16 %v1010
        %v1084 = vunpack.c.h.b16 %v1010
        %v1085 = vunpack.c.l.b16 %v1011
        %v1086 = vunpack.c.h.b16 %v1011
        %v1087 = vunpack.c.l.b16 %v1012
        %v1088 = vunpack.c.h.b16 %v1012
        %v1089 = vunpack.c.l.b16 %v1013
        %v1090 = vunpack.c.h.b16 %v1013
        %v1091 = vunpack.c.l.b16 %v1014
        %v1092 = vunpack.c.h.b16 %v1014
        %v1093 = vunpack.c.l.b16 %v1015
        %v1094 = vunpack.c.h.b16 %v1015
        %v1095 = vunpack.c.l.b16 %v1016
        %v1096 = vunpack.c.h.b16 %v1016
        %v1097 = vunpack.c.l.b16 %v1017
        %v1098 = vunpack.c.h.b16 %v1017
        %v1099 = vunpack.c.l.b16 %v1018
        %v1100 = vunpack.c.h.b16 %v1018
        %v1101 = vunpack.c.l.b16 %v1019
        %v1102 = vunpack.c.h.b16 %v1019
        %v1103 = vunpack.c.l.b16 %v1020
        %v1104 = vunpack.c.h.b16 %v1020
        %v1105 = vunpack.c.l.b16 %v1021
        %v1106 = vunpack.c.h.b16 %v1021
        %v1107 = vunpack.c.l.b16 %v1022
        %v1108 = vunpack.c.h.b16 %v1022
        %v1109 = vunpack.c.l.b16 %v1023
        %v1110 = vunpack.c.h.b16 %v1023
        %v1111 = vunpack.c.l.b16 %v1024
        %v1112 = vunpack.c.h.b16 %v1024
        %v1113 = vunpack.c.l.b16 %v1025
        %v1114 = vunpack.c.h.b16 %v1025
        %v1115 = vunpack.c.l.b16 %v1026
        %v1116 = vunpack.c.h.b16 %v1026
        %v1117 = vunpack.c.l.b16 %v1027
        %v1118 = vunpack.c.h.b16 %v1027
        %v1119 = vunpack.c.l.b16 %v1028
        %v1120 = vunpack.c.h.b16 %v1028
        %v1121 = vunpack.c.l.b16 %v1029
        %v1122 = vunpack.c.h.b16 %v1029
        %v1123 = vunpack.c.l.b16 %v1030
        %v1124 = vunpack.c.h.b16 %v1030
        %v1125 = vunpack.c.l.b16 %v1031
        %v1126 = vunpack.c.h.b16 %v1031
        %v1127 = vunpack.c.l.b16 %v1032
        %v1128 = vunpack.c.h.b16 %v1032
        %v1129 = vpack.c.b16 %v1073, %v1065
        %v1130 = vpack.c.b16 %v1074, %v1066
        %v1131 = vpack.c.b16 %v1075, %v1067
        %v1132 = vpack.c.b16 %v1076, %v1068
        %v1133 = vpack.c.b16 %v1077, %v1069
        %v1134 = vpack.c.b16 %v1078, %v1070
        %v1135 = vpack.c.b16 %v1079, %v1071
        %v1136 = vpack.c.b16 %v1080, %v1072
        %v1137 = vpack.c.b16 %v1089, %v1081
        %v1138 = vpack.c.b16 %v1090, %v1082
        %v1139 = vpack.c.b16 %v1091, %v1083
        %v1140 = vpack.c.b16 %v1092, %v1084
        %v1141 = vpack.c.b16 %v1093, %v1085
        %v1142 = vpack.c.b16 %v1094, %v1086
        %v1143 = vpack.c.b16 %v1095, %v1087
        %v1144 = vpack.c.b16 %v1096, %v1088
        %v1145 = vpack.c.b16 %v1105, %v1097
        %v1146 = vpack.c.b16 %v1106, %v1098
        %v1147 = vpack.c.b16 %v1107, %v1099
        %v1148 = vpack.c.b16 %v1108, %v1100
        %v1149 = vpack.c.b16 %v1109, %v1101
        %v1150 = vpack.c.b16 %v1110, %v1102
        %v1151 = vpack.c.b16 %v1111, %v1103
        %v1152 = vpack.c.b16 %v1112, %v1104
        %v1153 = vpack.c.b16 %v1121, %v1113
        %v1154 = vpack.c.b16 %v1122, %v1114
        %v1155 = vpack.c.b16 %v1123, %v1115
        %v1156 = vpack.c.b16 %v1124, %v1116
        %v1157 = vpack.c.b16 %v1125, %v1117
        %v1158 = vpack.c.b16 %v1126, %v1118
        %v1159 = vpack.c.b16 %v1127, %v1119
        %v1160 = vpack.c.b16 %v1128, %v1120
        %vm1193 = vcmask 523264
        %v1195 = vsel %vm1193, %v969, 0
        %v1198 = vsel %vm1193, %v970, 0
        %v1201 = vsel %vm1193, %v971, 0
        %v1204 = vsel %vm1193, %v972, 0
        %v1207 = vsel %vm1193, %v973, 0
        %v1210 = vsel %vm1193, %v974, 0
        %v1213 = vsel %vm1193, %v975, 0
        %v1216 = vsel %vm1193, %v976, 0
        %v1219 = vsel %vm1193, %v977, 0
        %v1222 = vsel %vm1193, %v978, 0
        %v1225 = vsel %vm1193, %v979, 0
        %v1228 = vsel %vm1193, %v980, 0
        %v1231 = vsel %vm1193, %v981, 0
        %v1234 = vsel %vm1193, %v982, 0
        %v1237 = vsel %vm1193, %v983, 0
        %v1240 = vsel %vm1193, %v984, 0
        %v1243 = vsel %vm1193, %v985, 0
        %v1246 = vsel %vm1193, %v986, 0
        %v1249 = vsel %vm1193, %v987, 0
        %v1252 = vsel %vm1193, %v988, 0
        %v1255 = vsel %vm1193, %v989, 0
        %v1258 = vsel %vm1193, %v990, 0
        %v1261 = vsel %vm1193, %v991, 0
        %v1264 = vsel %vm1193, %v992, 0
        %v1267 = vsel %vm1193, %v993, 0
        %v1270 = vsel %vm1193, %v994, 0
        %v1273 = vsel %vm1193, %v995, 0
        %v1276 = vsel %vm1193, %v996, 0
        %v1279 = vsel %vm1193, %v997, 0
        %v1282 = vsel %vm1193, %v998, 0
        %v1285 = vsel %vm1193, %v999, 0
        %v1288 = vsel %vm1193, %v1000, 0
        %1290 = vmatprep.subr.bf16.mxu0 %v1130
        %1291 = vmatpush1.bf16.msra.mxu0 %v1129
        %1292 = vmatprep.subr.bf16.mxu0 %v1138
        %1293 = vmatpush1.bf16.msra.mxu0 %v1137
        %1294 = vmatprep.subr.bf16.mxu0 %v1146
        %1295 = vmatpush1.bf16.msra.mxu0 %v1145
        %1296 = vmatprep.subr.bf16.mxu0 %v1154
        %1297 = vmatpush1.bf16.msra.mxu0 %v1153
        %1298 = vmatprep.subr.bf16.mxu0 0
        %1299 = vmatpush1.bf16.msra.mxu0 0
        %1300 = vmatprep.subr.bf16.mxu0 0
        %1301 = vmatpush1.bf16.msra.mxu0 0
        %1302 = vmatprep.subr.bf16.mxu0 0
        %1303 = vmatpush1.bf16.msra.mxu0 0
        %1304 = vmatprep.subr.bf16.mxu0 0
        %1305 = vmatpush1.bf16.msra.mxu0 0
        %1306 = vmatprep.subr.bf16.mxu0 0
        %1307 = vmatpush1.bf16.msra.mxu0 0
        %1308 = vmatprep.subr.bf16.mxu0 0
        %1309 = vmatpush1.bf16.msra.mxu0 0
        %1310 = vmatprep.subr.bf16.mxu0 0
        %1311 = vmatpush1.bf16.msra.mxu0 0
        %1312 = vmatprep.subr.bf16.mxu0 0
        %1313 = vmatpush1.bf16.msra.mxu0 0
        %1314 = vmatprep.subr.bf16.mxu0 0
        %1315 = vmatpush1.bf16.msra.mxu0 0
        %1316 = vmatprep.subr.bf16.mxu0 0
        %1317 = vmatpush1.bf16.msra.mxu0 0
        %1318 = vmatprep.subr.bf16.mxu0 0
        %1319 = vmatpush1.bf16.msra.mxu0 0
        %1320 = vmatprep.subr.bf16.mxu0 0
        %1321 = vmatpush1.bf16.msra.mxu0 0
        %1322 = vmatprep.mubr.bf16.mxu0 0
        %1323 = vmatmul.mubr.bf16.gmra.mrb[0].mxu0 %v1195
        %v1324 = vpop.f32.mrb[0].mxu0
        %v1325 = vadd.f32 0.0, %v1324
        %v1326 = vpop.f32.mrb[0].mxu0
        %v1327 = vadd.f32 0.0, %v1326
        %v1328 = vpop.f32.mrb[0].mxu0
        %v1329 = vadd.f32 0.0, %v1328
        %v1330 = vpop.f32.mrb[0].mxu0
        %v1331 = vadd.f32 0.0, %v1330
        %1332 = vmatprep.mubr.bf16.mxu0 0
        %1333 = vmatmul.mubr.bf16.gmra.mrb[0].mxu0 %v1198
        %v1334 = vpop.f32.mrb[0].mxu0
        %v1335 = vadd.f32 0.0, %v1334
        %v1336 = vpop.f32.mrb[0].mxu0
        %v1337 = vadd.f32 0.0, %v1336
        %v1338 = vpop.f32.mrb[0].mxu0
        %v1339 = vadd.f32 0.0, %v1338
        %v1340 = vpop.f32.mrb[0].mxu0
        %v1341 = vadd.f32 0.0, %v1340
        %1342 = vmatprep.mubr.bf16.mxu0 0
        %1343 = vmatmul.mubr.bf16.gmra.mrb[0].mxu0 %v1201
        %v1344 = vpop.f32.mrb[0].mxu0
        %v1345 = vadd.f32 0.0, %v1344
        %v1346 = vpop.f32.mrb[0].mxu0
        %v1347 = vadd.f32 0.0, %v1346
        %v1348 = vpop.f32.mrb[0].mxu0
        %v1349 = vadd.f32 0.0, %v1348
        %v1350 = vpop.f32.mrb[0].mxu0
        %v1351 = vadd.f32 0.0, %v1350
        %1352 = vmatprep.mubr.bf16.mxu0 0
        %1353 = vmatmul.mubr.bf16.gmra.mrb[0].mxu0 %v1204
        %v1354 = vpop.f32.mrb[0].mxu0
        %v1355 = vadd.f32 0.0, %v1354
        %v1356 = vpop.f32.mrb[0].mxu0
        %v1357 = vadd.f32 0.0, %v1356
        %v1358 = vpop.f32.mrb[0].mxu0
        %v1359 = vadd.f32 0.0, %v1358
        %v1360 = vpop.f32.mrb[0].mxu0
        %v1361 = vadd.f32 0.0, %v1360
        %1362 = vmatprep.mubr.bf16.mxu0 0
        %1363 = vmatmul.mubr.bf16.gmra.mrb[0].mxu0 %v1207
        %v1364 = vpop.f32.mrb[0].mxu0
        %v1365 = vadd.f32 0.0, %v1364
        %v1366 = vpop.f32.mrb[0].mxu0
        %v1367 = vadd.f32 0.0, %v1366
        %v1368 = vpop.f32.mrb[0].mxu0
        %v1369 = vadd.f32 0.0, %v1368
        %v1370 = vpop.f32.mrb[0].mxu0
        %v1371 = vadd.f32 0.0, %v1370
        %1372 = vmatprep.mubr.bf16.mxu0 0
        %1373 = vmatmul.mubr.bf16.gmra.mrb[0].mxu0 %v1210
        %v1374 = vpop.f32.mrb[0].mxu0
        %v1375 = vadd.f32 0.0, %v1374
        %v1376 = vpop.f32.mrb[0].mxu0
        %v1377 = vadd.f32 0.0, %v1376
        %v1378 = vpop.f32.mrb[0].mxu0
        %v1379 = vadd.f32 0.0, %v1378
        %v1380 = vpop.f32.mrb[0].mxu0
        %v1381 = vadd.f32 0.0, %v1380
        %1382 = vmatprep.mubr.bf16.mxu0 0
        %1383 = vmatmul.mubr.bf16.gmra.mrb[0].mxu0 %v1213
        %v1384 = vpop.f32.mrb[0].mxu0
        %v1385 = vadd.f32 0.0, %v1384
        %v1386 = vpop.f32.mrb[0].mxu0
        %v1387 = vadd.f32 0.0, %v1386
        %v1388 = vpop.f32.mrb[0].mxu0
        %v1389 = vadd.f32 0.0, %v1388
        %v1390 = vpop.f32.mrb[0].mxu0
        %v1391 = vadd.f32 0.0, %v1390
        %1392 = vmatprep.mubr.bf16.mxu0 0
        %1393 = vmatmul.mubr.bf16.gmra.mrb[0].mxu0 %v1216
        %v1394 = vpop.f32.mrb[0].mxu0
        %v1395 = vadd.f32 0.0, %v1394
        %v1396 = vpop.f32.mrb[0].mxu0
        %v1397 = vadd.f32 0.0, %v1396
        %v1398 = vpop.f32.mrb[0].mxu0
        %v1399 = vadd.f32 0.0, %v1398
        %v1400 = vpop.f32.mrb[0].mxu0
        %v1401 = vadd.f32 0.0, %v1400
        %1402 = vmatprep.mubr.bf16.mxu0 0
        %1403 = vmatmul.mubr.bf16.gmra.mrb[0].mxu0 %v1219
        %v1404 = vpop.f32.mrb[0].mxu0
        %v1405 = vadd.f32 0.0, %v1404
        %v1406 = vpop.f32.mrb[0].mxu0
        %v1407 = vadd.f32 0.0, %v1406
        %v1408 = vpop.f32.mrb[0].mxu0
        %v1409 = vadd.f32 0.0, %v1408
        %v1410 = vpop.f32.mrb[0].mxu0
        %v1411 = vadd.f32 0.0, %v1410
        %1412 = vmatprep.mubr.bf16.mxu0 0
        %1413 = vmatmul.mubr.bf16.gmra.mrb[0].mxu0 %v1222
        %v1414 = vpop.f32.mrb[0].mxu0
        %v1415 = vadd.f32 0.0, %v1414
        %v1416 = vpop.f32.mrb[0].mxu0
        %v1417 = vadd.f32 0.0, %v1416
        %v1418 = vpop.f32.mrb[0].mxu0
        %v1419 = vadd.f32 0.0, %v1418
        %v1420 = vpop.f32.mrb[0].mxu0
        %v1421 = vadd.f32 0.0, %v1420
        %1422 = vmatprep.mubr.bf16.mxu0 0
        %1423 = vmatmul.mubr.bf16.gmra.mrb[0].mxu0 %v1225
        %v1424 = vpop.f32.mrb[0].mxu0
        %v1425 = vadd.f32 0.0, %v1424
        %v1426 = vpop.f32.mrb[0].mxu0
        %v1427 = vadd.f32 0.0, %v1426
        %v1428 = vpop.f32.mrb[0].mxu0
        %v1429 = vadd.f32 0.0, %v1428
        %v1430 = vpop.f32.mrb[0].mxu0
        %v1431 = vadd.f32 0.0, %v1430
        %1432 = vmatprep.mubr.bf16.mxu0 0
        %1433 = vmatmul.mubr.bf16.gmra.mrb[0].mxu0 %v1228
        %v1434 = vpop.f32.mrb[0].mxu0
        %v1435 = vadd.f32 0.0, %v1434
        %v1436 = vpop.f32.mrb[0].mxu0
        %v1437 = vadd.f32 0.0, %v1436
        %v1438 = vpop.f32.mrb[0].mxu0
        %v1439 = vadd.f32 0.0, %v1438
        %v1440 = vpop.f32.mrb[0].mxu0
        %v1441 = vadd.f32 0.0, %v1440
        %1442 = vmatprep.mubr.bf16.mxu0 0
        %1443 = vmatmul.mubr.bf16.gmra.mrb[0].mxu0 %v1231
        %v1444 = vpop.f32.mrb[0].mxu0
        %v1445 = vadd.f32 0.0, %v1444
        %v1446 = vpop.f32.mrb[0].mxu0
        %v1447 = vadd.f32 0.0, %v1446
        %v1448 = vpop.f32.mrb[0].mxu0
        %v1449 = vadd.f32 0.0, %v1448
        %v1450 = vpop.f32.mrb[0].mxu0
        %v1451 = vadd.f32 0.0, %v1450
        %1452 = vmatprep.mubr.bf16.mxu0 0
        %1453 = vmatmul.mubr.bf16.gmra.mrb[0].mxu0 %v1234
        %v1454 = vpop.f32.mrb[0].mxu0
        %v1455 = vadd.f32 0.0, %v1454
        %v1456 = vpop.f32.mrb[0].mxu0
        %v1457 = vadd.f32 0.0, %v1456
        %v1458 = vpop.f32.mrb[0].mxu0
        %v1459 = vadd.f32 0.0, %v1458
        %v1460 = vpop.f32.mrb[0].mxu0
        %v1461 = vadd.f32 0.0, %v1460
        %1462 = vmatprep.mubr.bf16.mxu0 0
        %1463 = vmatmul.mubr.bf16.gmra.mrb[0].mxu0 %v1237
        %v1464 = vpop.f32.mrb[0].mxu0
        %v1465 = vadd.f32 0.0, %v1464
        %v1466 = vpop.f32.mrb[0].mxu0
        %v1467 = vadd.f32 0.0, %v1466
        %v1468 = vpop.f32.mrb[0].mxu0
        %v1469 = vadd.f32 0.0, %v1468
        %v1470 = vpop.f32.mrb[0].mxu0
        %v1471 = vadd.f32 0.0, %v1470
        %1472 = vmatprep.mubr.bf16.mxu0 0
        %1473 = vmatmul.mubr.bf16.gmra.mrb[0].mxu0 %v1240
        %v1474 = vpop.f32.mrb[0].mxu0
        %v1475 = vadd.f32 0.0, %v1474
        %v1476 = vpop.f32.mrb[0].mxu0
        %v1477 = vadd.f32 0.0, %v1476
        %v1478 = vpop.f32.mrb[0].mxu0
        %v1479 = vadd.f32 0.0, %v1478
        %v1480 = vpop.f32.mrb[0].mxu0
        %v1481 = vadd.f32 0.0, %v1480
        %1482 = vmatprep.mubr.bf16.mxu0 0
        %1483 = vmatmul.mubr.bf16.gmra.mrb[0].mxu0 %v1243
        %v1484 = vpop.f32.mrb[0].mxu0
        %v1485 = vadd.f32 0.0, %v1484
        %v1486 = vpop.f32.mrb[0].mxu0
        %v1487 = vadd.f32 0.0, %v1486
        %v1488 = vpop.f32.mrb[0].mxu0
        %v1489 = vadd.f32 0.0, %v1488
        %v1490 = vpop.f32.mrb[0].mxu0
        %v1491 = vadd.f32 0.0, %v1490
        %1492 = vmatprep.mubr.bf16.mxu0 0
        %1493 = vmatmul.mubr.bf16.gmra.mrb[0].mxu0 %v1246
        %v1494 = vpop.f32.mrb[0].mxu0
        %v1495 = vadd.f32 0.0, %v1494
        %v1496 = vpop.f32.mrb[0].mxu0
        %v1497 = vadd.f32 0.0, %v1496
        %v1498 = vpop.f32.mrb[0].mxu0
        %v1499 = vadd.f32 0.0, %v1498
        %v1500 = vpop.f32.mrb[0].mxu0
        %v1501 = vadd.f32 0.0, %v1500
        %1502 = vmatprep.mubr.bf16.mxu0 0
        %1503 = vmatmul.mubr.bf16.gmra.mrb[0].mxu0 %v1249
        %v1504 = vpop.f32.mrb[0].mxu0
        %v1505 = vadd.f32 0.0, %v1504
        %v1506 = vpop.f32.mrb[0].mxu0
        %v1507 = vadd.f32 0.0, %v1506
        %v1508 = vpop.f32.mrb[0].mxu0
        %v1509 = vadd.f32 0.0, %v1508
        %v1510 = vpop.f32.mrb[0].mxu0
        %v1511 = vadd.f32 0.0, %v1510
        %1512 = vmatprep.mubr.bf16.mxu0 0
        %1513 = vmatmul.mubr.bf16.gmra.mrb[0].mxu0 %v1252
        %v1514 = vpop.f32.mrb[0].mxu0
        %v1515 = vadd.f32 0.0, %v1514
        %v1516 = vpop.f32.mrb[0].mxu0
        %v1517 = vadd.f32 0.0, %v1516
        %v1518 = vpop.f32.mrb[0].mxu0
        %v1519 = vadd.f32 0.0, %v1518
        %v1520 = vpop.f32.mrb[0].mxu0
        %v1521 = vadd.f32 0.0, %v1520
        %1522 = vmatprep.mubr.bf16.mxu0 0
        %1523 = vmatmul.mubr.bf16.gmra.mrb[0].mxu0 %v1255
        %v1524 = vpop.f32.mrb[0].mxu0
        %v1525 = vadd.f32 0.0, %v1524
        %v1526 = vpop.f32.mrb[0].mxu0
        %v1527 = vadd.f32 0.0, %v1526
        %v1528 = vpop.f32.mrb[0].mxu0
        %v1529 = vadd.f32 0.0, %v1528
        %v1530 = vpop.f32.mrb[0].mxu0
        %v1531 = vadd.f32 0.0, %v1530
        %1532 = vmatprep.mubr.bf16.mxu0 0
        %1533 = vmatmul.mubr.bf16.gmra.mrb[0].mxu0 %v1258
        %v1534 = vpop.f32.mrb[0].mxu0
        %v1535 = vadd.f32 0.0, %v1534
        %v1536 = vpop.f32.mrb[0].mxu0
        %v1537 = vadd.f32 0.0, %v1536
        %v1538 = vpop.f32.mrb[0].mxu0
        %v1539 = vadd.f32 0.0, %v1538
        %v1540 = vpop.f32.mrb[0].mxu0
        %v1541 = vadd.f32 0.0, %v1540
        %1542 = vmatprep.mubr.bf16.mxu0 0
        %1543 = vmatmul.mubr.bf16.gmra.mrb[0].mxu0 %v1261
        %v1544 = vpop.f32.mrb[0].mxu0
        %v1545 = vadd.f32 0.0, %v1544
        %v1546 = vpop.f32.mrb[0].mxu0
        %v1547 = vadd.f32 0.0, %v1546
        %v1548 = vpop.f32.mrb[0].mxu0
        %v1549 = vadd.f32 0.0, %v1548
        %v1550 = vpop.f32.mrb[0].mxu0
        %v1551 = vadd.f32 0.0, %v1550
        %1552 = vmatprep.mubr.bf16.mxu0 0
        %1553 = vmatmul.mubr.bf16.gmra.mrb[0].mxu0 %v1264
        %v1554 = vpop.f32.mrb[0].mxu0
        %v1555 = vadd.f32 0.0, %v1554
        %v1556 = vpop.f32.mrb[0].mxu0
        %v1557 = vadd.f32 0.0, %v1556
        %v1558 = vpop.f32.mrb[0].mxu0
        %v1559 = vadd.f32 0.0, %v1558
        %v1560 = vpop.f32.mrb[0].mxu0
        %v1561 = vadd.f32 0.0, %v1560
        %1562 = vmatprep.mubr.bf16.mxu0 0
        %1563 = vmatmul.mubr.bf16.gmra.mrb[0].mxu0 %v1267
        %v1564 = vpop.f32.mrb[0].mxu0
        %v1565 = vadd.f32 0.0, %v1564
        %v1566 = vpop.f32.mrb[0].mxu0
        %v1567 = vadd.f32 0.0, %v1566
        %v1568 = vpop.f32.mrb[0].mxu0
        %v1569 = vadd.f32 0.0, %v1568
        %v1570 = vpop.f32.mrb[0].mxu0
        %v1571 = vadd.f32 0.0, %v1570
        %1572 = vmatprep.mubr.bf16.mxu0 0
        %1573 = vmatmul.mubr.bf16.gmra.mrb[0].mxu0 %v1270
        %v1574 = vpop.f32.mrb[0].mxu0
        %v1575 = vadd.f32 0.0, %v1574
        %v1576 = vpop.f32.mrb[0].mxu0
        %v1577 = vadd.f32 0.0, %v1576
        %v1578 = vpop.f32.mrb[0].mxu0
        %v1579 = vadd.f32 0.0, %v1578
        %v1580 = vpop.f32.mrb[0].mxu0
        %v1581 = vadd.f32 0.0, %v1580
        %1582 = vmatprep.mubr.bf16.mxu0 0
        %1583 = vmatmul.mubr.bf16.gmra.mrb[0].mxu0 %v1273
        %v1584 = vpop.f32.mrb[0].mxu0
        %v1585 = vadd.f32 0.0, %v1584
        %v1586 = vpop.f32.mrb[0].mxu0
        %v1587 = vadd.f32 0.0, %v1586
        %v1588 = vpop.f32.mrb[0].mxu0
        %v1589 = vadd.f32 0.0, %v1588
        %v1590 = vpop.f32.mrb[0].mxu0
        %v1591 = vadd.f32 0.0, %v1590
        %1592 = vmatprep.mubr.bf16.mxu0 0
        %1593 = vmatmul.mubr.bf16.gmra.mrb[0].mxu0 %v1276
        %v1594 = vpop.f32.mrb[0].mxu0
        %v1595 = vadd.f32 0.0, %v1594
        %v1596 = vpop.f32.mrb[0].mxu0
        %v1597 = vadd.f32 0.0, %v1596
        %v1598 = vpop.f32.mrb[0].mxu0
        %v1599 = vadd.f32 0.0, %v1598
        %v1600 = vpop.f32.mrb[0].mxu0
        %v1601 = vadd.f32 0.0, %v1600
        %1602 = vmatprep.mubr.bf16.mxu0 0
        %1603 = vmatmul.mubr.bf16.gmra.mrb[0].mxu0 %v1279
        %v1604 = vpop.f32.mrb[0].mxu0
        %v1605 = vadd.f32 0.0, %v1604
        %v1606 = vpop.f32.mrb[0].mxu0
        %v1607 = vadd.f32 0.0, %v1606
        %v1608 = vpop.f32.mrb[0].mxu0
        %v1609 = vadd.f32 0.0, %v1608
        %v1610 = vpop.f32.mrb[0].mxu0
        %v1611 = vadd.f32 0.0, %v1610
        %1612 = vmatprep.mubr.bf16.mxu0 0
        %1613 = vmatmul.mubr.bf16.gmra.mrb[0].mxu0 %v1282
        %v1614 = vpop.f32.mrb[0].mxu0
        %v1615 = vadd.f32 0.0, %v1614
        %v1616 = vpop.f32.mrb[0].mxu0
        %v1617 = vadd.f32 0.0, %v1616
        %v1618 = vpop.f32.mrb[0].mxu0
        %v1619 = vadd.f32 0.0, %v1618
        %v1620 = vpop.f32.mrb[0].mxu0
        %v1621 = vadd.f32 0.0, %v1620
        %1622 = vmatprep.mubr.bf16.mxu0 0
        %1623 = vmatmul.mubr.bf16.gmra.mrb[0].mxu0 %v1285
        %v1624 = vpop.f32.mrb[0].mxu0
        %v1625 = vadd.f32 0.0, %v1624
        %v1626 = vpop.f32.mrb[0].mxu0
        %v1627 = vadd.f32 0.0, %v1626
        %v1628 = vpop.f32.mrb[0].mxu0
        %v1629 = vadd.f32 0.0, %v1628
        %v1630 = vpop.f32.mrb[0].mxu0
        %v1631 = vadd.f32 0.0, %v1630
        %1632 = vmatprep.mubr.bf16.mxu0 0
        %1633 = vmatmul.mubr.bf16.gmra.mrb[0].mxu0 %v1288
        %v1634 = vpop.f32.mrb[0].mxu0
        %v1635 = vadd.f32 0.0, %v1634
        %v1636 = vpop.f32.mrb[0].mxu0
        %v1637 = vadd.f32 0.0, %v1636
        %v1638 = vpop.f32.mrb[0].mxu0
        %v1639 = vadd.f32 0.0, %v1638
        %v1640 = vpop.f32.mrb[0].mxu0
        %v1641 = vadd.f32 0.0, %v1640
        %1642 = vdwg.mxu0
        %1643 = vmatprep.subr.bf16.mxu0 %v1132
        %1644 = vmatpush1.bf16.msra.mxu0 %v1131
        %1645 = vmatprep.subr.bf16.mxu0 %v1140
        %1646 = vmatpush1.bf16.msra.mxu0 %v1139
        %1647 = vmatprep.subr.bf16.mxu0 %v1148
        %1648 = vmatpush1.bf16.msra.mxu0 %v1147
        %1649 = vmatprep.subr.bf16.mxu0 %v1156
        %1650 = vmatpush1.bf16.msra.mxu0 %v1155
        %1651 = vmatprep.subr.bf16.mxu0 0
        %1652 = vmatpush1.bf16.msra.mxu0 0
        %1653 = vmatprep.subr.bf16.mxu0 0
        %1654 = vmatpush1.bf16.msra.mxu0 0
        %1655 = vmatprep.subr.bf16.mxu0 0
        %1656 = vmatpush1.bf16.msra.mxu0 0
        %1657 = vmatprep.subr.bf16.mxu0 0
        %1658 = vmatpush1.bf16.msra.mxu0 0
        %1659 = vmatprep.subr.bf16.mxu0 0
        %1660 = vmatpush1.bf16.msra.mxu0 0
        %1661 = vmatprep.subr.bf16.mxu0 0
        %1662 = vmatpush1.bf16.msra.mxu0 0
        %1663 = vmatprep.subr.bf16.mxu0 0
        %1664 = vmatpush1.bf16.msra.mxu0 0
        %1665 = vmatprep.subr.bf16.mxu0 0
        %1666 = vmatpush1.bf16.msra.mxu0 0
        %1667 = vmatprep.subr.bf16.mxu0 0
        %1668 = vmatpush1.bf16.msra.mxu0 0
        %1669 = vmatprep.subr.bf16.mxu0 0
        %1670 = vmatpush1.bf16.msra.mxu0 0
        %1671 = vmatprep.subr.bf16.mxu0 0
        %1672 = vmatpush1.bf16.msra.mxu0 0
        %1673 = vmatprep.subr.bf16.mxu0 0
        %1674 = vmatpush1.bf16.msra.mxu0 0
        %1675 = vmatprep.mubr.bf16.mxu0 0
        %1676 = vmatmul.mubr.bf16.gmra.mrb[0].mxu0 %v1195
        %v1677 = vpop.f32.mrb[0].mxu0
        %v1678 = vadd.f32 0.0, %v1677
        %v1679 = vpop.f32.mrb[0].mxu0
        %v1680 = vadd.f32 0.0, %v1679
        %v1681 = vpop.f32.mrb[0].mxu0
        %v1682 = vadd.f32 0.0, %v1681
        %v1683 = vpop.f32.mrb[0].mxu0
        %v1684 = vadd.f32 0.0, %v1683
        %1685 = vmatprep.mubr.bf16.mxu0 0
        %1686 = vmatmul.mubr.bf16.gmra.mrb[0].mxu0 %v1198
        %v1687 = vpop.f32.mrb[0].mxu0
        %v1688 = vadd.f32 0.0, %v1687
        %v1689 = vpop.f32.mrb[0].mxu0
        %v1690 = vadd.f32 0.0, %v1689
        %v1691 = vpop.f32.mrb[0].mxu0
        %v1692 = vadd.f32 0.0, %v1691
        %v1693 = vpop.f32.mrb[0].mxu0
        %v1694 = vadd.f32 0.0, %v1693
        %1695 = vmatprep.mubr.bf16.mxu0 0
        %1696 = vmatmul.mubr.bf16.gmra.mrb[0].mxu0 %v1201
        %v1697 = vpop.f32.mrb[0].mxu0
        %v1698 = vadd.f32 0.0, %v1697
        %v1699 = vpop.f32.mrb[0].mxu0
        %v1700 = vadd.f32 0.0, %v1699
        %v1701 = vpop.f32.mrb[0].mxu0
        %v1702 = vadd.f32 0.0, %v1701
        %v1703 = vpop.f32.mrb[0].mxu0
        %v1704 = vadd.f32 0.0, %v1703
        %1705 = vmatprep.mubr.bf16.mxu0 0
        %1706 = vmatmul.mubr.bf16.gmra.mrb[0].mxu0 %v1204
        %v1707 = vpop.f32.mrb[0].mxu0
        %v1708 = vadd.f32 0.0, %v1707
        %v1709 = vpop.f32.mrb[0].mxu0
        %v1710 = vadd.f32 0.0, %v1709
        %v1711 = vpop.f32.mrb[0].mxu0
        %v1712 = vadd.f32 0.0, %v1711
        %v1713 = vpop.f32.mrb[0].mxu0
        %v1714 = vadd.f32 0.0, %v1713
        %1715 = vmatprep.mubr.bf16.mxu0 0
        %1716 = vmatmul.mubr.bf16.gmra.mrb[0].mxu0 %v1207
        %v1717 = vpop.f32.mrb[0].mxu0
        %v1718 = vadd.f32 0.0, %v1717
        %v1719 = vpop.f32.mrb[0].mxu0
        %v1720 = vadd.f32 0.0, %v1719
        %v1721 = vpop.f32.mrb[0].mxu0
        %v1722 = vadd.f32 0.0, %v1721
        %v1723 = vpop.f32.mrb[0].mxu0
        %v1724 = vadd.f32 0.0, %v1723
        %1725 = vmatprep.mubr.bf16.mxu0 0
        %1726 = vmatmul.mubr.bf16.gmra.mrb[0].mxu0 %v1210
        %v1727 = vpop.f32.mrb[0].mxu0
        %v1728 = vadd.f32 0.0, %v1727
        %v1729 = vpop.f32.mrb[0].mxu0
        %v1730 = vadd.f32 0.0, %v1729
        %v1731 = vpop.f32.mrb[0].mxu0
        %v1732 = vadd.f32 0.0, %v1731
        %v1733 = vpop.f32.mrb[0].mxu0
        %v1734 = vadd.f32 0.0, %v1733
        %1735 = vmatprep.mubr.bf16.mxu0 0
        %1736 = vmatmul.mubr.bf16.gmra.mrb[0].mxu0 %v1213
        %v1737 = vpop.f32.mrb[0].mxu0
        %v1738 = vadd.f32 0.0, %v1737
        %v1739 = vpop.f32.mrb[0].mxu0
        %v1740 = vadd.f32 0.0, %v1739
        %v1741 = vpop.f32.mrb[0].mxu0
        %v1742 = vadd.f32 0.0, %v1741
        %v1743 = vpop.f32.mrb[0].mxu0
        %v1744 = vadd.f32 0.0, %v1743
        %1745 = vmatprep.mubr.bf16.mxu0 0
        %1746 = vmatmul.mubr.bf16.gmra.mrb[0].mxu0 %v1216
        %v1747 = vpop.f32.mrb[0].mxu0
        %v1748 = vadd.f32 0.0, %v1747
        %v1749 = vpop.f32.mrb[0].mxu0
        %v1750 = vadd.f32 0.0, %v1749
        %v1751 = vpop.f32.mrb[0].mxu0
        %v1752 = vadd.f32 0.0, %v1751
        %v1753 = vpop.f32.mrb[0].mxu0
        %v1754 = vadd.f32 0.0, %v1753
        %1755 = vmatprep.mubr.bf16.mxu0 0
        %1756 = vmatmul.mubr.bf16.gmra.mrb[0].mxu0 %v1219
        %v1757 = vpop.f32.mrb[0].mxu0
        %v1758 = vadd.f32 0.0, %v1757
        %v1759 = vpop.f32.mrb[0].mxu0
        %v1760 = vadd.f32 0.0, %v1759
        %v1761 = vpop.f32.mrb[0].mxu0
        %v1762 = vadd.f32 0.0, %v1761
        %v1763 = vpop.f32.mrb[0].mxu0
        %v1764 = vadd.f32 0.0, %v1763
        %1765 = vmatprep.mubr.bf16.mxu0 0
        %1766 = vmatmul.mubr.bf16.gmra.mrb[0].mxu0 %v1222
        %v1767 = vpop.f32.mrb[0].mxu0
        %v1768 = vadd.f32 0.0, %v1767
        %v1769 = vpop.f32.mrb[0].mxu0
        %v1770 = vadd.f32 0.0, %v1769
        %v1771 = vpop.f32.mrb[0].mxu0
        %v1772 = vadd.f32 0.0, %v1771
        %v1773 = vpop.f32.mrb[0].mxu0
        %v1774 = vadd.f32 0.0, %v1773
        %1775 = vmatprep.mubr.bf16.mxu0 0
        %1776 = vmatmul.mubr.bf16.gmra.mrb[0].mxu0 %v1225
        %v1777 = vpop.f32.mrb[0].mxu0
        %v1778 = vadd.f32 0.0, %v1777
        %v1779 = vpop.f32.mrb[0].mxu0
        %v1780 = vadd.f32 0.0, %v1779
        %v1781 = vpop.f32.mrb[0].mxu0
        %v1782 = vadd.f32 0.0, %v1781
        %v1783 = vpop.f32.mrb[0].mxu0
        %v1784 = vadd.f32 0.0, %v1783
        %1785 = vmatprep.mubr.bf16.mxu0 0
        %1786 = vmatmul.mubr.bf16.gmra.mrb[0].mxu0 %v1228
        %v1787 = vpop.f32.mrb[0].mxu0
        %v1788 = vadd.f32 0.0, %v1787
        %v1789 = vpop.f32.mrb[0].mxu0
        %v1790 = vadd.f32 0.0, %v1789
        %v1791 = vpop.f32.mrb[0].mxu0
        %v1792 = vadd.f32 0.0, %v1791
        %v1793 = vpop.f32.mrb[0].mxu0
        %v1794 = vadd.f32 0.0, %v1793
        %1795 = vmatprep.mubr.bf16.mxu0 0
        %1796 = vmatmul.mubr.bf16.gmra.mrb[0].mxu0 %v1231
        %v1797 = vpop.f32.mrb[0].mxu0
        %v1798 = vadd.f32 0.0, %v1797
        %v1799 = vpop.f32.mrb[0].mxu0
        %v1800 = vadd.f32 0.0, %v1799
        %v1801 = vpop.f32.mrb[0].mxu0
        %v1802 = vadd.f32 0.0, %v1801
        %v1803 = vpop.f32.mrb[0].mxu0
        %v1804 = vadd.f32 0.0, %v1803
        %1805 = vmatprep.mubr.bf16.mxu0 0
        %1806 = vmatmul.mubr.bf16.gmra.mrb[0].mxu0 %v1234
        %v1807 = vpop.f32.mrb[0].mxu0
        %v1808 = vadd.f32 0.0, %v1807
        %v1809 = vpop.f32.mrb[0].mxu0
        %v1810 = vadd.f32 0.0, %v1809
        %v1811 = vpop.f32.mrb[0].mxu0
        %v1812 = vadd.f32 0.0, %v1811
        %v1813 = vpop.f32.mrb[0].mxu0
        %v1814 = vadd.f32 0.0, %v1813
        %1815 = vmatprep.mubr.bf16.mxu0 0
        %1816 = vmatmul.mubr.bf16.gmra.mrb[0].mxu0 %v1237
        %v1817 = vpop.f32.mrb[0].mxu0
        %v1818 = vadd.f32 0.0, %v1817
        %v1819 = vpop.f32.mrb[0].mxu0
        %v1820 = vadd.f32 0.0, %v1819
        %v1821 = vpop.f32.mrb[0].mxu0
        %v1822 = vadd.f32 0.0, %v1821
        %v1823 = vpop.f32.mrb[0].mxu0
        %v1824 = vadd.f32 0.0, %v1823
        %1825 = vmatprep.mubr.bf16.mxu0 0
        %1826 = vmatmul.mubr.bf16.gmra.mrb[0].mxu0 %v1240
        %v1827 = vpop.f32.mrb[0].mxu0
        %v1828 = vadd.f32 0.0, %v1827
        %v1829 = vpop.f32.mrb[0].mxu0
        %v1830 = vadd.f32 0.0, %v1829
        %v1831 = vpop.f32.mrb[0].mxu0
        %v1832 = vadd.f32 0.0, %v1831
        %v1833 = vpop.f32.mrb[0].mxu0
        %v1834 = vadd.f32 0.0, %v1833
        %1835 = vmatprep.mubr.bf16.mxu0 0
        %1836 = vmatmul.mubr.bf16.gmra.mrb[0].mxu0 %v1243
        %v1837 = vpop.f32.mrb[0].mxu0
        %v1838 = vadd.f32 0.0, %v1837
        %v1839 = vpop.f32.mrb[0].mxu0
        %v1840 = vadd.f32 0.0, %v1839
        %v1841 = vpop.f32.mrb[0].mxu0
        %v1842 = vadd.f32 0.0, %v1841
        %v1843 = vpop.f32.mrb[0].mxu0
        %v1844 = vadd.f32 0.0, %v1843
        %1845 = vmatprep.mubr.bf16.mxu0 0
        %1846 = vmatmul.mubr.bf16.gmra.mrb[0].mxu0 %v1246
        %v1847 = vpop.f32.mrb[0].mxu0
        %v1848 = vadd.f32 0.0, %v1847
        %v1849 = vpop.f32.mrb[0].mxu0
        %v1850 = vadd.f32 0.0, %v1849
        %v1851 = vpop.f32.mrb[0].mxu0
        %v1852 = vadd.f32 0.0, %v1851
        %v1853 = vpop.f32.mrb[0].mxu0
        %v1854 = vadd.f32 0.0, %v1853
        %1855 = vmatprep.mubr.bf16.mxu0 0
        %1856 = vmatmul.mubr.bf16.gmra.mrb[0].mxu0 %v1249
        %v1857 = vpop.f32.mrb[0].mxu0
        %v1858 = vadd.f32 0.0, %v1857
        %v1859 = vpop.f32.mrb[0].mxu0
        %v1860 = vadd.f32 0.0, %v1859
        %v1861 = vpop.f32.mrb[0].mxu0
        %v1862 = vadd.f32 0.0, %v1861
        %v1863 = vpop.f32.mrb[0].mxu0
        %v1864 = vadd.f32 0.0, %v1863
        %1865 = vmatprep.mubr.bf16.mxu0 0
        %1866 = vmatmul.mubr.bf16.gmra.mrb[0].mxu0 %v1252
        %v1867 = vpop.f32.mrb[0].mxu0
        %v1868 = vadd.f32 0.0, %v1867
        %v1869 = vpop.f32.mrb[0].mxu0
        %v1870 = vadd.f32 0.0, %v1869
        %v1871 = vpop.f32.mrb[0].mxu0
        %v1872 = vadd.f32 0.0, %v1871
        %v1873 = vpop.f32.mrb[0].mxu0
        %v1874 = vadd.f32 0.0, %v1873
        %1875 = vmatprep.mubr.bf16.mxu0 0
        %1876 = vmatmul.mubr.bf16.gmra.mrb[0].mxu0 %v1255
        %v1877 = vpop.f32.mrb[0].mxu0
        %v1878 = vadd.f32 0.0, %v1877
        %v1879 = vpop.f32.mrb[0].mxu0
        %v1880 = vadd.f32 0.0, %v1879
        %v1881 = vpop.f32.mrb[0].mxu0
        %v1882 = vadd.f32 0.0, %v1881
        %v1883 = vpop.f32.mrb[0].mxu0
        %v1884 = vadd.f32 0.0, %v1883
        %1885 = vmatprep.mubr.bf16.mxu0 0
        %1886 = vmatmul.mubr.bf16.gmra.mrb[0].mxu0 %v1258
        %v1887 = vpop.f32.mrb[0].mxu0
        %v1888 = vadd.f32 0.0, %v1887
        %v1889 = vpop.f32.mrb[0].mxu0
        %v1890 = vadd.f32 0.0, %v1889
        %v1891 = vpop.f32.mrb[0].mxu0
        %v1892 = vadd.f32 0.0, %v1891
        %v1893 = vpop.f32.mrb[0].mxu0
        %v1894 = vadd.f32 0.0, %v1893
        %1895 = vmatprep.mubr.bf16.mxu0 0
        %1896 = vmatmul.mubr.bf16.gmra.mrb[0].mxu0 %v1261
        %v1897 = vpop.f32.mrb[0].mxu0
        %v1898 = vadd.f32 0.0, %v1897
        %v1899 = vpop.f32.mrb[0].mxu0
        %v1900 = vadd.f32 0.0, %v1899
        %v1901 = vpop.f32.mrb[0].mxu0
        %v1902 = vadd.f32 0.0, %v1901
        %v1903 = vpop.f32.mrb[0].mxu0
        %v1904 = vadd.f32 0.0, %v1903
        %1905 = vmatprep.mubr.bf16.mxu0 0
        %1906 = vmatmul.mubr.bf16.gmra.mrb[0].mxu0 %v1264
        %v1907 = vpop.f32.mrb[0].mxu0
        %v1908 = vadd.f32 0.0, %v1907
        %v1909 = vpop.f32.mrb[0].mxu0
        %v1910 = vadd.f32 0.0, %v1909
        %v1911 = vpop.f32.mrb[0].mxu0
        %v1912 = vadd.f32 0.0, %v1911
        %v1913 = vpop.f32.mrb[0].mxu0
        %v1914 = vadd.f32 0.0, %v1913
        %1915 = vmatprep.mubr.bf16.mxu0 0
        %1916 = vmatmul.mubr.bf16.gmra.mrb[0].mxu0 %v1267
        %v1917 = vpop.f32.mrb[0].mxu0
        %v1918 = vadd.f32 0.0, %v1917
        %v1919 = vpop.f32.mrb[0].mxu0
        %v1920 = vadd.f32 0.0, %v1919
        %v1921 = vpop.f32.mrb[0].mxu0
        %v1922 = vadd.f32 0.0, %v1921
        %v1923 = vpop.f32.mrb[0].mxu0
        %v1924 = vadd.f32 0.0, %v1923
        %1925 = vmatprep.mubr.bf16.mxu0 0
        %1926 = vmatmul.mubr.bf16.gmra.mrb[0].mxu0 %v1270
        %v1927 = vpop.f32.mrb[0].mxu0
        %v1928 = vadd.f32 0.0, %v1927
        %v1929 = vpop.f32.mrb[0].mxu0
        %v1930 = vadd.f32 0.0, %v1929
        %v1931 = vpop.f32.mrb[0].mxu0
        %v1932 = vadd.f32 0.0, %v1931
        %v1933 = vpop.f32.mrb[0].mxu0
        %v1934 = vadd.f32 0.0, %v1933
        %1935 = vmatprep.mubr.bf16.mxu0 0
        %1936 = vmatmul.mubr.bf16.gmra.mrb[0].mxu0 %v1273
        %v1937 = vpop.f32.mrb[0].mxu0
        %v1938 = vadd.f32 0.0, %v1937
        %v1939 = vpop.f32.mrb[0].mxu0
        %v1940 = vadd.f32 0.0, %v1939
        %v1941 = vpop.f32.mrb[0].mxu0
        %v1942 = vadd.f32 0.0, %v1941
        %v1943 = vpop.f32.mrb[0].mxu0
        %v1944 = vadd.f32 0.0, %v1943
        %1945 = vmatprep.mubr.bf16.mxu0 0
        %1946 = vmatmul.mubr.bf16.gmra.mrb[0].mxu0 %v1276
        %v1947 = vpop.f32.mrb[0].mxu0
        %v1948 = vadd.f32 0.0, %v1947
        %v1949 = vpop.f32.mrb[0].mxu0
        %v1950 = vadd.f32 0.0, %v1949
        %v1951 = vpop.f32.mrb[0].mxu0
        %v1952 = vadd.f32 0.0, %v1951
        %v1953 = vpop.f32.mrb[0].mxu0
        %v1954 = vadd.f32 0.0, %v1953
        %1955 = vmatprep.mubr.bf16.mxu0 0
        %1956 = vmatmul.mubr.bf16.gmra.mrb[0].mxu0 %v1279
        %v1957 = vpop.f32.mrb[0].mxu0
        %v1958 = vadd.f32 0.0, %v1957
        %v1959 = vpop.f32.mrb[0].mxu0
        %v1960 = vadd.f32 0.0, %v1959
        %v1961 = vpop.f32.mrb[0].mxu0
        %v1962 = vadd.f32 0.0, %v1961
        %v1963 = vpop.f32.mrb[0].mxu0
        %v1964 = vadd.f32 0.0, %v1963
        %1965 = vmatprep.mubr.bf16.mxu0 0
        %1966 = vmatmul.mubr.bf16.gmra.mrb[0].mxu0 %v1282
        %v1967 = vpop.f32.mrb[0].mxu0
        %v1968 = vadd.f32 0.0, %v1967
        %v1969 = vpop.f32.mrb[0].mxu0
        %v1970 = vadd.f32 0.0, %v1969
        %v1971 = vpop.f32.mrb[0].mxu0
        %v1972 = vadd.f32 0.0, %v1971
        %v1973 = vpop.f32.mrb[0].mxu0
        %v1974 = vadd.f32 0.0, %v1973
        %1975 = vmatprep.mubr.bf16.mxu0 0
        %1976 = vmatmul.mubr.bf16.gmra.mrb[0].mxu0 %v1285
        %v1977 = vpop.f32.mrb[0].mxu0
        %v1978 = vadd.f32 0.0, %v1977
        %v1979 = vpop.f32.mrb[0].mxu0
        %v1980 = vadd.f32 0.0, %v1979
        %v1981 = vpop.f32.mrb[0].mxu0
        %v1982 = vadd.f32 0.0, %v1981
        %v1983 = vpop.f32.mrb[0].mxu0
        %v1984 = vadd.f32 0.0, %v1983
        %1985 = vmatprep.mubr.bf16.mxu0 0
        %1986 = vmatmul.mubr.bf16.gmra.mrb[0].mxu0 %v1288
        %v1987 = vpop.f32.mrb[0].mxu0
        %v1988 = vadd.f32 0.0, %v1987
        %v1989 = vpop.f32.mrb[0].mxu0
        %v1990 = vadd.f32 0.0, %v1989
        %v1991 = vpop.f32.mrb[0].mxu0
        %v1992 = vadd.f32 0.0, %v1991
        %v1993 = vpop.f32.mrb[0].mxu0
        %v1994 = vadd.f32 0.0, %v1993
        %1995 = vdwg.mxu0
        %1996 = vmatprep.subr.bf16.mxu0 %v1134
        %1997 = vmatpush1.bf16.msra.mxu0 %v1133
        %1998 = vmatprep.subr.bf16.mxu0 %v1142
        %1999 = vmatpush1.bf16.msra.mxu0 %v1141
        %2000 = vmatprep.subr.bf16.mxu0 %v1150
        %2001 = vmatpush1.bf16.msra.mxu0 %v1149
        %2002 = vmatprep.subr.bf16.mxu0 %v1158
        %2003 = vmatpush1.bf16.msra.mxu0 %v1157
        %2004 = vmatprep.subr.bf16.mxu0 0
        %2005 = vmatpush1.bf16.msra.mxu0 0
        %2006 = vmatprep.subr.bf16.mxu0 0
        %2007 = vmatpush1.bf16.msra.mxu0 0
        %2008 = vmatprep.subr.bf16.mxu0 0
        %2009 = vmatpush1.bf16.msra.mxu0 0
        %2010 = vmatprep.subr.bf16.mxu0 0
        %2011 = vmatpush1.bf16.msra.mxu0 0
        %2012 = vmatprep.subr.bf16.mxu0 0
        %2013 = vmatpush1.bf16.msra.mxu0 0
        %2014 = vmatprep.subr.bf16.mxu0 0
        %2015 = vmatpush1.bf16.msra.mxu0 0
        %2016 = vmatprep.subr.bf16.mxu0 0
        %2017 = vmatpush1.bf16.msra.mxu0 0
        %2018 = vmatprep.subr.bf16.mxu0 0
        %2019 = vmatpush1.bf16.msra.mxu0 0
        %2020 = vmatprep.subr.bf16.mxu0 0
        %2021 = vmatpush1.bf16.msra.mxu0 0
        %2022 = vmatprep.subr.bf16.mxu0 0
        %2023 = vmatpush1.bf16.msra.mxu0 0
        %2024 = vmatprep.subr.bf16.mxu0 0
        %2025 = vmatpush1.bf16.msra.mxu0 0
        %2026 = vmatprep.subr.bf16.mxu0 0
        %2027 = vmatpush1.bf16.msra.mxu0 0
        %2028 = vmatprep.mubr.bf16.mxu0 0
        %2029 = vmatmul.mubr.bf16.gmra.mrb[0].mxu0 %v1195
        %v2030 = vpop.f32.mrb[0].mxu0
        %v2031 = vadd.f32 0.0, %v2030
        %v2032 = vpop.f32.mrb[0].mxu0
        %v2033 = vadd.f32 0.0, %v2032
        %v2034 = vpop.f32.mrb[0].mxu0
        %v2035 = vadd.f32 0.0, %v2034
        %v2036 = vpop.f32.mrb[0].mxu0
        %v2037 = vadd.f32 0.0, %v2036
        %2038 = vmatprep.mubr.bf16.mxu0 0
        %2039 = vmatmul.mubr.bf16.gmra.mrb[0].mxu0 %v1198
        %v2040 = vpop.f32.mrb[0].mxu0
        %v2041 = vadd.f32 0.0, %v2040
        %v2042 = vpop.f32.mrb[0].mxu0
        %v2043 = vadd.f32 0.0, %v2042
        %v2044 = vpop.f32.mrb[0].mxu0
        %v2045 = vadd.f32 0.0, %v2044
        %v2046 = vpop.f32.mrb[0].mxu0
        %v2047 = vadd.f32 0.0, %v2046
        %2048 = vmatprep.mubr.bf16.mxu0 0
        %2049 = vmatmul.mubr.bf16.gmra.mrb[0].mxu0 %v1201
        %v2050 = vpop.f32.mrb[0].mxu0
        %v2051 = vadd.f32 0.0, %v2050
        %v2052 = vpop.f32.mrb[0].mxu0
        %v2053 = vadd.f32 0.0, %v2052
        %v2054 = vpop.f32.mrb[0].mxu0
        %v2055 = vadd.f32 0.0, %v2054
        %v2056 = vpop.f32.mrb[0].mxu0
        %v2057 = vadd.f32 0.0, %v2056
        %2058 = vmatprep.mubr.bf16.mxu0 0
        %2059 = vmatmul.mubr.bf16.gmra.mrb[0].mxu0 %v1204
        %v2060 = vpop.f32.mrb[0].mxu0
        %v2061 = vadd.f32 0.0, %v2060
        %v2062 = vpop.f32.mrb[0].mxu0
        %v2063 = vadd.f32 0.0, %v2062
        %v2064 = vpop.f32.mrb[0].mxu0
        %v2065 = vadd.f32 0.0, %v2064
        %v2066 = vpop.f32.mrb[0].mxu0
        %v2067 = vadd.f32 0.0, %v2066
        %2068 = vmatprep.mubr.bf16.mxu0 0
        %2069 = vmatmul.mubr.bf16.gmra.mrb[0].mxu0 %v1207
        %v2070 = vpop.f32.mrb[0].mxu0
        %v2071 = vadd.f32 0.0, %v2070
        %v2072 = vpop.f32.mrb[0].mxu0
        %v2073 = vadd.f32 0.0, %v2072
        %v2074 = vpop.f32.mrb[0].mxu0
        %v2075 = vadd.f32 0.0, %v2074
        %v2076 = vpop.f32.mrb[0].mxu0
        %v2077 = vadd.f32 0.0, %v2076
        %2078 = vmatprep.mubr.bf16.mxu0 0
        %2079 = vmatmul.mubr.bf16.gmra.mrb[0].mxu0 %v1210
        %v2080 = vpop.f32.mrb[0].mxu0
        %v2081 = vadd.f32 0.0, %v2080
        %v2082 = vpop.f32.mrb[0].mxu0
        %v2083 = vadd.f32 0.0, %v2082
        %v2084 = vpop.f32.mrb[0].mxu0
        %v2085 = vadd.f32 0.0, %v2084
        %v2086 = vpop.f32.mrb[0].mxu0
        %v2087 = vadd.f32 0.0, %v2086
        %2088 = vmatprep.mubr.bf16.mxu0 0
        %2089 = vmatmul.mubr.bf16.gmra.mrb[0].mxu0 %v1213
        %v2090 = vpop.f32.mrb[0].mxu0
        %v2091 = vadd.f32 0.0, %v2090
        %v2092 = vpop.f32.mrb[0].mxu0
        %v2093 = vadd.f32 0.0, %v2092
        %v2094 = vpop.f32.mrb[0].mxu0
        %v2095 = vadd.f32 0.0, %v2094
        %v2096 = vpop.f32.mrb[0].mxu0
        %v2097 = vadd.f32 0.0, %v2096
        %2098 = vmatprep.mubr.bf16.mxu0 0
        %2099 = vmatmul.mubr.bf16.gmra.mrb[0].mxu0 %v1216
        %v2100 = vpop.f32.mrb[0].mxu0
        %v2101 = vadd.f32 0.0, %v2100
        %v2102 = vpop.f32.mrb[0].mxu0
        %v2103 = vadd.f32 0.0, %v2102
        %v2104 = vpop.f32.mrb[0].mxu0
        %v2105 = vadd.f32 0.0, %v2104
        %v2106 = vpop.f32.mrb[0].mxu0
        %v2107 = vadd.f32 0.0, %v2106
        %2108 = vmatprep.mubr.bf16.mxu0 0
        %2109 = vmatmul.mubr.bf16.gmra.mrb[0].mxu0 %v1219
        %v2110 = vpop.f32.mrb[0].mxu0
        %v2111 = vadd.f32 0.0, %v2110
        %v2112 = vpop.f32.mrb[0].mxu0
        %v2113 = vadd.f32 0.0, %v2112
        %v2114 = vpop.f32.mrb[0].mxu0
        %v2115 = vadd.f32 0.0, %v2114
        %v2116 = vpop.f32.mrb[0].mxu0
        %v2117 = vadd.f32 0.0, %v2116
        %2118 = vmatprep.mubr.bf16.mxu0 0
        %2119 = vmatmul.mubr.bf16.gmra.mrb[0].mxu0 %v1222
        %v2120 = vpop.f32.mrb[0].mxu0
        %v2121 = vadd.f32 0.0, %v2120
        %v2122 = vpop.f32.mrb[0].mxu0
        %v2123 = vadd.f32 0.0, %v2122
        %v2124 = vpop.f32.mrb[0].mxu0
        %v2125 = vadd.f32 0.0, %v2124
        %v2126 = vpop.f32.mrb[0].mxu0
        %v2127 = vadd.f32 0.0, %v2126
        %2128 = vmatprep.mubr.bf16.mxu0 0
        %2129 = vmatmul.mubr.bf16.gmra.mrb[0].mxu0 %v1225
        %v2130 = vpop.f32.mrb[0].mxu0
        %v2131 = vadd.f32 0.0, %v2130
        %v2132 = vpop.f32.mrb[0].mxu0
        %v2133 = vadd.f32 0.0, %v2132
        %v2134 = vpop.f32.mrb[0].mxu0
        %v2135 = vadd.f32 0.0, %v2134
        %v2136 = vpop.f32.mrb[0].mxu0
        %v2137 = vadd.f32 0.0, %v2136
        %2138 = vmatprep.mubr.bf16.mxu0 0
        %2139 = vmatmul.mubr.bf16.gmra.mrb[0].mxu0 %v1228
        %v2140 = vpop.f32.mrb[0].mxu0
        %v2141 = vadd.f32 0.0, %v2140
        %v2142 = vpop.f32.mrb[0].mxu0
        %v2143 = vadd.f32 0.0, %v2142
        %v2144 = vpop.f32.mrb[0].mxu0
        %v2145 = vadd.f32 0.0, %v2144
        %v2146 = vpop.f32.mrb[0].mxu0
        %v2147 = vadd.f32 0.0, %v2146
        %2148 = vmatprep.mubr.bf16.mxu0 0
        %2149 = vmatmul.mubr.bf16.gmra.mrb[0].mxu0 %v1231
        %v2150 = vpop.f32.mrb[0].mxu0
        %v2151 = vadd.f32 0.0, %v2150
        %v2152 = vpop.f32.mrb[0].mxu0
        %v2153 = vadd.f32 0.0, %v2152
        %v2154 = vpop.f32.mrb[0].mxu0
        %v2155 = vadd.f32 0.0, %v2154
        %v2156 = vpop.f32.mrb[0].mxu0
        %v2157 = vadd.f32 0.0, %v2156
        %2158 = vmatprep.mubr.bf16.mxu0 0
        %2159 = vmatmul.mubr.bf16.gmra.mrb[0].mxu0 %v1234
        %v2160 = vpop.f32.mrb[0].mxu0
        %v2161 = vadd.f32 0.0, %v2160
        %v2162 = vpop.f32.mrb[0].mxu0
        %v2163 = vadd.f32 0.0, %v2162
        %v2164 = vpop.f32.mrb[0].mxu0
        %v2165 = vadd.f32 0.0, %v2164
        %v2166 = vpop.f32.mrb[0].mxu0
        %v2167 = vadd.f32 0.0, %v2166
        %2168 = vmatprep.mubr.bf16.mxu0 0
        %2169 = vmatmul.mubr.bf16.gmra.mrb[0].mxu0 %v1237
        %v2170 = vpop.f32.mrb[0].mxu0
        %v2171 = vadd.f32 0.0, %v2170
        %v2172 = vpop.f32.mrb[0].mxu0
        %v2173 = vadd.f32 0.0, %v2172
        %v2174 = vpop.f32.mrb[0].mxu0
        %v2175 = vadd.f32 0.0, %v2174
        %v2176 = vpop.f32.mrb[0].mxu0
        %v2177 = vadd.f32 0.0, %v2176
        %2178 = vmatprep.mubr.bf16.mxu0 0
        %2179 = vmatmul.mubr.bf16.gmra.mrb[0].mxu0 %v1240
        %v2180 = vpop.f32.mrb[0].mxu0
        %v2181 = vadd.f32 0.0, %v2180
        %v2182 = vpop.f32.mrb[0].mxu0
        %v2183 = vadd.f32 0.0, %v2182
        %v2184 = vpop.f32.mrb[0].mxu0
        %v2185 = vadd.f32 0.0, %v2184
        %v2186 = vpop.f32.mrb[0].mxu0
        %v2187 = vadd.f32 0.0, %v2186
        %2188 = vmatprep.mubr.bf16.mxu0 0
        %2189 = vmatmul.mubr.bf16.gmra.mrb[0].mxu0 %v1243
        %v2190 = vpop.f32.mrb[0].mxu0
        %v2191 = vadd.f32 0.0, %v2190
        %v2192 = vpop.f32.mrb[0].mxu0
        %v2193 = vadd.f32 0.0, %v2192
        %v2194 = vpop.f32.mrb[0].mxu0
        %v2195 = vadd.f32 0.0, %v2194
        %v2196 = vpop.f32.mrb[0].mxu0
        %v2197 = vadd.f32 0.0, %v2196
        %2198 = vmatprep.mubr.bf16.mxu0 0
        %2199 = vmatmul.mubr.bf16.gmra.mrb[0].mxu0 %v1246
        %v2200 = vpop.f32.mrb[0].mxu0
        %v2201 = vadd.f32 0.0, %v2200
        %v2202 = vpop.f32.mrb[0].mxu0
        %v2203 = vadd.f32 0.0, %v2202
        %v2204 = vpop.f32.mrb[0].mxu0
        %v2205 = vadd.f32 0.0, %v2204
        %v2206 = vpop.f32.mrb[0].mxu0
        %v2207 = vadd.f32 0.0, %v2206
        %2208 = vmatprep.mubr.bf16.mxu0 0
        %2209 = vmatmul.mubr.bf16.gmra.mrb[0].mxu0 %v1249
        %v2210 = vpop.f32.mrb[0].mxu0
        %v2211 = vadd.f32 0.0, %v2210
        %v2212 = vpop.f32.mrb[0].mxu0
        %v2213 = vadd.f32 0.0, %v2212
        %v2214 = vpop.f32.mrb[0].mxu0
        %v2215 = vadd.f32 0.0, %v2214
        %v2216 = vpop.f32.mrb[0].mxu0
        %v2217 = vadd.f32 0.0, %v2216
        %2218 = vmatprep.mubr.bf16.mxu0 0
        %2219 = vmatmul.mubr.bf16.gmra.mrb[0].mxu0 %v1252
        %v2220 = vpop.f32.mrb[0].mxu0
        %v2221 = vadd.f32 0.0, %v2220
        %v2222 = vpop.f32.mrb[0].mxu0
        %v2223 = vadd.f32 0.0, %v2222
        %v2224 = vpop.f32.mrb[0].mxu0
        %v2225 = vadd.f32 0.0, %v2224
        %v2226 = vpop.f32.mrb[0].mxu0
        %v2227 = vadd.f32 0.0, %v2226
        %2228 = vmatprep.mubr.bf16.mxu0 0
        %2229 = vmatmul.mubr.bf16.gmra.mrb[0].mxu0 %v1255
        %v2230 = vpop.f32.mrb[0].mxu0
        %v2231 = vadd.f32 0.0, %v2230
        %v2232 = vpop.f32.mrb[0].mxu0
        %v2233 = vadd.f32 0.0, %v2232
        %v2234 = vpop.f32.mrb[0].mxu0
        %v2235 = vadd.f32 0.0, %v2234
        %v2236 = vpop.f32.mrb[0].mxu0
        %v2237 = vadd.f32 0.0, %v2236
        %2238 = vmatprep.mubr.bf16.mxu0 0
        %2239 = vmatmul.mubr.bf16.gmra.mrb[0].mxu0 %v1258
        %v2240 = vpop.f32.mrb[0].mxu0
        %v2241 = vadd.f32 0.0, %v2240
        %v2242 = vpop.f32.mrb[0].mxu0
        %v2243 = vadd.f32 0.0, %v2242
        %v2244 = vpop.f32.mrb[0].mxu0
        %v2245 = vadd.f32 0.0, %v2244
        %v2246 = vpop.f32.mrb[0].mxu0
        %v2247 = vadd.f32 0.0, %v2246
        %2248 = vmatprep.mubr.bf16.mxu0 0
        %2249 = vmatmul.mubr.bf16.gmra.mrb[0].mxu0 %v1261
        %v2250 = vpop.f32.mrb[0].mxu0
        %v2251 = vadd.f32 0.0, %v2250
        %v2252 = vpop.f32.mrb[0].mxu0
        %v2253 = vadd.f32 0.0, %v2252
        %v2254 = vpop.f32.mrb[0].mxu0
        %v2255 = vadd.f32 0.0, %v2254
        %v2256 = vpop.f32.mrb[0].mxu0
        %v2257 = vadd.f32 0.0, %v2256
        %2258 = vmatprep.mubr.bf16.mxu0 0
        %2259 = vmatmul.mubr.bf16.gmra.mrb[0].mxu0 %v1264
        %v2260 = vpop.f32.mrb[0].mxu0
        %v2261 = vadd.f32 0.0, %v2260
        %v2262 = vpop.f32.mrb[0].mxu0
        %v2263 = vadd.f32 0.0, %v2262
        %v2264 = vpop.f32.mrb[0].mxu0
        %v2265 = vadd.f32 0.0, %v2264
        %v2266 = vpop.f32.mrb[0].mxu0
        %v2267 = vadd.f32 0.0, %v2266
        %2268 = vmatprep.mubr.bf16.mxu0 0
        %2269 = vmatmul.mubr.bf16.gmra.mrb[0].mxu0 %v1267
        %v2270 = vpop.f32.mrb[0].mxu0
        %v2271 = vadd.f32 0.0, %v2270
        %v2272 = vpop.f32.mrb[0].mxu0
        %v2273 = vadd.f32 0.0, %v2272
        %v2274 = vpop.f32.mrb[0].mxu0
        %v2275 = vadd.f32 0.0, %v2274
        %v2276 = vpop.f32.mrb[0].mxu0
        %v2277 = vadd.f32 0.0, %v2276
        %2278 = vmatprep.mubr.bf16.mxu0 0
        %2279 = vmatmul.mubr.bf16.gmra.mrb[0].mxu0 %v1270
        %v2280 = vpop.f32.mrb[0].mxu0
        %v2281 = vadd.f32 0.0, %v2280
        %v2282 = vpop.f32.mrb[0].mxu0
        %v2283 = vadd.f32 0.0, %v2282
        %v2284 = vpop.f32.mrb[0].mxu0
        %v2285 = vadd.f32 0.0, %v2284
        %v2286 = vpop.f32.mrb[0].mxu0
        %v2287 = vadd.f32 0.0, %v2286
        %2288 = vmatprep.mubr.bf16.mxu0 0
        %2289 = vmatmul.mubr.bf16.gmra.mrb[0].mxu0 %v1273
        %v2290 = vpop.f32.mrb[0].mxu0
        %v2291 = vadd.f32 0.0, %v2290
        %v2292 = vpop.f32.mrb[0].mxu0
        %v2293 = vadd.f32 0.0, %v2292
        %v2294 = vpop.f32.mrb[0].mxu0
        %v2295 = vadd.f32 0.0, %v2294
        %v2296 = vpop.f32.mrb[0].mxu0
        %v2297 = vadd.f32 0.0, %v2296
        %2298 = vmatprep.mubr.bf16.mxu0 0
        %2299 = vmatmul.mubr.bf16.gmra.mrb[0].mxu0 %v1276
        %v2300 = vpop.f32.mrb[0].mxu0
        %v2301 = vadd.f32 0.0, %v2300
        %v2302 = vpop.f32.mrb[0].mxu0
        %v2303 = vadd.f32 0.0, %v2302
        %v2304 = vpop.f32.mrb[0].mxu0
        %v2305 = vadd.f32 0.0, %v2304
        %v2306 = vpop.f32.mrb[0].mxu0
        %v2307 = vadd.f32 0.0, %v2306
        %2308 = vmatprep.mubr.bf16.mxu0 0
        %2309 = vmatmul.mubr.bf16.gmra.mrb[0].mxu0 %v1279
        %v2310 = vpop.f32.mrb[0].mxu0
        %v2311 = vadd.f32 0.0, %v2310
        %v2312 = vpop.f32.mrb[0].mxu0
        %v2313 = vadd.f32 0.0, %v2312
        %v2314 = vpop.f32.mrb[0].mxu0
        %v2315 = vadd.f32 0.0, %v2314
        %v2316 = vpop.f32.mrb[0].mxu0
        %v2317 = vadd.f32 0.0, %v2316
        %2318 = vmatprep.mubr.bf16.mxu0 0
        %2319 = vmatmul.mubr.bf16.gmra.mrb[0].mxu0 %v1282
        %v2320 = vpop.f32.mrb[0].mxu0
        %v2321 = vadd.f32 0.0, %v2320
        %v2322 = vpop.f32.mrb[0].mxu0
        %v2323 = vadd.f32 0.0, %v2322
        %v2324 = vpop.f32.mrb[0].mxu0
        %v2325 = vadd.f32 0.0, %v2324
        %v2326 = vpop.f32.mrb[0].mxu0
        %v2327 = vadd.f32 0.0, %v2326
        %2328 = vmatprep.mubr.bf16.mxu0 0
        %2329 = vmatmul.mubr.bf16.gmra.mrb[0].mxu0 %v1285
        %v2330 = vpop.f32.mrb[0].mxu0
        %v2331 = vadd.f32 0.0, %v2330
        %v2332 = vpop.f32.mrb[0].mxu0
        %v2333 = vadd.f32 0.0, %v2332
        %v2334 = vpop.f32.mrb[0].mxu0
        %v2335 = vadd.f32 0.0, %v2334
        %v2336 = vpop.f32.mrb[0].mxu0
        %v2337 = vadd.f32 0.0, %v2336
        %2338 = vmatprep.mubr.bf16.mxu0 0
        %2339 = vmatmul.mubr.bf16.gmra.mrb[0].mxu0 %v1288
        %v2340 = vpop.f32.mrb[0].mxu0
        %v2341 = vadd.f32 0.0, %v2340
        %v2342 = vpop.f32.mrb[0].mxu0
        %v2343 = vadd.f32 0.0, %v2342
        %v2344 = vpop.f32.mrb[0].mxu0
        %v2345 = vadd.f32 0.0, %v2344
        %v2346 = vpop.f32.mrb[0].mxu0
        %v2347 = vadd.f32 0.0, %v2346
        %2348 = vdwg.mxu0
        %2349 = vmatprep.subr.bf16.mxu0 %v1136
        %2350 = vmatpush1.bf16.msra.mxu0 %v1135
        %2351 = vmatprep.subr.bf16.mxu0 %v1144
        %2352 = vmatpush1.bf16.msra.mxu0 %v1143
        %2353 = vmatprep.subr.bf16.mxu0 %v1152
        %2354 = vmatpush1.bf16.msra.mxu0 %v1151
        %2355 = vmatprep.subr.bf16.mxu0 %v1160
        %2356 = vmatpush1.bf16.msra.mxu0 %v1159
        %2357 = vmatprep.subr.bf16.mxu0 0
        %2358 = vmatpush1.bf16.msra.mxu0 0
        %2359 = vmatprep.subr.bf16.mxu0 0
        %2360 = vmatpush1.bf16.msra.mxu0 0
        %2361 = vmatprep.subr.bf16.mxu0 0
        %2362 = vmatpush1.bf16.msra.mxu0 0
        %2363 = vmatprep.subr.bf16.mxu0 0
        %2364 = vmatpush1.bf16.msra.mxu0 0
        %2365 = vmatprep.subr.bf16.mxu0 0
        %2366 = vmatpush1.bf16.msra.mxu0 0
        %2367 = vmatprep.subr.bf16.mxu0 0
        %2368 = vmatpush1.bf16.msra.mxu0 0
        %2369 = vmatprep.subr.bf16.mxu0 0
        %2370 = vmatpush1.bf16.msra.mxu0 0
        %2371 = vmatprep.subr.bf16.mxu0 0
        %2372 = vmatpush1.bf16.msra.mxu0 0
        %2373 = vmatprep.subr.bf16.mxu0 0
        %2374 = vmatpush1.bf16.msra.mxu0 0
        %2375 = vmatprep.subr.bf16.mxu0 0
        %2376 = vmatpush1.bf16.msra.mxu0 0
        %2377 = vmatprep.subr.bf16.mxu0 0
        %2378 = vmatpush1.bf16.msra.mxu0 0
        %2379 = vmatprep.subr.bf16.mxu0 0
        %2380 = vmatpush1.bf16.msra.mxu0 0
        %2381 = vmatprep.mubr.bf16.mxu0 0
        %2382 = vmatmul.mubr.bf16.gmra.mrb[0].mxu0 %v1195
        %v2383 = vpop.f32.mrb[0].mxu0
        %v2384 = vadd.f32 0.0, %v2383
        %v2385 = vpop.f32.mrb[0].mxu0
        %v2386 = vadd.f32 0.0, %v2385
        %v2387 = vpop.f32.mrb[0].mxu0
        %v2388 = vadd.f32 0.0, %v2387
        %v2389 = vpop.f32.mrb[0].mxu0
        %v2390 = vadd.f32 0.0, %v2389
        %2391 = vmatprep.mubr.bf16.mxu0 0
        %2392 = vmatmul.mubr.bf16.gmra.mrb[0].mxu0 %v1198
        %v2393 = vpop.f32.mrb[0].mxu0
        %v2394 = vadd.f32 0.0, %v2393
        %v2395 = vpop.f32.mrb[0].mxu0
        %v2396 = vadd.f32 0.0, %v2395
        %v2397 = vpop.f32.mrb[0].mxu0
        %v2398 = vadd.f32 0.0, %v2397
        %v2399 = vpop.f32.mrb[0].mxu0
        %v2400 = vadd.f32 0.0, %v2399
        %2401 = vmatprep.mubr.bf16.mxu0 0
        %2402 = vmatmul.mubr.bf16.gmra.mrb[0].mxu0 %v1201
        %v2403 = vpop.f32.mrb[0].mxu0
        %v2404 = vadd.f32 0.0, %v2403
        %v2405 = vpop.f32.mrb[0].mxu0
        %v2406 = vadd.f32 0.0, %v2405
        %v2407 = vpop.f32.mrb[0].mxu0
        %v2408 = vadd.f32 0.0, %v2407
        %v2409 = vpop.f32.mrb[0].mxu0
        %v2410 = vadd.f32 0.0, %v2409
        %2411 = vmatprep.mubr.bf16.mxu0 0
        %2412 = vmatmul.mubr.bf16.gmra.mrb[0].mxu0 %v1204
        %v2413 = vpop.f32.mrb[0].mxu0
        %v2414 = vadd.f32 0.0, %v2413
        %v2415 = vpop.f32.mrb[0].mxu0
        %v2416 = vadd.f32 0.0, %v2415
        %v2417 = vpop.f32.mrb[0].mxu0
        %v2418 = vadd.f32 0.0, %v2417
        %v2419 = vpop.f32.mrb[0].mxu0
        %v2420 = vadd.f32 0.0, %v2419
        %2421 = vmatprep.mubr.bf16.mxu0 0
        %2422 = vmatmul.mubr.bf16.gmra.mrb[0].mxu0 %v1207
        %v2423 = vpop.f32.mrb[0].mxu0
        %v2424 = vadd.f32 0.0, %v2423
        %v2425 = vpop.f32.mrb[0].mxu0
        %v2426 = vadd.f32 0.0, %v2425
        %v2427 = vpop.f32.mrb[0].mxu0
        %v2428 = vadd.f32 0.0, %v2427
        %v2429 = vpop.f32.mrb[0].mxu0
        %v2430 = vadd.f32 0.0, %v2429
        %2431 = vmatprep.mubr.bf16.mxu0 0
        %2432 = vmatmul.mubr.bf16.gmra.mrb[0].mxu0 %v1210
        %v2433 = vpop.f32.mrb[0].mxu0
        %v2434 = vadd.f32 0.0, %v2433
        %v2435 = vpop.f32.mrb[0].mxu0
        %v2436 = vadd.f32 0.0, %v2435
        %v2437 = vpop.f32.mrb[0].mxu0
        %v2438 = vadd.f32 0.0, %v2437
        %v2439 = vpop.f32.mrb[0].mxu0
        %v2440 = vadd.f32 0.0, %v2439
        %2441 = vmatprep.mubr.bf16.mxu0 0
        %2442 = vmatmul.mubr.bf16.gmra.mrb[0].mxu0 %v1213
        %v2443 = vpop.f32.mrb[0].mxu0
        %v2444 = vadd.f32 0.0, %v2443
        %v2445 = vpop.f32.mrb[0].mxu0
        %v2446 = vadd.f32 0.0, %v2445
        %v2447 = vpop.f32.mrb[0].mxu0
        %v2448 = vadd.f32 0.0, %v2447
        %v2449 = vpop.f32.mrb[0].mxu0
        %v2450 = vadd.f32 0.0, %v2449
        %2451 = vmatprep.mubr.bf16.mxu0 0
        %2452 = vmatmul.mubr.bf16.gmra.mrb[0].mxu0 %v1216
        %v2453 = vpop.f32.mrb[0].mxu0
        %v2454 = vadd.f32 0.0, %v2453
        %v2455 = vpop.f32.mrb[0].mxu0
        %v2456 = vadd.f32 0.0, %v2455
        %v2457 = vpop.f32.mrb[0].mxu0
        %v2458 = vadd.f32 0.0, %v2457
        %v2459 = vpop.f32.mrb[0].mxu0
        %v2460 = vadd.f32 0.0, %v2459
        %2461 = vmatprep.mubr.bf16.mxu0 0
        %2462 = vmatmul.mubr.bf16.gmra.mrb[0].mxu0 %v1219
        %v2463 = vpop.f32.mrb[0].mxu0
        %v2464 = vadd.f32 0.0, %v2463
        %v2465 = vpop.f32.mrb[0].mxu0
        %v2466 = vadd.f32 0.0, %v2465
        %v2467 = vpop.f32.mrb[0].mxu0
        %v2468 = vadd.f32 0.0, %v2467
        %v2469 = vpop.f32.mrb[0].mxu0
        %v2470 = vadd.f32 0.0, %v2469
        %2471 = vmatprep.mubr.bf16.mxu0 0
        %2472 = vmatmul.mubr.bf16.gmra.mrb[0].mxu0 %v1222
        %v2473 = vpop.f32.mrb[0].mxu0
        %v2474 = vadd.f32 0.0, %v2473
        %v2475 = vpop.f32.mrb[0].mxu0
        %v2476 = vadd.f32 0.0, %v2475
        %v2477 = vpop.f32.mrb[0].mxu0
        %v2478 = vadd.f32 0.0, %v2477
        %v2479 = vpop.f32.mrb[0].mxu0
        %v2480 = vadd.f32 0.0, %v2479
        %2481 = vmatprep.mubr.bf16.mxu0 0
        %2482 = vmatmul.mubr.bf16.gmra.mrb[0].mxu0 %v1225
        %v2483 = vpop.f32.mrb[0].mxu0
        %v2484 = vadd.f32 0.0, %v2483
        %v2485 = vpop.f32.mrb[0].mxu0
        %v2486 = vadd.f32 0.0, %v2485
        %v2487 = vpop.f32.mrb[0].mxu0
        %v2488 = vadd.f32 0.0, %v2487
        %v2489 = vpop.f32.mrb[0].mxu0
        %v2490 = vadd.f32 0.0, %v2489
        %2491 = vmatprep.mubr.bf16.mxu0 0
        %2492 = vmatmul.mubr.bf16.gmra.mrb[0].mxu0 %v1228
        %v2493 = vpop.f32.mrb[0].mxu0
        %v2494 = vadd.f32 0.0, %v2493
        %v2495 = vpop.f32.mrb[0].mxu0
        %v2496 = vadd.f32 0.0, %v2495
        %v2497 = vpop.f32.mrb[0].mxu0
        %v2498 = vadd.f32 0.0, %v2497
        %v2499 = vpop.f32.mrb[0].mxu0
        %v2500 = vadd.f32 0.0, %v2499
        %2501 = vmatprep.mubr.bf16.mxu0 0
        %2502 = vmatmul.mubr.bf16.gmra.mrb[0].mxu0 %v1231
        %v2503 = vpop.f32.mrb[0].mxu0
        %v2504 = vadd.f32 0.0, %v2503
        %v2505 = vpop.f32.mrb[0].mxu0
        %v2506 = vadd.f32 0.0, %v2505
        %v2507 = vpop.f32.mrb[0].mxu0
        %v2508 = vadd.f32 0.0, %v2507
        %v2509 = vpop.f32.mrb[0].mxu0
        %v2510 = vadd.f32 0.0, %v2509
        %2511 = vmatprep.mubr.bf16.mxu0 0
        %2512 = vmatmul.mubr.bf16.gmra.mrb[0].mxu0 %v1234
        %v2513 = vpop.f32.mrb[0].mxu0
        %v2514 = vadd.f32 0.0, %v2513
        %v2515 = vpop.f32.mrb[0].mxu0
        %v2516 = vadd.f32 0.0, %v2515
        %v2517 = vpop.f32.mrb[0].mxu0
        %v2518 = vadd.f32 0.0, %v2517
        %v2519 = vpop.f32.mrb[0].mxu0
        %v2520 = vadd.f32 0.0, %v2519
        %2521 = vmatprep.mubr.bf16.mxu0 0
        %2522 = vmatmul.mubr.bf16.gmra.mrb[0].mxu0 %v1237
        %v2523 = vpop.f32.mrb[0].mxu0
        %v2524 = vadd.f32 0.0, %v2523
        %v2525 = vpop.f32.mrb[0].mxu0
        %v2526 = vadd.f32 0.0, %v2525
        %v2527 = vpop.f32.mrb[0].mxu0
        %v2528 = vadd.f32 0.0, %v2527
        %v2529 = vpop.f32.mrb[0].mxu0
        %v2530 = vadd.f32 0.0, %v2529
        %2531 = vmatprep.mubr.bf16.mxu0 0
        %2532 = vmatmul.mubr.bf16.gmra.mrb[0].mxu0 %v1240
        %v2533 = vpop.f32.mrb[0].mxu0
        %v2534 = vadd.f32 0.0, %v2533
        %v2535 = vpop.f32.mrb[0].mxu0
        %v2536 = vadd.f32 0.0, %v2535
        %v2537 = vpop.f32.mrb[0].mxu0
        %v2538 = vadd.f32 0.0, %v2537
        %v2539 = vpop.f32.mrb[0].mxu0
        %v2540 = vadd.f32 0.0, %v2539
        %2541 = vmatprep.mubr.bf16.mxu0 0
        %2542 = vmatmul.mubr.bf16.gmra.mrb[0].mxu0 %v1243
        %v2543 = vpop.f32.mrb[0].mxu0
        %v2544 = vadd.f32 0.0, %v2543
        %v2545 = vpop.f32.mrb[0].mxu0
        %v2546 = vadd.f32 0.0, %v2545
        %v2547 = vpop.f32.mrb[0].mxu0
        %v2548 = vadd.f32 0.0, %v2547
        %v2549 = vpop.f32.mrb[0].mxu0
        %v2550 = vadd.f32 0.0, %v2549
        %2551 = vmatprep.mubr.bf16.mxu0 0
        %2552 = vmatmul.mubr.bf16.gmra.mrb[0].mxu0 %v1246
        %v2553 = vpop.f32.mrb[0].mxu0
        %v2554 = vadd.f32 0.0, %v2553
        %v2555 = vpop.f32.mrb[0].mxu0
        %v2556 = vadd.f32 0.0, %v2555
        %v2557 = vpop.f32.mrb[0].mxu0
        %v2558 = vadd.f32 0.0, %v2557
        %v2559 = vpop.f32.mrb[0].mxu0
        %v2560 = vadd.f32 0.0, %v2559
        %2561 = vmatprep.mubr.bf16.mxu0 0
        %2562 = vmatmul.mubr.bf16.gmra.mrb[0].mxu0 %v1249
        %v2563 = vpop.f32.mrb[0].mxu0
        %v2564 = vadd.f32 0.0, %v2563
        %v2565 = vpop.f32.mrb[0].mxu0
        %v2566 = vadd.f32 0.0, %v2565
        %v2567 = vpop.f32.mrb[0].mxu0
        %v2568 = vadd.f32 0.0, %v2567
        %v2569 = vpop.f32.mrb[0].mxu0
        %v2570 = vadd.f32 0.0, %v2569
        %2571 = vmatprep.mubr.bf16.mxu0 0
        %2572 = vmatmul.mubr.bf16.gmra.mrb[0].mxu0 %v1252
        %v2573 = vpop.f32.mrb[0].mxu0
        %v2574 = vadd.f32 0.0, %v2573
        %v2575 = vpop.f32.mrb[0].mxu0
        %v2576 = vadd.f32 0.0, %v2575
        %v2577 = vpop.f32.mrb[0].mxu0
        %v2578 = vadd.f32 0.0, %v2577
        %v2579 = vpop.f32.mrb[0].mxu0
        %v2580 = vadd.f32 0.0, %v2579
        %2581 = vmatprep.mubr.bf16.mxu0 0
        %2582 = vmatmul.mubr.bf16.gmra.mrb[0].mxu0 %v1255
        %v2583 = vpop.f32.mrb[0].mxu0
        %v2584 = vadd.f32 0.0, %v2583
        %v2585 = vpop.f32.mrb[0].mxu0
        %v2586 = vadd.f32 0.0, %v2585
        %v2587 = vpop.f32.mrb[0].mxu0
        %v2588 = vadd.f32 0.0, %v2587
        %v2589 = vpop.f32.mrb[0].mxu0
        %v2590 = vadd.f32 0.0, %v2589
        %2591 = vmatprep.mubr.bf16.mxu0 0
        %2592 = vmatmul.mubr.bf16.gmra.mrb[0].mxu0 %v1258
        %v2593 = vpop.f32.mrb[0].mxu0
        %v2594 = vadd.f32 0.0, %v2593
        %v2595 = vpop.f32.mrb[0].mxu0
        %v2596 = vadd.f32 0.0, %v2595
        %v2597 = vpop.f32.mrb[0].mxu0
        %v2598 = vadd.f32 0.0, %v2597
        %v2599 = vpop.f32.mrb[0].mxu0
        %v2600 = vadd.f32 0.0, %v2599
        %2601 = vmatprep.mubr.bf16.mxu0 0
        %2602 = vmatmul.mubr.bf16.gmra.mrb[0].mxu0 %v1261
        %v2603 = vpop.f32.mrb[0].mxu0
        %v2604 = vadd.f32 0.0, %v2603
        %v2605 = vpop.f32.mrb[0].mxu0
        %v2606 = vadd.f32 0.0, %v2605
        %v2607 = vpop.f32.mrb[0].mxu0
        %v2608 = vadd.f32 0.0, %v2607
        %v2609 = vpop.f32.mrb[0].mxu0
        %v2610 = vadd.f32 0.0, %v2609
        %2611 = vmatprep.mubr.bf16.mxu0 0
        %2612 = vmatmul.mubr.bf16.gmra.mrb[0].mxu0 %v1264
        %v2613 = vpop.f32.mrb[0].mxu0
        %v2614 = vadd.f32 0.0, %v2613
        %v2615 = vpop.f32.mrb[0].mxu0
        %v2616 = vadd.f32 0.0, %v2615
        %v2617 = vpop.f32.mrb[0].mxu0
        %v2618 = vadd.f32 0.0, %v2617
        %v2619 = vpop.f32.mrb[0].mxu0
        %v2620 = vadd.f32 0.0, %v2619
        %2621 = vmatprep.mubr.bf16.mxu0 0
        %2622 = vmatmul.mubr.bf16.gmra.mrb[0].mxu0 %v1267
        %v2623 = vpop.f32.mrb[0].mxu0
        %v2624 = vadd.f32 0.0, %v2623
        %v2625 = vpop.f32.mrb[0].mxu0
        %v2626 = vadd.f32 0.0, %v2625
        %v2627 = vpop.f32.mrb[0].mxu0
        %v2628 = vadd.f32 0.0, %v2627
        %v2629 = vpop.f32.mrb[0].mxu0
        %v2630 = vadd.f32 0.0, %v2629
        %2631 = vmatprep.mubr.bf16.mxu0 0
        %2632 = vmatmul.mubr.bf16.gmra.mrb[0].mxu0 %v1270
        %v2633 = vpop.f32.mrb[0].mxu0
        %v2634 = vadd.f32 0.0, %v2633
        %v2635 = vpop.f32.mrb[0].mxu0
        %v2636 = vadd.f32 0.0, %v2635
        %v2637 = vpop.f32.mrb[0].mxu0
        %v2638 = vadd.f32 0.0, %v2637
        %v2639 = vpop.f32.mrb[0].mxu0
        %v2640 = vadd.f32 0.0, %v2639
        %2641 = vmatprep.mubr.bf16.mxu0 0
        %2642 = vmatmul.mubr.bf16.gmra.mrb[0].mxu0 %v1273
        %v2643 = vpop.f32.mrb[0].mxu0
        %v2644 = vadd.f32 0.0, %v2643
        %v2645 = vpop.f32.mrb[0].mxu0
        %v2646 = vadd.f32 0.0, %v2645
        %v2647 = vpop.f32.mrb[0].mxu0
        %v2648 = vadd.f32 0.0, %v2647
        %v2649 = vpop.f32.mrb[0].mxu0
        %v2650 = vadd.f32 0.0, %v2649
        %2651 = vmatprep.mubr.bf16.mxu0 0
        %2652 = vmatmul.mubr.bf16.gmra.mrb[0].mxu0 %v1276
        %v2653 = vpop.f32.mrb[0].mxu0
        %v2654 = vadd.f32 0.0, %v2653
        %v2655 = vpop.f32.mrb[0].mxu0
        %v2656 = vadd.f32 0.0, %v2655
        %v2657 = vpop.f32.mrb[0].mxu0
        %v2658 = vadd.f32 0.0, %v2657
        %v2659 = vpop.f32.mrb[0].mxu0
        %v2660 = vadd.f32 0.0, %v2659
        %2661 = vmatprep.mubr.bf16.mxu0 0
        %2662 = vmatmul.mubr.bf16.gmra.mrb[0].mxu0 %v1279
        %v2663 = vpop.f32.mrb[0].mxu0
        %v2664 = vadd.f32 0.0, %v2663
        %v2665 = vpop.f32.mrb[0].mxu0
        %v2666 = vadd.f32 0.0, %v2665
        %v2667 = vpop.f32.mrb[0].mxu0
        %v2668 = vadd.f32 0.0, %v2667
        %v2669 = vpop.f32.mrb[0].mxu0
        %v2670 = vadd.f32 0.0, %v2669
        %2671 = vmatprep.mubr.bf16.mxu0 0
        %2672 = vmatmul.mubr.bf16.gmra.mrb[0].mxu0 %v1282
        %v2673 = vpop.f32.mrb[0].mxu0
        %v2674 = vadd.f32 0.0, %v2673
        %v2675 = vpop.f32.mrb[0].mxu0
        %v2676 = vadd.f32 0.0, %v2675
        %v2677 = vpop.f32.mrb[0].mxu0
        %v2678 = vadd.f32 0.0, %v2677
        %v2679 = vpop.f32.mrb[0].mxu0
        %v2680 = vadd.f32 0.0, %v2679
        %2681 = vmatprep.mubr.bf16.mxu0 0
        %2682 = vmatmul.mubr.bf16.gmra.mrb[0].mxu0 %v1285
        %v2683 = vpop.f32.mrb[0].mxu0
        %v2684 = vadd.f32 0.0, %v2683
        %v2685 = vpop.f32.mrb[0].mxu0
        %v2686 = vadd.f32 0.0, %v2685
        %v2687 = vpop.f32.mrb[0].mxu0
        %v2688 = vadd.f32 0.0, %v2687
        %v2689 = vpop.f32.mrb[0].mxu0
        %v2690 = vadd.f32 0.0, %v2689
        %2691 = vmatprep.mubr.bf16.mxu0 0
        %2692 = vmatmul.mubr.bf16.gmra.mrb[0].mxu0 %v1288
        %v2693 = vpop.f32.mrb[0].mxu0
        %v2694 = vadd.f32 0.0, %v2693
        %v2695 = vpop.f32.mrb[0].mxu0
        %v2696 = vadd.f32 0.0, %v2695
        %v2697 = vpop.f32.mrb[0].mxu0
        %v2698 = vadd.f32 0.0, %v2697
        %v2699 = vpop.f32.mrb[0].mxu0
        %v2700 = vadd.f32 0.0, %v2699
        %2701 = vdwg.mxu0
        %v2830 = vunpack.c.l.b16 %v777
        %v2831 = vunpack.c.h.b16 %v777
        %v2832 = vunpack.c.l.b16 %v778
        %v2833 = vunpack.c.h.b16 %v778
        %v2834 = vunpack.c.l.b16 %v779
        %v2835 = vunpack.c.h.b16 %v779
        %v2836 = vunpack.c.l.b16 %v780
        %v2837 = vunpack.c.h.b16 %v780
        %v2838 = vunpack.c.l.b16 %v781
        %v2839 = vunpack.c.h.b16 %v781
        %v2840 = vunpack.c.l.b16 %v782
        %v2841 = vunpack.c.h.b16 %v782
        %v2842 = vunpack.c.l.b16 %v783
        %v2843 = vunpack.c.h.b16 %v783
        %v2844 = vunpack.c.l.b16 %v784
        %v2845 = vunpack.c.h.b16 %v784
        %v2846 = vunpack.c.l.b16 %v785
        %v2847 = vunpack.c.h.b16 %v785
        %v2848 = vunpack.c.l.b16 %v786
        %v2849 = vunpack.c.h.b16 %v786
        %v2850 = vunpack.c.l.b16 %v787
        %v2851 = vunpack.c.h.b16 %v787
        %v2852 = vunpack.c.l.b16 %v788
        %v2853 = vunpack.c.h.b16 %v788
        %v2854 = vunpack.c.l.b16 %v789
        %v2855 = vunpack.c.h.b16 %v789
        %v2856 = vunpack.c.l.b16 %v790
        %v2857 = vunpack.c.h.b16 %v790
        %v2858 = vunpack.c.l.b16 %v791
        %v2859 = vunpack.c.h.b16 %v791
        %v2860 = vunpack.c.l.b16 %v792
        %v2861 = vunpack.c.h.b16 %v792
        %v2862 = vunpack.c.l.b16 %v793
        %v2863 = vunpack.c.h.b16 %v793
        %v2864 = vunpack.c.l.b16 %v794
        %v2865 = vunpack.c.h.b16 %v794
        %v2866 = vunpack.c.l.b16 %v795
        %v2867 = vunpack.c.h.b16 %v795
        %v2868 = vunpack.c.l.b16 %v796
        %v2869 = vunpack.c.h.b16 %v796
        %v2870 = vunpack.c.l.b16 %v797
        %v2871 = vunpack.c.h.b16 %v797
        %v2872 = vunpack.c.l.b16 %v798
        %v2873 = vunpack.c.h.b16 %v798
        %v2874 = vunpack.c.l.b16 %v799
        %v2875 = vunpack.c.h.b16 %v799
        %v2876 = vunpack.c.l.b16 %v800
        %v2877 = vunpack.c.h.b16 %v800
        %v2878 = vunpack.c.l.b16 %v801
        %v2879 = vunpack.c.h.b16 %v801
        %v2880 = vunpack.c.l.b16 %v802
        %v2881 = vunpack.c.h.b16 %v802
        %v2882 = vunpack.c.l.b16 %v803
        %v2883 = vunpack.c.h.b16 %v803
        %v2884 = vunpack.c.l.b16 %v804
        %v2885 = vunpack.c.h.b16 %v804
        %v2886 = vunpack.c.l.b16 %v805
        %v2887 = vunpack.c.h.b16 %v805
        %v2888 = vunpack.c.l.b16 %v806
        %v2889 = vunpack.c.h.b16 %v806
        %v2890 = vunpack.c.l.b16 %v807
        %v2891 = vunpack.c.h.b16 %v807
        %v2892 = vunpack.c.l.b16 %v808
        %v2893 = vunpack.c.h.b16 %v808
        %v2894 = vunpack.c.l.b16 %v809
        %v2895 = vunpack.c.h.b16 %v809
        %v2896 = vunpack.c.l.b16 %v810
        %v2897 = vunpack.c.h.b16 %v810
        %v2898 = vunpack.c.l.b16 %v811
        %v2899 = vunpack.c.h.b16 %v811
        %v2900 = vunpack.c.l.b16 %v812
        %v2901 = vunpack.c.h.b16 %v812
        %v2902 = vunpack.c.l.b16 %v813
        %v2903 = vunpack.c.h.b16 %v813
        %v2904 = vunpack.c.l.b16 %v814
        %v2905 = vunpack.c.h.b16 %v814
        %v2906 = vunpack.c.l.b16 %v815
        %v2907 = vunpack.c.h.b16 %v815
        %v2908 = vunpack.c.l.b16 %v816
        %v2909 = vunpack.c.h.b16 %v816
        %v2910 = vunpack.c.l.b16 %v817
        %v2911 = vunpack.c.h.b16 %v817
        %v2912 = vunpack.c.l.b16 %v818
        %v2913 = vunpack.c.h.b16 %v818
        %v2914 = vunpack.c.l.b16 %v819
        %v2915 = vunpack.c.h.b16 %v819
        %v2916 = vunpack.c.l.b16 %v820
        %v2917 = vunpack.c.h.b16 %v820
        %v2918 = vunpack.c.l.b16 %v821
        %v2919 = vunpack.c.h.b16 %v821
        %v2920 = vunpack.c.l.b16 %v822
        %v2921 = vunpack.c.h.b16 %v822
        %v2922 = vunpack.c.l.b16 %v823
        %v2923 = vunpack.c.h.b16 %v823
        %v2924 = vunpack.c.l.b16 %v824
        %v2925 = vunpack.c.h.b16 %v824
        %v2926 = vunpack.c.l.b16 %v825
        %v2927 = vunpack.c.h.b16 %v825
        %v2928 = vunpack.c.l.b16 %v826
        %v2929 = vunpack.c.h.b16 %v826
        %v2930 = vunpack.c.l.b16 %v827
        %v2931 = vunpack.c.h.b16 %v827
        %v2932 = vunpack.c.l.b16 %v828
        %v2933 = vunpack.c.h.b16 %v828
        %v2934 = vunpack.c.l.b16 %v829
        %v2935 = vunpack.c.h.b16 %v829
        %v2936 = vunpack.c.l.b16 %v830
        %v2937 = vunpack.c.h.b16 %v830
        %v2938 = vunpack.c.l.b16 %v831
        %v2939 = vunpack.c.h.b16 %v831
        %v2940 = vunpack.c.l.b16 %v832
        %v2941 = vunpack.c.h.b16 %v832
        %v2942 = vunpack.c.l.b16 %v833
        %v2943 = vunpack.c.h.b16 %v833
        %v2944 = vunpack.c.l.b16 %v834
        %v2945 = vunpack.c.h.b16 %v834
        %v2946 = vunpack.c.l.b16 %v835
        %v2947 = vunpack.c.h.b16 %v835
        %v2948 = vunpack.c.l.b16 %v836
        %v2949 = vunpack.c.h.b16 %v836
        %v2950 = vunpack.c.l.b16 %v837
        %v2951 = vunpack.c.h.b16 %v837
        %v2952 = vunpack.c.l.b16 %v838
        %v2953 = vunpack.c.h.b16 %v838
        %v2954 = vunpack.c.l.b16 %v839
        %v2955 = vunpack.c.h.b16 %v839
        %v2956 = vunpack.c.l.b16 %v840
        %v2957 = vunpack.c.h.b16 %v840
        %v2958 = vunpack.c.l.b16 %v841
        %v2959 = vunpack.c.h.b16 %v841
        %v2960 = vunpack.c.l.b16 %v842
        %v2961 = vunpack.c.h.b16 %v842
        %v2962 = vunpack.c.l.b16 %v843
        %v2963 = vunpack.c.h.b16 %v843
        %v2964 = vunpack.c.l.b16 %v844
        %v2965 = vunpack.c.h.b16 %v844
        %v2966 = vunpack.c.l.b16 %v845
        %v2967 = vunpack.c.h.b16 %v845
        %v2968 = vunpack.c.l.b16 %v846
        %v2969 = vunpack.c.h.b16 %v846
        %v2970 = vunpack.c.l.b16 %v847
        %v2971 = vunpack.c.h.b16 %v847
        %v2972 = vunpack.c.l.b16 %v848
        %v2973 = vunpack.c.h.b16 %v848
        %v2974 = vunpack.c.l.b16 %v849
        %v2975 = vunpack.c.h.b16 %v849
        %v2976 = vunpack.c.l.b16 %v850
        %v2977 = vunpack.c.h.b16 %v850
        %v2978 = vunpack.c.l.b16 %v851
        %v2979 = vunpack.c.h.b16 %v851
        %v2980 = vunpack.c.l.b16 %v852
        %v2981 = vunpack.c.h.b16 %v852
        %v2982 = vunpack.c.l.b16 %v853
        %v2983 = vunpack.c.h.b16 %v853
        %v2984 = vunpack.c.l.b16 %v854
        %v2985 = vunpack.c.h.b16 %v854
        %v2986 = vunpack.c.l.b16 %v855
        %v2987 = vunpack.c.h.b16 %v855
        %v2988 = vunpack.c.l.b16 %v856
        %v2989 = vunpack.c.h.b16 %v856
        %v2990 = vunpack.c.l.b16 %v857
        %v2991 = vunpack.c.h.b16 %v857
        %v2992 = vunpack.c.l.b16 %v858
        %v2993 = vunpack.c.h.b16 %v858
        %v2994 = vunpack.c.l.b16 %v859
        %v2995 = vunpack.c.h.b16 %v859
        %v2996 = vunpack.c.l.b16 %v860
        %v2997 = vunpack.c.h.b16 %v860
        %v2998 = vunpack.c.l.b16 %v861
        %v2999 = vunpack.c.h.b16 %v861
        %v3000 = vunpack.c.l.b16 %v862
        %v3001 = vunpack.c.h.b16 %v862
        %v3002 = vunpack.c.l.b16 %v863
        %v3003 = vunpack.c.h.b16 %v863
        %v3004 = vunpack.c.l.b16 %v864
        %v3005 = vunpack.c.h.b16 %v864
        %v3006 = vunpack.c.l.b16 %v865
        %v3007 = vunpack.c.h.b16 %v865
        %v3008 = vunpack.c.l.b16 %v866
        %v3009 = vunpack.c.h.b16 %v866
        %v3010 = vunpack.c.l.b16 %v867
        %v3011 = vunpack.c.h.b16 %v867
        %v3012 = vunpack.c.l.b16 %v868
        %v3013 = vunpack.c.h.b16 %v868
        %v3014 = vunpack.c.l.b16 %v869
        %v3015 = vunpack.c.h.b16 %v869
        %v3016 = vunpack.c.l.b16 %v870
        %v3017 = vunpack.c.h.b16 %v870
        %v3018 = vunpack.c.l.b16 %v871
        %v3019 = vunpack.c.h.b16 %v871
        %v3020 = vunpack.c.l.b16 %v872
        %v3021 = vunpack.c.h.b16 %v872
        %v3022 = vunpack.c.l.b16 %v873
        %v3023 = vunpack.c.h.b16 %v873
        %v3024 = vunpack.c.l.b16 %v874
        %v3025 = vunpack.c.h.b16 %v874
        %v3026 = vunpack.c.l.b16 %v875
        %v3027 = vunpack.c.h.b16 %v875
        %v3028 = vunpack.c.l.b16 %v876
        %v3029 = vunpack.c.h.b16 %v876
        %v3030 = vunpack.c.l.b16 %v877
        %v3031 = vunpack.c.h.b16 %v877
        %v3032 = vunpack.c.l.b16 %v878
        %v3033 = vunpack.c.h.b16 %v878
        %v3034 = vunpack.c.l.b16 %v879
        %v3035 = vunpack.c.h.b16 %v879
        %v3036 = vunpack.c.l.b16 %v880
        %v3037 = vunpack.c.h.b16 %v880
        %v3038 = vunpack.c.l.b16 %v881
        %v3039 = vunpack.c.h.b16 %v881
        %v3040 = vunpack.c.l.b16 %v882
        %v3041 = vunpack.c.h.b16 %v882
        %v3042 = vunpack.c.l.b16 %v883
        %v3043 = vunpack.c.h.b16 %v883
        %v3044 = vunpack.c.l.b16 %v884
        %v3045 = vunpack.c.h.b16 %v884
        %v3046 = vunpack.c.l.b16 %v885
        %v3047 = vunpack.c.h.b16 %v885
        %v3048 = vunpack.c.l.b16 %v886
        %v3049 = vunpack.c.h.b16 %v886
        %v3050 = vunpack.c.l.b16 %v887
        %v3051 = vunpack.c.h.b16 %v887
        %v3052 = vunpack.c.l.b16 %v888
        %v3053 = vunpack.c.h.b16 %v888
        %v3054 = vunpack.c.l.b16 %v889
        %v3055 = vunpack.c.h.b16 %v889
        %v3056 = vunpack.c.l.b16 %v890
        %v3057 = vunpack.c.h.b16 %v890
        %v3058 = vunpack.c.l.b16 %v891
        %v3059 = vunpack.c.h.b16 %v891
        %v3060 = vunpack.c.l.b16 %v892
        %v3061 = vunpack.c.h.b16 %v892
        %v3062 = vunpack.c.l.b16 %v893
        %v3063 = vunpack.c.h.b16 %v893
        %v3064 = vunpack.c.l.b16 %v894
        %v3065 = vunpack.c.h.b16 %v894
        %v3066 = vunpack.c.l.b16 %v895
        %v3067 = vunpack.c.h.b16 %v895
        %v3068 = vunpack.c.l.b16 %v896
        %v3069 = vunpack.c.h.b16 %v896
        %v3070 = vunpack.c.l.b16 %v897
        %v3071 = vunpack.c.h.b16 %v897
        %v3072 = vunpack.c.l.b16 %v898
        %v3073 = vunpack.c.h.b16 %v898
        %v3074 = vunpack.c.l.b16 %v899
        %v3075 = vunpack.c.h.b16 %v899
        %v3076 = vunpack.c.l.b16 %v900
        %v3077 = vunpack.c.h.b16 %v900
        %v3078 = vunpack.c.l.b16 %v901
        %v3079 = vunpack.c.h.b16 %v901
        %v3080 = vunpack.c.l.b16 %v902
        %v3081 = vunpack.c.h.b16 %v902
        %v3082 = vunpack.c.l.b16 %v903
        %v3083 = vunpack.c.h.b16 %v903
        %v3084 = vunpack.c.l.b16 %v904
        %v3085 = vunpack.c.h.b16 %v904
        %v3086 = vpack.c.b16 %v2838, %v2830
        %v3087 = vpack.c.b16 %v2839, %v2831
        %v3088 = vpack.c.b16 %v2840, %v2832
        %v3089 = vpack.c.b16 %v2841, %v2833
        %v3090 = vpack.c.b16 %v2842, %v2834
        %v3091 = vpack.c.b16 %v2843, %v2835
        %v3092 = vpack.c.b16 %v2844, %v2836
        %v3093 = vpack.c.b16 %v2845, %v2837
        %v3094 = vpack.c.b16 %v2854, %v2846
        %v3095 = vpack.c.b16 %v2855, %v2847
        %v3096 = vpack.c.b16 %v2856, %v2848
        %v3097 = vpack.c.b16 %v2857, %v2849
        %v3098 = vpack.c.b16 %v2858, %v2850
        %v3099 = vpack.c.b16 %v2859, %v2851
        %v3100 = vpack.c.b16 %v2860, %v2852
        %v3101 = vpack.c.b16 %v2861, %v2853
        %v3102 = vpack.c.b16 %v2870, %v2862
        %v3103 = vpack.c.b16 %v2871, %v2863
        %v3104 = vpack.c.b16 %v2872, %v2864
        %v3105 = vpack.c.b16 %v2873, %v2865
        %v3106 = vpack.c.b16 %v2874, %v2866
        %v3107 = vpack.c.b16 %v2875, %v2867
        %v3108 = vpack.c.b16 %v2876, %v2868
        %v3109 = vpack.c.b16 %v2877, %v2869
        %v3110 = vpack.c.b16 %v2886, %v2878
        %v3111 = vpack.c.b16 %v2887, %v2879
        %v3112 = vpack.c.b16 %v2888, %v2880
        %v3113 = vpack.c.b16 %v2889, %v2881
        %v3114 = vpack.c.b16 %v2890, %v2882
        %v3115 = vpack.c.b16 %v2891, %v2883
        %v3116 = vpack.c.b16 %v2892, %v2884
        %v3117 = vpack.c.b16 %v2893, %v2885
        %v3118 = vpack.c.b16 %v2902, %v2894
        %v3119 = vpack.c.b16 %v2903, %v2895
        %v3120 = vpack.c.b16 %v2904, %v2896
        %v3121 = vpack.c.b16 %v2905, %v2897
        %v3122 = vpack.c.b16 %v2906, %v2898
        %v3123 = vpack.c.b16 %v2907, %v2899
        %v3124 = vpack.c.b16 %v2908, %v2900
        %v3125 = vpack.c.b16 %v2909, %v2901
        %v3126 = vpack.c.b16 %v2918, %v2910
        %v3127 = vpack.c.b16 %v2919, %v2911
        %v3128 = vpack.c.b16 %v2920, %v2912
        %v3129 = vpack.c.b16 %v2921, %v2913
        %v3130 = vpack.c.b16 %v2922, %v2914
        %v3131 = vpack.c.b16 %v2923, %v2915
        %v3132 = vpack.c.b16 %v2924, %v2916
        %v3133 = vpack.c.b16 %v2925, %v2917
        %v3134 = vpack.c.b16 %v2934, %v2926
        %v3135 = vpack.c.b16 %v2935, %v2927
        %v3136 = vpack.c.b16 %v2936, %v2928
        %v3137 = vpack.c.b16 %v2937, %v2929
        %v3138 = vpack.c.b16 %v2938, %v2930
        %v3139 = vpack.c.b16 %v2939, %v2931
        %v3140 = vpack.c.b16 %v2940, %v2932
        %v3141 = vpack.c.b16 %v2941, %v2933
        %v3142 = vpack.c.b16 %v2950, %v2942
        %v3143 = vpack.c.b16 %v2951, %v2943
        %v3144 = vpack.c.b16 %v2952, %v2944
        %v3145 = vpack.c.b16 %v2953, %v2945
        %v3146 = vpack.c.b16 %v2954, %v2946
        %v3147 = vpack.c.b16 %v2955, %v2947
        %v3148 = vpack.c.b16 %v2956, %v2948
        %v3149 = vpack.c.b16 %v2957, %v2949
        %v3150 = vpack.c.b16 %v2966, %v2958
        %v3151 = vpack.c.b16 %v2967, %v2959
        %v3152 = vpack.c.b16 %v2968, %v2960
        %v3153 = vpack.c.b16 %v2969, %v2961
        %v3154 = vpack.c.b16 %v2970, %v2962
        %v3155 = vpack.c.b16 %v2971, %v2963
        %v3156 = vpack.c.b16 %v2972, %v2964
        %v3157 = vpack.c.b16 %v2973, %v2965
        %v3158 = vpack.c.b16 %v2982, %v2974
        %v3159 = vpack.c.b16 %v2983, %v2975
        %v3160 = vpack.c.b16 %v2984, %v2976
        %v3161 = vpack.c.b16 %v2985, %v2977
        %v3162 = vpack.c.b16 %v2986, %v2978
        %v3163 = vpack.c.b16 %v2987, %v2979
        %v3164 = vpack.c.b16 %v2988, %v2980
        %v3165 = vpack.c.b16 %v2989, %v2981
        %v3166 = vpack.c.b16 %v2998, %v2990
        %v3167 = vpack.c.b16 %v2999, %v2991
        %v3168 = vpack.c.b16 %v3000, %v2992
        %v3169 = vpack.c.b16 %v3001, %v2993
        %v3170 = vpack.c.b16 %v3002, %v2994
        %v3171 = vpack.c.b16 %v3003, %v2995
        %v3172 = vpack.c.b16 %v3004, %v2996
        %v3173 = vpack.c.b16 %v3005, %v2997
        %v3174 = vpack.c.b16 %v3014, %v3006
        %v3175 = vpack.c.b16 %v3015, %v3007
        %v3176 = vpack.c.b16 %v3016, %v3008
        %v3177 = vpack.c.b16 %v3017, %v3009
        %v3178 = vpack.c.b16 %v3018, %v3010
        %v3179 = vpack.c.b16 %v3019, %v3011
        %v3180 = vpack.c.b16 %v3020, %v3012
        %v3181 = vpack.c.b16 %v3021, %v3013
        %v3182 = vpack.c.b16 %v3030, %v3022
        %v3183 = vpack.c.b16 %v3031, %v3023
        %v3184 = vpack.c.b16 %v3032, %v3024
        %v3185 = vpack.c.b16 %v3033, %v3025
        %v3186 = vpack.c.b16 %v3034, %v3026
        %v3187 = vpack.c.b16 %v3035, %v3027
        %v3188 = vpack.c.b16 %v3036, %v3028
        %v3189 = vpack.c.b16 %v3037, %v3029
        %v3190 = vpack.c.b16 %v3046, %v3038
        %v3191 = vpack.c.b16 %v3047, %v3039
        %v3192 = vpack.c.b16 %v3048, %v3040
        %v3193 = vpack.c.b16 %v3049, %v3041
        %v3194 = vpack.c.b16 %v3050, %v3042
        %v3195 = vpack.c.b16 %v3051, %v3043
        %v3196 = vpack.c.b16 %v3052, %v3044
        %v3197 = vpack.c.b16 %v3053, %v3045
        %v3198 = vpack.c.b16 %v3062, %v3054
        %v3199 = vpack.c.b16 %v3063, %v3055
        %v3200 = vpack.c.b16 %v3064, %v3056
        %v3201 = vpack.c.b16 %v3065, %v3057
        %v3202 = vpack.c.b16 %v3066, %v3058
        %v3203 = vpack.c.b16 %v3067, %v3059
        %v3204 = vpack.c.b16 %v3068, %v3060
        %v3205 = vpack.c.b16 %v3069, %v3061
        %v3206 = vpack.c.b16 %v3078, %v3070
        %v3207 = vpack.c.b16 %v3079, %v3071
        %v3208 = vpack.c.b16 %v3080, %v3072
        %v3209 = vpack.c.b16 %v3081, %v3073
        %v3210 = vpack.c.b16 %v3082, %v3074
        %v3211 = vpack.c.b16 %v3083, %v3075
        %v3212 = vpack.c.b16 %v3084, %v3076
        %v3213 = vpack.c.b16 %v3085, %v3077
        %3342 = vmatprep.subr.bf16.mxu0 %v3087
        %3343 = vmatpush1.bf16.msra.mxu0 %v3086
        %3344 = vmatprep.subr.bf16.mxu0 %v3095
        %3345 = vmatpush1.bf16.msra.mxu0 %v3094
        %3346 = vmatprep.subr.bf16.mxu0 %v3103
        %3347 = vmatpush1.bf16.msra.mxu0 %v3102
        %3348 = vmatprep.subr.bf16.mxu0 %v3111
        %3349 = vmatpush1.bf16.msra.mxu0 %v3110
        %3350 = vmatprep.subr.bf16.mxu0 %v3119
        %3351 = vmatpush1.bf16.msra.mxu0 %v3118
        %3352 = vmatprep.subr.bf16.mxu0 %v3127
        %3353 = vmatpush1.bf16.msra.mxu0 %v3126
        %3354 = vmatprep.subr.bf16.mxu0 %v3135
        %3355 = vmatpush1.bf16.msra.mxu0 %v3134
        %3356 = vmatprep.subr.bf16.mxu0 %v3143
        %3357 = vmatpush1.bf16.msra.mxu0 %v3142
        %3358 = vmatprep.subr.bf16.mxu0 %v3151
        %3359 = vmatpush1.bf16.msra.mxu0 %v3150
        %3360 = vmatprep.subr.bf16.mxu0 %v3159
        %3361 = vmatpush1.bf16.msra.mxu0 %v3158
        %3362 = vmatprep.subr.bf16.mxu0 %v3167
        %3363 = vmatpush1.bf16.msra.mxu0 %v3166
        %3364 = vmatprep.subr.bf16.mxu0 %v3175
        %3365 = vmatpush1.bf16.msra.mxu0 %v3174
        %3366 = vmatprep.subr.bf16.mxu0 %v3183
        %3367 = vmatpush1.bf16.msra.mxu0 %v3182
        %3368 = vmatprep.subr.bf16.mxu0 %v3191
        %3369 = vmatpush1.bf16.msra.mxu0 %v3190
        %3370 = vmatprep.subr.bf16.mxu0 %v3199
        %3371 = vmatpush1.bf16.msra.mxu0 %v3198
        %3372 = vmatprep.subr.bf16.mxu0 %v3207
        %3373 = vmatpush1.bf16.msra.mxu0 %v3206
        %3374 = vmatprep.mubr.bf16.mxu0 %v714
        %3375 = vmatmul.mubr.bf16.gmra.mrb[0].mxu0 %v713
        %v3376 = vpop.f32.mrb[0].mxu0
        %v3377 = vadd.f32 %v1325, %v3376
        %v3378 = vpop.f32.mrb[0].mxu0
        %v3379 = vadd.f32 %v1327, %v3378
        %v3380 = vpop.f32.mrb[0].mxu0
        %v3381 = vadd.f32 %v1329, %v3380
        %v3382 = vpop.f32.mrb[0].mxu0
        %v3383 = vadd.f32 %v1331, %v3382
        %3384 = vmatprep.mubr.bf16.mxu0 %v716
        %3385 = vmatmul.mubr.bf16.gmra.mrb[0].mxu0 %v715
        %v3386 = vpop.f32.mrb[0].mxu0
        %v3387 = vadd.f32 %v1335, %v3386
        %v3388 = vpop.f32.mrb[0].mxu0
        %v3389 = vadd.f32 %v1337, %v3388
        %v3390 = vpop.f32.mrb[0].mxu0
        %v3391 = vadd.f32 %v1339, %v3390
        %v3392 = vpop.f32.mrb[0].mxu0
        %v3393 = vadd.f32 %v1341, %v3392
        %3394 = vmatprep.mubr.bf16.mxu0 %v718
        %3395 = vmatmul.mubr.bf16.gmra.mrb[0].mxu0 %v717
        %v3396 = vpop.f32.mrb[0].mxu0
        %v3397 = vadd.f32 %v1345, %v3396
        %v3398 = vpop.f32.mrb[0].mxu0
        %v3399 = vadd.f32 %v1347, %v3398
        %v3400 = vpop.f32.mrb[0].mxu0
        %v3401 = vadd.f32 %v1349, %v3400
        %v3402 = vpop.f32.mrb[0].mxu0
        %v3403 = vadd.f32 %v1351, %v3402
        %3404 = vmatprep.mubr.bf16.mxu0 %v720
        %3405 = vmatmul.mubr.bf16.gmra.mrb[0].mxu0 %v719
        %v3406 = vpop.f32.mrb[0].mxu0
        %v3407 = vadd.f32 %v1355, %v3406
        %v3408 = vpop.f32.mrb[0].mxu0
        %v3409 = vadd.f32 %v1357, %v3408
        %v3410 = vpop.f32.mrb[0].mxu0
        %v3411 = vadd.f32 %v1359, %v3410
        %v3412 = vpop.f32.mrb[0].mxu0
        %v3413 = vadd.f32 %v1361, %v3412
        %3414 = vmatprep.mubr.bf16.mxu0 %v722
        %3415 = vmatmul.mubr.bf16.gmra.mrb[0].mxu0 %v721
        %v3416 = vpop.f32.mrb[0].mxu0
        %v3417 = vadd.f32 %v1365, %v3416
        %v3418 = vpop.f32.mrb[0].mxu0
        %v3419 = vadd.f32 %v1367, %v3418
        %v3420 = vpop.f32.mrb[0].mxu0
        %v3421 = vadd.f32 %v1369, %v3420
        %v3422 = vpop.f32.mrb[0].mxu0
        %v3423 = vadd.f32 %v1371, %v3422
        %3424 = vmatprep.mubr.bf16.mxu0 %v724
        %3425 = vmatmul.mubr.bf16.gmra.mrb[0].mxu0 %v723
        %v3426 = vpop.f32.mrb[0].mxu0
        %v3427 = vadd.f32 %v1375, %v3426
        %v3428 = vpop.f32.mrb[0].mxu0
        %v3429 = vadd.f32 %v1377, %v3428
        %v3430 = vpop.f32.mrb[0].mxu0
        %v3431 = vadd.f32 %v1379, %v3430
        %v3432 = vpop.f32.mrb[0].mxu0
        %v3433 = vadd.f32 %v1381, %v3432
        %3434 = vmatprep.mubr.bf16.mxu0 %v726
        %3435 = vmatmul.mubr.bf16.gmra.mrb[0].mxu0 %v725
        %v3436 = vpop.f32.mrb[0].mxu0
        %v3437 = vadd.f32 %v1385, %v3436
        %v3438 = vpop.f32.mrb[0].mxu0
        %v3439 = vadd.f32 %v1387, %v3438
        %v3440 = vpop.f32.mrb[0].mxu0
        %v3441 = vadd.f32 %v1389, %v3440
        %v3442 = vpop.f32.mrb[0].mxu0
        %v3443 = vadd.f32 %v1391, %v3442
        %3444 = vmatprep.mubr.bf16.mxu0 %v728
        %3445 = vmatmul.mubr.bf16.gmra.mrb[0].mxu0 %v727
        %v3446 = vpop.f32.mrb[0].mxu0
        %v3447 = vadd.f32 %v1395, %v3446
        %v3448 = vpop.f32.mrb[0].mxu0
        %v3449 = vadd.f32 %v1397, %v3448
        %v3450 = vpop.f32.mrb[0].mxu0
        %v3451 = vadd.f32 %v1399, %v3450
        %v3452 = vpop.f32.mrb[0].mxu0
        %v3453 = vadd.f32 %v1401, %v3452
        %3454 = vmatprep.mubr.bf16.mxu0 %v730
        %3455 = vmatmul.mubr.bf16.gmra.mrb[0].mxu0 %v729
        %v3456 = vpop.f32.mrb[0].mxu0
        %v3457 = vadd.f32 %v1405, %v3456
        %v3458 = vpop.f32.mrb[0].mxu0
        %v3459 = vadd.f32 %v1407, %v3458
        %v3460 = vpop.f32.mrb[0].mxu0
        %v3461 = vadd.f32 %v1409, %v3460
        %v3462 = vpop.f32.mrb[0].mxu0
        %v3463 = vadd.f32 %v1411, %v3462
        %3464 = vmatprep.mubr.bf16.mxu0 %v732
        %3465 = vmatmul.mubr.bf16.gmra.mrb[0].mxu0 %v731
        %v3466 = vpop.f32.mrb[0].mxu0
        %v3467 = vadd.f32 %v1415, %v3466
        %v3468 = vpop.f32.mrb[0].mxu0
        %v3469 = vadd.f32 %v1417, %v3468
        %v3470 = vpop.f32.mrb[0].mxu0
        %v3471 = vadd.f32 %v1419, %v3470
        %v3472 = vpop.f32.mrb[0].mxu0
        %v3473 = vadd.f32 %v1421, %v3472
        %3474 = vmatprep.mubr.bf16.mxu0 %v734
        %3475 = vmatmul.mubr.bf16.gmra.mrb[0].mxu0 %v733
        %v3476 = vpop.f32.mrb[0].mxu0
        %v3477 = vadd.f32 %v1425, %v3476
        %v3478 = vpop.f32.mrb[0].mxu0
        %v3479 = vadd.f32 %v1427, %v3478
        %v3480 = vpop.f32.mrb[0].mxu0
        %v3481 = vadd.f32 %v1429, %v3480
        %v3482 = vpop.f32.mrb[0].mxu0
        %v3483 = vadd.f32 %v1431, %v3482
        %3484 = vmatprep.mubr.bf16.mxu0 %v736
        %3485 = vmatmul.mubr.bf16.gmra.mrb[0].mxu0 %v735
        %v3486 = vpop.f32.mrb[0].mxu0
        %v3487 = vadd.f32 %v1435, %v3486
        %v3488 = vpop.f32.mrb[0].mxu0
        %v3489 = vadd.f32 %v1437, %v3488
        %v3490 = vpop.f32.mrb[0].mxu0
        %v3491 = vadd.f32 %v1439, %v3490
        %v3492 = vpop.f32.mrb[0].mxu0
        %v3493 = vadd.f32 %v1441, %v3492
        %3494 = vmatprep.mubr.bf16.mxu0 %v738
        %3495 = vmatmul.mubr.bf16.gmra.mrb[0].mxu0 %v737
        %v3496 = vpop.f32.mrb[0].mxu0
        %v3497 = vadd.f32 %v1445, %v3496
        %v3498 = vpop.f32.mrb[0].mxu0
        %v3499 = vadd.f32 %v1447, %v3498
        %v3500 = vpop.f32.mrb[0].mxu0
        %v3501 = vadd.f32 %v1449, %v3500
        %v3502 = vpop.f32.mrb[0].mxu0
        %v3503 = vadd.f32 %v1451, %v3502
        %3504 = vmatprep.mubr.bf16.mxu0 %v740
        %3505 = vmatmul.mubr.bf16.gmra.mrb[0].mxu0 %v739
        %v3506 = vpop.f32.mrb[0].mxu0
        %v3507 = vadd.f32 %v1455, %v3506
        %v3508 = vpop.f32.mrb[0].mxu0
        %v3509 = vadd.f32 %v1457, %v3508
        %v3510 = vpop.f32.mrb[0].mxu0
        %v3511 = vadd.f32 %v1459, %v3510
        %v3512 = vpop.f32.mrb[0].mxu0
        %v3513 = vadd.f32 %v1461, %v3512
        %3514 = vmatprep.mubr.bf16.mxu0 %v742
        %3515 = vmatmul.mubr.bf16.gmra.mrb[0].mxu0 %v741
        %v3516 = vpop.f32.mrb[0].mxu0
        %v3517 = vadd.f32 %v1465, %v3516
        %v3518 = vpop.f32.mrb[0].mxu0
        %v3519 = vadd.f32 %v1467, %v3518
        %v3520 = vpop.f32.mrb[0].mxu0
        %v3521 = vadd.f32 %v1469, %v3520
        %v3522 = vpop.f32.mrb[0].mxu0
        %v3523 = vadd.f32 %v1471, %v3522
        %3524 = vmatprep.mubr.bf16.mxu0 %v744
        %3525 = vmatmul.mubr.bf16.gmra.mrb[0].mxu0 %v743
        %v3526 = vpop.f32.mrb[0].mxu0
        %v3527 = vadd.f32 %v1475, %v3526
        %v3528 = vpop.f32.mrb[0].mxu0
        %v3529 = vadd.f32 %v1477, %v3528
        %v3530 = vpop.f32.mrb[0].mxu0
        %v3531 = vadd.f32 %v1479, %v3530
        %v3532 = vpop.f32.mrb[0].mxu0
        %v3533 = vadd.f32 %v1481, %v3532
        %3534 = vmatprep.mubr.bf16.mxu0 %v746
        %3535 = vmatmul.mubr.bf16.gmra.mrb[0].mxu0 %v745
        %v3536 = vpop.f32.mrb[0].mxu0
        %v3537 = vadd.f32 %v1485, %v3536
        %v3538 = vpop.f32.mrb[0].mxu0
        %v3539 = vadd.f32 %v1487, %v3538
        %v3540 = vpop.f32.mrb[0].mxu0
        %v3541 = vadd.f32 %v1489, %v3540
        %v3542 = vpop.f32.mrb[0].mxu0
        %v3543 = vadd.f32 %v1491, %v3542
        %3544 = vmatprep.mubr.bf16.mxu0 %v748
        %3545 = vmatmul.mubr.bf16.gmra.mrb[0].mxu0 %v747
        %v3546 = vpop.f32.mrb[0].mxu0
        %v3547 = vadd.f32 %v1495, %v3546
        %v3548 = vpop.f32.mrb[0].mxu0
        %v3549 = vadd.f32 %v1497, %v3548
        %v3550 = vpop.f32.mrb[0].mxu0
        %v3551 = vadd.f32 %v1499, %v3550
        %v3552 = vpop.f32.mrb[0].mxu0
        %v3553 = vadd.f32 %v1501, %v3552
        %3554 = vmatprep.mubr.bf16.mxu0 %v750
        %3555 = vmatmul.mubr.bf16.gmra.mrb[0].mxu0 %v749
        %v3556 = vpop.f32.mrb[0].mxu0
        %v3557 = vadd.f32 %v1505, %v3556
        %v3558 = vpop.f32.mrb[0].mxu0
        %v3559 = vadd.f32 %v1507, %v3558
        %v3560 = vpop.f32.mrb[0].mxu0
        %v3561 = vadd.f32 %v1509, %v3560
        %v3562 = vpop.f32.mrb[0].mxu0
        %v3563 = vadd.f32 %v1511, %v3562
        %3564 = vmatprep.mubr.bf16.mxu0 %v752
        %3565 = vmatmul.mubr.bf16.gmra.mrb[0].mxu0 %v751
        %v3566 = vpop.f32.mrb[0].mxu0
        %v3567 = vadd.f32 %v1515, %v3566
        %v3568 = vpop.f32.mrb[0].mxu0
        %v3569 = vadd.f32 %v1517, %v3568
        %v3570 = vpop.f32.mrb[0].mxu0
        %v3571 = vadd.f32 %v1519, %v3570
        %v3572 = vpop.f32.mrb[0].mxu0
        %v3573 = vadd.f32 %v1521, %v3572
        %3574 = vmatprep.mubr.bf16.mxu0 %v754
        %3575 = vmatmul.mubr.bf16.gmra.mrb[0].mxu0 %v753
        %v3576 = vpop.f32.mrb[0].mxu0
        %v3577 = vadd.f32 %v1525, %v3576
        %v3578 = vpop.f32.mrb[0].mxu0
        %v3579 = vadd.f32 %v1527, %v3578
        %v3580 = vpop.f32.mrb[0].mxu0
        %v3581 = vadd.f32 %v1529, %v3580
        %v3582 = vpop.f32.mrb[0].mxu0
        %v3583 = vadd.f32 %v1531, %v3582
        %3584 = vmatprep.mubr.bf16.mxu0 %v756
        %3585 = vmatmul.mubr.bf16.gmra.mrb[0].mxu0 %v755
        %v3586 = vpop.f32.mrb[0].mxu0
        %v3587 = vadd.f32 %v1535, %v3586
        %v3588 = vpop.f32.mrb[0].mxu0
        %v3589 = vadd.f32 %v1537, %v3588
        %v3590 = vpop.f32.mrb[0].mxu0
        %v3591 = vadd.f32 %v1539, %v3590
        %v3592 = vpop.f32.mrb[0].mxu0
        %v3593 = vadd.f32 %v1541, %v3592
        %3594 = vmatprep.mubr.bf16.mxu0 %v758
        %3595 = vmatmul.mubr.bf16.gmra.mrb[0].mxu0 %v757
        %v3596 = vpop.f32.mrb[0].mxu0
        %v3597 = vadd.f32 %v1545, %v3596
        %v3598 = vpop.f32.mrb[0].mxu0
        %v3599 = vadd.f32 %v1547, %v3598
        %v3600 = vpop.f32.mrb[0].mxu0
        %v3601 = vadd.f32 %v1549, %v3600
        %v3602 = vpop.f32.mrb[0].mxu0
        %v3603 = vadd.f32 %v1551, %v3602
        %3604 = vmatprep.mubr.bf16.mxu0 %v760
        %3605 = vmatmul.mubr.bf16.gmra.mrb[0].mxu0 %v759
        %v3606 = vpop.f32.mrb[0].mxu0
        %v3607 = vadd.f32 %v1555, %v3606
        %v3608 = vpop.f32.mrb[0].mxu0
        %v3609 = vadd.f32 %v1557, %v3608
        %v3610 = vpop.f32.mrb[0].mxu0
        %v3611 = vadd.f32 %v1559, %v3610
        %v3612 = vpop.f32.mrb[0].mxu0
        %v3613 = vadd.f32 %v1561, %v3612
        %3614 = vmatprep.mubr.bf16.mxu0 %v762
        %3615 = vmatmul.mubr.bf16.gmra.mrb[0].mxu0 %v761
        %v3616 = vpop.f32.mrb[0].mxu0
        %v3617 = vadd.f32 %v1565, %v3616
        %v3618 = vpop.f32.mrb[0].mxu0
        %v3619 = vadd.f32 %v1567, %v3618
        %v3620 = vpop.f32.mrb[0].mxu0
        %v3621 = vadd.f32 %v1569, %v3620
        %v3622 = vpop.f32.mrb[0].mxu0
        %v3623 = vadd.f32 %v1571, %v3622
        %3624 = vmatprep.mubr.bf16.mxu0 %v764
        %3625 = vmatmul.mubr.bf16.gmra.mrb[0].mxu0 %v763
        %v3626 = vpop.f32.mrb[0].mxu0
        %v3627 = vadd.f32 %v1575, %v3626
        %v3628 = vpop.f32.mrb[0].mxu0
        %v3629 = vadd.f32 %v1577, %v3628
        %v3630 = vpop.f32.mrb[0].mxu0
        %v3631 = vadd.f32 %v1579, %v3630
        %v3632 = vpop.f32.mrb[0].mxu0
        %v3633 = vadd.f32 %v1581, %v3632
        %3634 = vmatprep.mubr.bf16.mxu0 %v766
        %3635 = vmatmul.mubr.bf16.gmra.mrb[0].mxu0 %v765
        %v3636 = vpop.f32.mrb[0].mxu0
        %v3637 = vadd.f32 %v1585, %v3636
        %v3638 = vpop.f32.mrb[0].mxu0
        %v3639 = vadd.f32 %v1587, %v3638
        %v3640 = vpop.f32.mrb[0].mxu0
        %v3641 = vadd.f32 %v1589, %v3640
        %v3642 = vpop.f32.mrb[0].mxu0
        %v3643 = vadd.f32 %v1591, %v3642
        %3644 = vmatprep.mubr.bf16.mxu0 %v768
        %3645 = vmatmul.mubr.bf16.gmra.mrb[0].mxu0 %v767
        %v3646 = vpop.f32.mrb[0].mxu0
        %v3647 = vadd.f32 %v1595, %v3646
        %v3648 = vpop.f32.mrb[0].mxu0
        %v3649 = vadd.f32 %v1597, %v3648
        %v3650 = vpop.f32.mrb[0].mxu0
        %v3651 = vadd.f32 %v1599, %v3650
        %v3652 = vpop.f32.mrb[0].mxu0
        %v3653 = vadd.f32 %v1601, %v3652
        %3654 = vmatprep.mubr.bf16.mxu0 %v770
        %3655 = vmatmul.mubr.bf16.gmra.mrb[0].mxu0 %v769
        %v3656 = vpop.f32.mrb[0].mxu0
        %v3657 = vadd.f32 %v1605, %v3656
        %v3658 = vpop.f32.mrb[0].mxu0
        %v3659 = vadd.f32 %v1607, %v3658
        %v3660 = vpop.f32.mrb[0].mxu0
        %v3661 = vadd.f32 %v1609, %v3660
        %v3662 = vpop.f32.mrb[0].mxu0
        %v3663 = vadd.f32 %v1611, %v3662
        %3664 = vmatprep.mubr.bf16.mxu0 %v772
        %3665 = vmatmul.mubr.bf16.gmra.mrb[0].mxu0 %v771
        %v3666 = vpop.f32.mrb[0].mxu0
        %v3667 = vadd.f32 %v1615, %v3666
        %v3668 = vpop.f32.mrb[0].mxu0
        %v3669 = vadd.f32 %v1617, %v3668
        %v3670 = vpop.f32.mrb[0].mxu0
        %v3671 = vadd.f32 %v1619, %v3670
        %v3672 = vpop.f32.mrb[0].mxu0
        %v3673 = vadd.f32 %v1621, %v3672
        %3674 = vmatprep.mubr.bf16.mxu0 %v774
        %3675 = vmatmul.mubr.bf16.gmra.mrb[0].mxu0 %v773
        %v3676 = vpop.f32.mrb[0].mxu0
        %v3677 = vadd.f32 %v1625, %v3676
        %v3678 = vpop.f32.mrb[0].mxu0
        %v3679 = vadd.f32 %v1627, %v3678
        %v3680 = vpop.f32.mrb[0].mxu0
        %v3681 = vadd.f32 %v1629, %v3680
        %v3682 = vpop.f32.mrb[0].mxu0
        %v3683 = vadd.f32 %v1631, %v3682
        %3684 = vmatprep.mubr.bf16.mxu0 %v776
        %3685 = vmatmul.mubr.bf16.gmra.mrb[0].mxu0 %v775
        %v3686 = vpop.f32.mrb[0].mxu0
        %v3687 = vadd.f32 %v1635, %v3686
        %v3688 = vpop.f32.mrb[0].mxu0
        %v3689 = vadd.f32 %v1637, %v3688
        %v3690 = vpop.f32.mrb[0].mxu0
        %v3691 = vadd.f32 %v1639, %v3690
        %v3692 = vpop.f32.mrb[0].mxu0
        %v3693 = vadd.f32 %v1641, %v3692
        %3694 = vdwg.mxu0
        %3695 = vmatprep.subr.bf16.mxu0 %v3089
        %3696 = vmatpush1.bf16.msra.mxu0 %v3088
        %3697 = vmatprep.subr.bf16.mxu0 %v3097
        %3698 = vmatpush1.bf16.msra.mxu0 %v3096
        %3699 = vmatprep.subr.bf16.mxu0 %v3105
        %3700 = vmatpush1.bf16.msra.mxu0 %v3104
        %3701 = vmatprep.subr.bf16.mxu0 %v3113
        %3702 = vmatpush1.bf16.msra.mxu0 %v3112
        %3703 = vmatprep.subr.bf16.mxu0 %v3121
        %3704 = vmatpush1.bf16.msra.mxu0 %v3120
        %3705 = vmatprep.subr.bf16.mxu0 %v3129
        %3706 = vmatpush1.bf16.msra.mxu0 %v3128
        %3707 = vmatprep.subr.bf16.mxu0 %v3137
        %3708 = vmatpush1.bf16.msra.mxu0 %v3136
        %3709 = vmatprep.subr.bf16.mxu0 %v3145
        %3710 = vmatpush1.bf16.msra.mxu0 %v3144
        %3711 = vmatprep.subr.bf16.mxu0 %v3153
        %3712 = vmatpush1.bf16.msra.mxu0 %v3152
        %3713 = vmatprep.subr.bf16.mxu0 %v3161
        %3714 = vmatpush1.bf16.msra.mxu0 %v3160
        %3715 = vmatprep.subr.bf16.mxu0 %v3169
        %3716 = vmatpush1.bf16.msra.mxu0 %v3168
        %3717 = vmatprep.subr.bf16.mxu0 %v3177
        %3718 = vmatpush1.bf16.msra.mxu0 %v3176
        %3719 = vmatprep.subr.bf16.mxu0 %v3185
        %3720 = vmatpush1.bf16.msra.mxu0 %v3184
        %3721 = vmatprep.subr.bf16.mxu0 %v3193
        %3722 = vmatpush1.bf16.msra.mxu0 %v3192
        %3723 = vmatprep.subr.bf16.mxu0 %v3201
        %3724 = vmatpush1.bf16.msra.mxu0 %v3200
        %3725 = vmatprep.subr.bf16.mxu0 %v3209
        %3726 = vmatpush1.bf16.msra.mxu0 %v3208
        %3727 = vmatprep.mubr.bf16.mxu0 %v714
        %3728 = vmatmul.mubr.bf16.gmra.mrb[0].mxu0 %v713
        %v3729 = vpop.f32.mrb[0].mxu0
        %v3730 = vadd.f32 %v1678, %v3729
        %v3731 = vpop.f32.mrb[0].mxu0
        %v3732 = vadd.f32 %v1680, %v3731
        %v3733 = vpop.f32.mrb[0].mxu0
        %v3734 = vadd.f32 %v1682, %v3733
        %v3735 = vpop.f32.mrb[0].mxu0
        %v3736 = vadd.f32 %v1684, %v3735
        %3737 = vmatprep.mubr.bf16.mxu0 %v716
        %3738 = vmatmul.mubr.bf16.gmra.mrb[0].mxu0 %v715
        %v3739 = vpop.f32.mrb[0].mxu0
        %v3740 = vadd.f32 %v1688, %v3739
        %v3741 = vpop.f32.mrb[0].mxu0
        %v3742 = vadd.f32 %v1690, %v3741
        %v3743 = vpop.f32.mrb[0].mxu0
        %v3744 = vadd.f32 %v1692, %v3743
        %v3745 = vpop.f32.mrb[0].mxu0
        %v3746 = vadd.f32 %v1694, %v3745
        %3747 = vmatprep.mubr.bf16.mxu0 %v718
        %3748 = vmatmul.mubr.bf16.gmra.mrb[0].mxu0 %v717
        %v3749 = vpop.f32.mrb[0].mxu0
        %v3750 = vadd.f32 %v1698, %v3749
        %v3751 = vpop.f32.mrb[0].mxu0
        %v3752 = vadd.f32 %v1700, %v3751
        %v3753 = vpop.f32.mrb[0].mxu0
        %v3754 = vadd.f32 %v1702, %v3753
        %v3755 = vpop.f32.mrb[0].mxu0
        %v3756 = vadd.f32 %v1704, %v3755
        %3757 = vmatprep.mubr.bf16.mxu0 %v720
        %3758 = vmatmul.mubr.bf16.gmra.mrb[0].mxu0 %v719
        %v3759 = vpop.f32.mrb[0].mxu0
        %v3760 = vadd.f32 %v1708, %v3759
        %v3761 = vpop.f32.mrb[0].mxu0
        %v3762 = vadd.f32 %v1710, %v3761
        %v3763 = vpop.f32.mrb[0].mxu0
        %v3764 = vadd.f32 %v1712, %v3763
        %v3765 = vpop.f32.mrb[0].mxu0
        %v3766 = vadd.f32 %v1714, %v3765
        %3767 = vmatprep.mubr.bf16.mxu0 %v722
        %3768 = vmatmul.mubr.bf16.gmra.mrb[0].mxu0 %v721
        %v3769 = vpop.f32.mrb[0].mxu0
        %v3770 = vadd.f32 %v1718, %v3769
        %v3771 = vpop.f32.mrb[0].mxu0
        %v3772 = vadd.f32 %v1720, %v3771
        %v3773 = vpop.f32.mrb[0].mxu0
        %v3774 = vadd.f32 %v1722, %v3773
        %v3775 = vpop.f32.mrb[0].mxu0
        %v3776 = vadd.f32 %v1724, %v3775
        %3777 = vmatprep.mubr.bf16.mxu0 %v724
        %3778 = vmatmul.mubr.bf16.gmra.mrb[0].mxu0 %v723
        %v3779 = vpop.f32.mrb[0].mxu0
        %v3780 = vadd.f32 %v1728, %v3779
        %v3781 = vpop.f32.mrb[0].mxu0
        %v3782 = vadd.f32 %v1730, %v3781
        %v3783 = vpop.f32.mrb[0].mxu0
        %v3784 = vadd.f32 %v1732, %v3783
        %v3785 = vpop.f32.mrb[0].mxu0
        %v3786 = vadd.f32 %v1734, %v3785
        %3787 = vmatprep.mubr.bf16.mxu0 %v726
        %3788 = vmatmul.mubr.bf16.gmra.mrb[0].mxu0 %v725
        %v3789 = vpop.f32.mrb[0].mxu0
        %v3790 = vadd.f32 %v1738, %v3789
        %v3791 = vpop.f32.mrb[0].mxu0
        %v3792 = vadd.f32 %v1740, %v3791
        %v3793 = vpop.f32.mrb[0].mxu0
        %v3794 = vadd.f32 %v1742, %v3793
        %v3795 = vpop.f32.mrb[0].mxu0
        %v3796 = vadd.f32 %v1744, %v3795
        %3797 = vmatprep.mubr.bf16.mxu0 %v728
        %3798 = vmatmul.mubr.bf16.gmra.mrb[0].mxu0 %v727
        %v3799 = vpop.f32.mrb[0].mxu0
        %v3800 = vadd.f32 %v1748, %v3799
        %v3801 = vpop.f32.mrb[0].mxu0
        %v3802 = vadd.f32 %v1750, %v3801
        %v3803 = vpop.f32.mrb[0].mxu0
        %v3804 = vadd.f32 %v1752, %v3803
        %v3805 = vpop.f32.mrb[0].mxu0
        %v3806 = vadd.f32 %v1754, %v3805
        %3807 = vmatprep.mubr.bf16.mxu0 %v730
        %3808 = vmatmul.mubr.bf16.gmra.mrb[0].mxu0 %v729
        %v3809 = vpop.f32.mrb[0].mxu0
        %v3810 = vadd.f32 %v1758, %v3809
        %v3811 = vpop.f32.mrb[0].mxu0
        %v3812 = vadd.f32 %v1760, %v3811
        %v3813 = vpop.f32.mrb[0].mxu0
        %v3814 = vadd.f32 %v1762, %v3813
        %v3815 = vpop.f32.mrb[0].mxu0
        %v3816 = vadd.f32 %v1764, %v3815
        %3817 = vmatprep.mubr.bf16.mxu0 %v732
        %3818 = vmatmul.mubr.bf16.gmra.mrb[0].mxu0 %v731
        %v3819 = vpop.f32.mrb[0].mxu0
        %v3820 = vadd.f32 %v1768, %v3819
        %v3821 = vpop.f32.mrb[0].mxu0
        %v3822 = vadd.f32 %v1770, %v3821
        %v3823 = vpop.f32.mrb[0].mxu0
        %v3824 = vadd.f32 %v1772, %v3823
        %v3825 = vpop.f32.mrb[0].mxu0
        %v3826 = vadd.f32 %v1774, %v3825
        %3827 = vmatprep.mubr.bf16.mxu0 %v734
        %3828 = vmatmul.mubr.bf16.gmra.mrb[0].mxu0 %v733
        %v3829 = vpop.f32.mrb[0].mxu0
        %v3830 = vadd.f32 %v1778, %v3829
        %v3831 = vpop.f32.mrb[0].mxu0
        %v3832 = vadd.f32 %v1780, %v3831
        %v3833 = vpop.f32.mrb[0].mxu0
        %v3834 = vadd.f32 %v1782, %v3833
        %v3835 = vpop.f32.mrb[0].mxu0
        %v3836 = vadd.f32 %v1784, %v3835
        %3837 = vmatprep.mubr.bf16.mxu0 %v736
        %3838 = vmatmul.mubr.bf16.gmra.mrb[0].mxu0 %v735
        %v3839 = vpop.f32.mrb[0].mxu0
        %v3840 = vadd.f32 %v1788, %v3839
        %v3841 = vpop.f32.mrb[0].mxu0
        %v3842 = vadd.f32 %v1790, %v3841
        %v3843 = vpop.f32.mrb[0].mxu0
        %v3844 = vadd.f32 %v1792, %v3843
        %v3845 = vpop.f32.mrb[0].mxu0
        %v3846 = vadd.f32 %v1794, %v3845
        %3847 = vmatprep.mubr.bf16.mxu0 %v738
        %3848 = vmatmul.mubr.bf16.gmra.mrb[0].mxu0 %v737
        %v3849 = vpop.f32.mrb[0].mxu0
        %v3850 = vadd.f32 %v1798, %v3849
        %v3851 = vpop.f32.mrb[0].mxu0
        %v3852 = vadd.f32 %v1800, %v3851
        %v3853 = vpop.f32.mrb[0].mxu0
        %v3854 = vadd.f32 %v1802, %v3853
        %v3855 = vpop.f32.mrb[0].mxu0
        %v3856 = vadd.f32 %v1804, %v3855
        %3857 = vmatprep.mubr.bf16.mxu0 %v740
        %3858 = vmatmul.mubr.bf16.gmra.mrb[0].mxu0 %v739
        %v3859 = vpop.f32.mrb[0].mxu0
        %v3860 = vadd.f32 %v1808, %v3859
        %v3861 = vpop.f32.mrb[0].mxu0
        %v3862 = vadd.f32 %v1810, %v3861
        %v3863 = vpop.f32.mrb[0].mxu0
        %v3864 = vadd.f32 %v1812, %v3863
        %v3865 = vpop.f32.mrb[0].mxu0
        %v3866 = vadd.f32 %v1814, %v3865
        %3867 = vmatprep.mubr.bf16.mxu0 %v742
        %3868 = vmatmul.mubr.bf16.gmra.mrb[0].mxu0 %v741
        %v3869 = vpop.f32.mrb[0].mxu0
        %v3870 = vadd.f32 %v1818, %v3869
        %v3871 = vpop.f32.mrb[0].mxu0
        %v3872 = vadd.f32 %v1820, %v3871
        %v3873 = vpop.f32.mrb[0].mxu0
        %v3874 = vadd.f32 %v1822, %v3873
        %v3875 = vpop.f32.mrb[0].mxu0
        %v3876 = vadd.f32 %v1824, %v3875
        %3877 = vmatprep.mubr.bf16.mxu0 %v744
        %3878 = vmatmul.mubr.bf16.gmra.mrb[0].mxu0 %v743
        %v3879 = vpop.f32.mrb[0].mxu0
        %v3880 = vadd.f32 %v1828, %v3879
        %v3881 = vpop.f32.mrb[0].mxu0
        %v3882 = vadd.f32 %v1830, %v3881
        %v3883 = vpop.f32.mrb[0].mxu0
        %v3884 = vadd.f32 %v1832, %v3883
        %v3885 = vpop.f32.mrb[0].mxu0
        %v3886 = vadd.f32 %v1834, %v3885
        %3887 = vmatprep.mubr.bf16.mxu0 %v746
        %3888 = vmatmul.mubr.bf16.gmra.mrb[0].mxu0 %v745
        %v3889 = vpop.f32.mrb[0].mxu0
        %v3890 = vadd.f32 %v1838, %v3889
        %v3891 = vpop.f32.mrb[0].mxu0
        %v3892 = vadd.f32 %v1840, %v3891
        %v3893 = vpop.f32.mrb[0].mxu0
        %v3894 = vadd.f32 %v1842, %v3893
        %v3895 = vpop.f32.mrb[0].mxu0
        %v3896 = vadd.f32 %v1844, %v3895
        %3897 = vmatprep.mubr.bf16.mxu0 %v748
        %3898 = vmatmul.mubr.bf16.gmra.mrb[0].mxu0 %v747
        %v3899 = vpop.f32.mrb[0].mxu0
        %v3900 = vadd.f32 %v1848, %v3899
        %v3901 = vpop.f32.mrb[0].mxu0
        %v3902 = vadd.f32 %v1850, %v3901
        %v3903 = vpop.f32.mrb[0].mxu0
        %v3904 = vadd.f32 %v1852, %v3903
        %v3905 = vpop.f32.mrb[0].mxu0
        %v3906 = vadd.f32 %v1854, %v3905
        %3907 = vmatprep.mubr.bf16.mxu0 %v750
        %3908 = vmatmul.mubr.bf16.gmra.mrb[0].mxu0 %v749
        %v3909 = vpop.f32.mrb[0].mxu0
        %v3910 = vadd.f32 %v1858, %v3909
        %v3911 = vpop.f32.mrb[0].mxu0
        %v3912 = vadd.f32 %v1860, %v3911
        %v3913 = vpop.f32.mrb[0].mxu0
        %v3914 = vadd.f32 %v1862, %v3913
        %v3915 = vpop.f32.mrb[0].mxu0
        %v3916 = vadd.f32 %v1864, %v3915
        %3917 = vmatprep.mubr.bf16.mxu0 %v752
        %3918 = vmatmul.mubr.bf16.gmra.mrb[0].mxu0 %v751
        %v3919 = vpop.f32.mrb[0].mxu0
        %v3920 = vadd.f32 %v1868, %v3919
        %v3921 = vpop.f32.mrb[0].mxu0
        %v3922 = vadd.f32 %v1870, %v3921
        %v3923 = vpop.f32.mrb[0].mxu0
        %v3924 = vadd.f32 %v1872, %v3923
        %v3925 = vpop.f32.mrb[0].mxu0
        %v3926 = vadd.f32 %v1874, %v3925
        %3927 = vmatprep.mubr.bf16.mxu0 %v754
        %3928 = vmatmul.mubr.bf16.gmra.mrb[0].mxu0 %v753
        %v3929 = vpop.f32.mrb[0].mxu0
        %v3930 = vadd.f32 %v1878, %v3929
        %v3931 = vpop.f32.mrb[0].mxu0
        %v3932 = vadd.f32 %v1880, %v3931
        %v3933 = vpop.f32.mrb[0].mxu0
        %v3934 = vadd.f32 %v1882, %v3933
        %v3935 = vpop.f32.mrb[0].mxu0
        %v3936 = vadd.f32 %v1884, %v3935
        %3937 = vmatprep.mubr.bf16.mxu0 %v756
        %3938 = vmatmul.mubr.bf16.gmra.mrb[0].mxu0 %v755
        %v3939 = vpop.f32.mrb[0].mxu0
        %v3940 = vadd.f32 %v1888, %v3939
        %v3941 = vpop.f32.mrb[0].mxu0
        %v3942 = vadd.f32 %v1890, %v3941
        %v3943 = vpop.f32.mrb[0].mxu0
        %v3944 = vadd.f32 %v1892, %v3943
        %v3945 = vpop.f32.mrb[0].mxu0
        %v3946 = vadd.f32 %v1894, %v3945
        %3947 = vmatprep.mubr.bf16.mxu0 %v758
        %3948 = vmatmul.mubr.bf16.gmra.mrb[0].mxu0 %v757
        %v3949 = vpop.f32.mrb[0].mxu0
        %v3950 = vadd.f32 %v1898, %v3949
        %v3951 = vpop.f32.mrb[0].mxu0
        %v3952 = vadd.f32 %v1900, %v3951
        %v3953 = vpop.f32.mrb[0].mxu0
        %v3954 = vadd.f32 %v1902, %v3953
        %v3955 = vpop.f32.mrb[0].mxu0
        %v3956 = vadd.f32 %v1904, %v3955
        %3957 = vmatprep.mubr.bf16.mxu0 %v760
        %3958 = vmatmul.mubr.bf16.gmra.mrb[0].mxu0 %v759
        %v3959 = vpop.f32.mrb[0].mxu0
        %v3960 = vadd.f32 %v1908, %v3959
        %v3961 = vpop.f32.mrb[0].mxu0
        %v3962 = vadd.f32 %v1910, %v3961
        %v3963 = vpop.f32.mrb[0].mxu0
        %v3964 = vadd.f32 %v1912, %v3963
        %v3965 = vpop.f32.mrb[0].mxu0
        %v3966 = vadd.f32 %v1914, %v3965
        %3967 = vmatprep.mubr.bf16.mxu0 %v762
        %3968 = vmatmul.mubr.bf16.gmra.mrb[0].mxu0 %v761
        %v3969 = vpop.f32.mrb[0].mxu0
        %v3970 = vadd.f32 %v1918, %v3969
        %v3971 = vpop.f32.mrb[0].mxu0
        %v3972 = vadd.f32 %v1920, %v3971
        %v3973 = vpop.f32.mrb[0].mxu0
        %v3974 = vadd.f32 %v1922, %v3973
        %v3975 = vpop.f32.mrb[0].mxu0
        %v3976 = vadd.f32 %v1924, %v3975
        %3977 = vmatprep.mubr.bf16.mxu0 %v764
        %3978 = vmatmul.mubr.bf16.gmra.mrb[0].mxu0 %v763
        %v3979 = vpop.f32.mrb[0].mxu0
        %v3980 = vadd.f32 %v1928, %v3979
        %v3981 = vpop.f32.mrb[0].mxu0
        %v3982 = vadd.f32 %v1930, %v3981
        %v3983 = vpop.f32.mrb[0].mxu0
        %v3984 = vadd.f32 %v1932, %v3983
        %v3985 = vpop.f32.mrb[0].mxu0
        %v3986 = vadd.f32 %v1934, %v3985
        %3987 = vmatprep.mubr.bf16.mxu0 %v766
        %3988 = vmatmul.mubr.bf16.gmra.mrb[0].mxu0 %v765
        %v3989 = vpop.f32.mrb[0].mxu0
        %v3990 = vadd.f32 %v1938, %v3989
        %v3991 = vpop.f32.mrb[0].mxu0
        %v3992 = vadd.f32 %v1940, %v3991
        %v3993 = vpop.f32.mrb[0].mxu0
        %v3994 = vadd.f32 %v1942, %v3993
        %v3995 = vpop.f32.mrb[0].mxu0
        %v3996 = vadd.f32 %v1944, %v3995
        %3997 = vmatprep.mubr.bf16.mxu0 %v768
        %3998 = vmatmul.mubr.bf16.gmra.mrb[0].mxu0 %v767
        %v3999 = vpop.f32.mrb[0].mxu0
        %v4000 = vadd.f32 %v1948, %v3999
        %v4001 = vpop.f32.mrb[0].mxu0
        %v4002 = vadd.f32 %v1950, %v4001
        %v4003 = vpop.f32.mrb[0].mxu0
        %v4004 = vadd.f32 %v1952, %v4003
        %v4005 = vpop.f32.mrb[0].mxu0
        %v4006 = vadd.f32 %v1954, %v4005
        %4007 = vmatprep.mubr.bf16.mxu0 %v770
        %4008 = vmatmul.mubr.bf16.gmra.mrb[0].mxu0 %v769
        %v4009 = vpop.f32.mrb[0].mxu0
        %v4010 = vadd.f32 %v1958, %v4009
        %v4011 = vpop.f32.mrb[0].mxu0
        %v4012 = vadd.f32 %v1960, %v4011
        %v4013 = vpop.f32.mrb[0].mxu0
        %v4014 = vadd.f32 %v1962, %v4013
        %v4015 = vpop.f32.mrb[0].mxu0
        %v4016 = vadd.f32 %v1964, %v4015
        %4017 = vmatprep.mubr.bf16.mxu0 %v772
        %4018 = vmatmul.mubr.bf16.gmra.mrb[0].mxu0 %v771
        %v4019 = vpop.f32.mrb[0].mxu0
        %v4020 = vadd.f32 %v1968, %v4019
        %v4021 = vpop.f32.mrb[0].mxu0
        %v4022 = vadd.f32 %v1970, %v4021
        %v4023 = vpop.f32.mrb[0].mxu0
        %v4024 = vadd.f32 %v1972, %v4023
        %v4025 = vpop.f32.mrb[0].mxu0
        %v4026 = vadd.f32 %v1974, %v4025
        %4027 = vmatprep.mubr.bf16.mxu0 %v774
        %4028 = vmatmul.mubr.bf16.gmra.mrb[0].mxu0 %v773
        %v4029 = vpop.f32.mrb[0].mxu0
        %v4030 = vadd.f32 %v1978, %v4029
        %v4031 = vpop.f32.mrb[0].mxu0
        %v4032 = vadd.f32 %v1980, %v4031
        %v4033 = vpop.f32.mrb[0].mxu0
        %v4034 = vadd.f32 %v1982, %v4033
        %v4035 = vpop.f32.mrb[0].mxu0
        %v4036 = vadd.f32 %v1984, %v4035
        %4037 = vmatprep.mubr.bf16.mxu0 %v776
        %4038 = vmatmul.mubr.bf16.gmra.mrb[0].mxu0 %v775
        %v4039 = vpop.f32.mrb[0].mxu0
        %v4040 = vadd.f32 %v1988, %v4039
        %v4041 = vpop.f32.mrb[0].mxu0
        %v4042 = vadd.f32 %v1990, %v4041
        %v4043 = vpop.f32.mrb[0].mxu0
        %v4044 = vadd.f32 %v1992, %v4043
        %v4045 = vpop.f32.mrb[0].mxu0
        %v4046 = vadd.f32 %v1994, %v4045
        %4047 = vdwg.mxu0
        %4048 = vmatprep.subr.bf16.mxu0 %v3091
        %4049 = vmatpush1.bf16.msra.mxu0 %v3090
        %4050 = vmatprep.subr.bf16.mxu0 %v3099
        %4051 = vmatpush1.bf16.msra.mxu0 %v3098
        %4052 = vmatprep.subr.bf16.mxu0 %v3107
        %4053 = vmatpush1.bf16.msra.mxu0 %v3106
        %4054 = vmatprep.subr.bf16.mxu0 %v3115
        %4055 = vmatpush1.bf16.msra.mxu0 %v3114
        %4056 = vmatprep.subr.bf16.mxu0 %v3123
        %4057 = vmatpush1.bf16.msra.mxu0 %v3122
        %4058 = vmatprep.subr.bf16.mxu0 %v3131
        %4059 = vmatpush1.bf16.msra.mxu0 %v3130
        %4060 = vmatprep.subr.bf16.mxu0 %v3139
        %4061 = vmatpush1.bf16.msra.mxu0 %v3138
        %4062 = vmatprep.subr.bf16.mxu0 %v3147
        %4063 = vmatpush1.bf16.msra.mxu0 %v3146
        %4064 = vmatprep.subr.bf16.mxu0 %v3155
        %4065 = vmatpush1.bf16.msra.mxu0 %v3154
        %4066 = vmatprep.subr.bf16.mxu0 %v3163
        %4067 = vmatpush1.bf16.msra.mxu0 %v3162
        %4068 = vmatprep.subr.bf16.mxu0 %v3171
        %4069 = vmatpush1.bf16.msra.mxu0 %v3170
        %4070 = vmatprep.subr.bf16.mxu0 %v3179
        %4071 = vmatpush1.bf16.msra.mxu0 %v3178
        %4072 = vmatprep.subr.bf16.mxu0 %v3187
        %4073 = vmatpush1.bf16.msra.mxu0 %v3186
        %4074 = vmatprep.subr.bf16.mxu0 %v3195
        %4075 = vmatpush1.bf16.msra.mxu0 %v3194
        %4076 = vmatprep.subr.bf16.mxu0 %v3203
        %4077 = vmatpush1.bf16.msra.mxu0 %v3202
        %4078 = vmatprep.subr.bf16.mxu0 %v3211
        %4079 = vmatpush1.bf16.msra.mxu0 %v3210
        %4080 = vmatprep.mubr.bf16.mxu0 %v714
        %4081 = vmatmul.mubr.bf16.gmra.mrb[0].mxu0 %v713
        %v4082 = vpop.f32.mrb[0].mxu0
        %v4083 = vadd.f32 %v2031, %v4082
        %v4084 = vpop.f32.mrb[0].mxu0
        %v4085 = vadd.f32 %v2033, %v4084
        %v4086 = vpop.f32.mrb[0].mxu0
        %v4087 = vadd.f32 %v2035, %v4086
        %v4088 = vpop.f32.mrb[0].mxu0
        %v4089 = vadd.f32 %v2037, %v4088
        %4090 = vmatprep.mubr.bf16.mxu0 %v716
        %4091 = vmatmul.mubr.bf16.gmra.mrb[0].mxu0 %v715
        %v4092 = vpop.f32.mrb[0].mxu0
        %v4093 = vadd.f32 %v2041, %v4092
        %v4094 = vpop.f32.mrb[0].mxu0
        %v4095 = vadd.f32 %v2043, %v4094
        %v4096 = vpop.f32.mrb[0].mxu0
        %v4097 = vadd.f32 %v2045, %v4096
        %v4098 = vpop.f32.mrb[0].mxu0
        %v4099 = vadd.f32 %v2047, %v4098
        %4100 = vmatprep.mubr.bf16.mxu0 %v718
        %4101 = vmatmul.mubr.bf16.gmra.mrb[0].mxu0 %v717
        %v4102 = vpop.f32.mrb[0].mxu0
        %v4103 = vadd.f32 %v2051, %v4102
        %v4104 = vpop.f32.mrb[0].mxu0
        %v4105 = vadd.f32 %v2053, %v4104
        %v4106 = vpop.f32.mrb[0].mxu0
        %v4107 = vadd.f32 %v2055, %v4106
        %v4108 = vpop.f32.mrb[0].mxu0
        %v4109 = vadd.f32 %v2057, %v4108
        %4110 = vmatprep.mubr.bf16.mxu0 %v720
        %4111 = vmatmul.mubr.bf16.gmra.mrb[0].mxu0 %v719
        %v4112 = vpop.f32.mrb[0].mxu0
        %v4113 = vadd.f32 %v2061, %v4112
        %v4114 = vpop.f32.mrb[0].mxu0
        %v4115 = vadd.f32 %v2063, %v4114
        %v4116 = vpop.f32.mrb[0].mxu0
        %v4117 = vadd.f32 %v2065, %v4116
        %v4118 = vpop.f32.mrb[0].mxu0
        %v4119 = vadd.f32 %v2067, %v4118
        %4120 = vmatprep.mubr.bf16.mxu0 %v722
        %4121 = vmatmul.mubr.bf16.gmra.mrb[0].mxu0 %v721
        %v4122 = vpop.f32.mrb[0].mxu0
        %v4123 = vadd.f32 %v2071, %v4122
        %v4124 = vpop.f32.mrb[0].mxu0
        %v4125 = vadd.f32 %v2073, %v4124
        %v4126 = vpop.f32.mrb[0].mxu0
        %v4127 = vadd.f32 %v2075, %v4126
        %v4128 = vpop.f32.mrb[0].mxu0
        %v4129 = vadd.f32 %v2077, %v4128
        %4130 = vmatprep.mubr.bf16.mxu0 %v724
        %4131 = vmatmul.mubr.bf16.gmra.mrb[0].mxu0 %v723
        %v4132 = vpop.f32.mrb[0].mxu0
        %v4133 = vadd.f32 %v2081, %v4132
        %v4134 = vpop.f32.mrb[0].mxu0
        %v4135 = vadd.f32 %v2083, %v4134
        %v4136 = vpop.f32.mrb[0].mxu0
        %v4137 = vadd.f32 %v2085, %v4136
        %v4138 = vpop.f32.mrb[0].mxu0
        %v4139 = vadd.f32 %v2087, %v4138
        %4140 = vmatprep.mubr.bf16.mxu0 %v726
        %4141 = vmatmul.mubr.bf16.gmra.mrb[0].mxu0 %v725
        %v4142 = vpop.f32.mrb[0].mxu0
        %v4143 = vadd.f32 %v2091, %v4142
        %v4144 = vpop.f32.mrb[0].mxu0
        %v4145 = vadd.f32 %v2093, %v4144
        %v4146 = vpop.f32.mrb[0].mxu0
        %v4147 = vadd.f32 %v2095, %v4146
        %v4148 = vpop.f32.mrb[0].mxu0
        %v4149 = vadd.f32 %v2097, %v4148
        %4150 = vmatprep.mubr.bf16.mxu0 %v728
        %4151 = vmatmul.mubr.bf16.gmra.mrb[0].mxu0 %v727
        %v4152 = vpop.f32.mrb[0].mxu0
        %v4153 = vadd.f32 %v2101, %v4152
        %v4154 = vpop.f32.mrb[0].mxu0
        %v4155 = vadd.f32 %v2103, %v4154
        %v4156 = vpop.f32.mrb[0].mxu0
        %v4157 = vadd.f32 %v2105, %v4156
        %v4158 = vpop.f32.mrb[0].mxu0
        %v4159 = vadd.f32 %v2107, %v4158
        %4160 = vmatprep.mubr.bf16.mxu0 %v730
        %4161 = vmatmul.mubr.bf16.gmra.mrb[0].mxu0 %v729
        %v4162 = vpop.f32.mrb[0].mxu0
        %v4163 = vadd.f32 %v2111, %v4162
        %v4164 = vpop.f32.mrb[0].mxu0
        %v4165 = vadd.f32 %v2113, %v4164
        %v4166 = vpop.f32.mrb[0].mxu0
        %v4167 = vadd.f32 %v2115, %v4166
        %v4168 = vpop.f32.mrb[0].mxu0
        %v4169 = vadd.f32 %v2117, %v4168
        %4170 = vmatprep.mubr.bf16.mxu0 %v732
        %4171 = vmatmul.mubr.bf16.gmra.mrb[0].mxu0 %v731
        %v4172 = vpop.f32.mrb[0].mxu0
        %v4173 = vadd.f32 %v2121, %v4172
        %v4174 = vpop.f32.mrb[0].mxu0
        %v4175 = vadd.f32 %v2123, %v4174
        %v4176 = vpop.f32.mrb[0].mxu0
        %v4177 = vadd.f32 %v2125, %v4176
        %v4178 = vpop.f32.mrb[0].mxu0
        %v4179 = vadd.f32 %v2127, %v4178
        %4180 = vmatprep.mubr.bf16.mxu0 %v734
        %4181 = vmatmul.mubr.bf16.gmra.mrb[0].mxu0 %v733
        %v4182 = vpop.f32.mrb[0].mxu0
        %v4183 = vadd.f32 %v2131, %v4182
        %v4184 = vpop.f32.mrb[0].mxu0
        %v4185 = vadd.f32 %v2133, %v4184
        %v4186 = vpop.f32.mrb[0].mxu0
        %v4187 = vadd.f32 %v2135, %v4186
        %v4188 = vpop.f32.mrb[0].mxu0
        %v4189 = vadd.f32 %v2137, %v4188
        %4190 = vmatprep.mubr.bf16.mxu0 %v736
        %4191 = vmatmul.mubr.bf16.gmra.mrb[0].mxu0 %v735
        %v4192 = vpop.f32.mrb[0].mxu0
        %v4193 = vadd.f32 %v2141, %v4192
        %v4194 = vpop.f32.mrb[0].mxu0
        %v4195 = vadd.f32 %v2143, %v4194
        %v4196 = vpop.f32.mrb[0].mxu0
        %v4197 = vadd.f32 %v2145, %v4196
        %v4198 = vpop.f32.mrb[0].mxu0
        %v4199 = vadd.f32 %v2147, %v4198
        %4200 = vmatprep.mubr.bf16.mxu0 %v738
        %4201 = vmatmul.mubr.bf16.gmra.mrb[0].mxu0 %v737
        %v4202 = vpop.f32.mrb[0].mxu0
        %v4203 = vadd.f32 %v2151, %v4202
        %v4204 = vpop.f32.mrb[0].mxu0
        %v4205 = vadd.f32 %v2153, %v4204
        %v4206 = vpop.f32.mrb[0].mxu0
        %v4207 = vadd.f32 %v2155, %v4206
        %v4208 = vpop.f32.mrb[0].mxu0
        %v4209 = vadd.f32 %v2157, %v4208
        %4210 = vmatprep.mubr.bf16.mxu0 %v740
        %4211 = vmatmul.mubr.bf16.gmra.mrb[0].mxu0 %v739
        %v4212 = vpop.f32.mrb[0].mxu0
        %v4213 = vadd.f32 %v2161, %v4212
        %v4214 = vpop.f32.mrb[0].mxu0
        %v4215 = vadd.f32 %v2163, %v4214
        %v4216 = vpop.f32.mrb[0].mxu0
        %v4217 = vadd.f32 %v2165, %v4216
        %v4218 = vpop.f32.mrb[0].mxu0
        %v4219 = vadd.f32 %v2167, %v4218
        %4220 = vmatprep.mubr.bf16.mxu0 %v742
        %4221 = vmatmul.mubr.bf16.gmra.mrb[0].mxu0 %v741
        %v4222 = vpop.f32.mrb[0].mxu0
        %v4223 = vadd.f32 %v2171, %v4222
        %v4224 = vpop.f32.mrb[0].mxu0
        %v4225 = vadd.f32 %v2173, %v4224
        %v4226 = vpop.f32.mrb[0].mxu0
        %v4227 = vadd.f32 %v2175, %v4226
        %v4228 = vpop.f32.mrb[0].mxu0
        %v4229 = vadd.f32 %v2177, %v4228
        %4230 = vmatprep.mubr.bf16.mxu0 %v744
        %4231 = vmatmul.mubr.bf16.gmra.mrb[0].mxu0 %v743
        %v4232 = vpop.f32.mrb[0].mxu0
        %v4233 = vadd.f32 %v2181, %v4232
        %v4234 = vpop.f32.mrb[0].mxu0
        %v4235 = vadd.f32 %v2183, %v4234
        %v4236 = vpop.f32.mrb[0].mxu0
        %v4237 = vadd.f32 %v2185, %v4236
        %v4238 = vpop.f32.mrb[0].mxu0
        %v4239 = vadd.f32 %v2187, %v4238
        %4240 = vmatprep.mubr.bf16.mxu0 %v746
        %4241 = vmatmul.mubr.bf16.gmra.mrb[0].mxu0 %v745
        %v4242 = vpop.f32.mrb[0].mxu0
        %v4243 = vadd.f32 %v2191, %v4242
        %v4244 = vpop.f32.mrb[0].mxu0
        %v4245 = vadd.f32 %v2193, %v4244
        %v4246 = vpop.f32.mrb[0].mxu0
        %v4247 = vadd.f32 %v2195, %v4246
        %v4248 = vpop.f32.mrb[0].mxu0
        %v4249 = vadd.f32 %v2197, %v4248
        %4250 = vmatprep.mubr.bf16.mxu0 %v748
        %4251 = vmatmul.mubr.bf16.gmra.mrb[0].mxu0 %v747
        %v4252 = vpop.f32.mrb[0].mxu0
        %v4253 = vadd.f32 %v2201, %v4252
        %v4254 = vpop.f32.mrb[0].mxu0
        %v4255 = vadd.f32 %v2203, %v4254
        %v4256 = vpop.f32.mrb[0].mxu0
        %v4257 = vadd.f32 %v2205, %v4256
        %v4258 = vpop.f32.mrb[0].mxu0
        %v4259 = vadd.f32 %v2207, %v4258
        %4260 = vmatprep.mubr.bf16.mxu0 %v750
        %4261 = vmatmul.mubr.bf16.gmra.mrb[0].mxu0 %v749
        %v4262 = vpop.f32.mrb[0].mxu0
        %v4263 = vadd.f32 %v2211, %v4262
        %v4264 = vpop.f32.mrb[0].mxu0
        %v4265 = vadd.f32 %v2213, %v4264
        %v4266 = vpop.f32.mrb[0].mxu0
        %v4267 = vadd.f32 %v2215, %v4266
        %v4268 = vpop.f32.mrb[0].mxu0
        %v4269 = vadd.f32 %v2217, %v4268
        %4270 = vmatprep.mubr.bf16.mxu0 %v752
        %4271 = vmatmul.mubr.bf16.gmra.mrb[0].mxu0 %v751
        %v4272 = vpop.f32.mrb[0].mxu0
        %v4273 = vadd.f32 %v2221, %v4272
        %v4274 = vpop.f32.mrb[0].mxu0
        %v4275 = vadd.f32 %v2223, %v4274
        %v4276 = vpop.f32.mrb[0].mxu0
        %v4277 = vadd.f32 %v2225, %v4276
        %v4278 = vpop.f32.mrb[0].mxu0
        %v4279 = vadd.f32 %v2227, %v4278
        %4280 = vmatprep.mubr.bf16.mxu0 %v754
        %4281 = vmatmul.mubr.bf16.gmra.mrb[0].mxu0 %v753
        %v4282 = vpop.f32.mrb[0].mxu0
        %v4283 = vadd.f32 %v2231, %v4282
        %v4284 = vpop.f32.mrb[0].mxu0
        %v4285 = vadd.f32 %v2233, %v4284
        %v4286 = vpop.f32.mrb[0].mxu0
        %v4287 = vadd.f32 %v2235, %v4286
        %v4288 = vpop.f32.mrb[0].mxu0
        %v4289 = vadd.f32 %v2237, %v4288
        %4290 = vmatprep.mubr.bf16.mxu0 %v756
        %4291 = vmatmul.mubr.bf16.gmra.mrb[0].mxu0 %v755
        %v4292 = vpop.f32.mrb[0].mxu0
        %v4293 = vadd.f32 %v2241, %v4292
        %v4294 = vpop.f32.mrb[0].mxu0
        %v4295 = vadd.f32 %v2243, %v4294
        %v4296 = vpop.f32.mrb[0].mxu0
        %v4297 = vadd.f32 %v2245, %v4296
        %v4298 = vpop.f32.mrb[0].mxu0
        %v4299 = vadd.f32 %v2247, %v4298
        %4300 = vmatprep.mubr.bf16.mxu0 %v758
        %4301 = vmatmul.mubr.bf16.gmra.mrb[0].mxu0 %v757
        %v4302 = vpop.f32.mrb[0].mxu0
        %v4303 = vadd.f32 %v2251, %v4302
        %v4304 = vpop.f32.mrb[0].mxu0
        %v4305 = vadd.f32 %v2253, %v4304
        %v4306 = vpop.f32.mrb[0].mxu0
        %v4307 = vadd.f32 %v2255, %v4306
        %v4308 = vpop.f32.mrb[0].mxu0
        %v4309 = vadd.f32 %v2257, %v4308
        %4310 = vmatprep.mubr.bf16.mxu0 %v760
        %4311 = vmatmul.mubr.bf16.gmra.mrb[0].mxu0 %v759
        %v4312 = vpop.f32.mrb[0].mxu0
        %v4313 = vadd.f32 %v2261, %v4312
        %v4314 = vpop.f32.mrb[0].mxu0
        %v4315 = vadd.f32 %v2263, %v4314
        %v4316 = vpop.f32.mrb[0].mxu0
        %v4317 = vadd.f32 %v2265, %v4316
        %v4318 = vpop.f32.mrb[0].mxu0
        %v4319 = vadd.f32 %v2267, %v4318
        %4320 = vmatprep.mubr.bf16.mxu0 %v762
        %4321 = vmatmul.mubr.bf16.gmra.mrb[0].mxu0 %v761
        %v4322 = vpop.f32.mrb[0].mxu0
        %v4323 = vadd.f32 %v2271, %v4322
        %v4324 = vpop.f32.mrb[0].mxu0
        %v4325 = vadd.f32 %v2273, %v4324
        %v4326 = vpop.f32.mrb[0].mxu0
        %v4327 = vadd.f32 %v2275, %v4326
        %v4328 = vpop.f32.mrb[0].mxu0
        %v4329 = vadd.f32 %v2277, %v4328
        %4330 = vmatprep.mubr.bf16.mxu0 %v764
        %4331 = vmatmul.mubr.bf16.gmra.mrb[0].mxu0 %v763
        %v4332 = vpop.f32.mrb[0].mxu0
        %v4333 = vadd.f32 %v2281, %v4332
        %v4334 = vpop.f32.mrb[0].mxu0
        %v4335 = vadd.f32 %v2283, %v4334
        %v4336 = vpop.f32.mrb[0].mxu0
        %v4337 = vadd.f32 %v2285, %v4336
        %v4338 = vpop.f32.mrb[0].mxu0
        %v4339 = vadd.f32 %v2287, %v4338
        %4340 = vmatprep.mubr.bf16.mxu0 %v766
        %4341 = vmatmul.mubr.bf16.gmra.mrb[0].mxu0 %v765
        %v4342 = vpop.f32.mrb[0].mxu0
        %v4343 = vadd.f32 %v2291, %v4342
        %v4344 = vpop.f32.mrb[0].mxu0
        %v4345 = vadd.f32 %v2293, %v4344
        %v4346 = vpop.f32.mrb[0].mxu0
        %v4347 = vadd.f32 %v2295, %v4346
        %v4348 = vpop.f32.mrb[0].mxu0
        %v4349 = vadd.f32 %v2297, %v4348
        %4350 = vmatprep.mubr.bf16.mxu0 %v768
        %4351 = vmatmul.mubr.bf16.gmra.mrb[0].mxu0 %v767
        %v4352 = vpop.f32.mrb[0].mxu0
        %v4353 = vadd.f32 %v2301, %v4352
        %v4354 = vpop.f32.mrb[0].mxu0
        %v4355 = vadd.f32 %v2303, %v4354
        %v4356 = vpop.f32.mrb[0].mxu0
        %v4357 = vadd.f32 %v2305, %v4356
        %v4358 = vpop.f32.mrb[0].mxu0
        %v4359 = vadd.f32 %v2307, %v4358
        %4360 = vmatprep.mubr.bf16.mxu0 %v770
        %4361 = vmatmul.mubr.bf16.gmra.mrb[0].mxu0 %v769
        %v4362 = vpop.f32.mrb[0].mxu0
        %v4363 = vadd.f32 %v2311, %v4362
        %v4364 = vpop.f32.mrb[0].mxu0
        %v4365 = vadd.f32 %v2313, %v4364
        %v4366 = vpop.f32.mrb[0].mxu0
        %v4367 = vadd.f32 %v2315, %v4366
        %v4368 = vpop.f32.mrb[0].mxu0
        %v4369 = vadd.f32 %v2317, %v4368
        %4370 = vmatprep.mubr.bf16.mxu0 %v772
        %4371 = vmatmul.mubr.bf16.gmra.mrb[0].mxu0 %v771
        %v4372 = vpop.f32.mrb[0].mxu0
        %v4373 = vadd.f32 %v2321, %v4372
        %v4374 = vpop.f32.mrb[0].mxu0
        %v4375 = vadd.f32 %v2323, %v4374
        %v4376 = vpop.f32.mrb[0].mxu0
        %v4377 = vadd.f32 %v2325, %v4376
        %v4378 = vpop.f32.mrb[0].mxu0
        %v4379 = vadd.f32 %v2327, %v4378
        %4380 = vmatprep.mubr.bf16.mxu0 %v774
        %4381 = vmatmul.mubr.bf16.gmra.mrb[0].mxu0 %v773
        %v4382 = vpop.f32.mrb[0].mxu0
        %v4383 = vadd.f32 %v2331, %v4382
        %v4384 = vpop.f32.mrb[0].mxu0
        %v4385 = vadd.f32 %v2333, %v4384
        %v4386 = vpop.f32.mrb[0].mxu0
        %v4387 = vadd.f32 %v2335, %v4386
        %v4388 = vpop.f32.mrb[0].mxu0
        %v4389 = vadd.f32 %v2337, %v4388
        %4390 = vmatprep.mubr.bf16.mxu0 %v776
        %4391 = vmatmul.mubr.bf16.gmra.mrb[0].mxu0 %v775
        %v4392 = vpop.f32.mrb[0].mxu0
        %v4393 = vadd.f32 %v2341, %v4392
        %v4394 = vpop.f32.mrb[0].mxu0
        %v4395 = vadd.f32 %v2343, %v4394
        %v4396 = vpop.f32.mrb[0].mxu0
        %v4397 = vadd.f32 %v2345, %v4396
        %v4398 = vpop.f32.mrb[0].mxu0
        %v4399 = vadd.f32 %v2347, %v4398
        %4400 = vdwg.mxu0
        %4401 = vmatprep.subr.bf16.mxu0 %v3093
        %4402 = vmatpush1.bf16.msra.mxu0 %v3092
        %4403 = vmatprep.subr.bf16.mxu0 %v3101
        %4404 = vmatpush1.bf16.msra.mxu0 %v3100
        %4405 = vmatprep.subr.bf16.mxu0 %v3109
        %4406 = vmatpush1.bf16.msra.mxu0 %v3108
        %4407 = vmatprep.subr.bf16.mxu0 %v3117
        %4408 = vmatpush1.bf16.msra.mxu0 %v3116
        %4409 = vmatprep.subr.bf16.mxu0 %v3125
        %4410 = vmatpush1.bf16.msra.mxu0 %v3124
        %4411 = vmatprep.subr.bf16.mxu0 %v3133
        %4412 = vmatpush1.bf16.msra.mxu0 %v3132
        %4413 = vmatprep.subr.bf16.mxu0 %v3141
        %4414 = vmatpush1.bf16.msra.mxu0 %v3140
        %4415 = vmatprep.subr.bf16.mxu0 %v3149
        %4416 = vmatpush1.bf16.msra.mxu0 %v3148
        %4417 = vmatprep.subr.bf16.mxu0 %v3157
        %4418 = vmatpush1.bf16.msra.mxu0 %v3156
        %4419 = vmatprep.subr.bf16.mxu0 %v3165
        %4420 = vmatpush1.bf16.msra.mxu0 %v3164
        %4421 = vmatprep.subr.bf16.mxu0 %v3173
        %4422 = vmatpush1.bf16.msra.mxu0 %v3172
        %4423 = vmatprep.subr.bf16.mxu0 %v3181
        %4424 = vmatpush1.bf16.msra.mxu0 %v3180
        %4425 = vmatprep.subr.bf16.mxu0 %v3189
        %4426 = vmatpush1.bf16.msra.mxu0 %v3188
        %4427 = vmatprep.subr.bf16.mxu0 %v3197
        %4428 = vmatpush1.bf16.msra.mxu0 %v3196
        %4429 = vmatprep.subr.bf16.mxu0 %v3205
        %4430 = vmatpush1.bf16.msra.mxu0 %v3204
        %4431 = vmatprep.subr.bf16.mxu0 %v3213
        %4432 = vmatpush1.bf16.msra.mxu0 %v3212
        %4433 = vmatprep.mubr.bf16.mxu0 %v714
        %4434 = vmatmul.mubr.bf16.gmra.mrb[0].mxu0 %v713
        %v4435 = vpop.f32.mrb[0].mxu0
        %v4436 = vadd.f32 %v2384, %v4435
        %v4437 = vpop.f32.mrb[0].mxu0
        %v4438 = vadd.f32 %v2386, %v4437
        %v4439 = vpop.f32.mrb[0].mxu0
        %v4440 = vadd.f32 %v2388, %v4439
        %v4441 = vpop.f32.mrb[0].mxu0
        %v4442 = vadd.f32 %v2390, %v4441
        %4443 = vmatprep.mubr.bf16.mxu0 %v716
        %4444 = vmatmul.mubr.bf16.gmra.mrb[0].mxu0 %v715
        %v4445 = vpop.f32.mrb[0].mxu0
        %v4446 = vadd.f32 %v2394, %v4445
        %v4447 = vpop.f32.mrb[0].mxu0
        %v4448 = vadd.f32 %v2396, %v4447
        %v4449 = vpop.f32.mrb[0].mxu0
        %v4450 = vadd.f32 %v2398, %v4449
        %v4451 = vpop.f32.mrb[0].mxu0
        %v4452 = vadd.f32 %v2400, %v4451
        %4453 = vmatprep.mubr.bf16.mxu0 %v718
        %4454 = vmatmul.mubr.bf16.gmra.mrb[0].mxu0 %v717
        %v4455 = vpop.f32.mrb[0].mxu0
        %v4456 = vadd.f32 %v2404, %v4455
        %v4457 = vpop.f32.mrb[0].mxu0
        %v4458 = vadd.f32 %v2406, %v4457
        %v4459 = vpop.f32.mrb[0].mxu0
        %v4460 = vadd.f32 %v2408, %v4459
        %v4461 = vpop.f32.mrb[0].mxu0
        %v4462 = vadd.f32 %v2410, %v4461
        %4463 = vmatprep.mubr.bf16.mxu0 %v720
        %4464 = vmatmul.mubr.bf16.gmra.mrb[0].mxu0 %v719
        %v4465 = vpop.f32.mrb[0].mxu0
        %v4466 = vadd.f32 %v2414, %v4465
        %v4467 = vpop.f32.mrb[0].mxu0
        %v4468 = vadd.f32 %v2416, %v4467
        %v4469 = vpop.f32.mrb[0].mxu0
        %v4470 = vadd.f32 %v2418, %v4469
        %v4471 = vpop.f32.mrb[0].mxu0
        %v4472 = vadd.f32 %v2420, %v4471
        %4473 = vmatprep.mubr.bf16.mxu0 %v722
        %4474 = vmatmul.mubr.bf16.gmra.mrb[0].mxu0 %v721
        %v4475 = vpop.f32.mrb[0].mxu0
        %v4476 = vadd.f32 %v2424, %v4475
        %v4477 = vpop.f32.mrb[0].mxu0
        %v4478 = vadd.f32 %v2426, %v4477
        %v4479 = vpop.f32.mrb[0].mxu0
        %v4480 = vadd.f32 %v2428, %v4479
        %v4481 = vpop.f32.mrb[0].mxu0
        %v4482 = vadd.f32 %v2430, %v4481
        %4483 = vmatprep.mubr.bf16.mxu0 %v724
        %4484 = vmatmul.mubr.bf16.gmra.mrb[0].mxu0 %v723
        %v4485 = vpop.f32.mrb[0].mxu0
        %v4486 = vadd.f32 %v2434, %v4485
        %v4487 = vpop.f32.mrb[0].mxu0
        %v4488 = vadd.f32 %v2436, %v4487
        %v4489 = vpop.f32.mrb[0].mxu0
        %v4490 = vadd.f32 %v2438, %v4489
        %v4491 = vpop.f32.mrb[0].mxu0
        %v4492 = vadd.f32 %v2440, %v4491
        %4493 = vmatprep.mubr.bf16.mxu0 %v726
        %4494 = vmatmul.mubr.bf16.gmra.mrb[0].mxu0 %v725
        %v4495 = vpop.f32.mrb[0].mxu0
        %v4496 = vadd.f32 %v2444, %v4495
        %v4497 = vpop.f32.mrb[0].mxu0
        %v4498 = vadd.f32 %v2446, %v4497
        %v4499 = vpop.f32.mrb[0].mxu0
        %v4500 = vadd.f32 %v2448, %v4499
        %v4501 = vpop.f32.mrb[0].mxu0
        %v4502 = vadd.f32 %v2450, %v4501
        %4503 = vmatprep.mubr.bf16.mxu0 %v728
        %4504 = vmatmul.mubr.bf16.gmra.mrb[0].mxu0 %v727
        %v4505 = vpop.f32.mrb[0].mxu0
        %v4506 = vadd.f32 %v2454, %v4505
        %v4507 = vpop.f32.mrb[0].mxu0
        %v4508 = vadd.f32 %v2456, %v4507
        %v4509 = vpop.f32.mrb[0].mxu0
        %v4510 = vadd.f32 %v2458, %v4509
        %v4511 = vpop.f32.mrb[0].mxu0
        %v4512 = vadd.f32 %v2460, %v4511
        %4513 = vmatprep.mubr.bf16.mxu0 %v730
        %4514 = vmatmul.mubr.bf16.gmra.mrb[0].mxu0 %v729
        %v4515 = vpop.f32.mrb[0].mxu0
        %v4516 = vadd.f32 %v2464, %v4515
        %v4517 = vpop.f32.mrb[0].mxu0
        %v4518 = vadd.f32 %v2466, %v4517
        %v4519 = vpop.f32.mrb[0].mxu0
        %v4520 = vadd.f32 %v2468, %v4519
        %v4521 = vpop.f32.mrb[0].mxu0
        %v4522 = vadd.f32 %v2470, %v4521
        %4523 = vmatprep.mubr.bf16.mxu0 %v732
        %4524 = vmatmul.mubr.bf16.gmra.mrb[0].mxu0 %v731
        %v4525 = vpop.f32.mrb[0].mxu0
        %v4526 = vadd.f32 %v2474, %v4525
        %v4527 = vpop.f32.mrb[0].mxu0
        %v4528 = vadd.f32 %v2476, %v4527
        %v4529 = vpop.f32.mrb[0].mxu0
        %v4530 = vadd.f32 %v2478, %v4529
        %v4531 = vpop.f32.mrb[0].mxu0
        %v4532 = vadd.f32 %v2480, %v4531
        %4533 = vmatprep.mubr.bf16.mxu0 %v734
        %4534 = vmatmul.mubr.bf16.gmra.mrb[0].mxu0 %v733
        %v4535 = vpop.f32.mrb[0].mxu0
        %v4536 = vadd.f32 %v2484, %v4535
        %v4537 = vpop.f32.mrb[0].mxu0
        %v4538 = vadd.f32 %v2486, %v4537
        %v4539 = vpop.f32.mrb[0].mxu0
        %v4540 = vadd.f32 %v2488, %v4539
        %v4541 = vpop.f32.mrb[0].mxu0
        %v4542 = vadd.f32 %v2490, %v4541
        %4543 = vmatprep.mubr.bf16.mxu0 %v736
        %4544 = vmatmul.mubr.bf16.gmra.mrb[0].mxu0 %v735
        %v4545 = vpop.f32.mrb[0].mxu0
        %v4546 = vadd.f32 %v2494, %v4545
        %v4547 = vpop.f32.mrb[0].mxu0
        %v4548 = vadd.f32 %v2496, %v4547
        %v4549 = vpop.f32.mrb[0].mxu0
        %v4550 = vadd.f32 %v2498, %v4549
        %v4551 = vpop.f32.mrb[0].mxu0
        %v4552 = vadd.f32 %v2500, %v4551
        %4553 = vmatprep.mubr.bf16.mxu0 %v738
        %4554 = vmatmul.mubr.bf16.gmra.mrb[0].mxu0 %v737
        %v4555 = vpop.f32.mrb[0].mxu0
        %v4556 = vadd.f32 %v2504, %v4555
        %v4557 = vpop.f32.mrb[0].mxu0
        %v4558 = vadd.f32 %v2506, %v4557
        %v4559 = vpop.f32.mrb[0].mxu0
        %v4560 = vadd.f32 %v2508, %v4559
        %v4561 = vpop.f32.mrb[0].mxu0
        %v4562 = vadd.f32 %v2510, %v4561
        %4563 = vmatprep.mubr.bf16.mxu0 %v740
        %4564 = vmatmul.mubr.bf16.gmra.mrb[0].mxu0 %v739
        %v4565 = vpop.f32.mrb[0].mxu0
        %v4566 = vadd.f32 %v2514, %v4565
        %v4567 = vpop.f32.mrb[0].mxu0
        %v4568 = vadd.f32 %v2516, %v4567
        %v4569 = vpop.f32.mrb[0].mxu0
        %v4570 = vadd.f32 %v2518, %v4569
        %v4571 = vpop.f32.mrb[0].mxu0
        %v4572 = vadd.f32 %v2520, %v4571
        %4573 = vmatprep.mubr.bf16.mxu0 %v742
        %4574 = vmatmul.mubr.bf16.gmra.mrb[0].mxu0 %v741
        %v4575 = vpop.f32.mrb[0].mxu0
        %v4576 = vadd.f32 %v2524, %v4575
        %v4577 = vpop.f32.mrb[0].mxu0
        %v4578 = vadd.f32 %v2526, %v4577
        %v4579 = vpop.f32.mrb[0].mxu0
        %v4580 = vadd.f32 %v2528, %v4579
        %v4581 = vpop.f32.mrb[0].mxu0
        %v4582 = vadd.f32 %v2530, %v4581
        %4583 = vmatprep.mubr.bf16.mxu0 %v744
        %4584 = vmatmul.mubr.bf16.gmra.mrb[0].mxu0 %v743
        %v4585 = vpop.f32.mrb[0].mxu0
        %v4586 = vadd.f32 %v2534, %v4585
        %v4587 = vpop.f32.mrb[0].mxu0
        %v4588 = vadd.f32 %v2536, %v4587
        %v4589 = vpop.f32.mrb[0].mxu0
        %v4590 = vadd.f32 %v2538, %v4589
        %v4591 = vpop.f32.mrb[0].mxu0
        %v4592 = vadd.f32 %v2540, %v4591
        %4593 = vmatprep.mubr.bf16.mxu0 %v746
        %4594 = vmatmul.mubr.bf16.gmra.mrb[0].mxu0 %v745
        %v4595 = vpop.f32.mrb[0].mxu0
        %v4596 = vadd.f32 %v2544, %v4595
        %v4597 = vpop.f32.mrb[0].mxu0
        %v4598 = vadd.f32 %v2546, %v4597
        %v4599 = vpop.f32.mrb[0].mxu0
        %v4600 = vadd.f32 %v2548, %v4599
        %v4601 = vpop.f32.mrb[0].mxu0
        %v4602 = vadd.f32 %v2550, %v4601
        %4603 = vmatprep.mubr.bf16.mxu0 %v748
        %4604 = vmatmul.mubr.bf16.gmra.mrb[0].mxu0 %v747
        %v4605 = vpop.f32.mrb[0].mxu0
        %v4606 = vadd.f32 %v2554, %v4605
        %v4607 = vpop.f32.mrb[0].mxu0
        %v4608 = vadd.f32 %v2556, %v4607
        %v4609 = vpop.f32.mrb[0].mxu0
        %v4610 = vadd.f32 %v2558, %v4609
        %v4611 = vpop.f32.mrb[0].mxu0
        %v4612 = vadd.f32 %v2560, %v4611
        %4613 = vmatprep.mubr.bf16.mxu0 %v750
        %4614 = vmatmul.mubr.bf16.gmra.mrb[0].mxu0 %v749
        %v4615 = vpop.f32.mrb[0].mxu0
        %v4616 = vadd.f32 %v2564, %v4615
        %v4617 = vpop.f32.mrb[0].mxu0
        %v4618 = vadd.f32 %v2566, %v4617
        %v4619 = vpop.f32.mrb[0].mxu0
        %v4620 = vadd.f32 %v2568, %v4619
        %v4621 = vpop.f32.mrb[0].mxu0
        %v4622 = vadd.f32 %v2570, %v4621
        %4623 = vmatprep.mubr.bf16.mxu0 %v752
        %4624 = vmatmul.mubr.bf16.gmra.mrb[0].mxu0 %v751
        %v4625 = vpop.f32.mrb[0].mxu0
        %v4626 = vadd.f32 %v2574, %v4625
        %v4627 = vpop.f32.mrb[0].mxu0
        %v4628 = vadd.f32 %v2576, %v4627
        %v4629 = vpop.f32.mrb[0].mxu0
        %v4630 = vadd.f32 %v2578, %v4629
        %v4631 = vpop.f32.mrb[0].mxu0
        %v4632 = vadd.f32 %v2580, %v4631
        %4633 = vmatprep.mubr.bf16.mxu0 %v754
        %4634 = vmatmul.mubr.bf16.gmra.mrb[0].mxu0 %v753
        %v4635 = vpop.f32.mrb[0].mxu0
        %v4636 = vadd.f32 %v2584, %v4635
        %v4637 = vpop.f32.mrb[0].mxu0
        %v4638 = vadd.f32 %v2586, %v4637
        %v4639 = vpop.f32.mrb[0].mxu0
        %v4640 = vadd.f32 %v2588, %v4639
        %v4641 = vpop.f32.mrb[0].mxu0
        %v4642 = vadd.f32 %v2590, %v4641
        %4643 = vmatprep.mubr.bf16.mxu0 %v756
        %4644 = vmatmul.mubr.bf16.gmra.mrb[0].mxu0 %v755
        %v4645 = vpop.f32.mrb[0].mxu0
        %v4646 = vadd.f32 %v2594, %v4645
        %v4647 = vpop.f32.mrb[0].mxu0
        %v4648 = vadd.f32 %v2596, %v4647
        %v4649 = vpop.f32.mrb[0].mxu0
        %v4650 = vadd.f32 %v2598, %v4649
        %v4651 = vpop.f32.mrb[0].mxu0
        %v4652 = vadd.f32 %v2600, %v4651
        %4653 = vmatprep.mubr.bf16.mxu0 %v758
        %4654 = vmatmul.mubr.bf16.gmra.mrb[0].mxu0 %v757
        %v4655 = vpop.f32.mrb[0].mxu0
        %v4656 = vadd.f32 %v2604, %v4655
        %v4657 = vpop.f32.mrb[0].mxu0
        %v4658 = vadd.f32 %v2606, %v4657
        %v4659 = vpop.f32.mrb[0].mxu0
        %v4660 = vadd.f32 %v2608, %v4659
        %v4661 = vpop.f32.mrb[0].mxu0
        %v4662 = vadd.f32 %v2610, %v4661
        %4663 = vmatprep.mubr.bf16.mxu0 %v760
        %4664 = vmatmul.mubr.bf16.gmra.mrb[0].mxu0 %v759
        %v4665 = vpop.f32.mrb[0].mxu0
        %v4666 = vadd.f32 %v2614, %v4665
        %v4667 = vpop.f32.mrb[0].mxu0
        %v4668 = vadd.f32 %v2616, %v4667
        %v4669 = vpop.f32.mrb[0].mxu0
        %v4670 = vadd.f32 %v2618, %v4669
        %v4671 = vpop.f32.mrb[0].mxu0
        %v4672 = vadd.f32 %v2620, %v4671
        %4673 = vmatprep.mubr.bf16.mxu0 %v762
        %4674 = vmatmul.mubr.bf16.gmra.mrb[0].mxu0 %v761
        %v4675 = vpop.f32.mrb[0].mxu0
        %v4676 = vadd.f32 %v2624, %v4675
        %v4677 = vpop.f32.mrb[0].mxu0
        %v4678 = vadd.f32 %v2626, %v4677
        %v4679 = vpop.f32.mrb[0].mxu0
        %v4680 = vadd.f32 %v2628, %v4679
        %v4681 = vpop.f32.mrb[0].mxu0
        %v4682 = vadd.f32 %v2630, %v4681
        %4683 = vmatprep.mubr.bf16.mxu0 %v764
        %4684 = vmatmul.mubr.bf16.gmra.mrb[0].mxu0 %v763
        %v4685 = vpop.f32.mrb[0].mxu0
        %v4686 = vadd.f32 %v2634, %v4685
        %v4687 = vpop.f32.mrb[0].mxu0
        %v4688 = vadd.f32 %v2636, %v4687
        %v4689 = vpop.f32.mrb[0].mxu0
        %v4690 = vadd.f32 %v2638, %v4689
        %v4691 = vpop.f32.mrb[0].mxu0
        %v4692 = vadd.f32 %v2640, %v4691
        %4693 = vmatprep.mubr.bf16.mxu0 %v766
        %4694 = vmatmul.mubr.bf16.gmra.mrb[0].mxu0 %v765
        %v4695 = vpop.f32.mrb[0].mxu0
        %v4696 = vadd.f32 %v2644, %v4695
        %v4697 = vpop.f32.mrb[0].mxu0
        %v4698 = vadd.f32 %v2646, %v4697
        %v4699 = vpop.f32.mrb[0].mxu0
        %v4700 = vadd.f32 %v2648, %v4699
        %v4701 = vpop.f32.mrb[0].mxu0
        %v4702 = vadd.f32 %v2650, %v4701
        %4703 = vmatprep.mubr.bf16.mxu0 %v768
        %4704 = vmatmul.mubr.bf16.gmra.mrb[0].mxu0 %v767
        %v4705 = vpop.f32.mrb[0].mxu0
        %v4706 = vadd.f32 %v2654, %v4705
        %v4707 = vpop.f32.mrb[0].mxu0
        %v4708 = vadd.f32 %v2656, %v4707
        %v4709 = vpop.f32.mrb[0].mxu0
        %v4710 = vadd.f32 %v2658, %v4709
        %v4711 = vpop.f32.mrb[0].mxu0
        %v4712 = vadd.f32 %v2660, %v4711
        %4713 = vmatprep.mubr.bf16.mxu0 %v770
        %4714 = vmatmul.mubr.bf16.gmra.mrb[0].mxu0 %v769
        %v4715 = vpop.f32.mrb[0].mxu0
        %v4716 = vadd.f32 %v2664, %v4715
        %v4717 = vpop.f32.mrb[0].mxu0
        %v4718 = vadd.f32 %v2666, %v4717
        %v4719 = vpop.f32.mrb[0].mxu0
        %v4720 = vadd.f32 %v2668, %v4719
        %v4721 = vpop.f32.mrb[0].mxu0
        %v4722 = vadd.f32 %v2670, %v4721
        %4723 = vmatprep.mubr.bf16.mxu0 %v772
        %4724 = vmatmul.mubr.bf16.gmra.mrb[0].mxu0 %v771
        %v4725 = vpop.f32.mrb[0].mxu0
        %v4726 = vadd.f32 %v2674, %v4725
        %v4727 = vpop.f32.mrb[0].mxu0
        %v4728 = vadd.f32 %v2676, %v4727
        %v4729 = vpop.f32.mrb[0].mxu0
        %v4730 = vadd.f32 %v2678, %v4729
        %v4731 = vpop.f32.mrb[0].mxu0
        %v4732 = vadd.f32 %v2680, %v4731
        %4733 = vmatprep.mubr.bf16.mxu0 %v774
        %4734 = vmatmul.mubr.bf16.gmra.mrb[0].mxu0 %v773
        %v4735 = vpop.f32.mrb[0].mxu0
        %v4736 = vadd.f32 %v2684, %v4735
        %v4737 = vpop.f32.mrb[0].mxu0
        %v4738 = vadd.f32 %v2686, %v4737
        %v4739 = vpop.f32.mrb[0].mxu0
        %v4740 = vadd.f32 %v2688, %v4739
        %v4741 = vpop.f32.mrb[0].mxu0
        %v4742 = vadd.f32 %v2690, %v4741
        %4743 = vmatprep.mubr.bf16.mxu0 %v776
        %4744 = vmatmul.mubr.bf16.gmra.mrb[0].mxu0 %v775
        %v4745 = vpop.f32.mrb[0].mxu0
        %v4746 = vadd.f32 %v2694, %v4745
        %v4747 = vpop.f32.mrb[0].mxu0
        %v4748 = vadd.f32 %v2696, %v4747
        %v4749 = vpop.f32.mrb[0].mxu0
        %v4750 = vadd.f32 %v2698, %v4749
        %v4751 = vpop.f32.mrb[0].mxu0
        %v4752 = vadd.f32 %v2700, %v4751
        %4753 = vdwg.mxu0
        %v4754 = vld [vmem:[%s7] sm:$0xff]
        %v4756 = vlaneseq
        %v4757 = vshrl.u32 %v4756, 7
        %v4758 = vsub.s32 0, %v4757
        %v4759 = vrot.slane %v4754, %v4758
        %v4760 = vlaneseq
        %v4761 = vshrl.u32 %v4760, 7
        %v4762 = vsub.s32 1, %v4761
        %v4763 = vrot.slane %v4754, %v4762
        %v4764 = vlaneseq
        %v4765 = vshrl.u32 %v4764, 7
        %v4766 = vsub.s32 2, %v4765
        %v4767 = vrot.slane %v4754, %v4766
        %v4768 = vlaneseq
        %v4769 = vshrl.u32 %v4768, 7
        %v4770 = vsub.s32 3, %v4769
        %v4771 = vrot.slane %v4754, %v4770
        %v4772 = vlaneseq
        %v4773 = vshrl.u32 %v4772, 7
        %v4774 = vsub.s32 4, %v4773
        %v4775 = vrot.slane %v4754, %v4774
        %v4776 = vlaneseq
        %v4777 = vshrl.u32 %v4776, 7
        %v4778 = vsub.s32 5, %v4777
        %v4779 = vrot.slane %v4754, %v4778
        %v4780 = vlaneseq
        %v4781 = vshrl.u32 %v4780, 7
        %v4782 = vsub.s32 6, %v4781
        %v4783 = vrot.slane %v4754, %v4782
        %v4784 = vlaneseq
        %v4785 = vshrl.u32 %v4784, 7
        %v4786 = vsub.s32 7, %v4785
        %v4787 = vrot.slane %v4754, %v4786
        %v4796 = vadd.f32 %v3377, %v4759
        %v4797 = vadd.f32 %v3379, %v4763
        %v4798 = vadd.f32 %v3730, %v4767
        %v4799 = vadd.f32 %v3732, %v4771
        %v4800 = vadd.f32 %v4083, %v4775
        %v4801 = vadd.f32 %v4085, %v4779
        %v4802 = vadd.f32 %v4436, %v4783
        %v4803 = vadd.f32 %v4438, %v4787
        %v4804 = vadd.f32 %v3381, %v4759
        %v4805 = vadd.f32 %v3383, %v4763
        %v4806 = vadd.f32 %v3734, %v4767
        %v4807 = vadd.f32 %v3736, %v4771
        %v4808 = vadd.f32 %v4087, %v4775
        %v4809 = vadd.f32 %v4089, %v4779
        %v4810 = vadd.f32 %v4440, %v4783
        %v4811 = vadd.f32 %v4442, %v4787
        %v4812 = vadd.f32 %v3387, %v4759
        %v4813 = vadd.f32 %v3389, %v4763
        %v4814 = vadd.f32 %v3740, %v4767
        %v4815 = vadd.f32 %v3742, %v4771
        %v4816 = vadd.f32 %v4093, %v4775
        %v4817 = vadd.f32 %v4095, %v4779
        %v4818 = vadd.f32 %v4446, %v4783
        %v4819 = vadd.f32 %v4448, %v4787
        %v4820 = vadd.f32 %v3391, %v4759
        %v4821 = vadd.f32 %v3393, %v4763
        %v4822 = vadd.f32 %v3744, %v4767
        %v4823 = vadd.f32 %v3746, %v4771
        %v4824 = vadd.f32 %v4097, %v4775
        %v4825 = vadd.f32 %v4099, %v4779
        %v4826 = vadd.f32 %v4450, %v4783
        %v4827 = vadd.f32 %v4452, %v4787
        %v4828 = vadd.f32 %v3397, %v4759
        %v4829 = vadd.f32 %v3399, %v4763
        %v4830 = vadd.f32 %v3750, %v4767
        %v4831 = vadd.f32 %v3752, %v4771
        %v4832 = vadd.f32 %v4103, %v4775
        %v4833 = vadd.f32 %v4105, %v4779
        %v4834 = vadd.f32 %v4456, %v4783
        %v4835 = vadd.f32 %v4458, %v4787
        %v4836 = vadd.f32 %v3401, %v4759
        %v4837 = vadd.f32 %v3403, %v4763
        %v4838 = vadd.f32 %v3754, %v4767
        %v4839 = vadd.f32 %v3756, %v4771
        %v4840 = vadd.f32 %v4107, %v4775
        %v4841 = vadd.f32 %v4109, %v4779
        %v4842 = vadd.f32 %v4460, %v4783
        %v4843 = vadd.f32 %v4462, %v4787
        %v4844 = vadd.f32 %v3407, %v4759
        %v4845 = vadd.f32 %v3409, %v4763
        %v4846 = vadd.f32 %v3760, %v4767
        %v4847 = vadd.f32 %v3762, %v4771
        %v4848 = vadd.f32 %v4113, %v4775
        %v4849 = vadd.f32 %v4115, %v4779
        %v4850 = vadd.f32 %v4466, %v4783
        %v4851 = vadd.f32 %v4468, %v4787
        %v4852 = vadd.f32 %v3411, %v4759
        %v4853 = vadd.f32 %v3413, %v4763
        %v4854 = vadd.f32 %v3764, %v4767
        %v4855 = vadd.f32 %v3766, %v4771
        %v4856 = vadd.f32 %v4117, %v4775
        %v4857 = vadd.f32 %v4119, %v4779
        %v4858 = vadd.f32 %v4470, %v4783
        %v4859 = vadd.f32 %v4472, %v4787
        %v4860 = vadd.f32 %v3417, %v4759
        %v4861 = vadd.f32 %v3419, %v4763
        %v4862 = vadd.f32 %v3770, %v4767
        %v4863 = vadd.f32 %v3772, %v4771
        %v4864 = vadd.f32 %v4123, %v4775
        %v4865 = vadd.f32 %v4125, %v4779
        %v4866 = vadd.f32 %v4476, %v4783
        %v4867 = vadd.f32 %v4478, %v4787
        %v4868 = vadd.f32 %v3421, %v4759
        %v4869 = vadd.f32 %v3423, %v4763
        %v4870 = vadd.f32 %v3774, %v4767
        %v4871 = vadd.f32 %v3776, %v4771
        %v4872 = vadd.f32 %v4127, %v4775
        %v4873 = vadd.f32 %v4129, %v4779
        %v4874 = vadd.f32 %v4480, %v4783
        %v4875 = vadd.f32 %v4482, %v4787
        %v4876 = vadd.f32 %v3427, %v4759
        %v4877 = vadd.f32 %v3429, %v4763
        %v4878 = vadd.f32 %v3780, %v4767
        %v4879 = vadd.f32 %v3782, %v4771
        %v4880 = vadd.f32 %v4133, %v4775
        %v4881 = vadd.f32 %v4135, %v4779
        %v4882 = vadd.f32 %v4486, %v4783
        %v4883 = vadd.f32 %v4488, %v4787
        %v4884 = vadd.f32 %v3431, %v4759
        %v4885 = vadd.f32 %v3433, %v4763
        %v4886 = vadd.f32 %v3784, %v4767
        %v4887 = vadd.f32 %v3786, %v4771
        %v4888 = vadd.f32 %v4137, %v4775
        %v4889 = vadd.f32 %v4139, %v4779
        %v4890 = vadd.f32 %v4490, %v4783
        %v4891 = vadd.f32 %v4492, %v4787
        %v4892 = vadd.f32 %v3437, %v4759
        %v4893 = vadd.f32 %v3439, %v4763
        %v4894 = vadd.f32 %v3790, %v4767
        %v4895 = vadd.f32 %v3792, %v4771
        %v4896 = vadd.f32 %v4143, %v4775
        %v4897 = vadd.f32 %v4145, %v4779
        %v4898 = vadd.f32 %v4496, %v4783
        %v4899 = vadd.f32 %v4498, %v4787
        %v4900 = vadd.f32 %v3441, %v4759
        %v4901 = vadd.f32 %v3443, %v4763
        %v4902 = vadd.f32 %v3794, %v4767
        %v4903 = vadd.f32 %v3796, %v4771
        %v4904 = vadd.f32 %v4147, %v4775
        %v4905 = vadd.f32 %v4149, %v4779
        %v4906 = vadd.f32 %v4500, %v4783
        %v4907 = vadd.f32 %v4502, %v4787
        %v4908 = vadd.f32 %v3447, %v4759
        %v4909 = vadd.f32 %v3449, %v4763
        %v4910 = vadd.f32 %v3800, %v4767
        %v4911 = vadd.f32 %v3802, %v4771
        %v4912 = vadd.f32 %v4153, %v4775
        %v4913 = vadd.f32 %v4155, %v4779
        %v4914 = vadd.f32 %v4506, %v4783
        %v4915 = vadd.f32 %v4508, %v4787
        %v4916 = vadd.f32 %v3451, %v4759
        %v4917 = vadd.f32 %v3453, %v4763
        %v4918 = vadd.f32 %v3804, %v4767
        %v4919 = vadd.f32 %v3806, %v4771
        %v4920 = vadd.f32 %v4157, %v4775
        %v4921 = vadd.f32 %v4159, %v4779
        %v4922 = vadd.f32 %v4510, %v4783
        %v4923 = vadd.f32 %v4512, %v4787
        %v4924 = vadd.f32 %v3457, %v4759
        %v4925 = vadd.f32 %v3459, %v4763
        %v4926 = vadd.f32 %v3810, %v4767
        %v4927 = vadd.f32 %v3812, %v4771
        %v4928 = vadd.f32 %v4163, %v4775
        %v4929 = vadd.f32 %v4165, %v4779
        %v4930 = vadd.f32 %v4516, %v4783
        %v4931 = vadd.f32 %v4518, %v4787
        %v4932 = vadd.f32 %v3461, %v4759
        %v4933 = vadd.f32 %v3463, %v4763
        %v4934 = vadd.f32 %v3814, %v4767
        %v4935 = vadd.f32 %v3816, %v4771
        %v4936 = vadd.f32 %v4167, %v4775
        %v4937 = vadd.f32 %v4169, %v4779
        %v4938 = vadd.f32 %v4520, %v4783
        %v4939 = vadd.f32 %v4522, %v4787
        %v4940 = vadd.f32 %v3467, %v4759
        %v4941 = vadd.f32 %v3469, %v4763
        %v4942 = vadd.f32 %v3820, %v4767
        %v4943 = vadd.f32 %v3822, %v4771
        %v4944 = vadd.f32 %v4173, %v4775
        %v4945 = vadd.f32 %v4175, %v4779
        %v4946 = vadd.f32 %v4526, %v4783
        %v4947 = vadd.f32 %v4528, %v4787
        %v4948 = vadd.f32 %v3471, %v4759
        %v4949 = vadd.f32 %v3473, %v4763
        %v4950 = vadd.f32 %v3824, %v4767
        %v4951 = vadd.f32 %v3826, %v4771
        %v4952 = vadd.f32 %v4177, %v4775
        %v4953 = vadd.f32 %v4179, %v4779
        %v4954 = vadd.f32 %v4530, %v4783
        %v4955 = vadd.f32 %v4532, %v4787
        %v4956 = vadd.f32 %v3477, %v4759
        %v4957 = vadd.f32 %v3479, %v4763
        %v4958 = vadd.f32 %v3830, %v4767
        %v4959 = vadd.f32 %v3832, %v4771
        %v4960 = vadd.f32 %v4183, %v4775
        %v4961 = vadd.f32 %v4185, %v4779
        %v4962 = vadd.f32 %v4536, %v4783
        %v4963 = vadd.f32 %v4538, %v4787
        %v4964 = vadd.f32 %v3481, %v4759
        %v4965 = vadd.f32 %v3483, %v4763
        %v4966 = vadd.f32 %v3834, %v4767
        %v4967 = vadd.f32 %v3836, %v4771
        %v4968 = vadd.f32 %v4187, %v4775
        %v4969 = vadd.f32 %v4189, %v4779
        %v4970 = vadd.f32 %v4540, %v4783
        %v4971 = vadd.f32 %v4542, %v4787
        %v4972 = vadd.f32 %v3487, %v4759
        %v4973 = vadd.f32 %v3489, %v4763
        %v4974 = vadd.f32 %v3840, %v4767
        %v4975 = vadd.f32 %v3842, %v4771
        %v4976 = vadd.f32 %v4193, %v4775
        %v4977 = vadd.f32 %v4195, %v4779
        %v4978 = vadd.f32 %v4546, %v4783
        %v4979 = vadd.f32 %v4548, %v4787
        %v4980 = vadd.f32 %v3491, %v4759
        %v4981 = vadd.f32 %v3493, %v4763
        %v4982 = vadd.f32 %v3844, %v4767
        %v4983 = vadd.f32 %v3846, %v4771
        %v4984 = vadd.f32 %v4197, %v4775
        %v4985 = vadd.f32 %v4199, %v4779
        %v4986 = vadd.f32 %v4550, %v4783
        %v4987 = vadd.f32 %v4552, %v4787
        %v4988 = vadd.f32 %v3497, %v4759
        %v4989 = vadd.f32 %v3499, %v4763
        %v4990 = vadd.f32 %v3850, %v4767
        %v4991 = vadd.f32 %v3852, %v4771
        %v4992 = vadd.f32 %v4203, %v4775
        %v4993 = vadd.f32 %v4205, %v4779
        %v4994 = vadd.f32 %v4556, %v4783
        %v4995 = vadd.f32 %v4558, %v4787
        %v4996 = vadd.f32 %v3501, %v4759
        %v4997 = vadd.f32 %v3503, %v4763
        %v4998 = vadd.f32 %v3854, %v4767
        %v4999 = vadd.f32 %v3856, %v4771
        %v5000 = vadd.f32 %v4207, %v4775
        %v5001 = vadd.f32 %v4209, %v4779
        %v5002 = vadd.f32 %v4560, %v4783
        %v5003 = vadd.f32 %v4562, %v4787
        %v5004 = vadd.f32 %v3507, %v4759
        %v5005 = vadd.f32 %v3509, %v4763
        %v5006 = vadd.f32 %v3860, %v4767
        %v5007 = vadd.f32 %v3862, %v4771
        %v5008 = vadd.f32 %v4213, %v4775
        %v5009 = vadd.f32 %v4215, %v4779
        %v5010 = vadd.f32 %v4566, %v4783
        %v5011 = vadd.f32 %v4568, %v4787
        %v5012 = vadd.f32 %v3511, %v4759
        %v5013 = vadd.f32 %v3513, %v4763
        %v5014 = vadd.f32 %v3864, %v4767
        %v5015 = vadd.f32 %v3866, %v4771
        %v5016 = vadd.f32 %v4217, %v4775
        %v5017 = vadd.f32 %v4219, %v4779
        %v5018 = vadd.f32 %v4570, %v4783
        %v5019 = vadd.f32 %v4572, %v4787
        %v5020 = vadd.f32 %v3517, %v4759
        %v5021 = vadd.f32 %v3519, %v4763
        %v5022 = vadd.f32 %v3870, %v4767
        %v5023 = vadd.f32 %v3872, %v4771
        %v5024 = vadd.f32 %v4223, %v4775
        %v5025 = vadd.f32 %v4225, %v4779
        %v5026 = vadd.f32 %v4576, %v4783
        %v5027 = vadd.f32 %v4578, %v4787
        %v5028 = vadd.f32 %v3521, %v4759
        %v5029 = vadd.f32 %v3523, %v4763
        %v5030 = vadd.f32 %v3874, %v4767
        %v5031 = vadd.f32 %v3876, %v4771
        %v5032 = vadd.f32 %v4227, %v4775
        %v5033 = vadd.f32 %v4229, %v4779
        %v5034 = vadd.f32 %v4580, %v4783
        %v5035 = vadd.f32 %v4582, %v4787
        %v5036 = vadd.f32 %v3527, %v4759
        %v5037 = vadd.f32 %v3529, %v4763
        %v5038 = vadd.f32 %v3880, %v4767
        %v5039 = vadd.f32 %v3882, %v4771
        %v5040 = vadd.f32 %v4233, %v4775
        %v5041 = vadd.f32 %v4235, %v4779
        %v5042 = vadd.f32 %v4586, %v4783
        %v5043 = vadd.f32 %v4588, %v4787
        %v5044 = vadd.f32 %v3531, %v4759
        %v5045 = vadd.f32 %v3533, %v4763
        %v5046 = vadd.f32 %v3884, %v4767
        %v5047 = vadd.f32 %v3886, %v4771
        %v5048 = vadd.f32 %v4237, %v4775
        %v5049 = vadd.f32 %v4239, %v4779
        %v5050 = vadd.f32 %v4590, %v4783
        %v5051 = vadd.f32 %v4592, %v4787
        %v5052 = vadd.f32 %v3537, %v4759
        %v5053 = vadd.f32 %v3539, %v4763
        %v5054 = vadd.f32 %v3890, %v4767
        %v5055 = vadd.f32 %v3892, %v4771
        %v5056 = vadd.f32 %v4243, %v4775
        %v5057 = vadd.f32 %v4245, %v4779
        %v5058 = vadd.f32 %v4596, %v4783
        %v5059 = vadd.f32 %v4598, %v4787
        %v5060 = vadd.f32 %v3541, %v4759
        %v5061 = vadd.f32 %v3543, %v4763
        %v5062 = vadd.f32 %v3894, %v4767
        %v5063 = vadd.f32 %v3896, %v4771
        %v5064 = vadd.f32 %v4247, %v4775
        %v5065 = vadd.f32 %v4249, %v4779
        %v5066 = vadd.f32 %v4600, %v4783
        %v5067 = vadd.f32 %v4602, %v4787
        %v5068 = vadd.f32 %v3547, %v4759
        %v5069 = vadd.f32 %v3549, %v4763
        %v5070 = vadd.f32 %v3900, %v4767
        %v5071 = vadd.f32 %v3902, %v4771
        %v5072 = vadd.f32 %v4253, %v4775
        %v5073 = vadd.f32 %v4255, %v4779
        %v5074 = vadd.f32 %v4606, %v4783
        %v5075 = vadd.f32 %v4608, %v4787
        %v5076 = vadd.f32 %v3551, %v4759
        %v5077 = vadd.f32 %v3553, %v4763
        %v5078 = vadd.f32 %v3904, %v4767
        %v5079 = vadd.f32 %v3906, %v4771
        %v5080 = vadd.f32 %v4257, %v4775
        %v5081 = vadd.f32 %v4259, %v4779
        %v5082 = vadd.f32 %v4610, %v4783
        %v5083 = vadd.f32 %v4612, %v4787
        %v5084 = vadd.f32 %v3557, %v4759
        %v5085 = vadd.f32 %v3559, %v4763
        %v5086 = vadd.f32 %v3910, %v4767
        %v5087 = vadd.f32 %v3912, %v4771
        %v5088 = vadd.f32 %v4263, %v4775
        %v5089 = vadd.f32 %v4265, %v4779
        %v5090 = vadd.f32 %v4616, %v4783
        %v5091 = vadd.f32 %v4618, %v4787
        %v5092 = vadd.f32 %v3561, %v4759
        %v5093 = vadd.f32 %v3563, %v4763
        %v5094 = vadd.f32 %v3914, %v4767
        %v5095 = vadd.f32 %v3916, %v4771
        %v5096 = vadd.f32 %v4267, %v4775
        %v5097 = vadd.f32 %v4269, %v4779
        %v5098 = vadd.f32 %v4620, %v4783
        %v5099 = vadd.f32 %v4622, %v4787
        %v5100 = vadd.f32 %v3567, %v4759
        %v5101 = vadd.f32 %v3569, %v4763
        %v5102 = vadd.f32 %v3920, %v4767
        %v5103 = vadd.f32 %v3922, %v4771
        %v5104 = vadd.f32 %v4273, %v4775
        %v5105 = vadd.f32 %v4275, %v4779
        %v5106 = vadd.f32 %v4626, %v4783
        %v5107 = vadd.f32 %v4628, %v4787
        %v5108 = vadd.f32 %v3571, %v4759
        %v5109 = vadd.f32 %v3573, %v4763
        %v5110 = vadd.f32 %v3924, %v4767
        %v5111 = vadd.f32 %v3926, %v4771
        %v5112 = vadd.f32 %v4277, %v4775
        %v5113 = vadd.f32 %v4279, %v4779
        %v5114 = vadd.f32 %v4630, %v4783
        %v5115 = vadd.f32 %v4632, %v4787
        %v5116 = vadd.f32 %v3577, %v4759
        %v5117 = vadd.f32 %v3579, %v4763
        %v5118 = vadd.f32 %v3930, %v4767
        %v5119 = vadd.f32 %v3932, %v4771
        %v5120 = vadd.f32 %v4283, %v4775
        %v5121 = vadd.f32 %v4285, %v4779
        %v5122 = vadd.f32 %v4636, %v4783
        %v5123 = vadd.f32 %v4638, %v4787
        %v5124 = vadd.f32 %v3581, %v4759
        %v5125 = vadd.f32 %v3583, %v4763
        %v5126 = vadd.f32 %v3934, %v4767
        %v5127 = vadd.f32 %v3936, %v4771
        %v5128 = vadd.f32 %v4287, %v4775
        %v5129 = vadd.f32 %v4289, %v4779
        %v5130 = vadd.f32 %v4640, %v4783
        %v5131 = vadd.f32 %v4642, %v4787
        %v5132 = vadd.f32 %v3587, %v4759
        %v5133 = vadd.f32 %v3589, %v4763
        %v5134 = vadd.f32 %v3940, %v4767
        %v5135 = vadd.f32 %v3942, %v4771
        %v5136 = vadd.f32 %v4293, %v4775
        %v5137 = vadd.f32 %v4295, %v4779
        %v5138 = vadd.f32 %v4646, %v4783
        %v5139 = vadd.f32 %v4648, %v4787
        %v5140 = vadd.f32 %v3591, %v4759
        %v5141 = vadd.f32 %v3593, %v4763
        %v5142 = vadd.f32 %v3944, %v4767
        %v5143 = vadd.f32 %v3946, %v4771
        %v5144 = vadd.f32 %v4297, %v4775
        %v5145 = vadd.f32 %v4299, %v4779
        %v5146 = vadd.f32 %v4650, %v4783
        %v5147 = vadd.f32 %v4652, %v4787
        %v5148 = vadd.f32 %v3597, %v4759
        %v5149 = vadd.f32 %v3599, %v4763
        %v5150 = vadd.f32 %v3950, %v4767
        %v5151 = vadd.f32 %v3952, %v4771
        %v5152 = vadd.f32 %v4303, %v4775
        %v5153 = vadd.f32 %v4305, %v4779
        %v5154 = vadd.f32 %v4656, %v4783
        %v5155 = vadd.f32 %v4658, %v4787
        %v5156 = vadd.f32 %v3601, %v4759
        %v5157 = vadd.f32 %v3603, %v4763
        %v5158 = vadd.f32 %v3954, %v4767
        %v5159 = vadd.f32 %v3956, %v4771
        %v5160 = vadd.f32 %v4307, %v4775
        %v5161 = vadd.f32 %v4309, %v4779
        %v5162 = vadd.f32 %v4660, %v4783
        %v5163 = vadd.f32 %v4662, %v4787
        %v5164 = vadd.f32 %v3607, %v4759
        %v5165 = vadd.f32 %v3609, %v4763
        %v5166 = vadd.f32 %v3960, %v4767
        %v5167 = vadd.f32 %v3962, %v4771
        %v5168 = vadd.f32 %v4313, %v4775
        %v5169 = vadd.f32 %v4315, %v4779
        %v5170 = vadd.f32 %v4666, %v4783
        %v5171 = vadd.f32 %v4668, %v4787
        %v5172 = vadd.f32 %v3611, %v4759
        %v5173 = vadd.f32 %v3613, %v4763
        %v5174 = vadd.f32 %v3964, %v4767
        %v5175 = vadd.f32 %v3966, %v4771
        %v5176 = vadd.f32 %v4317, %v4775
        %v5177 = vadd.f32 %v4319, %v4779
        %v5178 = vadd.f32 %v4670, %v4783
        %v5179 = vadd.f32 %v4672, %v4787
        %v5180 = vadd.f32 %v3617, %v4759
        %v5181 = vadd.f32 %v3619, %v4763
        %v5182 = vadd.f32 %v3970, %v4767
        %v5183 = vadd.f32 %v3972, %v4771
        %v5184 = vadd.f32 %v4323, %v4775
        %v5185 = vadd.f32 %v4325, %v4779
        %v5186 = vadd.f32 %v4676, %v4783
        %v5187 = vadd.f32 %v4678, %v4787
        %v5188 = vadd.f32 %v3621, %v4759
        %v5189 = vadd.f32 %v3623, %v4763
        %v5190 = vadd.f32 %v3974, %v4767
        %v5191 = vadd.f32 %v3976, %v4771
        %v5192 = vadd.f32 %v4327, %v4775
        %v5193 = vadd.f32 %v4329, %v4779
        %v5194 = vadd.f32 %v4680, %v4783
        %v5195 = vadd.f32 %v4682, %v4787
        %v5196 = vadd.f32 %v3627, %v4759
        %v5197 = vadd.f32 %v3629, %v4763
        %v5198 = vadd.f32 %v3980, %v4767
        %v5199 = vadd.f32 %v3982, %v4771
        %v5200 = vadd.f32 %v4333, %v4775
        %v5201 = vadd.f32 %v4335, %v4779
        %v5202 = vadd.f32 %v4686, %v4783
        %v5203 = vadd.f32 %v4688, %v4787
        %v5204 = vadd.f32 %v3631, %v4759
        %v5205 = vadd.f32 %v3633, %v4763
        %v5206 = vadd.f32 %v3984, %v4767
        %v5207 = vadd.f32 %v3986, %v4771
        %v5208 = vadd.f32 %v4337, %v4775
        %v5209 = vadd.f32 %v4339, %v4779
        %v5210 = vadd.f32 %v4690, %v4783
        %v5211 = vadd.f32 %v4692, %v4787
        %v5212 = vadd.f32 %v3637, %v4759
        %v5213 = vadd.f32 %v3639, %v4763
        %v5214 = vadd.f32 %v3990, %v4767
        %v5215 = vadd.f32 %v3992, %v4771
        %v5216 = vadd.f32 %v4343, %v4775
        %v5217 = vadd.f32 %v4345, %v4779
        %v5218 = vadd.f32 %v4696, %v4783
        %v5219 = vadd.f32 %v4698, %v4787
        %v5220 = vadd.f32 %v3641, %v4759
        %v5221 = vadd.f32 %v3643, %v4763
        %v5222 = vadd.f32 %v3994, %v4767
        %v5223 = vadd.f32 %v3996, %v4771
        %v5224 = vadd.f32 %v4347, %v4775
        %v5225 = vadd.f32 %v4349, %v4779
        %v5226 = vadd.f32 %v4700, %v4783
        %v5227 = vadd.f32 %v4702, %v4787
        %v5228 = vadd.f32 %v3647, %v4759
        %v5229 = vadd.f32 %v3649, %v4763
        %v5230 = vadd.f32 %v4000, %v4767
        %v5231 = vadd.f32 %v4002, %v4771
        %v5232 = vadd.f32 %v4353, %v4775
        %v5233 = vadd.f32 %v4355, %v4779
        %v5234 = vadd.f32 %v4706, %v4783
        %v5235 = vadd.f32 %v4708, %v4787
        %v5236 = vadd.f32 %v3651, %v4759
        %v5237 = vadd.f32 %v3653, %v4763
        %v5238 = vadd.f32 %v4004, %v4767
        %v5239 = vadd.f32 %v4006, %v4771
        %v5240 = vadd.f32 %v4357, %v4775
        %v5241 = vadd.f32 %v4359, %v4779
        %v5242 = vadd.f32 %v4710, %v4783
        %v5243 = vadd.f32 %v4712, %v4787
        %v5244 = vadd.f32 %v3657, %v4759
        %v5245 = vadd.f32 %v3659, %v4763
        %v5246 = vadd.f32 %v4010, %v4767
        %v5247 = vadd.f32 %v4012, %v4771
        %v5248 = vadd.f32 %v4363, %v4775
        %v5249 = vadd.f32 %v4365, %v4779
        %v5250 = vadd.f32 %v4716, %v4783
        %v5251 = vadd.f32 %v4718, %v4787
        %v5252 = vadd.f32 %v3661, %v4759
        %v5253 = vadd.f32 %v3663, %v4763
        %v5254 = vadd.f32 %v4014, %v4767
        %v5255 = vadd.f32 %v4016, %v4771
        %v5256 = vadd.f32 %v4367, %v4775
        %v5257 = vadd.f32 %v4369, %v4779
        %v5258 = vadd.f32 %v4720, %v4783
        %v5259 = vadd.f32 %v4722, %v4787
        %v5260 = vadd.f32 %v3667, %v4759
        %v5261 = vadd.f32 %v3669, %v4763
        %v5262 = vadd.f32 %v4020, %v4767
        %v5263 = vadd.f32 %v4022, %v4771
        %v5264 = vadd.f32 %v4373, %v4775
        %v5265 = vadd.f32 %v4375, %v4779
        %v5266 = vadd.f32 %v4726, %v4783
        %v5267 = vadd.f32 %v4728, %v4787
        %v5268 = vadd.f32 %v3671, %v4759
        %v5269 = vadd.f32 %v3673, %v4763
        %v5270 = vadd.f32 %v4024, %v4767
        %v5271 = vadd.f32 %v4026, %v4771
        %v5272 = vadd.f32 %v4377, %v4775
        %v5273 = vadd.f32 %v4379, %v4779
        %v5274 = vadd.f32 %v4730, %v4783
        %v5275 = vadd.f32 %v4732, %v4787
        %v5276 = vadd.f32 %v3677, %v4759
        %v5277 = vadd.f32 %v3679, %v4763
        %v5278 = vadd.f32 %v4030, %v4767
        %v5279 = vadd.f32 %v4032, %v4771
        %v5280 = vadd.f32 %v4383, %v4775
        %v5281 = vadd.f32 %v4385, %v4779
        %v5282 = vadd.f32 %v4736, %v4783
        %v5283 = vadd.f32 %v4738, %v4787
        %v5284 = vadd.f32 %v3681, %v4759
        %v5285 = vadd.f32 %v3683, %v4763
        %v5286 = vadd.f32 %v4034, %v4767
        %v5287 = vadd.f32 %v4036, %v4771
        %v5288 = vadd.f32 %v4387, %v4775
        %v5289 = vadd.f32 %v4389, %v4779
        %v5290 = vadd.f32 %v4740, %v4783
        %v5291 = vadd.f32 %v4742, %v4787
        %v5292 = vadd.f32 %v3687, %v4759
        %v5293 = vadd.f32 %v3689, %v4763
        %v5294 = vadd.f32 %v4040, %v4767
        %v5295 = vadd.f32 %v4042, %v4771
        %v5296 = vadd.f32 %v4393, %v4775
        %v5297 = vadd.f32 %v4395, %v4779
        %v5298 = vadd.f32 %v4746, %v4783
        %v5299 = vadd.f32 %v4748, %v4787
        %v5300 = vadd.f32 %v3691, %v4759
        %v5301 = vadd.f32 %v3693, %v4763
        %v5302 = vadd.f32 %v4044, %v4767
        %v5303 = vadd.f32 %v4046, %v4771
        %v5304 = vadd.f32 %v4397, %v4775
        %v5305 = vadd.f32 %v4399, %v4779
        %v5306 = vadd.f32 %v4750, %v4783
        %v5307 = vadd.f32 %v4752, %v4787
        %v5308 = vld [vmem:[%s487] sm:$0xff]
        %v5309 = vld [vmem:[%s487 + $0x8] sm:$0xff]
        %v5310 = vld [vmem:[%s487 + $0x10] sm:$0xff]
        %v5311 = vld [vmem:[%s487 + $0x18] sm:$0xff]
        %v5312 = vld [vmem:[%s487 + $0x20] sm:$0xff]
        %v5313 = vld [vmem:[%s487 + $0x28] sm:$0xff]
        %v5314 = vld [vmem:[%s487 + $0x30] sm:$0xff]
        %v5315 = vld [vmem:[%s487 + $0x38] sm:$0xff]
        %v5316 = vld [vmem:[%s487 + $0x40] sm:$0xff]
        %v5317 = vld [vmem:[%s487 + $0x48] sm:$0xff]
        %v5318 = vld [vmem:[%s487 + $0x50] sm:$0xff]
        %v5319 = vld [vmem:[%s487 + $0x58] sm:$0xff]
        %v5320 = vld [vmem:[%s487 + $0x60] sm:$0xff]
        %v5321 = vld [vmem:[%s487 + $0x68] sm:$0xff]
        %v5322 = vld [vmem:[%s487 + $0x70] sm:$0xff]
        %v5323 = vld [vmem:[%s487 + $0x78] sm:$0xff]
        %v5324 = vld [vmem:[%s487 + $0x80] sm:$0xff]
        %v5325 = vld [vmem:[%s487 + $0x88] sm:$0xff]
        %v5326 = vld [vmem:[%s487 + $0x90] sm:$0xff]
        %v5327 = vld [vmem:[%s487 + $0x98] sm:$0xff]
        %v5328 = vld [vmem:[%s487 + $0xa0] sm:$0xff]
        %v5329 = vld [vmem:[%s487 + $0xa8] sm:$0xff]
        %v5330 = vld [vmem:[%s487 + $0xb0] sm:$0xff]
        %v5331 = vld [vmem:[%s487 + $0xb8] sm:$0xff]
        %v5332 = vld [vmem:[%s487 + $0xc0] sm:$0xff]
        %v5333 = vld [vmem:[%s487 + $0xc8] sm:$0xff]
        %v5334 = vld [vmem:[%s487 + $0xd0] sm:$0xff]
        %v5335 = vld [vmem:[%s487 + $0xd8] sm:$0xff]
        %v5336 = vld [vmem:[%s487 + $0xe0] sm:$0xff]
        %v5337 = vld [vmem:[%s487 + $0xe8] sm:$0xff]
        %v5338 = vld [vmem:[%s487 + $0xf0] sm:$0xff]
        %v5339 = vld [vmem:[%s487 + $0xf8] sm:$0xff]
        %v5340 = vld [vmem:[%s487 + $0x100] sm:$0xff]
        %v5341 = vld [vmem:[%s487 + $0x108] sm:$0xff]
        %v5342 = vld [vmem:[%s487 + $0x110] sm:$0xff]
        %v5343 = vld [vmem:[%s487 + $0x118] sm:$0xff]
        %v5344 = vld [vmem:[%s487 + $0x120] sm:$0xff]
        %v5345 = vld [vmem:[%s487 + $0x128] sm:$0xff]
        %v5346 = vld [vmem:[%s487 + $0x130] sm:$0xff]
        %v5347 = vld [vmem:[%s487 + $0x138] sm:$0xff]
        %v5348 = vld [vmem:[%s487 + $0x140] sm:$0xff]
        %v5349 = vld [vmem:[%s487 + $0x148] sm:$0xff]
        %v5350 = vld [vmem:[%s487 + $0x150] sm:$0xff]
        %v5351 = vld [vmem:[%s487 + $0x158] sm:$0xff]
        %v5352 = vld [vmem:[%s487 + $0x160] sm:$0xff]
        %v5353 = vld [vmem:[%s487 + $0x168] sm:$0xff]
        %v5354 = vld [vmem:[%s487 + $0x170] sm:$0xff]
        %v5355 = vld [vmem:[%s487 + $0x178] sm:$0xff]
        %v5356 = vld [vmem:[%s487 + $0x180] sm:$0xff]
        %v5357 = vld [vmem:[%s487 + $0x188] sm:$0xff]
        %v5358 = vld [vmem:[%s487 + $0x190] sm:$0xff]
        %v5359 = vld [vmem:[%s487 + $0x198] sm:$0xff]
        %v5360 = vld [vmem:[%s487 + $0x1a0] sm:$0xff]
        %v5361 = vld [vmem:[%s487 + $0x1a8] sm:$0xff]
        %v5362 = vld [vmem:[%s487 + $0x1b0] sm:$0xff]
        %v5363 = vld [vmem:[%s487 + $0x1b8] sm:$0xff]
        %v5364 = vld [vmem:[%s487 + $0x1c0] sm:$0xff]
        %v5365 = vld [vmem:[%s487 + $0x1c8] sm:$0xff]
        %v5366 = vld [vmem:[%s487 + $0x1d0] sm:$0xff]
        %v5367 = vld [vmem:[%s487 + $0x1d8] sm:$0xff]
        %v5368 = vld [vmem:[%s487 + $0x1e0] sm:$0xff]
        %v5369 = vld [vmem:[%s487 + $0x1e8] sm:$0xff]
        %v5370 = vld [vmem:[%s487 + $0x1f0] sm:$0xff]
        %v5371 = vld [vmem:[%s487 + $0x1f8] sm:$0xff]
        %v5372 = vld [vmem:[%s487 + $0x200] sm:$0xff]
        %v5373 = vld [vmem:[%s487 + $0x208] sm:$0xff]
        %v5374 = vld [vmem:[%s487 + $0x210] sm:$0xff]
        %v5375 = vld [vmem:[%s487 + $0x218] sm:$0xff]
        %v5376 = vld [vmem:[%s487 + $0x220] sm:$0xff]
        %v5377 = vld [vmem:[%s487 + $0x228] sm:$0xff]
        %v5378 = vld [vmem:[%s487 + $0x230] sm:$0xff]
        %v5379 = vld [vmem:[%s487 + $0x238] sm:$0xff]
        %v5380 = vld [vmem:[%s487 + $0x240] sm:$0xff]
        %v5381 = vld [vmem:[%s487 + $0x248] sm:$0xff]
        %v5382 = vld [vmem:[%s487 + $0x250] sm:$0xff]
        %v5383 = vld [vmem:[%s487 + $0x258] sm:$0xff]
        %v5384 = vld [vmem:[%s487 + $0x260] sm:$0xff]
        %v5385 = vld [vmem:[%s487 + $0x268] sm:$0xff]
        %v5386 = vld [vmem:[%s487 + $0x270] sm:$0xff]
        %v5387 = vld [vmem:[%s487 + $0x278] sm:$0xff]
        %v5388 = vld [vmem:[%s487 + $0x280] sm:$0xff]
        %v5389 = vld [vmem:[%s487 + $0x288] sm:$0xff]
        %v5390 = vld [vmem:[%s487 + $0x290] sm:$0xff]
        %v5391 = vld [vmem:[%s487 + $0x298] sm:$0xff]
        %v5392 = vld [vmem:[%s487 + $0x2a0] sm:$0xff]
        %v5393 = vld [vmem:[%s487 + $0x2a8] sm:$0xff]
        %v5394 = vld [vmem:[%s487 + $0x2b0] sm:$0xff]
        %v5395 = vld [vmem:[%s487 + $0x2b8] sm:$0xff]
        %v5396 = vld [vmem:[%s487 + $0x2c0] sm:$0xff]
        %v5397 = vld [vmem:[%s487 + $0x2c8] sm:$0xff]
        %v5398 = vld [vmem:[%s487 + $0x2d0] sm:$0xff]
        %v5399 = vld [vmem:[%s487 + $0x2d8] sm:$0xff]
        %v5400 = vld [vmem:[%s487 + $0x2e0] sm:$0xff]
        %v5401 = vld [vmem:[%s487 + $0x2e8] sm:$0xff]
        %v5402 = vld [vmem:[%s487 + $0x2f0] sm:$0xff]
        %v5403 = vld [vmem:[%s487 + $0x2f8] sm:$0xff]
        %v5404 = vld [vmem:[%s487 + $0x300] sm:$0xff]
        %v5405 = vld [vmem:[%s487 + $0x308] sm:$0xff]
        %v5406 = vld [vmem:[%s487 + $0x310] sm:$0xff]
        %v5407 = vld [vmem:[%s487 + $0x318] sm:$0xff]
        %v5408 = vld [vmem:[%s487 + $0x320] sm:$0xff]
        %v5409 = vld [vmem:[%s487 + $0x328] sm:$0xff]
        %v5410 = vld [vmem:[%s487 + $0x330] sm:$0xff]
        %v5411 = vld [vmem:[%s487 + $0x338] sm:$0xff]
        %v5412 = vld [vmem:[%s487 + $0x340] sm:$0xff]
        %v5413 = vld [vmem:[%s487 + $0x348] sm:$0xff]
        %v5414 = vld [vmem:[%s487 + $0x350] sm:$0xff]
        %v5415 = vld [vmem:[%s487 + $0x358] sm:$0xff]
        %v5416 = vld [vmem:[%s487 + $0x360] sm:$0xff]
        %v5417 = vld [vmem:[%s487 + $0x368] sm:$0xff]
        %v5418 = vld [vmem:[%s487 + $0x370] sm:$0xff]
        %v5419 = vld [vmem:[%s487 + $0x378] sm:$0xff]
        %v5420 = vld [vmem:[%s487 + $0x380] sm:$0xff]
        %v5421 = vld [vmem:[%s487 + $0x388] sm:$0xff]
        %v5422 = vld [vmem:[%s487 + $0x390] sm:$0xff]
        %v5423 = vld [vmem:[%s487 + $0x398] sm:$0xff]
        %v5424 = vld [vmem:[%s487 + $0x3a0] sm:$0xff]
        %v5425 = vld [vmem:[%s487 + $0x3a8] sm:$0xff]
        %v5426 = vld [vmem:[%s487 + $0x3b0] sm:$0xff]
        %v5427 = vld [vmem:[%s487 + $0x3b8] sm:$0xff]
        %v5428 = vld [vmem:[%s487 + $0x3c0] sm:$0xff]
        %v5429 = vld [vmem:[%s487 + $0x3c8] sm:$0xff]
        %v5430 = vld [vmem:[%s487 + $0x3d0] sm:$0xff]
        %v5431 = vld [vmem:[%s487 + $0x3d8] sm:$0xff]
        %v5432 = vld [vmem:[%s487 + $0x3e0] sm:$0xff]
        %v5433 = vld [vmem:[%s487 + $0x3e8] sm:$0xff]
        %v5434 = vld [vmem:[%s487 + $0x3f0] sm:$0xff]
        %v5435 = vld [vmem:[%s487 + $0x3f8] sm:$0xff]
        %v5436 = vadd.f32 %v4798, %v5308
        %v5437 = vadd.f32 %v4799, %v5309
        %v5438 = vadd.f32 %v4806, %v5310
        %v5439 = vadd.f32 %v4807, %v5311
        %v5440 = vadd.f32 %v4814, %v5312
        %v5441 = vadd.f32 %v4815, %v5313
        %v5442 = vadd.f32 %v4822, %v5314
        %v5443 = vadd.f32 %v4823, %v5315
        %v5444 = vadd.f32 %v4830, %v5316
        %v5445 = vadd.f32 %v4831, %v5317
        %v5446 = vadd.f32 %v4838, %v5318
        %v5447 = vadd.f32 %v4839, %v5319
        %v5448 = vadd.f32 %v4846, %v5320
        %v5449 = vadd.f32 %v4847, %v5321
        %v5450 = vadd.f32 %v4854, %v5322
        %v5451 = vadd.f32 %v4855, %v5323
        %v5452 = vadd.f32 %v4862, %v5324
        %v5453 = vadd.f32 %v4863, %v5325
        %v5454 = vadd.f32 %v4870, %v5326
        %v5455 = vadd.f32 %v4871, %v5327
        %v5456 = vadd.f32 %v4878, %v5328
        %v5457 = vadd.f32 %v4879, %v5329
        %v5458 = vadd.f32 %v4886, %v5330
        %v5459 = vadd.f32 %v4887, %v5331
        %v5460 = vadd.f32 %v4894, %v5332
        %v5461 = vadd.f32 %v4895, %v5333
        %v5462 = vadd.f32 %v4902, %v5334
        %v5463 = vadd.f32 %v4903, %v5335
        %v5464 = vadd.f32 %v4910, %v5336
        %v5465 = vadd.f32 %v4911, %v5337
        %v5466 = vadd.f32 %v4918, %v5338
        %v5467 = vadd.f32 %v4919, %v5339
        %v5468 = vadd.f32 %v4926, %v5340
        %v5469 = vadd.f32 %v4927, %v5341
        %v5470 = vadd.f32 %v4934, %v5342
        %v5471 = vadd.f32 %v4935, %v5343
        %v5472 = vadd.f32 %v4942, %v5344
        %v5473 = vadd.f32 %v4943, %v5345
        %v5474 = vadd.f32 %v4950, %v5346
        %v5475 = vadd.f32 %v4951, %v5347
        %v5476 = vadd.f32 %v4958, %v5348
        %v5477 = vadd.f32 %v4959, %v5349
        %v5478 = vadd.f32 %v4966, %v5350
        %v5479 = vadd.f32 %v4967, %v5351
        %v5480 = vadd.f32 %v4974, %v5352
        %v5481 = vadd.f32 %v4975, %v5353
        %v5482 = vadd.f32 %v4982, %v5354
        %v5483 = vadd.f32 %v4983, %v5355
        %v5484 = vadd.f32 %v4990, %v5356
        %v5485 = vadd.f32 %v4991, %v5357
        %v5486 = vadd.f32 %v4998, %v5358
        %v5487 = vadd.f32 %v4999, %v5359
        %v5488 = vadd.f32 %v5006, %v5360
        %v5489 = vadd.f32 %v5007, %v5361
        %v5490 = vadd.f32 %v5014, %v5362
        %v5491 = vadd.f32 %v5015, %v5363
        %v5492 = vadd.f32 %v5022, %v5364
        %v5493 = vadd.f32 %v5023, %v5365
        %v5494 = vadd.f32 %v5030, %v5366
        %v5495 = vadd.f32 %v5031, %v5367
        %v5496 = vadd.f32 %v5038, %v5368
        %v5497 = vadd.f32 %v5039, %v5369
        %v5498 = vadd.f32 %v5046, %v5370
        %v5499 = vadd.f32 %v5047, %v5371
        %v5500 = vadd.f32 %v5054, %v5372
        %v5501 = vadd.f32 %v5055, %v5373
        %v5502 = vadd.f32 %v5062, %v5374
        %v5503 = vadd.f32 %v5063, %v5375
        %v5504 = vadd.f32 %v5070, %v5376
        %v5505 = vadd.f32 %v5071, %v5377
        %v5506 = vadd.f32 %v5078, %v5378
        %v5507 = vadd.f32 %v5079, %v5379
        %v5508 = vadd.f32 %v5086, %v5380
        %v5509 = vadd.f32 %v5087, %v5381
        %v5510 = vadd.f32 %v5094, %v5382
        %v5511 = vadd.f32 %v5095, %v5383
        %v5512 = vadd.f32 %v5102, %v5384
        %v5513 = vadd.f32 %v5103, %v5385
        %v5514 = vadd.f32 %v5110, %v5386
        %v5515 = vadd.f32 %v5111, %v5387
        %v5516 = vadd.f32 %v5118, %v5388
        %v5517 = vadd.f32 %v5119, %v5389
        %v5518 = vadd.f32 %v5126, %v5390
        %v5519 = vadd.f32 %v5127, %v5391
        %v5520 = vadd.f32 %v5134, %v5392
        %v5521 = vadd.f32 %v5135, %v5393
        %v5522 = vadd.f32 %v5142, %v5394
        %v5523 = vadd.f32 %v5143, %v5395
        %v5524 = vadd.f32 %v5150, %v5396
        %v5525 = vadd.f32 %v5151, %v5397
        %v5526 = vadd.f32 %v5158, %v5398
        %v5527 = vadd.f32 %v5159, %v5399
        %v5528 = vadd.f32 %v5166, %v5400
        %v5529 = vadd.f32 %v5167, %v5401
        %v5530 = vadd.f32 %v5174, %v5402
        %v5531 = vadd.f32 %v5175, %v5403
        %v5532 = vadd.f32 %v5182, %v5404
        %v5533 = vadd.f32 %v5183, %v5405
        %v5534 = vadd.f32 %v5190, %v5406
        %v5535 = vadd.f32 %v5191, %v5407
        %v5536 = vadd.f32 %v5198, %v5408
        %v5537 = vadd.f32 %v5199, %v5409
        %v5538 = vadd.f32 %v5206, %v5410
        %v5539 = vadd.f32 %v5207, %v5411
        %v5540 = vadd.f32 %v5214, %v5412
        %v5541 = vadd.f32 %v5215, %v5413
        %v5542 = vadd.f32 %v5222, %v5414
        %v5543 = vadd.f32 %v5223, %v5415
        %v5544 = vadd.f32 %v5230, %v5416
        %v5545 = vadd.f32 %v5231, %v5417
        %v5546 = vadd.f32 %v5238, %v5418
        %v5547 = vadd.f32 %v5239, %v5419
        %v5548 = vadd.f32 %v5246, %v5420
        %v5549 = vadd.f32 %v5247, %v5421
        %v5550 = vadd.f32 %v5254, %v5422
        %v5551 = vadd.f32 %v5255, %v5423
        %v5552 = vadd.f32 %v5262, %v5424
        %v5553 = vadd.f32 %v5263, %v5425
        %v5554 = vadd.f32 %v5270, %v5426
        %v5555 = vadd.f32 %v5271, %v5427
        %v5556 = vadd.f32 %v5278, %v5428
        %v5557 = vadd.f32 %v5279, %v5429
        %v5558 = vadd.f32 %v5286, %v5430
        %v5559 = vadd.f32 %v5287, %v5431
        %v5560 = vadd.f32 %v5294, %v5432
        %v5561 = vadd.f32 %v5295, %v5433
        %v5562 = vadd.f32 %v5302, %v5434
        %v5563 = vadd.f32 %v5303, %v5435
        %v5564 = vmax.f32 %v5436, %v4796
        %v5565 = vmax.f32 %v5437, %v4797
        %v5566 = vmax.f32 %v5438, %v4804
        %v5567 = vmax.f32 %v5439, %v4805
        %v5568 = vmax.f32 %v5440, %v4812
        %v5569 = vmax.f32 %v5441, %v4813
        %v5570 = vmax.f32 %v5442, %v4820
        %v5571 = vmax.f32 %v5443, %v4821
        %v5572 = vmax.f32 %v5444, %v4828
        %v5573 = vmax.f32 %v5445, %v4829
        %v5574 = vmax.f32 %v5446, %v4836
        %v5575 = vmax.f32 %v5447, %v4837
        %v5576 = vmax.f32 %v5448, %v4844
        %v5577 = vmax.f32 %v5449, %v4845
        %v5578 = vmax.f32 %v5450, %v4852
        %v5579 = vmax.f32 %v5451, %v4853
        %v5580 = vmax.f32 %v5452, %v4860
        %v5581 = vmax.f32 %v5453, %v4861
        %v5582 = vmax.f32 %v5454, %v4868
        %v5583 = vmax.f32 %v5455, %v4869
        %v5584 = vmax.f32 %v5456, %v4876
        %v5585 = vmax.f32 %v5457, %v4877
        %v5586 = vmax.f32 %v5458, %v4884
        %v5587 = vmax.f32 %v5459, %v4885
        %v5588 = vmax.f32 %v5460, %v4892
        %v5589 = vmax.f32 %v5461, %v4893
        %v5590 = vmax.f32 %v5462, %v4900
        %v5591 = vmax.f32 %v5463, %v4901
        %v5592 = vmax.f32 %v5464, %v4908
        %v5593 = vmax.f32 %v5465, %v4909
        %v5594 = vmax.f32 %v5466, %v4916
        %v5595 = vmax.f32 %v5467, %v4917
        %v5596 = vmax.f32 %v5468, %v4924
        %v5597 = vmax.f32 %v5469, %v4925
        %v5598 = vmax.f32 %v5470, %v4932
        %v5599 = vmax.f32 %v5471, %v4933
        %v5600 = vmax.f32 %v5472, %v4940
        %v5601 = vmax.f32 %v5473, %v4941
        %v5602 = vmax.f32 %v5474, %v4948
        %v5603 = vmax.f32 %v5475, %v4949
        %v5604 = vmax.f32 %v5476, %v4956
        %v5605 = vmax.f32 %v5477, %v4957
        %v5606 = vmax.f32 %v5478, %v4964
        %v5607 = vmax.f32 %v5479, %v4965
        %v5608 = vmax.f32 %v5480, %v4972
        %v5609 = vmax.f32 %v5481, %v4973
        %v5610 = vmax.f32 %v5482, %v4980
        %v5611 = vmax.f32 %v5483, %v4981
        %v5612 = vmax.f32 %v5484, %v4988
        %v5613 = vmax.f32 %v5485, %v4989
        %v5614 = vmax.f32 %v5486, %v4996
        %v5615 = vmax.f32 %v5487, %v4997
        %v5616 = vmax.f32 %v5488, %v5004
        %v5617 = vmax.f32 %v5489, %v5005
        %v5618 = vmax.f32 %v5490, %v5012
        %v5619 = vmax.f32 %v5491, %v5013
        %v5620 = vmax.f32 %v5492, %v5020
        %v5621 = vmax.f32 %v5493, %v5021
        %v5622 = vmax.f32 %v5494, %v5028
        %v5623 = vmax.f32 %v5495, %v5029
        %v5624 = vmax.f32 %v5496, %v5036
        %v5625 = vmax.f32 %v5497, %v5037
        %v5626 = vmax.f32 %v5498, %v5044
        %v5627 = vmax.f32 %v5499, %v5045
        %v5628 = vmax.f32 %v5500, %v5052
        %v5629 = vmax.f32 %v5501, %v5053
        %v5630 = vmax.f32 %v5502, %v5060
        %v5631 = vmax.f32 %v5503, %v5061
        %v5632 = vmax.f32 %v5504, %v5068
        %v5633 = vmax.f32 %v5505, %v5069
        %v5634 = vmax.f32 %v5506, %v5076
        %v5635 = vmax.f32 %v5507, %v5077
        %v5636 = vmax.f32 %v5508, %v5084
        %v5637 = vmax.f32 %v5509, %v5085
        %v5638 = vmax.f32 %v5510, %v5092
        %v5639 = vmax.f32 %v5511, %v5093
        %v5640 = vmax.f32 %v5512, %v5100
        %v5641 = vmax.f32 %v5513, %v5101
        %v5642 = vmax.f32 %v5514, %v5108
        %v5643 = vmax.f32 %v5515, %v5109
        %v5644 = vmax.f32 %v5516, %v5116
        %v5645 = vmax.f32 %v5517, %v5117
        %v5646 = vmax.f32 %v5518, %v5124
        %v5647 = vmax.f32 %v5519, %v5125
        %v5648 = vmax.f32 %v5520, %v5132
        %v5649 = vmax.f32 %v5521, %v5133
        %v5650 = vmax.f32 %v5522, %v5140
        %v5651 = vmax.f32 %v5523, %v5141
        %v5652 = vmax.f32 %v5524, %v5148
        %v5653 = vmax.f32 %v5525, %v5149
        %v5654 = vmax.f32 %v5526, %v5156
        %v5655 = vmax.f32 %v5527, %v5157
        %v5656 = vmax.f32 %v5528, %v5164
        %v5657 = vmax.f32 %v5529, %v5165
        %v5658 = vmax.f32 %v5530, %v5172
        %v5659 = vmax.f32 %v5531, %v5173
        %v5660 = vmax.f32 %v5532, %v5180
        %v5661 = vmax.f32 %v5533, %v5181
        %v5662 = vmax.f32 %v5534, %v5188
        %v5663 = vmax.f32 %v5535, %v5189
        %v5664 = vmax.f32 %v5536, %v5196
        %v5665 = vmax.f32 %v5537, %v5197
        %v5666 = vmax.f32 %v5538, %v5204
        %v5667 = vmax.f32 %v5539, %v5205
        %v5668 = vmax.f32 %v5540, %v5212
        %v5669 = vmax.f32 %v5541, %v5213
        %v5670 = vmax.f32 %v5542, %v5220
        %v5671 = vmax.f32 %v5543, %v5221
        %v5672 = vmax.f32 %v5544, %v5228
        %v5673 = vmax.f32 %v5545, %v5229
        %v5674 = vmax.f32 %v5546, %v5236
        %v5675 = vmax.f32 %v5547, %v5237
        %v5676 = vmax.f32 %v5548, %v5244
        %v5677 = vmax.f32 %v5549, %v5245
        %v5678 = vmax.f32 %v5550, %v5252
        %v5679 = vmax.f32 %v5551, %v5253
        %v5680 = vmax.f32 %v5552, %v5260
        %v5681 = vmax.f32 %v5553, %v5261
        %v5682 = vmax.f32 %v5554, %v5268
        %v5683 = vmax.f32 %v5555, %v5269
        %v5684 = vmax.f32 %v5556, %v5276
        %v5685 = vmax.f32 %v5557, %v5277
        %v5686 = vmax.f32 %v5558, %v5284
        %v5687 = vmax.f32 %v5559, %v5285
        %v5688 = vmax.f32 %v5560, %v5292
        %v5689 = vmax.f32 %v5561, %v5293
        %v5690 = vmax.f32 %v5562, %v5300
        %v5691 = vmax.f32 %v5563, %v5301
        %5692 = vst [vmem:[%s555] sm:$0xff] %v5564
        %5693 = vst [vmem:[%s555 + $0x8] sm:$0xff] %v5565
        %5694 = vst [vmem:[%s555 + $0x10] sm:$0xff] %v5566
        %5695 = vst [vmem:[%s555 + $0x18] sm:$0xff] %v5567
        %5696 = vst [vmem:[%s555 + $0x20] sm:$0xff] %v5568
        %5697 = vst [vmem:[%s555 + $0x28] sm:$0xff] %v5569
        %5698 = vst [vmem:[%s555 + $0x30] sm:$0xff] %v5570
        %5699 = vst [vmem:[%s555 + $0x38] sm:$0xff] %v5571
        %5700 = vst [vmem:[%s555 + $0x40] sm:$0xff] %v5572
        %5701 = vst [vmem:[%s555 + $0x48] sm:$0xff] %v5573
        %5702 = vst [vmem:[%s555 + $0x50] sm:$0xff] %v5574
        %5703 = vst [vmem:[%s555 + $0x58] sm:$0xff] %v5575
        %5704 = vst [vmem:[%s555 + $0x60] sm:$0xff] %v5576
        %5705 = vst [vmem:[%s555 + $0x68] sm:$0xff] %v5577
        %5706 = vst [vmem:[%s555 + $0x70] sm:$0xff] %v5578
        %5707 = vst [vmem:[%s555 + $0x78] sm:$0xff] %v5579
        %5708 = vst [vmem:[%s555 + $0x80] sm:$0xff] %v5580
        %5709 = vst [vmem:[%s555 + $0x88] sm:$0xff] %v5581
        %5710 = vst [vmem:[%s555 + $0x90] sm:$0xff] %v5582
        %5711 = vst [vmem:[%s555 + $0x98] sm:$0xff] %v5583
        %5712 = vst [vmem:[%s555 + $0xa0] sm:$0xff] %v5584
        %5713 = vst [vmem:[%s555 + $0xa8] sm:$0xff] %v5585
        %5714 = vst [vmem:[%s555 + $0xb0] sm:$0xff] %v5586
        %5715 = vst [vmem:[%s555 + $0xb8] sm:$0xff] %v5587
        %5716 = vst [vmem:[%s555 + $0xc0] sm:$0xff] %v5588
        %5717 = vst [vmem:[%s555 + $0xc8] sm:$0xff] %v5589
        %5718 = vst [vmem:[%s555 + $0xd0] sm:$0xff] %v5590
        %5719 = vst [vmem:[%s555 + $0xd8] sm:$0xff] %v5591
        %5720 = vst [vmem:[%s555 + $0xe0] sm:$0xff] %v5592
        %5721 = vst [vmem:[%s555 + $0xe8] sm:$0xff] %v5593
        %5722 = vst [vmem:[%s555 + $0xf0] sm:$0xff] %v5594
        %5723 = vst [vmem:[%s555 + $0xf8] sm:$0xff] %v5595
        %5724 = vst [vmem:[%s555 + $0x100] sm:$0xff] %v5596
        %5725 = vst [vmem:[%s555 + $0x108] sm:$0xff] %v5597
        %5726 = vst [vmem:[%s555 + $0x110] sm:$0xff] %v5598
        %5727 = vst [vmem:[%s555 + $0x118] sm:$0xff] %v5599
        %5728 = vst [vmem:[%s555 + $0x120] sm:$0xff] %v5600
        %5729 = vst [vmem:[%s555 + $0x128] sm:$0xff] %v5601
        %5730 = vst [vmem:[%s555 + $0x130] sm:$0xff] %v5602
        %5731 = vst [vmem:[%s555 + $0x138] sm:$0xff] %v5603
        %5732 = vst [vmem:[%s555 + $0x140] sm:$0xff] %v5604
        %5733 = vst [vmem:[%s555 + $0x148] sm:$0xff] %v5605
        %5734 = vst [vmem:[%s555 + $0x150] sm:$0xff] %v5606
        %5735 = vst [vmem:[%s555 + $0x158] sm:$0xff] %v5607
        %5736 = vst [vmem:[%s555 + $0x160] sm:$0xff] %v5608
        %5737 = vst [vmem:[%s555 + $0x168] sm:$0xff] %v5609
        %5738 = vst [vmem:[%s555 + $0x170] sm:$0xff] %v5610
        %5739 = vst [vmem:[%s555 + $0x178] sm:$0xff] %v5611
        %5740 = vst [vmem:[%s555 + $0x180] sm:$0xff] %v5612
        %5741 = vst [vmem:[%s555 + $0x188] sm:$0xff] %v5613
        %5742 = vst [vmem:[%s555 + $0x190] sm:$0xff] %v5614
        %5743 = vst [vmem:[%s555 + $0x198] sm:$0xff] %v5615
        %5744 = vst [vmem:[%s555 + $0x1a0] sm:$0xff] %v5616
        %5745 = vst [vmem:[%s555 + $0x1a8] sm:$0xff] %v5617
        %5746 = vst [vmem:[%s555 + $0x1b0] sm:$0xff] %v5618
        %5747 = vst [vmem:[%s555 + $0x1b8] sm:$0xff] %v5619
        %5748 = vst [vmem:[%s555 + $0x1c0] sm:$0xff] %v5620
        %5749 = vst [vmem:[%s555 + $0x1c8] sm:$0xff] %v5621
        %5750 = vst [vmem:[%s555 + $0x1d0] sm:$0xff] %v5622
        %5751 = vst [vmem:[%s555 + $0x1d8] sm:$0xff] %v5623
        %5752 = vst [vmem:[%s555 + $0x1e0] sm:$0xff] %v5624
        %5753 = vst [vmem:[%s555 + $0x1e8] sm:$0xff] %v5625
        %5754 = vst [vmem:[%s555 + $0x1f0] sm:$0xff] %v5626
        %5755 = vst [vmem:[%s555 + $0x1f8] sm:$0xff] %v5627
        %5756 = vst [vmem:[%s555 + $0x200] sm:$0xff] %v5628
        %5757 = vst [vmem:[%s555 + $0x208] sm:$0xff] %v5629
        %5758 = vst [vmem:[%s555 + $0x210] sm:$0xff] %v5630
        %5759 = vst [vmem:[%s555 + $0x218] sm:$0xff] %v5631
        %5760 = vst [vmem:[%s555 + $0x220] sm:$0xff] %v5632
        %5761 = vst [vmem:[%s555 + $0x228] sm:$0xff] %v5633
        %5762 = vst [vmem:[%s555 + $0x230] sm:$0xff] %v5634
        %5763 = vst [vmem:[%s555 + $0x238] sm:$0xff] %v5635
        %5764 = vst [vmem:[%s555 + $0x240] sm:$0xff] %v5636
        %5765 = vst [vmem:[%s555 + $0x248] sm:$0xff] %v5637
        %5766 = vst [vmem:[%s555 + $0x250] sm:$0xff] %v5638
        %5767 = vst [vmem:[%s555 + $0x258] sm:$0xff] %v5639
        %5768 = vst [vmem:[%s555 + $0x260] sm:$0xff] %v5640
        %5769 = vst [vmem:[%s555 + $0x268] sm:$0xff] %v5641
        %5770 = vst [vmem:[%s555 + $0x270] sm:$0xff] %v5642
        %5771 = vst [vmem:[%s555 + $0x278] sm:$0xff] %v5643
        %5772 = vst [vmem:[%s555 + $0x280] sm:$0xff] %v5644
        %5773 = vst [vmem:[%s555 + $0x288] sm:$0xff] %v5645
        %5774 = vst [vmem:[%s555 + $0x290] sm:$0xff] %v5646
        %5775 = vst [vmem:[%s555 + $0x298] sm:$0xff] %v5647
        %5776 = vst [vmem:[%s555 + $0x2a0] sm:$0xff] %v5648
        %5777 = vst [vmem:[%s555 + $0x2a8] sm:$0xff] %v5649
        %5778 = vst [vmem:[%s555 + $0x2b0] sm:$0xff] %v5650
        %5779 = vst [vmem:[%s555 + $0x2b8] sm:$0xff] %v5651
        %5780 = vst [vmem:[%s555 + $0x2c0] sm:$0xff] %v5652
        %5781 = vst [vmem:[%s555 + $0x2c8] sm:$0xff] %v5653
        %5782 = vst [vmem:[%s555 + $0x2d0] sm:$0xff] %v5654
        %5783 = vst [vmem:[%s555 + $0x2d8] sm:$0xff] %v5655
        %5784 = vst [vmem:[%s555 + $0x2e0] sm:$0xff] %v5656
        %5785 = vst [vmem:[%s555 + $0x2e8] sm:$0xff] %v5657
        %5786 = vst [vmem:[%s555 + $0x2f0] sm:$0xff] %v5658
        %5787 = vst [vmem:[%s555 + $0x2f8] sm:$0xff] %v5659
        %5788 = vst [vmem:[%s555 + $0x300] sm:$0xff] %v5660
        %5789 = vst [vmem:[%s555 + $0x308] sm:$0xff] %v5661
        %5790 = vst [vmem:[%s555 + $0x310] sm:$0xff] %v5662
        %5791 = vst [vmem:[%s555 + $0x318] sm:$0xff] %v5663
        %5792 = vst [vmem:[%s555 + $0x320] sm:$0xff] %v5664
        %5793 = vst [vmem:[%s555 + $0x328] sm:$0xff] %v5665
        %5794 = vst [vmem:[%s555 + $0x330] sm:$0xff] %v5666
        %5795 = vst [vmem:[%s555 + $0x338] sm:$0xff] %v5667
        %5796 = vst [vmem:[%s555 + $0x340] sm:$0xff] %v5668
        %5797 = vst [vmem:[%s555 + $0x348] sm:$0xff] %v5669
        %5798 = vst [vmem:[%s555 + $0x350] sm:$0xff] %v5670
        %5799 = vst [vmem:[%s555 + $0x358] sm:$0xff] %v5671
        %5800 = vst [vmem:[%s555 + $0x360] sm:$0xff] %v5672
        %5801 = vst [vmem:[%s555 + $0x368] sm:$0xff] %v5673
        %5802 = vst [vmem:[%s555 + $0x370] sm:$0xff] %v5674
        %5803 = vst [vmem:[%s555 + $0x378] sm:$0xff] %v5675
        %5804 = vst [vmem:[%s555 + $0x380] sm:$0xff] %v5676
        %5805 = vst [vmem:[%s555 + $0x388] sm:$0xff] %v5677
        %5806 = vst [vmem:[%s555 + $0x390] sm:$0xff] %v5678
        %5807 = vst [vmem:[%s555 + $0x398] sm:$0xff] %v5679
        %5808 = vst [vmem:[%s555 + $0x3a0] sm:$0xff] %v5680
        %5809 = vst [vmem:[%s555 + $0x3a8] sm:$0xff] %v5681
        %5810 = vst [vmem:[%s555 + $0x3b0] sm:$0xff] %v5682
        %5811 = vst [vmem:[%s555 + $0x3b8] sm:$0xff] %v5683
        %5812 = vst [vmem:[%s555 + $0x3c0] sm:$0xff] %v5684
        %5813 = vst [vmem:[%s555 + $0x3c8] sm:$0xff] %v5685
        %5814 = vst [vmem:[%s555 + $0x3d0] sm:$0xff] %v5686
        %5815 = vst [vmem:[%s555 + $0x3d8] sm:$0xff] %v5687
        %5816 = vst [vmem:[%s555 + $0x3e0] sm:$0xff] %v5688
        %5817 = vst [vmem:[%s555 + $0x3e8] sm:$0xff] %v5689
        %5818 = vst [vmem:[%s555 + $0x3f0] sm:$0xff] %v5690
        %5819 = vst [vmem:[%s555 + $0x3f8] sm:$0xff] %v5691
        %v5820 = vsub.f32 %v4796, %v5564
        %v5821 = vsub.f32 %v4797, %v5565
        %v5822 = vsub.f32 %v4804, %v5566
        %v5823 = vsub.f32 %v4805, %v5567
        %v5824 = vsub.f32 %v4812, %v5568
        %v5825 = vsub.f32 %v4813, %v5569
        %v5826 = vsub.f32 %v4820, %v5570
        %v5827 = vsub.f32 %v4821, %v5571
        %v5828 = vsub.f32 %v4828, %v5572
        %v5829 = vsub.f32 %v4829, %v5573
        %v5830 = vsub.f32 %v4836, %v5574
        %v5831 = vsub.f32 %v4837, %v5575
        %v5832 = vsub.f32 %v4844, %v5576
        %v5833 = vsub.f32 %v4845, %v5577
        %v5834 = vsub.f32 %v4852, %v5578
        %v5835 = vsub.f32 %v4853, %v5579
        %v5836 = vsub.f32 %v4860, %v5580
        %v5837 = vsub.f32 %v4861, %v5581
        %v5838 = vsub.f32 %v4868, %v5582
        %v5839 = vsub.f32 %v4869, %v5583
        %v5840 = vsub.f32 %v4876, %v5584
        %v5841 = vsub.f32 %v4877, %v5585
        %v5842 = vsub.f32 %v4884, %v5586
        %v5843 = vsub.f32 %v4885, %v5587
        %v5844 = vsub.f32 %v4892, %v5588
        %v5845 = vsub.f32 %v4893, %v5589
        %v5846 = vsub.f32 %v4900, %v5590
        %v5847 = vsub.f32 %v4901, %v5591
        %v5848 = vsub.f32 %v4908, %v5592
        %v5849 = vsub.f32 %v4909, %v5593
        %v5850 = vsub.f32 %v4916, %v5594
        %v5851 = vsub.f32 %v4917, %v5595
        %v5852 = vsub.f32 %v4924, %v5596
        %v5853 = vsub.f32 %v4925, %v5597
        %v5854 = vsub.f32 %v4932, %v5598
        %v5855 = vsub.f32 %v4933, %v5599
        %v5856 = vsub.f32 %v4940, %v5600
        %v5857 = vsub.f32 %v4941, %v5601
        %v5858 = vsub.f32 %v4948, %v5602
        %v5859 = vsub.f32 %v4949, %v5603
        %v5860 = vsub.f32 %v4956, %v5604
        %v5861 = vsub.f32 %v4957, %v5605
        %v5862 = vsub.f32 %v4964, %v5606
        %v5863 = vsub.f32 %v4965, %v5607
        %v5864 = vsub.f32 %v4972, %v5608
        %v5865 = vsub.f32 %v4973, %v5609
        %v5866 = vsub.f32 %v4980, %v5610
        %v5867 = vsub.f32 %v4981, %v5611
        %v5868 = vsub.f32 %v4988, %v5612
        %v5869 = vsub.f32 %v4989, %v5613
        %v5870 = vsub.f32 %v4996, %v5614
        %v5871 = vsub.f32 %v4997, %v5615
        %v5872 = vsub.f32 %v5004, %v5616
        %v5873 = vsub.f32 %v5005, %v5617
        %v5874 = vsub.f32 %v5012, %v5618
        %v5875 = vsub.f32 %v5013, %v5619
        %v5876 = vsub.f32 %v5020, %v5620
        %v5877 = vsub.f32 %v5021, %v5621
        %v5878 = vsub.f32 %v5028, %v5622
        %v5879 = vsub.f32 %v5029, %v5623
        %v5880 = vsub.f32 %v5036, %v5624
        %v5881 = vsub.f32 %v5037, %v5625
        %v5882 = vsub.f32 %v5044, %v5626
        %v5883 = vsub.f32 %v5045, %v5627
        %v5884 = vsub.f32 %v5052, %v5628
        %v5885 = vsub.f32 %v5053, %v5629
        %v5886 = vsub.f32 %v5060, %v5630
        %v5887 = vsub.f32 %v5061, %v5631
        %v5888 = vsub.f32 %v5068, %v5632
        %v5889 = vsub.f32 %v5069, %v5633
        %v5890 = vsub.f32 %v5076, %v5634
        %v5891 = vsub.f32 %v5077, %v5635
        %v5892 = vsub.f32 %v5084, %v5636
        %v5893 = vsub.f32 %v5085, %v5637
        %v5894 = vsub.f32 %v5092, %v5638
        %v5895 = vsub.f32 %v5093, %v5639
        %v5896 = vsub.f32 %v5100, %v5640
        %v5897 = vsub.f32 %v5101, %v5641
        %v5898 = vsub.f32 %v5108, %v5642
        %v5899 = vsub.f32 %v5109, %v5643
        %v5900 = vsub.f32 %v5116, %v5644
        %v5901 = vsub.f32 %v5117, %v5645
        %v5902 = vsub.f32 %v5124, %v5646
        %v5903 = vsub.f32 %v5125, %v5647
        %v5904 = vsub.f32 %v5132, %v5648
        %v5905 = vsub.f32 %v5133, %v5649
        %v5906 = vsub.f32 %v5140, %v5650
        %v5907 = vsub.f32 %v5141, %v5651
        %v5908 = vsub.f32 %v5148, %v5652
        %v5909 = vsub.f32 %v5149, %v5653
        %v5910 = vsub.f32 %v5156, %v5654
        %v5911 = vsub.f32 %v5157, %v5655
        %v5912 = vsub.f32 %v5164, %v5656
        %v5913 = vsub.f32 %v5165, %v5657
        %v5914 = vsub.f32 %v5172, %v5658
        %v5915 = vsub.f32 %v5173, %v5659
        %v5916 = vsub.f32 %v5180, %v5660
        %v5917 = vsub.f32 %v5181, %v5661
        %v5918 = vsub.f32 %v5188, %v5662
        %v5919 = vsub.f32 %v5189, %v5663
        %v5920 = vsub.f32 %v5196, %v5664
        %v5921 = vsub.f32 %v5197, %v5665
        %v5922 = vsub.f32 %v5204, %v5666
        %v5923 = vsub.f32 %v5205, %v5667
        %v5924 = vsub.f32 %v5212, %v5668
        %v5925 = vsub.f32 %v5213, %v5669
        %v5926 = vsub.f32 %v5220, %v5670
        %v5927 = vsub.f32 %v5221, %v5671
        %v5928 = vsub.f32 %v5228, %v5672
        %v5929 = vsub.f32 %v5229, %v5673
        %v5930 = vsub.f32 %v5236, %v5674
        %v5931 = vsub.f32 %v5237, %v5675
        %v5932 = vsub.f32 %v5244, %v5676
        %v5933 = vsub.f32 %v5245, %v5677
        %v5934 = vsub.f32 %v5252, %v5678
        %v5935 = vsub.f32 %v5253, %v5679
        %v5936 = vsub.f32 %v5260, %v5680
        %v5937 = vsub.f32 %v5261, %v5681
        %v5938 = vsub.f32 %v5268, %v5682
        %v5939 = vsub.f32 %v5269, %v5683
        %v5940 = vsub.f32 %v5276, %v5684
        %v5941 = vsub.f32 %v5277, %v5685
        %v5942 = vsub.f32 %v5284, %v5686
        %v5943 = vsub.f32 %v5285, %v5687
        %v5944 = vsub.f32 %v5292, %v5688
        %v5945 = vsub.f32 %v5293, %v5689
        %v5946 = vsub.f32 %v5300, %v5690
        %v5947 = vsub.f32 %v5301, %v5691
        %v5948 = vmul.f32 %v5820, 1.442695
        %v5949 = vpow.pop %v5948
        %v5950 = vmul.f32 %v5821, 1.442695
        %v5951 = vpow.pop %v5950
        %v5952 = vmul.f32 %v5822, 1.442695
        %v5953 = vpow.pop %v5952
        %v5954 = vmul.f32 %v5823, 1.442695
        %v5955 = vpow.pop %v5954
        %v5956 = vmul.f32 %v5824, 1.442695
        %v5957 = vpow.pop %v5956
        %v5958 = vmul.f32 %v5825, 1.442695
        %v5959 = vpow.pop %v5958
        %v5960 = vmul.f32 %v5826, 1.442695
        %v5961 = vpow.pop %v5960
        %v5962 = vmul.f32 %v5827, 1.442695
        %v5963 = vpow.pop %v5962
        %v5964 = vmul.f32 %v5828, 1.442695
        %v5965 = vpow.pop %v5964
        %v5966 = vmul.f32 %v5829, 1.442695
        %v5967 = vpow.pop %v5966
        %v5968 = vmul.f32 %v5830, 1.442695
        %v5969 = vpow.pop %v5968
        %v5970 = vmul.f32 %v5831, 1.442695
        %v5971 = vpow.pop %v5970
        %v5972 = vmul.f32 %v5832, 1.442695
        %v5973 = vpow.pop %v5972
        %v5974 = vmul.f32 %v5833, 1.442695
        %v5975 = vpow.pop %v5974
        %v5976 = vmul.f32 %v5834, 1.442695
        %v5977 = vpow.pop %v5976
        %v5978 = vmul.f32 %v5835, 1.442695
        %v5979 = vpow.pop %v5978
        %v5980 = vmul.f32 %v5836, 1.442695
        %v5981 = vpow.pop %v5980
        %v5982 = vmul.f32 %v5837, 1.442695
        %v5983 = vpow.pop %v5982
        %v5984 = vmul.f32 %v5838, 1.442695
        %v5985 = vpow.pop %v5984
        %v5986 = vmul.f32 %v5839, 1.442695
        %v5987 = vpow.pop %v5986
        %v5988 = vmul.f32 %v5840, 1.442695
        %v5989 = vpow.pop %v5988
        %v5990 = vmul.f32 %v5841, 1.442695
        %v5991 = vpow.pop %v5990
        %v5992 = vmul.f32 %v5842, 1.442695
        %v5993 = vpow.pop %v5992
        %v5994 = vmul.f32 %v5843, 1.442695
        %v5995 = vpow.pop %v5994
        %v5996 = vmul.f32 %v5844, 1.442695
        %v5997 = vpow.pop %v5996
        %v5998 = vmul.f32 %v5845, 1.442695
        %v5999 = vpow.pop %v5998
        %v6000 = vmul.f32 %v5846, 1.442695
        %v6001 = vpow.pop %v6000
        %v6002 = vmul.f32 %v5847, 1.442695
        %v6003 = vpow.pop %v6002
        %v6004 = vmul.f32 %v5848, 1.442695
        %v6005 = vpow.pop %v6004
        %v6006 = vmul.f32 %v5849, 1.442695
        %v6007 = vpow.pop %v6006
        %v6008 = vmul.f32 %v5850, 1.442695
        %v6009 = vpow.pop %v6008
        %v6010 = vmul.f32 %v5851, 1.442695
        %v6011 = vpow.pop %v6010
        %v6012 = vmul.f32 %v5852, 1.442695
        %v6013 = vpow.pop %v6012
        %v6014 = vmul.f32 %v5853, 1.442695
        %v6015 = vpow.pop %v6014
        %v6016 = vmul.f32 %v5854, 1.442695
        %v6017 = vpow.pop %v6016
        %v6018 = vmul.f32 %v5855, 1.442695
        %v6019 = vpow.pop %v6018
        %v6020 = vmul.f32 %v5856, 1.442695
        %v6021 = vpow.pop %v6020
        %v6022 = vmul.f32 %v5857, 1.442695
        %v6023 = vpow.pop %v6022
        %v6024 = vmul.f32 %v5858, 1.442695
        %v6025 = vpow.pop %v6024
        %v6026 = vmul.f32 %v5859, 1.442695
        %v6027 = vpow.pop %v6026
        %v6028 = vmul.f32 %v5860, 1.442695
        %v6029 = vpow.pop %v6028
        %v6030 = vmul.f32 %v5861, 1.442695
        %v6031 = vpow.pop %v6030
        %v6032 = vmul.f32 %v5862, 1.442695
        %v6033 = vpow.pop %v6032
        %v6034 = vmul.f32 %v5863, 1.442695
        %v6035 = vpow.pop %v6034
        %v6036 = vmul.f32 %v5864, 1.442695
        %v6037 = vpow.pop %v6036
        %v6038 = vmul.f32 %v5865, 1.442695
        %v6039 = vpow.pop %v6038
        %v6040 = vmul.f32 %v5866, 1.442695
        %v6041 = vpow.pop %v6040
        %v6042 = vmul.f32 %v5867, 1.442695
        %v6043 = vpow.pop %v6042
        %v6044 = vmul.f32 %v5868, 1.442695
        %v6045 = vpow.pop %v6044
        %v6046 = vmul.f32 %v5869, 1.442695
        %v6047 = vpow.pop %v6046
        %v6048 = vmul.f32 %v5870, 1.442695
        %v6049 = vpow.pop %v6048
        %v6050 = vmul.f32 %v5871, 1.442695
        %v6051 = vpow.pop %v6050
        %v6052 = vmul.f32 %v5872, 1.442695
        %v6053 = vpow.pop %v6052
        %v6054 = vmul.f32 %v5873, 1.442695
        %v6055 = vpow.pop %v6054
        %v6056 = vmul.f32 %v5874, 1.442695
        %v6057 = vpow.pop %v6056
        %v6058 = vmul.f32 %v5875, 1.442695
        %v6059 = vpow.pop %v6058
        %v6060 = vmul.f32 %v5876, 1.442695
        %v6061 = vpow.pop %v6060
        %v6062 = vmul.f32 %v5877, 1.442695
        %v6063 = vpow.pop %v6062
        %v6064 = vmul.f32 %v5878, 1.442695
        %v6065 = vpow.pop %v6064
        %v6066 = vmul.f32 %v5879, 1.442695
        %v6067 = vpow.pop %v6066
        %v6068 = vmul.f32 %v5880, 1.442695
        %v6069 = vpow.pop %v6068
        %v6070 = vmul.f32 %v5881, 1.442695
        %v6071 = vpow.pop %v6070
        %v6072 = vmul.f32 %v5882, 1.442695
        %v6073 = vpow.pop %v6072
        %v6074 = vmul.f32 %v5883, 1.442695
        %v6075 = vpow.pop %v6074
        %v6076 = vmul.f32 %v5884, 1.442695
        %v6077 = vpow.pop %v6076
        %v6078 = vmul.f32 %v5885, 1.442695
        %v6079 = vpow.pop %v6078
        %v6080 = vmul.f32 %v5886, 1.442695
        %v6081 = vpow.pop %v6080
        %v6082 = vmul.f32 %v5887, 1.442695
        %v6083 = vpow.pop %v6082
        %v6084 = vmul.f32 %v5888, 1.442695
        %v6085 = vpow.pop %v6084
        %v6086 = vmul.f32 %v5889, 1.442695
        %v6087 = vpow.pop %v6086
        %v6088 = vmul.f32 %v5890, 1.442695
        %v6089 = vpow.pop %v6088
        %v6090 = vmul.f32 %v5891, 1.442695
        %v6091 = vpow.pop %v6090
        %v6092 = vmul.f32 %v5892, 1.442695
        %v6093 = vpow.pop %v6092
        %v6094 = vmul.f32 %v5893, 1.442695
        %v6095 = vpow.pop %v6094
        %v6096 = vmul.f32 %v5894, 1.442695
        %v6097 = vpow.pop %v6096
        %v6098 = vmul.f32 %v5895, 1.442695
        %v6099 = vpow.pop %v6098
        %v6100 = vmul.f32 %v5896, 1.442695
        %v6101 = vpow.pop %v6100
        %v6102 = vmul.f32 %v5897, 1.442695
        %v6103 = vpow.pop %v6102
        %v6104 = vmul.f32 %v5898, 1.442695
        %v6105 = vpow.pop %v6104
        %v6106 = vmul.f32 %v5899, 1.442695
        %v6107 = vpow.pop %v6106
        %v6108 = vmul.f32 %v5900, 1.442695
        %v6109 = vpow.pop %v6108
        %v6110 = vmul.f32 %v5901, 1.442695
        %v6111 = vpow.pop %v6110
        %v6112 = vmul.f32 %v5902, 1.442695
        %v6113 = vpow.pop %v6112
        %v6114 = vmul.f32 %v5903, 1.442695
        %v6115 = vpow.pop %v6114
        %v6116 = vmul.f32 %v5904, 1.442695
        %v6117 = vpow.pop %v6116
        %v6118 = vmul.f32 %v5905, 1.442695
        %v6119 = vpow.pop %v6118
        %v6120 = vmul.f32 %v5906, 1.442695
        %v6121 = vpow.pop %v6120
        %v6122 = vmul.f32 %v5907, 1.442695
        %v6123 = vpow.pop %v6122
        %v6124 = vmul.f32 %v5908, 1.442695
        %v6125 = vpow.pop %v6124
        %v6126 = vmul.f32 %v5909, 1.442695
        %v6127 = vpow.pop %v6126
        %v6128 = vmul.f32 %v5910, 1.442695
        %v6129 = vpow.pop %v6128
        %v6130 = vmul.f32 %v5911, 1.442695
        %v6131 = vpow.pop %v6130
        %v6132 = vmul.f32 %v5912, 1.442695
        %v6133 = vpow.pop %v6132
        %v6134 = vmul.f32 %v5913, 1.442695
        %v6135 = vpow.pop %v6134
        %v6136 = vmul.f32 %v5914, 1.442695
        %v6137 = vpow.pop %v6136
        %v6138 = vmul.f32 %v5915, 1.442695
        %v6139 = vpow.pop %v6138
        %v6140 = vmul.f32 %v5916, 1.442695
        %v6141 = vpow.pop %v6140
        %v6142 = vmul.f32 %v5917, 1.442695
        %v6143 = vpow.pop %v6142
        %v6144 = vmul.f32 %v5918, 1.442695
        %v6145 = vpow.pop %v6144
        %v6146 = vmul.f32 %v5919, 1.442695
        %v6147 = vpow.pop %v6146
        %v6148 = vmul.f32 %v5920, 1.442695
        %v6149 = vpow.pop %v6148
        %v6150 = vmul.f32 %v5921, 1.442695
        %v6151 = vpow.pop %v6150
        %v6152 = vmul.f32 %v5922, 1.442695
        %v6153 = vpow.pop %v6152
        %v6154 = vmul.f32 %v5923, 1.442695
        %v6155 = vpow.pop %v6154
        %v6156 = vmul.f32 %v5924, 1.442695
        %v6157 = vpow.pop %v6156
        %v6158 = vmul.f32 %v5925, 1.442695
        %v6159 = vpow.pop %v6158
        %v6160 = vmul.f32 %v5926, 1.442695
        %v6161 = vpow.pop %v6160
        %v6162 = vmul.f32 %v5927, 1.442695
        %v6163 = vpow.pop %v6162
        %v6164 = vmul.f32 %v5928, 1.442695
        %v6165 = vpow.pop %v6164
        %v6166 = vmul.f32 %v5929, 1.442695
        %v6167 = vpow.pop %v6166
        %v6168 = vmul.f32 %v5930, 1.442695
        %v6169 = vpow.pop %v6168
        %v6170 = vmul.f32 %v5931, 1.442695
        %v6171 = vpow.pop %v6170
        %v6172 = vmul.f32 %v5932, 1.442695
        %v6173 = vpow.pop %v6172
        %v6174 = vmul.f32 %v5933, 1.442695
        %v6175 = vpow.pop %v6174
        %v6176 = vmul.f32 %v5934, 1.442695
        %v6177 = vpow.pop %v6176
        %v6178 = vmul.f32 %v5935, 1.442695
        %v6179 = vpow.pop %v6178
        %v6180 = vmul.f32 %v5936, 1.442695
        %v6181 = vpow.pop %v6180
        %v6182 = vmul.f32 %v5937, 1.442695
        %v6183 = vpow.pop %v6182
        %v6184 = vmul.f32 %v5938, 1.442695
        %v6185 = vpow.pop %v6184
        %v6186 = vmul.f32 %v5939, 1.442695
        %v6187 = vpow.pop %v6186
        %v6188 = vmul.f32 %v5940, 1.442695
        %v6189 = vpow.pop %v6188
        %v6190 = vmul.f32 %v5941, 1.442695
        %v6191 = vpow.pop %v6190
        %v6192 = vmul.f32 %v5942, 1.442695
        %v6193 = vpow.pop %v6192
        %v6194 = vmul.f32 %v5943, 1.442695
        %v6195 = vpow.pop %v6194
        %v6196 = vmul.f32 %v5944, 1.442695
        %v6197 = vpow.pop %v6196
        %v6198 = vmul.f32 %v5945, 1.442695
        %v6199 = vpow.pop %v6198
        %v6200 = vmul.f32 %v5946, 1.442695
        %v6201 = vpow.pop %v6200
        %v6202 = vmul.f32 %v5947, 1.442695
        %v6203 = vpow.pop %v6202
        %v6204 = vsub.f32 %v5436, %v5564
        %v6205 = vsub.f32 %v5437, %v5565
        %v6206 = vsub.f32 %v5438, %v5566
        %v6207 = vsub.f32 %v5439, %v5567
        %v6208 = vsub.f32 %v5440, %v5568
        %v6209 = vsub.f32 %v5441, %v5569
        %v6210 = vsub.f32 %v5442, %v5570
        %v6211 = vsub.f32 %v5443, %v5571
        %v6212 = vsub.f32 %v5444, %v5572
        %v6213 = vsub.f32 %v5445, %v5573
        %v6214 = vsub.f32 %v5446, %v5574
        %v6215 = vsub.f32 %v5447, %v5575
        %v6216 = vsub.f32 %v5448, %v5576
        %v6217 = vsub.f32 %v5449, %v5577
        %v6218 = vsub.f32 %v5450, %v5578
        %v6219 = vsub.f32 %v5451, %v5579
        %v6220 = vsub.f32 %v5452, %v5580
        %v6221 = vsub.f32 %v5453, %v5581
        %v6222 = vsub.f32 %v5454, %v5582
        %v6223 = vsub.f32 %v5455, %v5583
        %v6224 = vsub.f32 %v5456, %v5584
        %v6225 = vsub.f32 %v5457, %v5585
        %v6226 = vsub.f32 %v5458, %v5586
        %v6227 = vsub.f32 %v5459, %v5587
        %v6228 = vsub.f32 %v5460, %v5588
        %v6229 = vsub.f32 %v5461, %v5589
        %v6230 = vsub.f32 %v5462, %v5590
        %v6231 = vsub.f32 %v5463, %v5591
        %v6232 = vsub.f32 %v5464, %v5592
        %v6233 = vsub.f32 %v5465, %v5593
        %v6234 = vsub.f32 %v5466, %v5594
        %v6235 = vsub.f32 %v5467, %v5595
        %v6236 = vsub.f32 %v5468, %v5596
        %v6237 = vsub.f32 %v5469, %v5597
        %v6238 = vsub.f32 %v5470, %v5598
        %v6239 = vsub.f32 %v5471, %v5599
        %v6240 = vsub.f32 %v5472, %v5600
        %v6241 = vsub.f32 %v5473, %v5601
        %v6242 = vsub.f32 %v5474, %v5602
        %v6243 = vsub.f32 %v5475, %v5603
        %v6244 = vsub.f32 %v5476, %v5604
        %v6245 = vsub.f32 %v5477, %v5605
        %v6246 = vsub.f32 %v5478, %v5606
        %v6247 = vsub.f32 %v5479, %v5607
        %v6248 = vsub.f32 %v5480, %v5608
        %v6249 = vsub.f32 %v5481, %v5609
        %v6250 = vsub.f32 %v5482, %v5610
        %v6251 = vsub.f32 %v5483, %v5611
        %v6252 = vsub.f32 %v5484, %v5612
        %v6253 = vsub.f32 %v5485, %v5613
        %v6254 = vsub.f32 %v5486, %v5614
        %v6255 = vsub.f32 %v5487, %v5615
        %v6256 = vsub.f32 %v5488, %v5616
        %v6257 = vsub.f32 %v5489, %v5617
        %v6258 = vsub.f32 %v5490, %v5618
        %v6259 = vsub.f32 %v5491, %v5619
        %v6260 = vsub.f32 %v5492, %v5620
        %v6261 = vsub.f32 %v5493, %v5621
        %v6262 = vsub.f32 %v5494, %v5622
        %v6263 = vsub.f32 %v5495, %v5623
        %v6264 = vsub.f32 %v5496, %v5624
        %v6265 = vsub.f32 %v5497, %v5625
        %v6266 = vsub.f32 %v5498, %v5626
        %v6267 = vsub.f32 %v5499, %v5627
        %v6268 = vsub.f32 %v5500, %v5628
        %v6269 = vsub.f32 %v5501, %v5629
        %v6270 = vsub.f32 %v5502, %v5630
        %v6271 = vsub.f32 %v5503, %v5631
        %v6272 = vsub.f32 %v5504, %v5632
        %v6273 = vsub.f32 %v5505, %v5633
        %v6274 = vsub.f32 %v5506, %v5634
        %v6275 = vsub.f32 %v5507, %v5635
        %v6276 = vsub.f32 %v5508, %v5636
        %v6277 = vsub.f32 %v5509, %v5637
        %v6278 = vsub.f32 %v5510, %v5638
        %v6279 = vsub.f32 %v5511, %v5639
        %v6280 = vsub.f32 %v5512, %v5640
        %v6281 = vsub.f32 %v5513, %v5641
        %v6282 = vsub.f32 %v5514, %v5642
        %v6283 = vsub.f32 %v5515, %v5643
        %v6284 = vsub.f32 %v5516, %v5644
        %v6285 = vsub.f32 %v5517, %v5645
        %v6286 = vsub.f32 %v5518, %v5646
        %v6287 = vsub.f32 %v5519, %v5647
        %v6288 = vsub.f32 %v5520, %v5648
        %v6289 = vsub.f32 %v5521, %v5649
        %v6290 = vsub.f32 %v5522, %v5650
        %v6291 = vsub.f32 %v5523, %v5651
        %v6292 = vsub.f32 %v5524, %v5652
        %v6293 = vsub.f32 %v5525, %v5653
        %v6294 = vsub.f32 %v5526, %v5654
        %v6295 = vsub.f32 %v5527, %v5655
        %v6296 = vsub.f32 %v5528, %v5656
        %v6297 = vsub.f32 %v5529, %v5657
        %v6298 = vsub.f32 %v5530, %v5658
        %v6299 = vsub.f32 %v5531, %v5659
        %v6300 = vsub.f32 %v5532, %v5660
        %v6301 = vsub.f32 %v5533, %v5661
        %v6302 = vsub.f32 %v5534, %v5662
        %v6303 = vsub.f32 %v5535, %v5663
        %v6304 = vsub.f32 %v5536, %v5664
        %v6305 = vsub.f32 %v5537, %v5665
        %v6306 = vsub.f32 %v5538, %v5666
        %v6307 = vsub.f32 %v5539, %v5667
        %v6308 = vsub.f32 %v5540, %v5668
        %v6309 = vsub.f32 %v5541, %v5669
        %v6310 = vsub.f32 %v5542, %v5670
        %v6311 = vsub.f32 %v5543, %v5671
        %v6312 = vsub.f32 %v5544, %v5672
        %v6313 = vsub.f32 %v5545, %v5673
        %v6314 = vsub.f32 %v5546, %v5674
        %v6315 = vsub.f32 %v5547, %v5675
        %v6316 = vsub.f32 %v5548, %v5676
        %v6317 = vsub.f32 %v5549, %v5677
        %v6318 = vsub.f32 %v5550, %v5678
        %v6319 = vsub.f32 %v5551, %v5679
        %v6320 = vsub.f32 %v5552, %v5680
        %v6321 = vsub.f32 %v5553, %v5681
        %v6322 = vsub.f32 %v5554, %v5682
        %v6323 = vsub.f32 %v5555, %v5683
        %v6324 = vsub.f32 %v5556, %v5684
        %v6325 = vsub.f32 %v5557, %v5685
        %v6326 = vsub.f32 %v5558, %v5686
        %v6327 = vsub.f32 %v5559, %v5687
        %v6328 = vsub.f32 %v5560, %v5688
        %v6329 = vsub.f32 %v5561, %v5689
        %v6330 = vsub.f32 %v5562, %v5690
        %v6331 = vsub.f32 %v5563, %v5691
        %v6332 = vmul.f32 %v6204, 1.442695
        %v6333 = vpow.pop %v6332
        %v6334 = vmul.f32 %v6205, 1.442695
        %v6335 = vpow.pop %v6334
        %v6336 = vmul.f32 %v6206, 1.442695
        %v6337 = vpow.pop %v6336
        %v6338 = vmul.f32 %v6207, 1.442695
        %v6339 = vpow.pop %v6338
        %v6340 = vmul.f32 %v6208, 1.442695
        %v6341 = vpow.pop %v6340
        %v6342 = vmul.f32 %v6209, 1.442695
        %v6343 = vpow.pop %v6342
        %v6344 = vmul.f32 %v6210, 1.442695
        %v6345 = vpow.pop %v6344
        %v6346 = vmul.f32 %v6211, 1.442695
        %v6347 = vpow.pop %v6346
        %v6348 = vmul.f32 %v6212, 1.442695
        %v6349 = vpow.pop %v6348
        %v6350 = vmul.f32 %v6213, 1.442695
        %v6351 = vpow.pop %v6350
        %v6352 = vmul.f32 %v6214, 1.442695
        %v6353 = vpow.pop %v6352
        %v6354 = vmul.f32 %v6215, 1.442695
        %v6355 = vpow.pop %v6354
        %v6356 = vmul.f32 %v6216, 1.442695
        %v6357 = vpow.pop %v6356
        %v6358 = vmul.f32 %v6217, 1.442695
        %v6359 = vpow.pop %v6358
        %v6360 = vmul.f32 %v6218, 1.442695
        %v6361 = vpow.pop %v6360
        %v6362 = vmul.f32 %v6219, 1.442695
        %v6363 = vpow.pop %v6362
        %v6364 = vmul.f32 %v6220, 1.442695
        %v6365 = vpow.pop %v6364
        %v6366 = vmul.f32 %v6221, 1.442695
        %v6367 = vpow.pop %v6366
        %v6368 = vmul.f32 %v6222, 1.442695
        %v6369 = vpow.pop %v6368
        %v6370 = vmul.f32 %v6223, 1.442695
        %v6371 = vpow.pop %v6370
        %v6372 = vmul.f32 %v6224, 1.442695
        %v6373 = vpow.pop %v6372
        %v6374 = vmul.f32 %v6225, 1.442695
        %v6375 = vpow.pop %v6374
        %v6376 = vmul.f32 %v6226, 1.442695
        %v6377 = vpow.pop %v6376
        %v6378 = vmul.f32 %v6227, 1.442695
        %v6379 = vpow.pop %v6378
        %v6380 = vmul.f32 %v6228, 1.442695
        %v6381 = vpow.pop %v6380
        %v6382 = vmul.f32 %v6229, 1.442695
        %v6383 = vpow.pop %v6382
        %v6384 = vmul.f32 %v6230, 1.442695
        %v6385 = vpow.pop %v6384
        %v6386 = vmul.f32 %v6231, 1.442695
        %v6387 = vpow.pop %v6386
        %v6388 = vmul.f32 %v6232, 1.442695
        %v6389 = vpow.pop %v6388
        %v6390 = vmul.f32 %v6233, 1.442695
        %v6391 = vpow.pop %v6390
        %v6392 = vmul.f32 %v6234, 1.442695
        %v6393 = vpow.pop %v6392
        %v6394 = vmul.f32 %v6235, 1.442695
        %v6395 = vpow.pop %v6394
        %v6396 = vmul.f32 %v6236, 1.442695
        %v6397 = vpow.pop %v6396
        %v6398 = vmul.f32 %v6237, 1.442695
        %v6399 = vpow.pop %v6398
        %v6400 = vmul.f32 %v6238, 1.442695
        %v6401 = vpow.pop %v6400
        %v6402 = vmul.f32 %v6239, 1.442695
        %v6403 = vpow.pop %v6402
        %v6404 = vmul.f32 %v6240, 1.442695
        %v6405 = vpow.pop %v6404
        %v6406 = vmul.f32 %v6241, 1.442695
        %v6407 = vpow.pop %v6406
        %v6408 = vmul.f32 %v6242, 1.442695
        %v6409 = vpow.pop %v6408
        %v6410 = vmul.f32 %v6243, 1.442695
        %v6411 = vpow.pop %v6410
        %v6412 = vmul.f32 %v6244, 1.442695
        %v6413 = vpow.pop %v6412
        %v6414 = vmul.f32 %v6245, 1.442695
        %v6415 = vpow.pop %v6414
        %v6416 = vmul.f32 %v6246, 1.442695
        %v6417 = vpow.pop %v6416
        %v6418 = vmul.f32 %v6247, 1.442695
        %v6419 = vpow.pop %v6418
        %v6420 = vmul.f32 %v6248, 1.442695
        %v6421 = vpow.pop %v6420
        %v6422 = vmul.f32 %v6249, 1.442695
        %v6423 = vpow.pop %v6422
        %v6424 = vmul.f32 %v6250, 1.442695
        %v6425 = vpow.pop %v6424
        %v6426 = vmul.f32 %v6251, 1.442695
        %v6427 = vpow.pop %v6426
        %v6428 = vmul.f32 %v6252, 1.442695
        %v6429 = vpow.pop %v6428
        %v6430 = vmul.f32 %v6253, 1.442695
        %v6431 = vpow.pop %v6430
        %v6432 = vmul.f32 %v6254, 1.442695
        %v6433 = vpow.pop %v6432
        %v6434 = vmul.f32 %v6255, 1.442695
        %v6435 = vpow.pop %v6434
        %v6436 = vmul.f32 %v6256, 1.442695
        %v6437 = vpow.pop %v6436
        %v6438 = vmul.f32 %v6257, 1.442695
        %v6439 = vpow.pop %v6438
        %v6440 = vmul.f32 %v6258, 1.442695
        %v6441 = vpow.pop %v6440
        %v6442 = vmul.f32 %v6259, 1.442695
        %v6443 = vpow.pop %v6442
        %v6444 = vmul.f32 %v6260, 1.442695
        %v6445 = vpow.pop %v6444
        %v6446 = vmul.f32 %v6261, 1.442695
        %v6447 = vpow.pop %v6446
        %v6448 = vmul.f32 %v6262, 1.442695
        %v6449 = vpow.pop %v6448
        %v6450 = vmul.f32 %v6263, 1.442695
        %v6451 = vpow.pop %v6450
        %v6452 = vmul.f32 %v6264, 1.442695
        %v6453 = vpow.pop %v6452
        %v6454 = vmul.f32 %v6265, 1.442695
        %v6455 = vpow.pop %v6454
        %v6456 = vmul.f32 %v6266, 1.442695
        %v6457 = vpow.pop %v6456
        %v6458 = vmul.f32 %v6267, 1.442695
        %v6459 = vpow.pop %v6458
        %v6460 = vmul.f32 %v6268, 1.442695
        %v6461 = vpow.pop %v6460
        %v6462 = vmul.f32 %v6269, 1.442695
        %v6463 = vpow.pop %v6462
        %v6464 = vmul.f32 %v6270, 1.442695
        %v6465 = vpow.pop %v6464
        %v6466 = vmul.f32 %v6271, 1.442695
        %v6467 = vpow.pop %v6466
        %v6468 = vmul.f32 %v6272, 1.442695
        %v6469 = vpow.pop %v6468
        %v6470 = vmul.f32 %v6273, 1.442695
        %v6471 = vpow.pop %v6470
        %v6472 = vmul.f32 %v6274, 1.442695
        %v6473 = vpow.pop %v6472
        %v6474 = vmul.f32 %v6275, 1.442695
        %v6475 = vpow.pop %v6474
        %v6476 = vmul.f32 %v6276, 1.442695
        %v6477 = vpow.pop %v6476
        %v6478 = vmul.f32 %v6277, 1.442695
        %v6479 = vpow.pop %v6478
        %v6480 = vmul.f32 %v6278, 1.442695
        %v6481 = vpow.pop %v6480
        %v6482 = vmul.f32 %v6279, 1.442695
        %v6483 = vpow.pop %v6482
        %v6484 = vmul.f32 %v6280, 1.442695
        %v6485 = vpow.pop %v6484
        %v6486 = vmul.f32 %v6281, 1.442695
        %v6487 = vpow.pop %v6486
        %v6488 = vmul.f32 %v6282, 1.442695
        %v6489 = vpow.pop %v6488
        %v6490 = vmul.f32 %v6283, 1.442695
        %v6491 = vpow.pop %v6490
        %v6492 = vmul.f32 %v6284, 1.442695
        %v6493 = vpow.pop %v6492
        %v6494 = vmul.f32 %v6285, 1.442695
        %v6495 = vpow.pop %v6494
        %v6496 = vmul.f32 %v6286, 1.442695
        %v6497 = vpow.pop %v6496
        %v6498 = vmul.f32 %v6287, 1.442695
        %v6499 = vpow.pop %v6498
        %v6500 = vmul.f32 %v6288, 1.442695
        %v6501 = vpow.pop %v6500
        %v6502 = vmul.f32 %v6289, 1.442695
        %v6503 = vpow.pop %v6502
        %v6504 = vmul.f32 %v6290, 1.442695
        %v6505 = vpow.pop %v6504
        %v6506 = vmul.f32 %v6291, 1.442695
        %v6507 = vpow.pop %v6506
        %v6508 = vmul.f32 %v6292, 1.442695
        %v6509 = vpow.pop %v6508
        %v6510 = vmul.f32 %v6293, 1.442695
        %v6511 = vpow.pop %v6510
        %v6512 = vmul.f32 %v6294, 1.442695
        %v6513 = vpow.pop %v6512
        %v6514 = vmul.f32 %v6295, 1.442695
        %v6515 = vpow.pop %v6514
        %v6516 = vmul.f32 %v6296, 1.442695
        %v6517 = vpow.pop %v6516
        %v6518 = vmul.f32 %v6297, 1.442695
        %v6519 = vpow.pop %v6518
        %v6520 = vmul.f32 %v6298, 1.442695
        %v6521 = vpow.pop %v6520
        %v6522 = vmul.f32 %v6299, 1.442695
        %v6523 = vpow.pop %v6522
        %v6524 = vmul.f32 %v6300, 1.442695
        %v6525 = vpow.pop %v6524
        %v6526 = vmul.f32 %v6301, 1.442695
        %v6527 = vpow.pop %v6526
        %v6528 = vmul.f32 %v6302, 1.442695
        %v6529 = vpow.pop %v6528
        %v6530 = vmul.f32 %v6303, 1.442695
        %v6531 = vpow.pop %v6530
        %v6532 = vmul.f32 %v6304, 1.442695
        %v6533 = vpow.pop %v6532
        %v6534 = vmul.f32 %v6305, 1.442695
        %v6535 = vpow.pop %v6534
        %v6536 = vmul.f32 %v6306, 1.442695
        %v6537 = vpow.pop %v6536
        %v6538 = vmul.f32 %v6307, 1.442695
        %v6539 = vpow.pop %v6538
        %v6540 = vmul.f32 %v6308, 1.442695
        %v6541 = vpow.pop %v6540
        %v6542 = vmul.f32 %v6309, 1.442695
        %v6543 = vpow.pop %v6542
        %v6544 = vmul.f32 %v6310, 1.442695
        %v6545 = vpow.pop %v6544
        %v6546 = vmul.f32 %v6311, 1.442695
        %v6547 = vpow.pop %v6546
        %v6548 = vmul.f32 %v6312, 1.442695
        %v6549 = vpow.pop %v6548
        %v6550 = vmul.f32 %v6313, 1.442695
        %v6551 = vpow.pop %v6550
        %v6552 = vmul.f32 %v6314, 1.442695
        %v6553 = vpow.pop %v6552
        %v6554 = vmul.f32 %v6315, 1.442695
        %v6555 = vpow.pop %v6554
        %v6556 = vmul.f32 %v6316, 1.442695
        %v6557 = vpow.pop %v6556
        %v6558 = vmul.f32 %v6317, 1.442695
        %v6559 = vpow.pop %v6558
        %v6560 = vmul.f32 %v6318, 1.442695
        %v6561 = vpow.pop %v6560
        %v6562 = vmul.f32 %v6319, 1.442695
        %v6563 = vpow.pop %v6562
        %v6564 = vmul.f32 %v6320, 1.442695
        %v6565 = vpow.pop %v6564
        %v6566 = vmul.f32 %v6321, 1.442695
        %v6567 = vpow.pop %v6566
        %v6568 = vmul.f32 %v6322, 1.442695
        %v6569 = vpow.pop %v6568
        %v6570 = vmul.f32 %v6323, 1.442695
        %v6571 = vpow.pop %v6570
        %v6572 = vmul.f32 %v6324, 1.442695
        %v6573 = vpow.pop %v6572
        %v6574 = vmul.f32 %v6325, 1.442695
        %v6575 = vpow.pop %v6574
        %v6576 = vmul.f32 %v6326, 1.442695
        %v6577 = vpow.pop %v6576
        %v6578 = vmul.f32 %v6327, 1.442695
        %v6579 = vpow.pop %v6578
        %v6580 = vmul.f32 %v6328, 1.442695
        %v6581 = vpow.pop %v6580
        %v6582 = vmul.f32 %v6329, 1.442695
        %v6583 = vpow.pop %v6582
        %v6584 = vmul.f32 %v6330, 1.442695
        %v6585 = vpow.pop %v6584
        %v6586 = vmul.f32 %v6331, 1.442695
        %v6587 = vpow.pop %v6586
        %v6588 = vld [vmem:[%s496] sm:$0xff]
        %v6589 = vld [vmem:[%s496 + $0x8] sm:$0xff]
        %v6590 = vld [vmem:[%s496 + $0x10] sm:$0xff]
        %v6591 = vld [vmem:[%s496 + $0x18] sm:$0xff]
        %v6592 = vld [vmem:[%s496 + $0x20] sm:$0xff]
        %v6593 = vld [vmem:[%s496 + $0x28] sm:$0xff]
        %v6594 = vld [vmem:[%s496 + $0x30] sm:$0xff]
        %v6595 = vld [vmem:[%s496 + $0x38] sm:$0xff]
        %v6596 = vld [vmem:[%s496 + $0x40] sm:$0xff]
        %v6597 = vld [vmem:[%s496 + $0x48] sm:$0xff]
        %v6598 = vld [vmem:[%s496 + $0x50] sm:$0xff]
        %v6599 = vld [vmem:[%s496 + $0x58] sm:$0xff]
        %v6600 = vld [vmem:[%s496 + $0x60] sm:$0xff]
        %v6601 = vld [vmem:[%s496 + $0x68] sm:$0xff]
        %v6602 = vld [vmem:[%s496 + $0x70] sm:$0xff]
        %v6603 = vld [vmem:[%s496 + $0x78] sm:$0xff]
        %v6604 = vld [vmem:[%s496 + $0x80] sm:$0xff]
        %v6605 = vld [vmem:[%s496 + $0x88] sm:$0xff]
        %v6606 = vld [vmem:[%s496 + $0x90] sm:$0xff]
        %v6607 = vld [vmem:[%s496 + $0x98] sm:$0xff]
        %v6608 = vld [vmem:[%s496 + $0xa0] sm:$0xff]
        %v6609 = vld [vmem:[%s496 + $0xa8] sm:$0xff]
        %v6610 = vld [vmem:[%s496 + $0xb0] sm:$0xff]
        %v6611 = vld [vmem:[%s496 + $0xb8] sm:$0xff]
        %v6612 = vld [vmem:[%s496 + $0xc0] sm:$0xff]
        %v6613 = vld [vmem:[%s496 + $0xc8] sm:$0xff]
        %v6614 = vld [vmem:[%s496 + $0xd0] sm:$0xff]
        %v6615 = vld [vmem:[%s496 + $0xd8] sm:$0xff]
        %v6616 = vld [vmem:[%s496 + $0xe0] sm:$0xff]
        %v6617 = vld [vmem:[%s496 + $0xe8] sm:$0xff]
        %v6618 = vld [vmem:[%s496 + $0xf0] sm:$0xff]
        %v6619 = vld [vmem:[%s496 + $0xf8] sm:$0xff]
        %v6620 = vld [vmem:[%s496 + $0x100] sm:$0xff]
        %v6621 = vld [vmem:[%s496 + $0x108] sm:$0xff]
        %v6622 = vld [vmem:[%s496 + $0x110] sm:$0xff]
        %v6623 = vld [vmem:[%s496 + $0x118] sm:$0xff]
        %v6624 = vld [vmem:[%s496 + $0x120] sm:$0xff]
        %v6625 = vld [vmem:[%s496 + $0x128] sm:$0xff]
        %v6626 = vld [vmem:[%s496 + $0x130] sm:$0xff]
        %v6627 = vld [vmem:[%s496 + $0x138] sm:$0xff]
        %v6628 = vld [vmem:[%s496 + $0x140] sm:$0xff]
        %v6629 = vld [vmem:[%s496 + $0x148] sm:$0xff]
        %v6630 = vld [vmem:[%s496 + $0x150] sm:$0xff]
        %v6631 = vld [vmem:[%s496 + $0x158] sm:$0xff]
        %v6632 = vld [vmem:[%s496 + $0x160] sm:$0xff]
        %v6633 = vld [vmem:[%s496 + $0x168] sm:$0xff]
        %v6634 = vld [vmem:[%s496 + $0x170] sm:$0xff]
        %v6635 = vld [vmem:[%s496 + $0x178] sm:$0xff]
        %v6636 = vld [vmem:[%s496 + $0x180] sm:$0xff]
        %v6637 = vld [vmem:[%s496 + $0x188] sm:$0xff]
        %v6638 = vld [vmem:[%s496 + $0x190] sm:$0xff]
        %v6639 = vld [vmem:[%s496 + $0x198] sm:$0xff]
        %v6640 = vld [vmem:[%s496 + $0x1a0] sm:$0xff]
        %v6641 = vld [vmem:[%s496 + $0x1a8] sm:$0xff]
        %v6642 = vld [vmem:[%s496 + $0x1b0] sm:$0xff]
        %v6643 = vld [vmem:[%s496 + $0x1b8] sm:$0xff]
        %v6644 = vld [vmem:[%s496 + $0x1c0] sm:$0xff]
        %v6645 = vld [vmem:[%s496 + $0x1c8] sm:$0xff]
        %v6646 = vld [vmem:[%s496 + $0x1d0] sm:$0xff]
        %v6647 = vld [vmem:[%s496 + $0x1d8] sm:$0xff]
        %v6648 = vld [vmem:[%s496 + $0x1e0] sm:$0xff]
        %v6649 = vld [vmem:[%s496 + $0x1e8] sm:$0xff]
        %v6650 = vld [vmem:[%s496 + $0x1f0] sm:$0xff]
        %v6651 = vld [vmem:[%s496 + $0x1f8] sm:$0xff]
        %v6652 = vld [vmem:[%s496 + $0x200] sm:$0xff]
        %v6653 = vld [vmem:[%s496 + $0x208] sm:$0xff]
        %v6654 = vld [vmem:[%s496 + $0x210] sm:$0xff]
        %v6655 = vld [vmem:[%s496 + $0x218] sm:$0xff]
        %v6656 = vld [vmem:[%s496 + $0x220] sm:$0xff]
        %v6657 = vld [vmem:[%s496 + $0x228] sm:$0xff]
        %v6658 = vld [vmem:[%s496 + $0x230] sm:$0xff]
        %v6659 = vld [vmem:[%s496 + $0x238] sm:$0xff]
        %v6660 = vld [vmem:[%s496 + $0x240] sm:$0xff]
        %v6661 = vld [vmem:[%s496 + $0x248] sm:$0xff]
        %v6662 = vld [vmem:[%s496 + $0x250] sm:$0xff]
        %v6663 = vld [vmem:[%s496 + $0x258] sm:$0xff]
        %v6664 = vld [vmem:[%s496 + $0x260] sm:$0xff]
        %v6665 = vld [vmem:[%s496 + $0x268] sm:$0xff]
        %v6666 = vld [vmem:[%s496 + $0x270] sm:$0xff]
        %v6667 = vld [vmem:[%s496 + $0x278] sm:$0xff]
        %v6668 = vld [vmem:[%s496 + $0x280] sm:$0xff]
        %v6669 = vld [vmem:[%s496 + $0x288] sm:$0xff]
        %v6670 = vld [vmem:[%s496 + $0x290] sm:$0xff]
        %v6671 = vld [vmem:[%s496 + $0x298] sm:$0xff]
        %v6672 = vld [vmem:[%s496 + $0x2a0] sm:$0xff]
        %v6673 = vld [vmem:[%s496 + $0x2a8] sm:$0xff]
        %v6674 = vld [vmem:[%s496 + $0x2b0] sm:$0xff]
        %v6675 = vld [vmem:[%s496 + $0x2b8] sm:$0xff]
        %v6676 = vld [vmem:[%s496 + $0x2c0] sm:$0xff]
        %v6677 = vld [vmem:[%s496 + $0x2c8] sm:$0xff]
        %v6678 = vld [vmem:[%s496 + $0x2d0] sm:$0xff]
        %v6679 = vld [vmem:[%s496 + $0x2d8] sm:$0xff]
        %v6680 = vld [vmem:[%s496 + $0x2e0] sm:$0xff]
        %v6681 = vld [vmem:[%s496 + $0x2e8] sm:$0xff]
        %v6682 = vld [vmem:[%s496 + $0x2f0] sm:$0xff]
        %v6683 = vld [vmem:[%s496 + $0x2f8] sm:$0xff]
        %v6684 = vld [vmem:[%s496 + $0x300] sm:$0xff]
        %v6685 = vld [vmem:[%s496 + $0x308] sm:$0xff]
        %v6686 = vld [vmem:[%s496 + $0x310] sm:$0xff]
        %v6687 = vld [vmem:[%s496 + $0x318] sm:$0xff]
        %v6688 = vld [vmem:[%s496 + $0x320] sm:$0xff]
        %v6689 = vld [vmem:[%s496 + $0x328] sm:$0xff]
        %v6690 = vld [vmem:[%s496 + $0x330] sm:$0xff]
        %v6691 = vld [vmem:[%s496 + $0x338] sm:$0xff]
        %v6692 = vld [vmem:[%s496 + $0x340] sm:$0xff]
        %v6693 = vld [vmem:[%s496 + $0x348] sm:$0xff]
        %v6694 = vld [vmem:[%s496 + $0x350] sm:$0xff]
        %v6695 = vld [vmem:[%s496 + $0x358] sm:$0xff]
        %v6696 = vld [vmem:[%s496 + $0x360] sm:$0xff]
        %v6697 = vld [vmem:[%s496 + $0x368] sm:$0xff]
        %v6698 = vld [vmem:[%s496 + $0x370] sm:$0xff]
        %v6699 = vld [vmem:[%s496 + $0x378] sm:$0xff]
        %v6700 = vld [vmem:[%s496 + $0x380] sm:$0xff]
        %v6701 = vld [vmem:[%s496 + $0x388] sm:$0xff]
        %v6702 = vld [vmem:[%s496 + $0x390] sm:$0xff]
        %v6703 = vld [vmem:[%s496 + $0x398] sm:$0xff]
        %v6704 = vld [vmem:[%s496 + $0x3a0] sm:$0xff]
        %v6705 = vld [vmem:[%s496 + $0x3a8] sm:$0xff]
        %v6706 = vld [vmem:[%s496 + $0x3b0] sm:$0xff]
        %v6707 = vld [vmem:[%s496 + $0x3b8] sm:$0xff]
        %v6708 = vld [vmem:[%s496 + $0x3c0] sm:$0xff]
        %v6709 = vld [vmem:[%s496 + $0x3c8] sm:$0xff]
        %v6710 = vld [vmem:[%s496 + $0x3d0] sm:$0xff]
        %v6711 = vld [vmem:[%s496 + $0x3d8] sm:$0xff]
        %v6712 = vld [vmem:[%s496 + $0x3e0] sm:$0xff]
        %v6713 = vld [vmem:[%s496 + $0x3e8] sm:$0xff]
        %v6714 = vld [vmem:[%s496 + $0x3f0] sm:$0xff]
        %v6715 = vld [vmem:[%s496 + $0x3f8] sm:$0xff]
        %v6716 = vmul.f32 %v6333, %v6588
        %v6717 = vmul.f32 %v6335, %v6589
        %v6718 = vmul.f32 %v6337, %v6590
        %v6719 = vmul.f32 %v6339, %v6591
        %v6720 = vmul.f32 %v6341, %v6592
        %v6721 = vmul.f32 %v6343, %v6593
        %v6722 = vmul.f32 %v6345, %v6594
        %v6723 = vmul.f32 %v6347, %v6595
        %v6724 = vmul.f32 %v6349, %v6596
        %v6725 = vmul.f32 %v6351, %v6597
        %v6726 = vmul.f32 %v6353, %v6598
        %v6727 = vmul.f32 %v6355, %v6599
        %v6728 = vmul.f32 %v6357, %v6600
        %v6729 = vmul.f32 %v6359, %v6601
        %v6730 = vmul.f32 %v6361, %v6602
        %v6731 = vmul.f32 %v6363, %v6603
        %v6732 = vmul.f32 %v6365, %v6604
        %v6733 = vmul.f32 %v6367, %v6605
        %v6734 = vmul.f32 %v6369, %v6606
        %v6735 = vmul.f32 %v6371, %v6607
        %v6736 = vmul.f32 %v6373, %v6608
        %v6737 = vmul.f32 %v6375, %v6609
        %v6738 = vmul.f32 %v6377, %v6610
        %v6739 = vmul.f32 %v6379, %v6611
        %v6740 = vmul.f32 %v6381, %v6612
        %v6741 = vmul.f32 %v6383, %v6613
        %v6742 = vmul.f32 %v6385, %v6614
        %v6743 = vmul.f32 %v6387, %v6615
        %v6744 = vmul.f32 %v6389, %v6616
        %v6745 = vmul.f32 %v6391, %v6617
        %v6746 = vmul.f32 %v6393, %v6618
        %v6747 = vmul.f32 %v6395, %v6619
        %v6748 = vmul.f32 %v6397, %v6620
        %v6749 = vmul.f32 %v6399, %v6621
        %v6750 = vmul.f32 %v6401, %v6622
        %v6751 = vmul.f32 %v6403, %v6623
        %v6752 = vmul.f32 %v6405, %v6624
        %v6753 = vmul.f32 %v6407, %v6625
        %v6754 = vmul.f32 %v6409, %v6626
        %v6755 = vmul.f32 %v6411, %v6627
        %v6756 = vmul.f32 %v6413, %v6628
        %v6757 = vmul.f32 %v6415, %v6629
        %v6758 = vmul.f32 %v6417, %v6630
        %v6759 = vmul.f32 %v6419, %v6631
        %v6760 = vmul.f32 %v6421, %v6632
        %v6761 = vmul.f32 %v6423, %v6633
        %v6762 = vmul.f32 %v6425, %v6634
        %v6763 = vmul.f32 %v6427, %v6635
        %v6764 = vmul.f32 %v6429, %v6636
        %v6765 = vmul.f32 %v6431, %v6637
        %v6766 = vmul.f32 %v6433, %v6638
        %v6767 = vmul.f32 %v6435, %v6639
        %v6768 = vmul.f32 %v6437, %v6640
        %v6769 = vmul.f32 %v6439, %v6641
        %v6770 = vmul.f32 %v6441, %v6642
        %v6771 = vmul.f32 %v6443, %v6643
        %v6772 = vmul.f32 %v6445, %v6644
        %v6773 = vmul.f32 %v6447, %v6645
        %v6774 = vmul.f32 %v6449, %v6646
        %v6775 = vmul.f32 %v6451, %v6647
        %v6776 = vmul.f32 %v6453, %v6648
        %v6777 = vmul.f32 %v6455, %v6649
        %v6778 = vmul.f32 %v6457, %v6650
        %v6779 = vmul.f32 %v6459, %v6651
        %v6780 = vmul.f32 %v6461, %v6652
        %v6781 = vmul.f32 %v6463, %v6653
        %v6782 = vmul.f32 %v6465, %v6654
        %v6783 = vmul.f32 %v6467, %v6655
        %v6784 = vmul.f32 %v6469, %v6656
        %v6785 = vmul.f32 %v6471, %v6657
        %v6786 = vmul.f32 %v6473, %v6658
        %v6787 = vmul.f32 %v6475, %v6659
        %v6788 = vmul.f32 %v6477, %v6660
        %v6789 = vmul.f32 %v6479, %v6661
        %v6790 = vmul.f32 %v6481, %v6662
        %v6791 = vmul.f32 %v6483, %v6663
        %v6792 = vmul.f32 %v6485, %v6664
        %v6793 = vmul.f32 %v6487, %v6665
        %v6794 = vmul.f32 %v6489, %v6666
        %v6795 = vmul.f32 %v6491, %v6667
        %v6796 = vmul.f32 %v6493, %v6668
        %v6797 = vmul.f32 %v6495, %v6669
        %v6798 = vmul.f32 %v6497, %v6670
        %v6799 = vmul.f32 %v6499, %v6671
        %v6800 = vmul.f32 %v6501, %v6672
        %v6801 = vmul.f32 %v6503, %v6673
        %v6802 = vmul.f32 %v6505, %v6674
        %v6803 = vmul.f32 %v6507, %v6675
        %v6804 = vmul.f32 %v6509, %v6676
        %v6805 = vmul.f32 %v6511, %v6677
        %v6806 = vmul.f32 %v6513, %v6678
        %v6807 = vmul.f32 %v6515, %v6679
        %v6808 = vmul.f32 %v6517, %v6680
        %v6809 = vmul.f32 %v6519, %v6681
        %v6810 = vmul.f32 %v6521, %v6682
        %v6811 = vmul.f32 %v6523, %v6683
        %v6812 = vmul.f32 %v6525, %v6684
        %v6813 = vmul.f32 %v6527, %v6685
        %v6814 = vmul.f32 %v6529, %v6686
        %v6815 = vmul.f32 %v6531, %v6687
        %v6816 = vmul.f32 %v6533, %v6688
        %v6817 = vmul.f32 %v6535, %v6689
        %v6818 = vmul.f32 %v6537, %v6690
        %v6819 = vmul.f32 %v6539, %v6691
        %v6820 = vmul.f32 %v6541, %v6692
        %v6821 = vmul.f32 %v6543, %v6693
        %v6822 = vmul.f32 %v6545, %v6694
        %v6823 = vmul.f32 %v6547, %v6695
        %v6824 = vmul.f32 %v6549, %v6696
        %v6825 = vmul.f32 %v6551, %v6697
        %v6826 = vmul.f32 %v6553, %v6698
        %v6827 = vmul.f32 %v6555, %v6699
        %v6828 = vmul.f32 %v6557, %v6700
        %v6829 = vmul.f32 %v6559, %v6701
        %v6830 = vmul.f32 %v6561, %v6702
        %v6831 = vmul.f32 %v6563, %v6703
        %v6832 = vmul.f32 %v6565, %v6704
        %v6833 = vmul.f32 %v6567, %v6705
        %v6834 = vmul.f32 %v6569, %v6706
        %v6835 = vmul.f32 %v6571, %v6707
        %v6836 = vmul.f32 %v6573, %v6708
        %v6837 = vmul.f32 %v6575, %v6709
        %v6838 = vmul.f32 %v6577, %v6710
        %v6839 = vmul.f32 %v6579, %v6711
        %v6840 = vmul.f32 %v6581, %v6712
        %v6841 = vmul.f32 %v6583, %v6713
        %v6842 = vmul.f32 %v6585, %v6714
        %v6843 = vmul.f32 %v6587, %v6715
        %v6844 = vadd.f32 %v6716, %v5949
        %v6845 = vadd.f32 %v6717, %v5951
        %v6846 = vadd.f32 %v6718, %v5953
        %v6847 = vadd.f32 %v6719, %v5955
        %v6848 = vadd.f32 %v6720, %v5957
        %v6849 = vadd.f32 %v6721, %v5959
        %v6850 = vadd.f32 %v6722, %v5961
        %v6851 = vadd.f32 %v6723, %v5963
        %v6852 = vadd.f32 %v6724, %v5965
        %v6853 = vadd.f32 %v6725, %v5967
        %v6854 = vadd.f32 %v6726, %v5969
        %v6855 = vadd.f32 %v6727, %v5971
        %v6856 = vadd.f32 %v6728, %v5973
        %v6857 = vadd.f32 %v6729, %v5975
        %v6858 = vadd.f32 %v6730, %v5977
        %v6859 = vadd.f32 %v6731, %v5979
        %v6860 = vadd.f32 %v6732, %v5981
        %v6861 = vadd.f32 %v6733, %v5983
        %v6862 = vadd.f32 %v6734, %v5985
        %v6863 = vadd.f32 %v6735, %v5987
        %v6864 = vadd.f32 %v6736, %v5989
        %v6865 = vadd.f32 %v6737, %v5991
        %v6866 = vadd.f32 %v6738, %v5993
        %v6867 = vadd.f32 %v6739, %v5995
        %v6868 = vadd.f32 %v6740, %v5997
        %v6869 = vadd.f32 %v6741, %v5999
        %v6870 = vadd.f32 %v6742, %v6001
        %v6871 = vadd.f32 %v6743, %v6003
        %v6872 = vadd.f32 %v6744, %v6005
        %v6873 = vadd.f32 %v6745, %v6007
        %v6874 = vadd.f32 %v6746, %v6009
        %v6875 = vadd.f32 %v6747, %v6011
        %v6876 = vadd.f32 %v6748, %v6013
        %v6877 = vadd.f32 %v6749, %v6015
        %v6878 = vadd.f32 %v6750, %v6017
        %v6879 = vadd.f32 %v6751, %v6019
        %v6880 = vadd.f32 %v6752, %v6021
        %v6881 = vadd.f32 %v6753, %v6023
        %v6882 = vadd.f32 %v6754, %v6025
        %v6883 = vadd.f32 %v6755, %v6027
        %v6884 = vadd.f32 %v6756, %v6029
        %v6885 = vadd.f32 %v6757, %v6031
        %v6886 = vadd.f32 %v6758, %v6033
        %v6887 = vadd.f32 %v6759, %v6035
        %v6888 = vadd.f32 %v6760, %v6037
        %v6889 = vadd.f32 %v6761, %v6039
        %v6890 = vadd.f32 %v6762, %v6041
        %v6891 = vadd.f32 %v6763, %v6043
        %v6892 = vadd.f32 %v6764, %v6045
        %v6893 = vadd.f32 %v6765, %v6047
        %v6894 = vadd.f32 %v6766, %v6049
        %v6895 = vadd.f32 %v6767, %v6051
        %v6896 = vadd.f32 %v6768, %v6053
        %v6897 = vadd.f32 %v6769, %v6055
        %v6898 = vadd.f32 %v6770, %v6057
        %v6899 = vadd.f32 %v6771, %v6059
        %v6900 = vadd.f32 %v6772, %v6061
        %v6901 = vadd.f32 %v6773, %v6063
        %v6902 = vadd.f32 %v6774, %v6065
        %v6903 = vadd.f32 %v6775, %v6067
        %v6904 = vadd.f32 %v6776, %v6069
        %v6905 = vadd.f32 %v6777, %v6071
        %v6906 = vadd.f32 %v6778, %v6073
        %v6907 = vadd.f32 %v6779, %v6075
        %v6908 = vadd.f32 %v6780, %v6077
        %v6909 = vadd.f32 %v6781, %v6079
        %v6910 = vadd.f32 %v6782, %v6081
        %v6911 = vadd.f32 %v6783, %v6083
        %v6912 = vadd.f32 %v6784, %v6085
        %v6913 = vadd.f32 %v6785, %v6087
        %v6914 = vadd.f32 %v6786, %v6089
        %v6915 = vadd.f32 %v6787, %v6091
        %v6916 = vadd.f32 %v6788, %v6093
        %v6917 = vadd.f32 %v6789, %v6095
        %v6918 = vadd.f32 %v6790, %v6097
        %v6919 = vadd.f32 %v6791, %v6099
        %v6920 = vadd.f32 %v6792, %v6101
        %v6921 = vadd.f32 %v6793, %v6103
        %v6922 = vadd.f32 %v6794, %v6105
        %v6923 = vadd.f32 %v6795, %v6107
        %v6924 = vadd.f32 %v6796, %v6109
        %v6925 = vadd.f32 %v6797, %v6111
        %v6926 = vadd.f32 %v6798, %v6113
        %v6927 = vadd.f32 %v6799, %v6115
        %v6928 = vadd.f32 %v6800, %v6117
        %v6929 = vadd.f32 %v6801, %v6119
        %v6930 = vadd.f32 %v6802, %v6121
        %v6931 = vadd.f32 %v6803, %v6123
        %v6932 = vadd.f32 %v6804, %v6125
        %v6933 = vadd.f32 %v6805, %v6127
        %v6934 = vadd.f32 %v6806, %v6129
        %v6935 = vadd.f32 %v6807, %v6131
        %v6936 = vadd.f32 %v6808, %v6133
        %v6937 = vadd.f32 %v6809, %v6135
        %v6938 = vadd.f32 %v6810, %v6137
        %v6939 = vadd.f32 %v6811, %v6139
        %v6940 = vadd.f32 %v6812, %v6141
        %v6941 = vadd.f32 %v6813, %v6143
        %v6942 = vadd.f32 %v6814, %v6145
        %v6943 = vadd.f32 %v6815, %v6147
        %v6944 = vadd.f32 %v6816, %v6149
        %v6945 = vadd.f32 %v6817, %v6151
        %v6946 = vadd.f32 %v6818, %v6153
        %v6947 = vadd.f32 %v6819, %v6155
        %v6948 = vadd.f32 %v6820, %v6157
        %v6949 = vadd.f32 %v6821, %v6159
        %v6950 = vadd.f32 %v6822, %v6161
        %v6951 = vadd.f32 %v6823, %v6163
        %v6952 = vadd.f32 %v6824, %v6165
        %v6953 = vadd.f32 %v6825, %v6167
        %v6954 = vadd.f32 %v6826, %v6169
        %v6955 = vadd.f32 %v6827, %v6171
        %v6956 = vadd.f32 %v6828, %v6173
        %v6957 = vadd.f32 %v6829, %v6175
        %v6958 = vadd.f32 %v6830, %v6177
        %v6959 = vadd.f32 %v6831, %v6179
        %v6960 = vadd.f32 %v6832, %v6181
        %v6961 = vadd.f32 %v6833, %v6183
        %v6962 = vadd.f32 %v6834, %v6185
        %v6963 = vadd.f32 %v6835, %v6187
        %v6964 = vadd.f32 %v6836, %v6189
        %v6965 = vadd.f32 %v6837, %v6191
        %v6966 = vadd.f32 %v6838, %v6193
        %v6967 = vadd.f32 %v6839, %v6195
        %v6968 = vadd.f32 %v6840, %v6197
        %v6969 = vadd.f32 %v6841, %v6199
        %v6970 = vadd.f32 %v6842, %v6201
        %v6971 = vadd.f32 %v6843, %v6203
        %6972 = vst [vmem:[%s569] sm:$0xff] %v6844
        %6973 = vst [vmem:[%s569 + $0x8] sm:$0xff] %v6845
        %6974 = vst [vmem:[%s569 + $0x10] sm:$0xff] %v6846
        %6975 = vst [vmem:[%s569 + $0x18] sm:$0xff] %v6847
        %6976 = vst [vmem:[%s569 + $0x20] sm:$0xff] %v6848
        %6977 = vst [vmem:[%s569 + $0x28] sm:$0xff] %v6849
        %6978 = vst [vmem:[%s569 + $0x30] sm:$0xff] %v6850
        %6979 = vst [vmem:[%s569 + $0x38] sm:$0xff] %v6851
        %6980 = vst [vmem:[%s569 + $0x40] sm:$0xff] %v6852
        %6981 = vst [vmem:[%s569 + $0x48] sm:$0xff] %v6853
        %6982 = vst [vmem:[%s569 + $0x50] sm:$0xff] %v6854
        %6983 = vst [vmem:[%s569 + $0x58] sm:$0xff] %v6855
        %6984 = vst [vmem:[%s569 + $0x60] sm:$0xff] %v6856
        %6985 = vst [vmem:[%s569 + $0x68] sm:$0xff] %v6857
        %6986 = vst [vmem:[%s569 + $0x70] sm:$0xff] %v6858
        %6987 = vst [vmem:[%s569 + $0x78] sm:$0xff] %v6859
        %6988 = vst [vmem:[%s569 + $0x80] sm:$0xff] %v6860
        %6989 = vst [vmem:[%s569 + $0x88] sm:$0xff] %v6861
        %6990 = vst [vmem:[%s569 + $0x90] sm:$0xff] %v6862
        %6991 = vst [vmem:[%s569 + $0x98] sm:$0xff] %v6863
        %6992 = vst [vmem:[%s569 + $0xa0] sm:$0xff] %v6864
        %6993 = vst [vmem:[%s569 + $0xa8] sm:$0xff] %v6865
        %6994 = vst [vmem:[%s569 + $0xb0] sm:$0xff] %v6866
        %6995 = vst [vmem:[%s569 + $0xb8] sm:$0xff] %v6867
        %6996 = vst [vmem:[%s569 + $0xc0] sm:$0xff] %v6868
        %6997 = vst [vmem:[%s569 + $0xc8] sm:$0xff] %v6869
        %6998 = vst [vmem:[%s569 + $0xd0] sm:$0xff] %v6870
        %6999 = vst [vmem:[%s569 + $0xd8] sm:$0xff] %v6871
        %7000 = vst [vmem:[%s569 + $0xe0] sm:$0xff] %v6872
        %7001 = vst [vmem:[%s569 + $0xe8] sm:$0xff] %v6873
        %7002 = vst [vmem:[%s569 + $0xf0] sm:$0xff] %v6874
        %7003 = vst [vmem:[%s569 + $0xf8] sm:$0xff] %v6875
        %7004 = vst [vmem:[%s569 + $0x100] sm:$0xff] %v6876
        %7005 = vst [vmem:[%s569 + $0x108] sm:$0xff] %v6877
        %7006 = vst [vmem:[%s569 + $0x110] sm:$0xff] %v6878
        %7007 = vst [vmem:[%s569 + $0x118] sm:$0xff] %v6879
        %7008 = vst [vmem:[%s569 + $0x120] sm:$0xff] %v6880
        %7009 = vst [vmem:[%s569 + $0x128] sm:$0xff] %v6881
        %7010 = vst [vmem:[%s569 + $0x130] sm:$0xff] %v6882
        %7011 = vst [vmem:[%s569 + $0x138] sm:$0xff] %v6883
        %7012 = vst [vmem:[%s569 + $0x140] sm:$0xff] %v6884
        %7013 = vst [vmem:[%s569 + $0x148] sm:$0xff] %v6885
        %7014 = vst [vmem:[%s569 + $0x150] sm:$0xff] %v6886
        %7015 = vst [vmem:[%s569 + $0x158] sm:$0xff] %v6887
        %7016 = vst [vmem:[%s569 + $0x160] sm:$0xff] %v6888
        %7017 = vst [vmem:[%s569 + $0x168] sm:$0xff] %v6889
        %7018 = vst [vmem:[%s569 + $0x170] sm:$0xff] %v6890
        %7019 = vst [vmem:[%s569 + $0x178] sm:$0xff] %v6891
        %7020 = vst [vmem:[%s569 + $0x180] sm:$0xff] %v6892
        %7021 = vst [vmem:[%s569 + $0x188] sm:$0xff] %v6893
        %7022 = vst [vmem:[%s569 + $0x190] sm:$0xff] %v6894
        %7023 = vst [vmem:[%s569 + $0x198] sm:$0xff] %v6895
        %7024 = vst [vmem:[%s569 + $0x1a0] sm:$0xff] %v6896
        %7025 = vst [vmem:[%s569 + $0x1a8] sm:$0xff] %v6897
        %7026 = vst [vmem:[%s569 + $0x1b0] sm:$0xff] %v6898
        %7027 = vst [vmem:[%s569 + $0x1b8] sm:$0xff] %v6899
        %7028 = vst [vmem:[%s569 + $0x1c0] sm:$0xff] %v6900
        %7029 = vst [vmem:[%s569 + $0x1c8] sm:$0xff] %v6901
        %7030 = vst [vmem:[%s569 + $0x1d0] sm:$0xff] %v6902
        %7031 = vst [vmem:[%s569 + $0x1d8] sm:$0xff] %v6903
        %7032 = vst [vmem:[%s569 + $0x1e0] sm:$0xff] %v6904
        %7033 = vst [vmem:[%s569 + $0x1e8] sm:$0xff] %v6905
        %7034 = vst [vmem:[%s569 + $0x1f0] sm:$0xff] %v6906
        %7035 = vst [vmem:[%s569 + $0x1f8] sm:$0xff] %v6907
        %7036 = vst [vmem:[%s569 + $0x200] sm:$0xff] %v6908
        %7037 = vst [vmem:[%s569 + $0x208] sm:$0xff] %v6909
        %7038 = vst [vmem:[%s569 + $0x210] sm:$0xff] %v6910
        %7039 = vst [vmem:[%s569 + $0x218] sm:$0xff] %v6911
        %7040 = vst [vmem:[%s569 + $0x220] sm:$0xff] %v6912
        %7041 = vst [vmem:[%s569 + $0x228] sm:$0xff] %v6913
        %7042 = vst [vmem:[%s569 + $0x230] sm:$0xff] %v6914
        %7043 = vst [vmem:[%s569 + $0x238] sm:$0xff] %v6915
        %7044 = vst [vmem:[%s569 + $0x240] sm:$0xff] %v6916
        %7045 = vst [vmem:[%s569 + $0x248] sm:$0xff] %v6917
        %7046 = vst [vmem:[%s569 + $0x250] sm:$0xff] %v6918
        %7047 = vst [vmem:[%s569 + $0x258] sm:$0xff] %v6919
        %7048 = vst [vmem:[%s569 + $0x260] sm:$0xff] %v6920
        %7049 = vst [vmem:[%s569 + $0x268] sm:$0xff] %v6921
        %7050 = vst [vmem:[%s569 + $0x270] sm:$0xff] %v6922
        %7051 = vst [vmem:[%s569 + $0x278] sm:$0xff] %v6923
        %7052 = vst [vmem:[%s569 + $0x280] sm:$0xff] %v6924
        %7053 = vst [vmem:[%s569 + $0x288] sm:$0xff] %v6925
        %7054 = vst [vmem:[%s569 + $0x290] sm:$0xff] %v6926
        %7055 = vst [vmem:[%s569 + $0x298] sm:$0xff] %v6927
        %7056 = vst [vmem:[%s569 + $0x2a0] sm:$0xff] %v6928
        %7057 = vst [vmem:[%s569 + $0x2a8] sm:$0xff] %v6929
        %7058 = vst [vmem:[%s569 + $0x2b0] sm:$0xff] %v6930
        %7059 = vst [vmem:[%s569 + $0x2b8] sm:$0xff] %v6931
        %7060 = vst [vmem:[%s569 + $0x2c0] sm:$0xff] %v6932
        %7061 = vst [vmem:[%s569 + $0x2c8] sm:$0xff] %v6933
        %7062 = vst [vmem:[%s569 + $0x2d0] sm:$0xff] %v6934
        %7063 = vst [vmem:[%s569 + $0x2d8] sm:$0xff] %v6935
        %7064 = vst [vmem:[%s569 + $0x2e0] sm:$0xff] %v6936
        %7065 = vst [vmem:[%s569 + $0x2e8] sm:$0xff] %v6937
        %7066 = vst [vmem:[%s569 + $0x2f0] sm:$0xff] %v6938
        %7067 = vst [vmem:[%s569 + $0x2f8] sm:$0xff] %v6939
        %7068 = vst [vmem:[%s569 + $0x300] sm:$0xff] %v6940
        %7069 = vst [vmem:[%s569 + $0x308] sm:$0xff] %v6941
        %7070 = vst [vmem:[%s569 + $0x310] sm:$0xff] %v6942
        %7071 = vst [vmem:[%s569 + $0x318] sm:$0xff] %v6943
        %7072 = vst [vmem:[%s569 + $0x320] sm:$0xff] %v6944
        %7073 = vst [vmem:[%s569 + $0x328] sm:$0xff] %v6945
        %7074 = vst [vmem:[%s569 + $0x330] sm:$0xff] %v6946
        %7075 = vst [vmem:[%s569 + $0x338] sm:$0xff] %v6947
        %7076 = vst [vmem:[%s569 + $0x340] sm:$0xff] %v6948
        %7077 = vst [vmem:[%s569 + $0x348] sm:$0xff] %v6949
        %7078 = vst [vmem:[%s569 + $0x350] sm:$0xff] %v6950
        %7079 = vst [vmem:[%s569 + $0x358] sm:$0xff] %v6951
        %7080 = vst [vmem:[%s569 + $0x360] sm:$0xff] %v6952
        %7081 = vst [vmem:[%s569 + $0x368] sm:$0xff] %v6953
        %7082 = vst [vmem:[%s569 + $0x370] sm:$0xff] %v6954
        %7083 = vst [vmem:[%s569 + $0x378] sm:$0xff] %v6955
        %7084 = vst [vmem:[%s569 + $0x380] sm:$0xff] %v6956
        %7085 = vst [vmem:[%s569 + $0x388] sm:$0xff] %v6957
        %7086 = vst [vmem:[%s569 + $0x390] sm:$0xff] %v6958
        %7087 = vst [vmem:[%s569 + $0x398] sm:$0xff] %v6959
        %7088 = vst [vmem:[%s569 + $0x3a0] sm:$0xff] %v6960
        %7089 = vst [vmem:[%s569 + $0x3a8] sm:$0xff] %v6961
        %7090 = vst [vmem:[%s569 + $0x3b0] sm:$0xff] %v6962
        %7091 = vst [vmem:[%s569 + $0x3b8] sm:$0xff] %v6963
        %7092 = vst [vmem:[%s569 + $0x3c0] sm:$0xff] %v6964
        %7093 = vst [vmem:[%s569 + $0x3c8] sm:$0xff] %v6965
        %7094 = vst [vmem:[%s569 + $0x3d0] sm:$0xff] %v6966
        %7095 = vst [vmem:[%s569 + $0x3d8] sm:$0xff] %v6967
        %7096 = vst [vmem:[%s569 + $0x3e0] sm:$0xff] %v6968
        %7097 = vst [vmem:[%s569 + $0x3e8] sm:$0xff] %v6969
        %7098 = vst [vmem:[%s569 + $0x3f0] sm:$0xff] %v6970
        %7099 = vst [vmem:[%s569 + $0x3f8] sm:$0xff] %v6971
        %v7100 = vtanh.pop %v4802
        %v7101 = vtanh.pop %v4803
        %v7102 = vtanh.pop %v4810
        %v7103 = vtanh.pop %v4811
        %v7104 = vtanh.pop %v4818
        %v7105 = vtanh.pop %v4819
        %v7106 = vtanh.pop %v4826
        %v7107 = vtanh.pop %v4827
        %v7108 = vtanh.pop %v4834
        %v7109 = vtanh.pop %v4835
        %v7110 = vtanh.pop %v4842
        %v7111 = vtanh.pop %v4843
        %v7112 = vtanh.pop %v4850
        %v7113 = vtanh.pop %v4851
        %v7114 = vtanh.pop %v4858
        %v7115 = vtanh.pop %v4859
        %v7116 = vtanh.pop %v4866
        %v7117 = vtanh.pop %v4867
        %v7118 = vtanh.pop %v4874
        %v7119 = vtanh.pop %v4875
        %v7120 = vtanh.pop %v4882
        %v7121 = vtanh.pop %v4883
        %v7122 = vtanh.pop %v4890
        %v7123 = vtanh.pop %v4891
        %v7124 = vtanh.pop %v4898
        %v7125 = vtanh.pop %v4899
        %v7126 = vtanh.pop %v4906
        %v7127 = vtanh.pop %v4907
        %v7128 = vtanh.pop %v4914
        %v7129 = vtanh.pop %v4915
        %v7130 = vtanh.pop %v4922
        %v7131 = vtanh.pop %v4923
        %v7132 = vtanh.pop %v4930
        %v7133 = vtanh.pop %v4931
        %v7134 = vtanh.pop %v4938
        %v7135 = vtanh.pop %v4939
        %v7136 = vtanh.pop %v4946
        %v7137 = vtanh.pop %v4947
        %v7138 = vtanh.pop %v4954
        %v7139 = vtanh.pop %v4955
        %v7140 = vtanh.pop %v4962
        %v7141 = vtanh.pop %v4963
        %v7142 = vtanh.pop %v4970
        %v7143 = vtanh.pop %v4971
        %v7144 = vtanh.pop %v4978
        %v7145 = vtanh.pop %v4979
        %v7146 = vtanh.pop %v4986
        %v7147 = vtanh.pop %v4987
        %v7148 = vtanh.pop %v4994
        %v7149 = vtanh.pop %v4995
        %v7150 = vtanh.pop %v5002
        %v7151 = vtanh.pop %v5003
        %v7152 = vtanh.pop %v5010
        %v7153 = vtanh.pop %v5011
        %v7154 = vtanh.pop %v5018
        %v7155 = vtanh.pop %v5019
        %v7156 = vtanh.pop %v5026
        %v7157 = vtanh.pop %v5027
        %v7158 = vtanh.pop %v5034
        %v7159 = vtanh.pop %v5035
        %v7160 = vtanh.pop %v5042
        %v7161 = vtanh.pop %v5043
        %v7162 = vtanh.pop %v5050
        %v7163 = vtanh.pop %v5051
        %v7164 = vtanh.pop %v5058
        %v7165 = vtanh.pop %v5059
        %v7166 = vtanh.pop %v5066
        %v7167 = vtanh.pop %v5067
        %v7168 = vtanh.pop %v5074
        %v7169 = vtanh.pop %v5075
        %v7170 = vtanh.pop %v5082
        %v7171 = vtanh.pop %v5083
        %v7172 = vtanh.pop %v5090
        %v7173 = vtanh.pop %v5091
        %v7174 = vtanh.pop %v5098
        %v7175 = vtanh.pop %v5099
        %v7176 = vtanh.pop %v5106
        %v7177 = vtanh.pop %v5107
        %v7178 = vtanh.pop %v5114
        %v7179 = vtanh.pop %v5115
        %v7180 = vtanh.pop %v5122
        %v7181 = vtanh.pop %v5123
        %v7182 = vtanh.pop %v5130
        %v7183 = vtanh.pop %v5131
        %v7184 = vtanh.pop %v5138
        %v7185 = vtanh.pop %v5139
        %v7186 = vtanh.pop %v5146
        %v7187 = vtanh.pop %v5147
        %v7188 = vtanh.pop %v5154
        %v7189 = vtanh.pop %v5155
        %v7190 = vtanh.pop %v5162
        %v7191 = vtanh.pop %v5163
        %v7192 = vtanh.pop %v5170
        %v7193 = vtanh.pop %v5171
        %v7194 = vtanh.pop %v5178
        %v7195 = vtanh.pop %v5179
        %v7196 = vtanh.pop %v5186
        %v7197 = vtanh.pop %v5187
        %v7198 = vtanh.pop %v5194
        %v7199 = vtanh.pop %v5195
        %v7200 = vtanh.pop %v5202
        %v7201 = vtanh.pop %v5203
        %v7202 = vtanh.pop %v5210
        %v7203 = vtanh.pop %v5211
        %v7204 = vtanh.pop %v5218
        %v7205 = vtanh.pop %v5219
        %v7206 = vtanh.pop %v5226
        %v7207 = vtanh.pop %v5227
        %v7208 = vtanh.pop %v5234
        %v7209 = vtanh.pop %v5235
        %v7210 = vtanh.pop %v5242
        %v7211 = vtanh.pop %v5243
        %v7212 = vtanh.pop %v5250
        %v7213 = vtanh.pop %v5251
        %v7214 = vtanh.pop %v5258
        %v7215 = vtanh.pop %v5259
        %v7216 = vtanh.pop %v5266
        %v7217 = vtanh.pop %v5267
        %v7218 = vtanh.pop %v5274
        %v7219 = vtanh.pop %v5275
        %v7220 = vtanh.pop %v5282
        %v7221 = vtanh.pop %v5283
        %v7222 = vtanh.pop %v5290
        %v7223 = vtanh.pop %v5291
        %v7224 = vtanh.pop %v5298
        %v7225 = vtanh.pop %v5299
        %v7226 = vtanh.pop %v5306
        %v7227 = vtanh.pop %v5307
        %v7228 = vld [vmem:[%s478] sm:$0xff]
        %v7229 = vld [vmem:[%s478 + $0x8] sm:$0xff]
        %v7230 = vld [vmem:[%s478 + $0x10] sm:$0xff]
        %v7231 = vld [vmem:[%s478 + $0x18] sm:$0xff]
        %v7232 = vld [vmem:[%s478 + $0x20] sm:$0xff]
        %v7233 = vld [vmem:[%s478 + $0x28] sm:$0xff]
        %v7234 = vld [vmem:[%s478 + $0x30] sm:$0xff]
        %v7235 = vld [vmem:[%s478 + $0x38] sm:$0xff]
        %v7236 = vld [vmem:[%s478 + $0x40] sm:$0xff]
        %v7237 = vld [vmem:[%s478 + $0x48] sm:$0xff]
        %v7238 = vld [vmem:[%s478 + $0x50] sm:$0xff]
        %v7239 = vld [vmem:[%s478 + $0x58] sm:$0xff]
        %v7240 = vld [vmem:[%s478 + $0x60] sm:$0xff]
        %v7241 = vld [vmem:[%s478 + $0x68] sm:$0xff]
        %v7242 = vld [vmem:[%s478 + $0x70] sm:$0xff]
        %v7243 = vld [vmem:[%s478 + $0x78] sm:$0xff]
        %v7244 = vld [vmem:[%s478 + $0x80] sm:$0xff]
        %v7245 = vld [vmem:[%s478 + $0x88] sm:$0xff]
        %v7246 = vld [vmem:[%s478 + $0x90] sm:$0xff]
        %v7247 = vld [vmem:[%s478 + $0x98] sm:$0xff]
        %v7248 = vld [vmem:[%s478 + $0xa0] sm:$0xff]
        %v7249 = vld [vmem:[%s478 + $0xa8] sm:$0xff]
        %v7250 = vld [vmem:[%s478 + $0xb0] sm:$0xff]
        %v7251 = vld [vmem:[%s478 + $0xb8] sm:$0xff]
        %v7252 = vld [vmem:[%s478 + $0xc0] sm:$0xff]
        %v7253 = vld [vmem:[%s478 + $0xc8] sm:$0xff]
        %v7254 = vld [vmem:[%s478 + $0xd0] sm:$0xff]
        %v7255 = vld [vmem:[%s478 + $0xd8] sm:$0xff]
        %v7256 = vld [vmem:[%s478 + $0xe0] sm:$0xff]
        %v7257 = vld [vmem:[%s478 + $0xe8] sm:$0xff]
        %v7258 = vld [vmem:[%s478 + $0xf0] sm:$0xff]
        %v7259 = vld [vmem:[%s478 + $0xf8] sm:$0xff]
        %v7260 = vld [vmem:[%s478 + $0x100] sm:$0xff]
        %v7261 = vld [vmem:[%s478 + $0x108] sm:$0xff]
        %v7262 = vld [vmem:[%s478 + $0x110] sm:$0xff]
        %v7263 = vld [vmem:[%s478 + $0x118] sm:$0xff]
        %v7264 = vld [vmem:[%s478 + $0x120] sm:$0xff]
        %v7265 = vld [vmem:[%s478 + $0x128] sm:$0xff]
        %v7266 = vld [vmem:[%s478 + $0x130] sm:$0xff]
        %v7267 = vld [vmem:[%s478 + $0x138] sm:$0xff]
        %v7268 = vld [vmem:[%s478 + $0x140] sm:$0xff]
        %v7269 = vld [vmem:[%s478 + $0x148] sm:$0xff]
        %v7270 = vld [vmem:[%s478 + $0x150] sm:$0xff]
        %v7271 = vld [vmem:[%s478 + $0x158] sm:$0xff]
        %v7272 = vld [vmem:[%s478 + $0x160] sm:$0xff]
        %v7273 = vld [vmem:[%s478 + $0x168] sm:$0xff]
        %v7274 = vld [vmem:[%s478 + $0x170] sm:$0xff]
        %v7275 = vld [vmem:[%s478 + $0x178] sm:$0xff]
        %v7276 = vld [vmem:[%s478 + $0x180] sm:$0xff]
        %v7277 = vld [vmem:[%s478 + $0x188] sm:$0xff]
        %v7278 = vld [vmem:[%s478 + $0x190] sm:$0xff]
        %v7279 = vld [vmem:[%s478 + $0x198] sm:$0xff]
        %v7280 = vld [vmem:[%s478 + $0x1a0] sm:$0xff]
        %v7281 = vld [vmem:[%s478 + $0x1a8] sm:$0xff]
        %v7282 = vld [vmem:[%s478 + $0x1b0] sm:$0xff]
        %v7283 = vld [vmem:[%s478 + $0x1b8] sm:$0xff]
        %v7284 = vld [vmem:[%s478 + $0x1c0] sm:$0xff]
        %v7285 = vld [vmem:[%s478 + $0x1c8] sm:$0xff]
        %v7286 = vld [vmem:[%s478 + $0x1d0] sm:$0xff]
        %v7287 = vld [vmem:[%s478 + $0x1d8] sm:$0xff]
        %v7288 = vld [vmem:[%s478 + $0x1e0] sm:$0xff]
        %v7289 = vld [vmem:[%s478 + $0x1e8] sm:$0xff]
        %v7290 = vld [vmem:[%s478 + $0x1f0] sm:$0xff]
        %v7291 = vld [vmem:[%s478 + $0x1f8] sm:$0xff]
        %v7292 = vld [vmem:[%s478 + $0x200] sm:$0xff]
        %v7293 = vld [vmem:[%s478 + $0x208] sm:$0xff]
        %v7294 = vld [vmem:[%s478 + $0x210] sm:$0xff]
        %v7295 = vld [vmem:[%s478 + $0x218] sm:$0xff]
        %v7296 = vld [vmem:[%s478 + $0x220] sm:$0xff]
        %v7297 = vld [vmem:[%s478 + $0x228] sm:$0xff]
        %v7298 = vld [vmem:[%s478 + $0x230] sm:$0xff]
        %v7299 = vld [vmem:[%s478 + $0x238] sm:$0xff]
        %v7300 = vld [vmem:[%s478 + $0x240] sm:$0xff]
        %v7301 = vld [vmem:[%s478 + $0x248] sm:$0xff]
        %v7302 = vld [vmem:[%s478 + $0x250] sm:$0xff]
        %v7303 = vld [vmem:[%s478 + $0x258] sm:$0xff]
        %v7304 = vld [vmem:[%s478 + $0x260] sm:$0xff]
        %v7305 = vld [vmem:[%s478 + $0x268] sm:$0xff]
        %v7306 = vld [vmem:[%s478 + $0x270] sm:$0xff]
        %v7307 = vld [vmem:[%s478 + $0x278] sm:$0xff]
        %v7308 = vld [vmem:[%s478 + $0x280] sm:$0xff]
        %v7309 = vld [vmem:[%s478 + $0x288] sm:$0xff]
        %v7310 = vld [vmem:[%s478 + $0x290] sm:$0xff]
        %v7311 = vld [vmem:[%s478 + $0x298] sm:$0xff]
        %v7312 = vld [vmem:[%s478 + $0x2a0] sm:$0xff]
        %v7313 = vld [vmem:[%s478 + $0x2a8] sm:$0xff]
        %v7314 = vld [vmem:[%s478 + $0x2b0] sm:$0xff]
        %v7315 = vld [vmem:[%s478 + $0x2b8] sm:$0xff]
        %v7316 = vld [vmem:[%s478 + $0x2c0] sm:$0xff]
        %v7317 = vld [vmem:[%s478 + $0x2c8] sm:$0xff]
        %v7318 = vld [vmem:[%s478 + $0x2d0] sm:$0xff]
        %v7319 = vld [vmem:[%s478 + $0x2d8] sm:$0xff]
        %v7320 = vld [vmem:[%s478 + $0x2e0] sm:$0xff]
        %v7321 = vld [vmem:[%s478 + $0x2e8] sm:$0xff]
        %v7322 = vld [vmem:[%s478 + $0x2f0] sm:$0xff]
        %v7323 = vld [vmem:[%s478 + $0x2f8] sm:$0xff]
        %v7324 = vld [vmem:[%s478 + $0x300] sm:$0xff]
        %v7325 = vld [vmem:[%s478 + $0x308] sm:$0xff]
        %v7326 = vld [vmem:[%s478 + $0x310] sm:$0xff]
        %v7327 = vld [vmem:[%s478 + $0x318] sm:$0xff]
        %v7328 = vld [vmem:[%s478 + $0x320] sm:$0xff]
        %v7329 = vld [vmem:[%s478 + $0x328] sm:$0xff]
        %v7330 = vld [vmem:[%s478 + $0x330] sm:$0xff]
        %v7331 = vld [vmem:[%s478 + $0x338] sm:$0xff]
        %v7332 = vld [vmem:[%s478 + $0x340] sm:$0xff]
        %v7333 = vld [vmem:[%s478 + $0x348] sm:$0xff]
        %v7334 = vld [vmem:[%s478 + $0x350] sm:$0xff]
        %v7335 = vld [vmem:[%s478 + $0x358] sm:$0xff]
        %v7336 = vld [vmem:[%s478 + $0x360] sm:$0xff]
        %v7337 = vld [vmem:[%s478 + $0x368] sm:$0xff]
        %v7338 = vld [vmem:[%s478 + $0x370] sm:$0xff]
        %v7339 = vld [vmem:[%s478 + $0x378] sm:$0xff]
        %v7340 = vld [vmem:[%s478 + $0x380] sm:$0xff]
        %v7341 = vld [vmem:[%s478 + $0x388] sm:$0xff]
        %v7342 = vld [vmem:[%s478 + $0x390] sm:$0xff]
        %v7343 = vld [vmem:[%s478 + $0x398] sm:$0xff]
        %v7344 = vld [vmem:[%s478 + $0x3a0] sm:$0xff]
        %v7345 = vld [vmem:[%s478 + $0x3a8] sm:$0xff]
        %v7346 = vld [vmem:[%s478 + $0x3b0] sm:$0xff]
        %v7347 = vld [vmem:[%s478 + $0x3b8] sm:$0xff]
        %v7348 = vld [vmem:[%s478 + $0x3c0] sm:$0xff]
        %v7349 = vld [vmem:[%s478 + $0x3c8] sm:$0xff]
        %v7350 = vld [vmem:[%s478 + $0x3d0] sm:$0xff]
        %v7351 = vld [vmem:[%s478 + $0x3d8] sm:$0xff]
        %v7352 = vld [vmem:[%s478 + $0x3e0] sm:$0xff]
        %v7353 = vld [vmem:[%s478 + $0x3e8] sm:$0xff]
        %v7354 = vld [vmem:[%s478 + $0x3f0] sm:$0xff]
        %v7355 = vld [vmem:[%s478 + $0x3f8] sm:$0xff]
        %v7356 = vmul.f32 %v7228, %v6333
        %v7357 = vmul.f32 %v7229, %v6335
        %v7358 = vmul.f32 %v7230, %v6337
        %v7359 = vmul.f32 %v7231, %v6339
        %v7360 = vmul.f32 %v7232, %v6341
        %v7361 = vmul.f32 %v7233, %v6343
        %v7362 = vmul.f32 %v7234, %v6345
        %v7363 = vmul.f32 %v7235, %v6347
        %v7364 = vmul.f32 %v7236, %v6349
        %v7365 = vmul.f32 %v7237, %v6351
        %v7366 = vmul.f32 %v7238, %v6353
        %v7367 = vmul.f32 %v7239, %v6355
        %v7368 = vmul.f32 %v7240, %v6357
        %v7369 = vmul.f32 %v7241, %v6359
        %v7370 = vmul.f32 %v7242, %v6361
        %v7371 = vmul.f32 %v7243, %v6363
        %v7372 = vmul.f32 %v7244, %v6365
        %v7373 = vmul.f32 %v7245, %v6367
        %v7374 = vmul.f32 %v7246, %v6369
        %v7375 = vmul.f32 %v7247, %v6371
        %v7376 = vmul.f32 %v7248, %v6373
        %v7377 = vmul.f32 %v7249, %v6375
        %v7378 = vmul.f32 %v7250, %v6377
        %v7379 = vmul.f32 %v7251, %v6379
        %v7380 = vmul.f32 %v7252, %v6381
        %v7381 = vmul.f32 %v7253, %v6383
        %v7382 = vmul.f32 %v7254, %v6385
        %v7383 = vmul.f32 %v7255, %v6387
        %v7384 = vmul.f32 %v7256, %v6389
        %v7385 = vmul.f32 %v7257, %v6391
        %v7386 = vmul.f32 %v7258, %v6393
        %v7387 = vmul.f32 %v7259, %v6395
        %v7388 = vmul.f32 %v7260, %v6397
        %v7389 = vmul.f32 %v7261, %v6399
        %v7390 = vmul.f32 %v7262, %v6401
        %v7391 = vmul.f32 %v7263, %v6403
        %v7392 = vmul.f32 %v7264, %v6405
        %v7393 = vmul.f32 %v7265, %v6407
        %v7394 = vmul.f32 %v7266, %v6409
        %v7395 = vmul.f32 %v7267, %v6411
        %v7396 = vmul.f32 %v7268, %v6413
        %v7397 = vmul.f32 %v7269, %v6415
        %v7398 = vmul.f32 %v7270, %v6417
        %v7399 = vmul.f32 %v7271, %v6419
        %v7400 = vmul.f32 %v7272, %v6421
        %v7401 = vmul.f32 %v7273, %v6423
        %v7402 = vmul.f32 %v7274, %v6425
        %v7403 = vmul.f32 %v7275, %v6427
        %v7404 = vmul.f32 %v7276, %v6429
        %v7405 = vmul.f32 %v7277, %v6431
        %v7406 = vmul.f32 %v7278, %v6433
        %v7407 = vmul.f32 %v7279, %v6435
        %v7408 = vmul.f32 %v7280, %v6437
        %v7409 = vmul.f32 %v7281, %v6439
        %v7410 = vmul.f32 %v7282, %v6441
        %v7411 = vmul.f32 %v7283, %v6443
        %v7412 = vmul.f32 %v7284, %v6445
        %v7413 = vmul.f32 %v7285, %v6447
        %v7414 = vmul.f32 %v7286, %v6449
        %v7415 = vmul.f32 %v7287, %v6451
        %v7416 = vmul.f32 %v7288, %v6453
        %v7417 = vmul.f32 %v7289, %v6455
        %v7418 = vmul.f32 %v7290, %v6457
        %v7419 = vmul.f32 %v7291, %v6459
        %v7420 = vmul.f32 %v7292, %v6461
        %v7421 = vmul.f32 %v7293, %v6463
        %v7422 = vmul.f32 %v7294, %v6465
        %v7423 = vmul.f32 %v7295, %v6467
        %v7424 = vmul.f32 %v7296, %v6469
        %v7425 = vmul.f32 %v7297, %v6471
        %v7426 = vmul.f32 %v7298, %v6473
        %v7427 = vmul.f32 %v7299, %v6475
        %v7428 = vmul.f32 %v7300, %v6477
        %v7429 = vmul.f32 %v7301, %v6479
        %v7430 = vmul.f32 %v7302, %v6481
        %v7431 = vmul.f32 %v7303, %v6483
        %v7432 = vmul.f32 %v7304, %v6485
        %v7433 = vmul.f32 %v7305, %v6487
        %v7434 = vmul.f32 %v7306, %v6489
        %v7435 = vmul.f32 %v7307, %v6491
        %v7436 = vmul.f32 %v7308, %v6493
        %v7437 = vmul.f32 %v7309, %v6495
        %v7438 = vmul.f32 %v7310, %v6497
        %v7439 = vmul.f32 %v7311, %v6499
        %v7440 = vmul.f32 %v7312, %v6501
        %v7441 = vmul.f32 %v7313, %v6503
        %v7442 = vmul.f32 %v7314, %v6505
        %v7443 = vmul.f32 %v7315, %v6507
        %v7444 = vmul.f32 %v7316, %v6509
        %v7445 = vmul.f32 %v7317, %v6511
        %v7446 = vmul.f32 %v7318, %v6513
        %v7447 = vmul.f32 %v7319, %v6515
        %v7448 = vmul.f32 %v7320, %v6517
        %v7449 = vmul.f32 %v7321, %v6519
        %v7450 = vmul.f32 %v7322, %v6521
        %v7451 = vmul.f32 %v7323, %v6523
        %v7452 = vmul.f32 %v7324, %v6525
        %v7453 = vmul.f32 %v7325, %v6527
        %v7454 = vmul.f32 %v7326, %v6529
        %v7455 = vmul.f32 %v7327, %v6531
        %v7456 = vmul.f32 %v7328, %v6533
        %v7457 = vmul.f32 %v7329, %v6535
        %v7458 = vmul.f32 %v7330, %v6537
        %v7459 = vmul.f32 %v7331, %v6539
        %v7460 = vmul.f32 %v7332, %v6541
        %v7461 = vmul.f32 %v7333, %v6543
        %v7462 = vmul.f32 %v7334, %v6545
        %v7463 = vmul.f32 %v7335, %v6547
        %v7464 = vmul.f32 %v7336, %v6549
        %v7465 = vmul.f32 %v7337, %v6551
        %v7466 = vmul.f32 %v7338, %v6553
        %v7467 = vmul.f32 %v7339, %v6555
        %v7468 = vmul.f32 %v7340, %v6557
        %v7469 = vmul.f32 %v7341, %v6559
        %v7470 = vmul.f32 %v7342, %v6561
        %v7471 = vmul.f32 %v7343, %v6563
        %v7472 = vmul.f32 %v7344, %v6565
        %v7473 = vmul.f32 %v7345, %v6567
        %v7474 = vmul.f32 %v7346, %v6569
        %v7475 = vmul.f32 %v7347, %v6571
        %v7476 = vmul.f32 %v7348, %v6573
        %v7477 = vmul.f32 %v7349, %v6575
        %v7478 = vmul.f32 %v7350, %v6577
        %v7479 = vmul.f32 %v7351, %v6579
        %v7480 = vmul.f32 %v7352, %v6581
        %v7481 = vmul.f32 %v7353, %v6583
        %v7482 = vmul.f32 %v7354, %v6585
        %v7483 = vmul.f32 %v7355, %v6587
        %v7484 = vmul.f32 %v7100, %v5949
        %v7485 = vmul.f32 %v7101, %v5951
        %v7486 = vmul.f32 %v7102, %v5953
        %v7487 = vmul.f32 %v7103, %v5955
        %v7488 = vmul.f32 %v7104, %v5957
        %v7489 = vmul.f32 %v7105, %v5959
        %v7490 = vmul.f32 %v7106, %v5961
        %v7491 = vmul.f32 %v7107, %v5963
        %v7492 = vmul.f32 %v7108, %v5965
        %v7493 = vmul.f32 %v7109, %v5967
        %v7494 = vmul.f32 %v7110, %v5969
        %v7495 = vmul.f32 %v7111, %v5971
        %v7496 = vmul.f32 %v7112, %v5973
        %v7497 = vmul.f32 %v7113, %v5975
        %v7498 = vmul.f32 %v7114, %v5977
        %v7499 = vmul.f32 %v7115, %v5979
        %v7500 = vmul.f32 %v7116, %v5981
        %v7501 = vmul.f32 %v7117, %v5983
        %v7502 = vmul.f32 %v7118, %v5985
        %v7503 = vmul.f32 %v7119, %v5987
        %v7504 = vmul.f32 %v7120, %v5989
        %v7505 = vmul.f32 %v7121, %v5991
        %v7506 = vmul.f32 %v7122, %v5993
        %v7507 = vmul.f32 %v7123, %v5995
        %v7508 = vmul.f32 %v7124, %v5997
        %v7509 = vmul.f32 %v7125, %v5999
        %v7510 = vmul.f32 %v7126, %v6001
        %v7511 = vmul.f32 %v7127, %v6003
        %v7512 = vmul.f32 %v7128, %v6005
        %v7513 = vmul.f32 %v7129, %v6007
        %v7514 = vmul.f32 %v7130, %v6009
        %v7515 = vmul.f32 %v7131, %v6011
        %v7516 = vmul.f32 %v7132, %v6013
        %v7517 = vmul.f32 %v7133, %v6015
        %v7518 = vmul.f32 %v7134, %v6017
        %v7519 = vmul.f32 %v7135, %v6019
        %v7520 = vmul.f32 %v7136, %v6021
        %v7521 = vmul.f32 %v7137, %v6023
        %v7522 = vmul.f32 %v7138, %v6025
        %v7523 = vmul.f32 %v7139, %v6027
        %v7524 = vmul.f32 %v7140, %v6029
        %v7525 = vmul.f32 %v7141, %v6031
        %v7526 = vmul.f32 %v7142, %v6033
        %v7527 = vmul.f32 %v7143, %v6035
        %v7528 = vmul.f32 %v7144, %v6037
        %v7529 = vmul.f32 %v7145, %v6039
        %v7530 = vmul.f32 %v7146, %v6041
        %v7531 = vmul.f32 %v7147, %v6043
        %v7532 = vmul.f32 %v7148, %v6045
        %v7533 = vmul.f32 %v7149, %v6047
        %v7534 = vmul.f32 %v7150, %v6049
        %v7535 = vmul.f32 %v7151, %v6051
        %v7536 = vmul.f32 %v7152, %v6053
        %v7537 = vmul.f32 %v7153, %v6055
        %v7538 = vmul.f32 %v7154, %v6057
        %v7539 = vmul.f32 %v7155, %v6059
        %v7540 = vmul.f32 %v7156, %v6061
        %v7541 = vmul.f32 %v7157, %v6063
        %v7542 = vmul.f32 %v7158, %v6065
        %v7543 = vmul.f32 %v7159, %v6067
        %v7544 = vmul.f32 %v7160, %v6069
        %v7545 = vmul.f32 %v7161, %v6071
        %v7546 = vmul.f32 %v7162, %v6073
        %v7547 = vmul.f32 %v7163, %v6075
        %v7548 = vmul.f32 %v7164, %v6077
        %v7549 = vmul.f32 %v7165, %v6079
        %v7550 = vmul.f32 %v7166, %v6081
        %v7551 = vmul.f32 %v7167, %v6083
        %v7552 = vmul.f32 %v7168, %v6085
        %v7553 = vmul.f32 %v7169, %v6087
        %v7554 = vmul.f32 %v7170, %v6089
        %v7555 = vmul.f32 %v7171, %v6091
        %v7556 = vmul.f32 %v7172, %v6093
        %v7557 = vmul.f32 %v7173, %v6095
        %v7558 = vmul.f32 %v7174, %v6097
        %v7559 = vmul.f32 %v7175, %v6099
        %v7560 = vmul.f32 %v7176, %v6101
        %v7561 = vmul.f32 %v7177, %v6103
        %v7562 = vmul.f32 %v7178, %v6105
        %v7563 = vmul.f32 %v7179, %v6107
        %v7564 = vmul.f32 %v7180, %v6109
        %v7565 = vmul.f32 %v7181, %v6111
        %v7566 = vmul.f32 %v7182, %v6113
        %v7567 = vmul.f32 %v7183, %v6115
        %v7568 = vmul.f32 %v7184, %v6117
        %v7569 = vmul.f32 %v7185, %v6119
        %v7570 = vmul.f32 %v7186, %v6121
        %v7571 = vmul.f32 %v7187, %v6123
        %v7572 = vmul.f32 %v7188, %v6125
        %v7573 = vmul.f32 %v7189, %v6127
        %v7574 = vmul.f32 %v7190, %v6129
        %v7575 = vmul.f32 %v7191, %v6131
        %v7576 = vmul.f32 %v7192, %v6133
        %v7577 = vmul.f32 %v7193, %v6135
        %v7578 = vmul.f32 %v7194, %v6137
        %v7579 = vmul.f32 %v7195, %v6139
        %v7580 = vmul.f32 %v7196, %v6141
        %v7581 = vmul.f32 %v7197, %v6143
        %v7582 = vmul.f32 %v7198, %v6145
        %v7583 = vmul.f32 %v7199, %v6147
        %v7584 = vmul.f32 %v7200, %v6149
        %v7585 = vmul.f32 %v7201, %v6151
        %v7586 = vmul.f32 %v7202, %v6153
        %v7587 = vmul.f32 %v7203, %v6155
        %v7588 = vmul.f32 %v7204, %v6157
        %v7589 = vmul.f32 %v7205, %v6159
        %v7590 = vmul.f32 %v7206, %v6161
        %v7591 = vmul.f32 %v7207, %v6163
        %v7592 = vmul.f32 %v7208, %v6165
        %v7593 = vmul.f32 %v7209, %v6167
        %v7594 = vmul.f32 %v7210, %v6169
        %v7595 = vmul.f32 %v7211, %v6171
        %v7596 = vmul.f32 %v7212, %v6173
        %v7597 = vmul.f32 %v7213, %v6175
        %v7598 = vmul.f32 %v7214, %v6177
        %v7599 = vmul.f32 %v7215, %v6179
        %v7600 = vmul.f32 %v7216, %v6181
        %v7601 = vmul.f32 %v7217, %v6183
        %v7602 = vmul.f32 %v7218, %v6185
        %v7603 = vmul.f32 %v7219, %v6187
        %v7604 = vmul.f32 %v7220, %v6189
        %v7605 = vmul.f32 %v7221, %v6191
        %v7606 = vmul.f32 %v7222, %v6193
        %v7607 = vmul.f32 %v7223, %v6195
        %v7608 = vmul.f32 %v7224, %v6197
        %v7609 = vmul.f32 %v7225, %v6199
        %v7610 = vmul.f32 %v7226, %v6201
        %v7611 = vmul.f32 %v7227, %v6203
        %v7612 = vadd.f32 %v7356, %v7484
        %v7613 = vadd.f32 %v7357, %v7485
        %v7614 = vadd.f32 %v7358, %v7486
        %v7615 = vadd.f32 %v7359, %v7487
        %v7616 = vadd.f32 %v7360, %v7488
        %v7617 = vadd.f32 %v7361, %v7489
        %v7618 = vadd.f32 %v7362, %v7490
        %v7619 = vadd.f32 %v7363, %v7491
        %v7620 = vadd.f32 %v7364, %v7492
        %v7621 = vadd.f32 %v7365, %v7493
        %v7622 = vadd.f32 %v7366, %v7494
        %v7623 = vadd.f32 %v7367, %v7495
        %v7624 = vadd.f32 %v7368, %v7496
        %v7625 = vadd.f32 %v7369, %v7497
        %v7626 = vadd.f32 %v7370, %v7498
        %v7627 = vadd.f32 %v7371, %v7499
        %v7628 = vadd.f32 %v7372, %v7500
        %v7629 = vadd.f32 %v7373, %v7501
        %v7630 = vadd.f32 %v7374, %v7502
        %v7631 = vadd.f32 %v7375, %v7503
        %v7632 = vadd.f32 %v7376, %v7504
        %v7633 = vadd.f32 %v7377, %v7505
        %v7634 = vadd.f32 %v7378, %v7506
        %v7635 = vadd.f32 %v7379, %v7507
        %v7636 = vadd.f32 %v7380, %v7508
        %v7637 = vadd.f32 %v7381, %v7509
        %v7638 = vadd.f32 %v7382, %v7510
        %v7639 = vadd.f32 %v7383, %v7511
        %v7640 = vadd.f32 %v7384, %v7512
        %v7641 = vadd.f32 %v7385, %v7513
        %v7642 = vadd.f32 %v7386, %v7514
        %v7643 = vadd.f32 %v7387, %v7515
        %v7644 = vadd.f32 %v7388, %v7516
        %v7645 = vadd.f32 %v7389, %v7517
        %v7646 = vadd.f32 %v7390, %v7518
        %v7647 = vadd.f32 %v7391, %v7519
        %v7648 = vadd.f32 %v7392, %v7520
        %v7649 = vadd.f32 %v7393, %v7521
        %v7650 = vadd.f32 %v7394, %v7522
        %v7651 = vadd.f32 %v7395, %v7523
        %v7652 = vadd.f32 %v7396, %v7524
        %v7653 = vadd.f32 %v7397, %v7525
        %v7654 = vadd.f32 %v7398, %v7526
        %v7655 = vadd.f32 %v7399, %v7527
        %v7656 = vadd.f32 %v7400, %v7528
        %v7657 = vadd.f32 %v7401, %v7529
        %v7658 = vadd.f32 %v7402, %v7530
        %v7659 = vadd.f32 %v7403, %v7531
        %v7660 = vadd.f32 %v7404, %v7532
        %v7661 = vadd.f32 %v7405, %v7533
        %v7662 = vadd.f32 %v7406, %v7534
        %v7663 = vadd.f32 %v7407, %v7535
        %v7664 = vadd.f32 %v7408, %v7536
        %v7665 = vadd.f32 %v7409, %v7537
        %v7666 = vadd.f32 %v7410, %v7538
        %v7667 = vadd.f32 %v7411, %v7539
        %v7668 = vadd.f32 %v7412, %v7540
        %v7669 = vadd.f32 %v7413, %v7541
        %v7670 = vadd.f32 %v7414, %v7542
        %v7671 = vadd.f32 %v7415, %v7543
        %v7672 = vadd.f32 %v7416, %v7544
        %v7673 = vadd.f32 %v7417, %v7545
        %v7674 = vadd.f32 %v7418, %v7546
        %v7675 = vadd.f32 %v7419, %v7547
        %v7676 = vadd.f32 %v7420, %v7548
        %v7677 = vadd.f32 %v7421, %v7549
        %v7678 = vadd.f32 %v7422, %v7550
        %v7679 = vadd.f32 %v7423, %v7551
        %v7680 = vadd.f32 %v7424, %v7552
        %v7681 = vadd.f32 %v7425, %v7553
        %v7682 = vadd.f32 %v7426, %v7554
        %v7683 = vadd.f32 %v7427, %v7555
        %v7684 = vadd.f32 %v7428, %v7556
        %v7685 = vadd.f32 %v7429, %v7557
        %v7686 = vadd.f32 %v7430, %v7558
        %v7687 = vadd.f32 %v7431, %v7559
        %v7688 = vadd.f32 %v7432, %v7560
        %v7689 = vadd.f32 %v7433, %v7561
        %v7690 = vadd.f32 %v7434, %v7562
        %v7691 = vadd.f32 %v7435, %v7563
        %v7692 = vadd.f32 %v7436, %v7564
        %v7693 = vadd.f32 %v7437, %v7565
        %v7694 = vadd.f32 %v7438, %v7566
        %v7695 = vadd.f32 %v7439, %v7567
        %v7696 = vadd.f32 %v7440, %v7568
        %v7697 = vadd.f32 %v7441, %v7569
        %v7698 = vadd.f32 %v7442, %v7570
        %v7699 = vadd.f32 %v7443, %v7571
        %v7700 = vadd.f32 %v7444, %v7572
        %v7701 = vadd.f32 %v7445, %v7573
        %v7702 = vadd.f32 %v7446, %v7574
        %v7703 = vadd.f32 %v7447, %v7575
        %v7704 = vadd.f32 %v7448, %v7576
        %v7705 = vadd.f32 %v7449, %v7577
        %v7706 = vadd.f32 %v7450, %v7578
        %v7707 = vadd.f32 %v7451, %v7579
        %v7708 = vadd.f32 %v7452, %v7580
        %v7709 = vadd.f32 %v7453, %v7581
        %v7710 = vadd.f32 %v7454, %v7582
        %v7711 = vadd.f32 %v7455, %v7583
        %v7712 = vadd.f32 %v7456, %v7584
        %v7713 = vadd.f32 %v7457, %v7585
        %v7714 = vadd.f32 %v7458, %v7586
        %v7715 = vadd.f32 %v7459, %v7587
        %v7716 = vadd.f32 %v7460, %v7588
        %v7717 = vadd.f32 %v7461, %v7589
        %v7718 = vadd.f32 %v7462, %v7590
        %v7719 = vadd.f32 %v7463, %v7591
        %v7720 = vadd.f32 %v7464, %v7592
        %v7721 = vadd.f32 %v7465, %v7593
        %v7722 = vadd.f32 %v7466, %v7594
        %v7723 = vadd.f32 %v7467, %v7595
        %v7724 = vadd.f32 %v7468, %v7596
        %v7725 = vadd.f32 %v7469, %v7597
        %v7726 = vadd.f32 %v7470, %v7598
        %v7727 = vadd.f32 %v7471, %v7599
        %v7728 = vadd.f32 %v7472, %v7600
        %v7729 = vadd.f32 %v7473, %v7601
        %v7730 = vadd.f32 %v7474, %v7602
        %v7731 = vadd.f32 %v7475, %v7603
        %v7732 = vadd.f32 %v7476, %v7604
        %v7733 = vadd.f32 %v7477, %v7605
        %v7734 = vadd.f32 %v7478, %v7606
        %v7735 = vadd.f32 %v7479, %v7607
        %v7736 = vadd.f32 %v7480, %v7608
        %v7737 = vadd.f32 %v7481, %v7609
        %v7738 = vadd.f32 %v7482, %v7610
        %v7739 = vadd.f32 %v7483, %v7611
        %7740 = vst [vmem:[%s548] sm:$0xff] %v7612
        %7741 = vst [vmem:[%s548 + $0x8] sm:$0xff] %v7613
        %7742 = vst [vmem:[%s548 + $0x10] sm:$0xff] %v7614
        %7743 = vst [vmem:[%s548 + $0x18] sm:$0xff] %v7615
        %7744 = vst [vmem:[%s548 + $0x20] sm:$0xff] %v7616
        %7745 = vst [vmem:[%s548 + $0x28] sm:$0xff] %v7617
        %7746 = vst [vmem:[%s548 + $0x30] sm:$0xff] %v7618
        %7747 = vst [vmem:[%s548 + $0x38] sm:$0xff] %v7619
        %7748 = vst [vmem:[%s548 + $0x40] sm:$0xff] %v7620
        %7749 = vst [vmem:[%s548 + $0x48] sm:$0xff] %v7621
        %7750 = vst [vmem:[%s548 + $0x50] sm:$0xff] %v7622
        %7751 = vst [vmem:[%s548 + $0x58] sm:$0xff] %v7623
        %7752 = vst [vmem:[%s548 + $0x60] sm:$0xff] %v7624
        %7753 = vst [vmem:[%s548 + $0x68] sm:$0xff] %v7625
        %7754 = vst [vmem:[%s548 + $0x70] sm:$0xff] %v7626
        %7755 = vst [vmem:[%s548 + $0x78] sm:$0xff] %v7627
        %7756 = vst [vmem:[%s548 + $0x80] sm:$0xff] %v7628
        %7757 = vst [vmem:[%s548 + $0x88] sm:$0xff] %v7629
        %7758 = vst [vmem:[%s548 + $0x90] sm:$0xff] %v7630
        %7759 = vst [vmem:[%s548 + $0x98] sm:$0xff] %v7631
        %7760 = vst [vmem:[%s548 + $0xa0] sm:$0xff] %v7632
        %7761 = vst [vmem:[%s548 + $0xa8] sm:$0xff] %v7633
        %7762 = vst [vmem:[%s548 + $0xb0] sm:$0xff] %v7634
        %7763 = vst [vmem:[%s548 + $0xb8] sm:$0xff] %v7635
        %7764 = vst [vmem:[%s548 + $0xc0] sm:$0xff] %v7636
        %7765 = vst [vmem:[%s548 + $0xc8] sm:$0xff] %v7637
        %7766 = vst [vmem:[%s548 + $0xd0] sm:$0xff] %v7638
        %7767 = vst [vmem:[%s548 + $0xd8] sm:$0xff] %v7639
        %7768 = vst [vmem:[%s548 + $0xe0] sm:$0xff] %v7640
        %7769 = vst [vmem:[%s548 + $0xe8] sm:$0xff] %v7641
        %7770 = vst [vmem:[%s548 + $0xf0] sm:$0xff] %v7642
        %7771 = vst [vmem:[%s548 + $0xf8] sm:$0xff] %v7643
        %7772 = vst [vmem:[%s548 + $0x100] sm:$0xff] %v7644
        %7773 = vst [vmem:[%s548 + $0x108] sm:$0xff] %v7645
        %7774 = vst [vmem:[%s548 + $0x110] sm:$0xff] %v7646
        %7775 = vst [vmem:[%s548 + $0x118] sm:$0xff] %v7647
        %7776 = vst [vmem:[%s548 + $0x120] sm:$0xff] %v7648
        %7777 = vst [vmem:[%s548 + $0x128] sm:$0xff] %v7649
        %7778 = vst [vmem:[%s548 + $0x130] sm:$0xff] %v7650
        %7779 = vst [vmem:[%s548 + $0x138] sm:$0xff] %v7651
        %7780 = vst [vmem:[%s548 + $0x140] sm:$0xff] %v7652
        %7781 = vst [vmem:[%s548 + $0x148] sm:$0xff] %v7653
        %7782 = vst [vmem:[%s548 + $0x150] sm:$0xff] %v7654
        %7783 = vst [vmem:[%s548 + $0x158] sm:$0xff] %v7655
        %7784 = vst [vmem:[%s548 + $0x160] sm:$0xff] %v7656
        %7785 = vst [vmem:[%s548 + $0x168] sm:$0xff] %v7657
        %7786 = vst [vmem:[%s548 + $0x170] sm:$0xff] %v7658
        %7787 = vst [vmem:[%s548 + $0x178] sm:$0xff] %v7659
        %7788 = vst [vmem:[%s548 + $0x180] sm:$0xff] %v7660
        %7789 = vst [vmem:[%s548 + $0x188] sm:$0xff] %v7661
        %7790 = vst [vmem:[%s548 + $0x190] sm:$0xff] %v7662
        %7791 = vst [vmem:[%s548 + $0x198] sm:$0xff] %v7663
        %7792 = vst [vmem:[%s548 + $0x1a0] sm:$0xff] %v7664
        %7793 = vst [vmem:[%s548 + $0x1a8] sm:$0xff] %v7665
        %7794 = vst [vmem:[%s548 + $0x1b0] sm:$0xff] %v7666
        %7795 = vst [vmem:[%s548 + $0x1b8] sm:$0xff] %v7667
        %7796 = vst [vmem:[%s548 + $0x1c0] sm:$0xff] %v7668
        %7797 = vst [vmem:[%s548 + $0x1c8] sm:$0xff] %v7669
        %7798 = vst [vmem:[%s548 + $0x1d0] sm:$0xff] %v7670
        %7799 = vst [vmem:[%s548 + $0x1d8] sm:$0xff] %v7671
        %7800 = vst [vmem:[%s548 + $0x1e0] sm:$0xff] %v7672
        %7801 = vst [vmem:[%s548 + $0x1e8] sm:$0xff] %v7673
        %7802 = vst [vmem:[%s548 + $0x1f0] sm:$0xff] %v7674
        %7803 = vst [vmem:[%s548 + $0x1f8] sm:$0xff] %v7675
        %7804 = vst [vmem:[%s548 + $0x200] sm:$0xff] %v7676
        %7805 = vst [vmem:[%s548 + $0x208] sm:$0xff] %v7677
        %7806 = vst [vmem:[%s548 + $0x210] sm:$0xff] %v7678
        %7807 = vst [vmem:[%s548 + $0x218] sm:$0xff] %v7679
        %7808 = vst [vmem:[%s548 + $0x220] sm:$0xff] %v7680
        %7809 = vst [vmem:[%s548 + $0x228] sm:$0xff] %v7681
        %7810 = vst [vmem:[%s548 + $0x230] sm:$0xff] %v7682
        %7811 = vst [vmem:[%s548 + $0x238] sm:$0xff] %v7683
        %7812 = vst [vmem:[%s548 + $0x240] sm:$0xff] %v7684
        %7813 = vst [vmem:[%s548 + $0x248] sm:$0xff] %v7685
        %7814 = vst [vmem:[%s548 + $0x250] sm:$0xff] %v7686
        %7815 = vst [vmem:[%s548 + $0x258] sm:$0xff] %v7687
        %7816 = vst [vmem:[%s548 + $0x260] sm:$0xff] %v7688
        %7817 = vst [vmem:[%s548 + $0x268] sm:$0xff] %v7689
        %7818 = vst [vmem:[%s548 + $0x270] sm:$0xff] %v7690
        %7819 = vst [vmem:[%s548 + $0x278] sm:$0xff] %v7691
        %7820 = vst [vmem:[%s548 + $0x280] sm:$0xff] %v7692
        %7821 = vst [vmem:[%s548 + $0x288] sm:$0xff] %v7693
        %7822 = vst [vmem:[%s548 + $0x290] sm:$0xff] %v7694
        %7823 = vst [vmem:[%s548 + $0x298] sm:$0xff] %v7695
        %7824 = vst [vmem:[%s548 + $0x2a0] sm:$0xff] %v7696
        %7825 = vst [vmem:[%s548 + $0x2a8] sm:$0xff] %v7697
        %7826 = vst [vmem:[%s548 + $0x2b0] sm:$0xff] %v7698
        %7827 = vst [vmem:[%s548 + $0x2b8] sm:$0xff] %v7699
        %7828 = vst [vmem:[%s548 + $0x2c0] sm:$0xff] %v7700
        %7829 = vst [vmem:[%s548 + $0x2c8] sm:$0xff] %v7701
        %7830 = vst [vmem:[%s548 + $0x2d0] sm:$0xff] %v7702
        %7831 = vst [vmem:[%s548 + $0x2d8] sm:$0xff] %v7703
        %7832 = vst [vmem:[%s548 + $0x2e0] sm:$0xff] %v7704
        %7833 = vst [vmem:[%s548 + $0x2e8] sm:$0xff] %v7705
        %7834 = vst [vmem:[%s548 + $0x2f0] sm:$0xff] %v7706
        %7835 = vst [vmem:[%s548 + $0x2f8] sm:$0xff] %v7707
        %7836 = vst [vmem:[%s548 + $0x300] sm:$0xff] %v7708
        %7837 = vst [vmem:[%s548 + $0x308] sm:$0xff] %v7709
        %7838 = vst [vmem:[%s548 + $0x310] sm:$0xff] %v7710
        %7839 = vst [vmem:[%s548 + $0x318] sm:$0xff] %v7711
        %7840 = vst [vmem:[%s548 + $0x320] sm:$0xff] %v7712
        %7841 = vst [vmem:[%s548 + $0x328] sm:$0xff] %v7713
        %7842 = vst [vmem:[%s548 + $0x330] sm:$0xff] %v7714
        %7843 = vst [vmem:[%s548 + $0x338] sm:$0xff] %v7715
        %7844 = vst [vmem:[%s548 + $0x340] sm:$0xff] %v7716
        %7845 = vst [vmem:[%s548 + $0x348] sm:$0xff] %v7717
        %7846 = vst [vmem:[%s548 + $0x350] sm:$0xff] %v7718
        %7847 = vst [vmem:[%s548 + $0x358] sm:$0xff] %v7719
        %7848 = vst [vmem:[%s548 + $0x360] sm:$0xff] %v7720
        %7849 = vst [vmem:[%s548 + $0x368] sm:$0xff] %v7721
        %7850 = vst [vmem:[%s548 + $0x370] sm:$0xff] %v7722
        %7851 = vst [vmem:[%s548 + $0x378] sm:$0xff] %v7723
        %7852 = vst [vmem:[%s548 + $0x380] sm:$0xff] %v7724
        %7853 = vst [vmem:[%s548 + $0x388] sm:$0xff] %v7725
        %7854 = vst [vmem:[%s548 + $0x390] sm:$0xff] %v7726
        %7855 = vst [vmem:[%s548 + $0x398] sm:$0xff] %v7727
        %7856 = vst [vmem:[%s548 + $0x3a0] sm:$0xff] %v7728
        %7857 = vst [vmem:[%s548 + $0x3a8] sm:$0xff] %v7729
        %7858 = vst [vmem:[%s548 + $0x3b0] sm:$0xff] %v7730
        %7859 = vst [vmem:[%s548 + $0x3b8] sm:$0xff] %v7731
        %7860 = vst [vmem:[%s548 + $0x3c0] sm:$0xff] %v7732
        %7861 = vst [vmem:[%s548 + $0x3c8] sm:$0xff] %v7733
        %7862 = vst [vmem:[%s548 + $0x3d0] sm:$0xff] %v7734
        %7863 = vst [vmem:[%s548 + $0x3d8] sm:$0xff] %v7735
        %7864 = vst [vmem:[%s548 + $0x3e0] sm:$0xff] %v7736
        %7865 = vst [vmem:[%s548 + $0x3e8] sm:$0xff] %v7737
        %7866 = vst [vmem:[%s548 + $0x3f0] sm:$0xff] %v7738
        %7867 = vst [vmem:[%s548 + $0x3f8] sm:$0xff] %v7739
        %v7868 = vmul.f32 %v4800, 0.5
        %v7869 = vmul.f32 %v4801, 0.5
        %v7870 = vmul.f32 %v4808, 0.5
        %v7871 = vmul.f32 %v4809, 0.5
        %v7872 = vmul.f32 %v4816, 0.5
        %v7873 = vmul.f32 %v4817, 0.5
        %v7874 = vmul.f32 %v4824, 0.5
        %v7875 = vmul.f32 %v4825, 0.5
        %v7876 = vmul.f32 %v4832, 0.5
        %v7877 = vmul.f32 %v4833, 0.5
        %v7878 = vmul.f32 %v4840, 0.5
        %v7879 = vmul.f32 %v4841, 0.5
        %v7880 = vmul.f32 %v4848, 0.5
        %v7881 = vmul.f32 %v4849, 0.5
        %v7882 = vmul.f32 %v4856, 0.5
        %v7883 = vmul.f32 %v4857, 0.5
        %v7884 = vmul.f32 %v4864, 0.5
        %v7885 = vmul.f32 %v4865, 0.5
        %v7886 = vmul.f32 %v4872, 0.5
        %v7887 = vmul.f32 %v4873, 0.5
        %v7888 = vmul.f32 %v4880, 0.5
        %v7889 = vmul.f32 %v4881, 0.5
        %v7890 = vmul.f32 %v4888, 0.5
        %v7891 = vmul.f32 %v4889, 0.5
        %v7892 = vmul.f32 %v4896, 0.5
        %v7893 = vmul.f32 %v4897, 0.5
        %v7894 = vmul.f32 %v4904, 0.5
        %v7895 = vmul.f32 %v4905, 0.5
        %v7896 = vmul.f32 %v4912, 0.5
        %v7897 = vmul.f32 %v4913, 0.5
        %v7898 = vmul.f32 %v4920, 0.5
        %v7899 = vmul.f32 %v4921, 0.5
        %v7900 = vmul.f32 %v4928, 0.5
        %v7901 = vmul.f32 %v4929, 0.5
        %v7902 = vmul.f32 %v4936, 0.5
        %v7903 = vmul.f32 %v4937, 0.5
        %v7904 = vmul.f32 %v4944, 0.5
        %v7905 = vmul.f32 %v4945, 0.5
        %v7906 = vmul.f32 %v4952, 0.5
        %v7907 = vmul.f32 %v4953, 0.5
        %v7908 = vmul.f32 %v4960, 0.5
        %v7909 = vmul.f32 %v4961, 0.5
        %v7910 = vmul.f32 %v4968, 0.5
        %v7911 = vmul.f32 %v4969, 0.5
        %v7912 = vmul.f32 %v4976, 0.5
        %v7913 = vmul.f32 %v4977, 0.5
        %v7914 = vmul.f32 %v4984, 0.5
        %v7915 = vmul.f32 %v4985, 0.5
        %v7916 = vmul.f32 %v4992, 0.5
        %v7917 = vmul.f32 %v4993, 0.5
        %v7918 = vmul.f32 %v5000, 0.5
        %v7919 = vmul.f32 %v5001, 0.5
        %v7920 = vmul.f32 %v5008, 0.5
        %v7921 = vmul.f32 %v5009, 0.5
        %v7922 = vmul.f32 %v5016, 0.5
        %v7923 = vmul.f32 %v5017, 0.5
        %v7924 = vmul.f32 %v5024, 0.5
        %v7925 = vmul.f32 %v5025, 0.5
        %v7926 = vmul.f32 %v5032, 0.5
        %v7927 = vmul.f32 %v5033, 0.5
        %v7928 = vmul.f32 %v5040, 0.5
        %v7929 = vmul.f32 %v5041, 0.5
        %v7930 = vmul.f32 %v5048, 0.5
        %v7931 = vmul.f32 %v5049, 0.5
        %v7932 = vmul.f32 %v5056, 0.5
        %v7933 = vmul.f32 %v5057, 0.5
        %v7934 = vmul.f32 %v5064, 0.5
        %v7935 = vmul.f32 %v5065, 0.5
        %v7936 = vmul.f32 %v5072, 0.5
        %v7937 = vmul.f32 %v5073, 0.5
        %v7938 = vmul.f32 %v5080, 0.5
        %v7939 = vmul.f32 %v5081, 0.5
        %v7940 = vmul.f32 %v5088, 0.5
        %v7941 = vmul.f32 %v5089, 0.5
        %v7942 = vmul.f32 %v5096, 0.5
        %v7943 = vmul.f32 %v5097, 0.5
        %v7944 = vmul.f32 %v5104, 0.5
        %v7945 = vmul.f32 %v5105, 0.5
        %v7946 = vmul.f32 %v5112, 0.5
        %v7947 = vmul.f32 %v5113, 0.5
        %v7948 = vmul.f32 %v5120, 0.5
        %v7949 = vmul.f32 %v5121, 0.5
        %v7950 = vmul.f32 %v5128, 0.5
        %v7951 = vmul.f32 %v5129, 0.5
        %v7952 = vmul.f32 %v5136, 0.5
        %v7953 = vmul.f32 %v5137, 0.5
        %v7954 = vmul.f32 %v5144, 0.5
        %v7955 = vmul.f32 %v5145, 0.5
        %v7956 = vmul.f32 %v5152, 0.5
        %v7957 = vmul.f32 %v5153, 0.5
        %v7958 = vmul.f32 %v5160, 0.5
        %v7959 = vmul.f32 %v5161, 0.5
        %v7960 = vmul.f32 %v5168, 0.5
        %v7961 = vmul.f32 %v5169, 0.5
        %v7962 = vmul.f32 %v5176, 0.5
        %v7963 = vmul.f32 %v5177, 0.5
        %v7964 = vmul.f32 %v5184, 0.5
        %v7965 = vmul.f32 %v5185, 0.5
        %v7966 = vmul.f32 %v5192, 0.5
        %v7967 = vmul.f32 %v5193, 0.5
        %v7968 = vmul.f32 %v5200, 0.5
        %v7969 = vmul.f32 %v5201, 0.5
        %v7970 = vmul.f32 %v5208, 0.5
        %v7971 = vmul.f32 %v5209, 0.5
        %v7972 = vmul.f32 %v5216, 0.5
        %v7973 = vmul.f32 %v5217, 0.5
        %v7974 = vmul.f32 %v5224, 0.5
        %v7975 = vmul.f32 %v5225, 0.5
        %v7976 = vmul.f32 %v5232, 0.5
        %v7977 = vmul.f32 %v5233, 0.5
        %v7978 = vmul.f32 %v5240, 0.5
        %v7979 = vmul.f32 %v5241, 0.5
        %v7980 = vmul.f32 %v5248, 0.5
        %v7981 = vmul.f32 %v5249, 0.5
        %v7982 = vmul.f32 %v5256, 0.5
        %v7983 = vmul.f32 %v5257, 0.5
        %v7984 = vmul.f32 %v5264, 0.5
        %v7985 = vmul.f32 %v5265, 0.5
        %v7986 = vmul.f32 %v5272, 0.5
        %v7987 = vmul.f32 %v5273, 0.5
        %v7988 = vmul.f32 %v5280, 0.5
        %v7989 = vmul.f32 %v5281, 0.5
        %v7990 = vmul.f32 %v5288, 0.5
        %v7991 = vmul.f32 %v5289, 0.5
        %v7992 = vmul.f32 %v5296, 0.5
        %v7993 = vmul.f32 %v5297, 0.5
        %v7994 = vmul.f32 %v5304, 0.5
        %v7995 = vmul.f32 %v5305, 0.5
        %v7996 = vtanh.pop %v7868
        %v7997 = vtanh.pop %v7869
        %v7998 = vtanh.pop %v7870
        %v7999 = vtanh.pop %v7871
        %v8000 = vtanh.pop %v7872
        %v8001 = vtanh.pop %v7873
        %v8002 = vtanh.pop %v7874
        %v8003 = vtanh.pop %v7875
        %v8004 = vtanh.pop %v7876
        %v8005 = vtanh.pop %v7877
        %v8006 = vtanh.pop %v7878
        %v8007 = vtanh.pop %v7879
        %v8008 = vtanh.pop %v7880
        %v8009 = vtanh.pop %v7881
        %v8010 = vtanh.pop %v7882
        %v8011 = vtanh.pop %v7883
        %v8012 = vtanh.pop %v7884
        %v8013 = vtanh.pop %v7885
        %v8014 = vtanh.pop %v7886
        %v8015 = vtanh.pop %v7887
        %v8016 = vtanh.pop %v7888
        %v8017 = vtanh.pop %v7889
        %v8018 = vtanh.pop %v7890
        %v8019 = vtanh.pop %v7891
        %v8020 = vtanh.pop %v7892
        %v8021 = vtanh.pop %v7893
        %v8022 = vtanh.pop %v7894
        %v8023 = vtanh.pop %v7895
        %v8024 = vtanh.pop %v7896
        %v8025 = vtanh.pop %v7897
        %v8026 = vtanh.pop %v7898
        %v8027 = vtanh.pop %v7899
        %v8028 = vtanh.pop %v7900
        %v8029 = vtanh.pop %v7901
        %v8030 = vtanh.pop %v7902
        %v8031 = vtanh.pop %v7903
        %v8032 = vtanh.pop %v7904
        %v8033 = vtanh.pop %v7905
        %v8034 = vtanh.pop %v7906
        %v8035 = vtanh.pop %v7907
        %v8036 = vtanh.pop %v7908
        %v8037 = vtanh.pop %v7909
        %v8038 = vtanh.pop %v7910
        %v8039 = vtanh.pop %v7911
        %v8040 = vtanh.pop %v7912
        %v8041 = vtanh.pop %v7913
        %v8042 = vtanh.pop %v7914
        %v8043 = vtanh.pop %v7915
        %v8044 = vtanh.pop %v7916
        %v8045 = vtanh.pop %v7917
        %v8046 = vtanh.pop %v7918
        %v8047 = vtanh.pop %v7919
        %v8048 = vtanh.pop %v7920
        %v8049 = vtanh.pop %v7921
        %v8050 = vtanh.pop %v7922
        %v8051 = vtanh.pop %v7923
        %v8052 = vtanh.pop %v7924
        %v8053 = vtanh.pop %v7925
        %v8054 = vtanh.pop %v7926
        %v8055 = vtanh.pop %v7927
        %v8056 = vtanh.pop %v7928
        %v8057 = vtanh.pop %v7929
        %v8058 = vtanh.pop %v7930
        %v8059 = vtanh.pop %v7931
        %v8060 = vtanh.pop %v7932
        %v8061 = vtanh.pop %v7933
        %v8062 = vtanh.pop %v7934
        %v8063 = vtanh.pop %v7935
        %v8064 = vtanh.pop %v7936
        %v8065 = vtanh.pop %v7937
        %v8066 = vtanh.pop %v7938
        %v8067 = vtanh.pop %v7939
        %v8068 = vtanh.pop %v7940
        %v8069 = vtanh.pop %v7941
        %v8070 = vtanh.pop %v7942
        %v8071 = vtanh.pop %v7943
        %v8072 = vtanh.pop %v7944
        %v8073 = vtanh.pop %v7945
        %v8074 = vtanh.pop %v7946
        %v8075 = vtanh.pop %v7947
        %v8076 = vtanh.pop %v7948
        %v8077 = vtanh.pop %v7949
        %v8078 = vtanh.pop %v7950
        %v8079 = vtanh.pop %v7951
        %v8080 = vtanh.pop %v7952
        %v8081 = vtanh.pop %v7953
        %v8082 = vtanh.pop %v7954
        %v8083 = vtanh.pop %v7955
        %v8084 = vtanh.pop %v7956
        %v8085 = vtanh.pop %v7957
        %v8086 = vtanh.pop %v7958
        %v8087 = vtanh.pop %v7959
        %v8088 = vtanh.pop %v7960
        %v8089 = vtanh.pop %v7961
        %v8090 = vtanh.pop %v7962
        %v8091 = vtanh.pop %v7963
        %v8092 = vtanh.pop %v7964
        %v8093 = vtanh.pop %v7965
        %v8094 = vtanh.pop %v7966
        %v8095 = vtanh.pop %v7967
        %v8096 = vtanh.pop %v7968
        %v8097 = vtanh.pop %v7969
        %v8098 = vtanh.pop %v7970
        %v8099 = vtanh.pop %v7971
        %v8100 = vtanh.pop %v7972
        %v8101 = vtanh.pop %v7973
        %v8102 = vtanh.pop %v7974
        %v8103 = vtanh.pop %v7975
        %v8104 = vtanh.pop %v7976
        %v8105 = vtanh.pop %v7977
        %v8106 = vtanh.pop %v7978
        %v8107 = vtanh.pop %v7979
        %v8108 = vtanh.pop %v7980
        %v8109 = vtanh.pop %v7981
        %v8110 = vtanh.pop %v7982
        %v8111 = vtanh.pop %v7983
        %v8112 = vtanh.pop %v7984
        %v8113 = vtanh.pop %v7985
        %v8114 = vtanh.pop %v7986
        %v8115 = vtanh.pop %v7987
        %v8116 = vtanh.pop %v7988
        %v8117 = vtanh.pop %v7989
        %v8118 = vtanh.pop %v7990
        %v8119 = vtanh.pop %v7991
        %v8120 = vtanh.pop %v7992
        %v8121 = vtanh.pop %v7993
        %v8122 = vtanh.pop %v7994
        %v8123 = vtanh.pop %v7995
        %v8124 = vadd.f32 %v7996, 1.0
        %v8125 = vadd.f32 %v7997, 1.0
        %v8126 = vadd.f32 %v7998, 1.0
        %v8127 = vadd.f32 %v7999, 1.0
        %v8128 = vadd.f32 %v8000, 1.0
        %v8129 = vadd.f32 %v8001, 1.0
        %v8130 = vadd.f32 %v8002, 1.0
        %v8131 = vadd.f32 %v8003, 1.0
        %v8132 = vadd.f32 %v8004, 1.0
        %v8133 = vadd.f32 %v8005, 1.0
        %v8134 = vadd.f32 %v8006, 1.0
        %v8135 = vadd.f32 %v8007, 1.0
        %v8136 = vadd.f32 %v8008, 1.0
        %v8137 = vadd.f32 %v8009, 1.0
        %v8138 = vadd.f32 %v8010, 1.0
        %v8139 = vadd.f32 %v8011, 1.0
        %v8140 = vadd.f32 %v8012, 1.0
        %v8141 = vadd.f32 %v8013, 1.0
        %v8142 = vadd.f32 %v8014, 1.0
        %v8143 = vadd.f32 %v8015, 1.0
        %v8144 = vadd.f32 %v8016, 1.0
        %v8145 = vadd.f32 %v8017, 1.0
        %v8146 = vadd.f32 %v8018, 1.0
        %v8147 = vadd.f32 %v8019, 1.0
        %v8148 = vadd.f32 %v8020, 1.0
        %v8149 = vadd.f32 %v8021, 1.0
        %v8150 = vadd.f32 %v8022, 1.0
        %v8151 = vadd.f32 %v8023, 1.0
        %v8152 = vadd.f32 %v8024, 1.0
        %v8153 = vadd.f32 %v8025, 1.0
        %v8154 = vadd.f32 %v8026, 1.0
        %v8155 = vadd.f32 %v8027, 1.0
        %v8156 = vadd.f32 %v8028, 1.0
        %v8157 = vadd.f32 %v8029, 1.0
        %v8158 = vadd.f32 %v8030, 1.0
        %v8159 = vadd.f32 %v8031, 1.0
        %v8160 = vadd.f32 %v8032, 1.0
        %v8161 = vadd.f32 %v8033, 1.0
        %v8162 = vadd.f32 %v8034, 1.0
        %v8163 = vadd.f32 %v8035, 1.0
        %v8164 = vadd.f32 %v8036, 1.0
        %v8165 = vadd.f32 %v8037, 1.0
        %v8166 = vadd.f32 %v8038, 1.0
        %v8167 = vadd.f32 %v8039, 1.0
        %v8168 = vadd.f32 %v8040, 1.0
        %v8169 = vadd.f32 %v8041, 1.0
        %v8170 = vadd.f32 %v8042, 1.0
        %v8171 = vadd.f32 %v8043, 1.0
        %v8172 = vadd.f32 %v8044, 1.0
        %v8173 = vadd.f32 %v8045, 1.0
        %v8174 = vadd.f32 %v8046, 1.0
        %v8175 = vadd.f32 %v8047, 1.0
        %v8176 = vadd.f32 %v8048, 1.0
        %v8177 = vadd.f32 %v8049, 1.0
        %v8178 = vadd.f32 %v8050, 1.0
        %v8179 = vadd.f32 %v8051, 1.0
        %v8180 = vadd.f32 %v8052, 1.0
        %v8181 = vadd.f32 %v8053, 1.0
        %v8182 = vadd.f32 %v8054, 1.0
        %v8183 = vadd.f32 %v8055, 1.0
        %v8184 = vadd.f32 %v8056, 1.0
        %v8185 = vadd.f32 %v8057, 1.0
        %v8186 = vadd.f32 %v8058, 1.0
        %v8187 = vadd.f32 %v8059, 1.0
        %v8188 = vadd.f32 %v8060, 1.0
        %v8189 = vadd.f32 %v8061, 1.0
        %v8190 = vadd.f32 %v8062, 1.0
        %v8191 = vadd.f32 %v8063, 1.0
        %v8192 = vadd.f32 %v8064, 1.0
        %v8193 = vadd.f32 %v8065, 1.0
        %v8194 = vadd.f32 %v8066, 1.0
        %v8195 = vadd.f32 %v8067, 1.0
        %v8196 = vadd.f32 %v8068, 1.0
        %v8197 = vadd.f32 %v8069, 1.0
        %v8198 = vadd.f32 %v8070, 1.0
        %v8199 = vadd.f32 %v8071, 1.0
        %v8200 = vadd.f32 %v8072, 1.0
        %v8201 = vadd.f32 %v8073, 1.0
        %v8202 = vadd.f32 %v8074, 1.0
        %v8203 = vadd.f32 %v8075, 1.0
        %v8204 = vadd.f32 %v8076, 1.0
        %v8205 = vadd.f32 %v8077, 1.0
        %v8206 = vadd.f32 %v8078, 1.0
        %v8207 = vadd.f32 %v8079, 1.0
        %v8208 = vadd.f32 %v8080, 1.0
        %v8209 = vadd.f32 %v8081, 1.0
        %v8210 = vadd.f32 %v8082, 1.0
        %v8211 = vadd.f32 %v8083, 1.0
        %v8212 = vadd.f32 %v8084, 1.0
        %v8213 = vadd.f32 %v8085, 1.0
        %v8214 = vadd.f32 %v8086, 1.0
        %v8215 = vadd.f32 %v8087, 1.0
        %v8216 = vadd.f32 %v8088, 1.0
        %v8217 = vadd.f32 %v8089, 1.0
        %v8218 = vadd.f32 %v8090, 1.0
        %v8219 = vadd.f32 %v8091, 1.0
        %v8220 = vadd.f32 %v8092, 1.0
        %v8221 = vadd.f32 %v8093, 1.0
        %v8222 = vadd.f32 %v8094, 1.0
        %v8223 = vadd.f32 %v8095, 1.0
        %v8224 = vadd.f32 %v8096, 1.0
        %v8225 = vadd.f32 %v8097, 1.0
        %v8226 = vadd.f32 %v8098, 1.0
        %v8227 = vadd.f32 %v8099, 1.0
        %v8228 = vadd.f32 %v8100, 1.0
        %v8229 = vadd.f32 %v8101, 1.0
        %v8230 = vadd.f32 %v8102, 1.0
        %v8231 = vadd.f32 %v8103, 1.0
        %v8232 = vadd.f32 %v8104, 1.0
        %v8233 = vadd.f32 %v8105, 1.0
        %v8234 = vadd.f32 %v8106, 1.0
        %v8235 = vadd.f32 %v8107, 1.0
        %v8236 = vadd.f32 %v8108, 1.0
        %v8237 = vadd.f32 %v8109, 1.0
        %v8238 = vadd.f32 %v8110, 1.0
        %v8239 = vadd.f32 %v8111, 1.0
        %v8240 = vadd.f32 %v8112, 1.0
        %v8241 = vadd.f32 %v8113, 1.0
        %v8242 = vadd.f32 %v8114, 1.0
        %v8243 = vadd.f32 %v8115, 1.0
        %v8244 = vadd.f32 %v8116, 1.0
        %v8245 = vadd.f32 %v8117, 1.0
        %v8246 = vadd.f32 %v8118, 1.0
        %v8247 = vadd.f32 %v8119, 1.0
        %v8248 = vadd.f32 %v8120, 1.0
        %v8249 = vadd.f32 %v8121, 1.0
        %v8250 = vadd.f32 %v8122, 1.0
        %v8251 = vadd.f32 %v8123, 1.0
        %v8252 = vmul.f32 %v8124, 0.5
        %v8253 = vmul.f32 %v8125, 0.5
        %v8254 = vmul.f32 %v8126, 0.5
        %v8255 = vmul.f32 %v8127, 0.5
        %v8256 = vmul.f32 %v8128, 0.5
        %v8257 = vmul.f32 %v8129, 0.5
        %v8258 = vmul.f32 %v8130, 0.5
        %v8259 = vmul.f32 %v8131, 0.5
        %v8260 = vmul.f32 %v8132, 0.5
        %v8261 = vmul.f32 %v8133, 0.5
        %v8262 = vmul.f32 %v8134, 0.5
        %v8263 = vmul.f32 %v8135, 0.5
        %v8264 = vmul.f32 %v8136, 0.5
        %v8265 = vmul.f32 %v8137, 0.5
        %v8266 = vmul.f32 %v8138, 0.5
        %v8267 = vmul.f32 %v8139, 0.5
        %v8268 = vmul.f32 %v8140, 0.5
        %v8269 = vmul.f32 %v8141, 0.5
        %v8270 = vmul.f32 %v8142, 0.5
        %v8271 = vmul.f32 %v8143, 0.5
        %v8272 = vmul.f32 %v8144, 0.5
        %v8273 = vmul.f32 %v8145, 0.5
        %v8274 = vmul.f32 %v8146, 0.5
        %v8275 = vmul.f32 %v8147, 0.5
        %v8276 = vmul.f32 %v8148, 0.5
        %v8277 = vmul.f32 %v8149, 0.5
        %v8278 = vmul.f32 %v8150, 0.5
        %v8279 = vmul.f32 %v8151, 0.5
        %v8280 = vmul.f32 %v8152, 0.5
        %v8281 = vmul.f32 %v8153, 0.5
        %v8282 = vmul.f32 %v8154, 0.5
        %v8283 = vmul.f32 %v8155, 0.5
        %v8284 = vmul.f32 %v8156, 0.5
        %v8285 = vmul.f32 %v8157, 0.5
        %v8286 = vmul.f32 %v8158, 0.5
        %v8287 = vmul.f32 %v8159, 0.5
        %v8288 = vmul.f32 %v8160, 0.5
        %v8289 = vmul.f32 %v8161, 0.5
        %v8290 = vmul.f32 %v8162, 0.5
        %v8291 = vmul.f32 %v8163, 0.5
        %v8292 = vmul.f32 %v8164, 0.5
        %v8293 = vmul.f32 %v8165, 0.5
        %v8294 = vmul.f32 %v8166, 0.5
        %v8295 = vmul.f32 %v8167, 0.5
        %v8296 = vmul.f32 %v8168, 0.5
        %v8297 = vmul.f32 %v8169, 0.5
        %v8298 = vmul.f32 %v8170, 0.5
        %v8299 = vmul.f32 %v8171, 0.5
        %v8300 = vmul.f32 %v8172, 0.5
        %v8301 = vmul.f32 %v8173, 0.5
        %v8302 = vmul.f32 %v8174, 0.5
        %v8303 = vmul.f32 %v8175, 0.5
        %v8304 = vmul.f32 %v8176, 0.5
        %v8305 = vmul.f32 %v8177, 0.5
        %v8306 = vmul.f32 %v8178, 0.5
        %v8307 = vmul.f32 %v8179, 0.5
        %v8308 = vmul.f32 %v8180, 0.5
        %v8309 = vmul.f32 %v8181, 0.5
        %v8310 = vmul.f32 %v8182, 0.5
        %v8311 = vmul.f32 %v8183, 0.5
        %v8312 = vmul.f32 %v8184, 0.5
        %v8313 = vmul.f32 %v8185, 0.5
        %v8314 = vmul.f32 %v8186, 0.5
        %v8315 = vmul.f32 %v8187, 0.5
        %v8316 = vmul.f32 %v8188, 0.5
        %v8317 = vmul.f32 %v8189, 0.5
        %v8318 = vmul.f32 %v8190, 0.5
        %v8319 = vmul.f32 %v8191, 0.5
        %v8320 = vmul.f32 %v8192, 0.5
        %v8321 = vmul.f32 %v8193, 0.5
        %v8322 = vmul.f32 %v8194, 0.5
        %v8323 = vmul.f32 %v8195, 0.5
        %v8324 = vmul.f32 %v8196, 0.5
        %v8325 = vmul.f32 %v8197, 0.5
        %v8326 = vmul.f32 %v8198, 0.5
        %v8327 = vmul.f32 %v8199, 0.5
        %v8328 = vmul.f32 %v8200, 0.5
        %v8329 = vmul.f32 %v8201, 0.5
        %v8330 = vmul.f32 %v8202, 0.5
        %v8331 = vmul.f32 %v8203, 0.5
        %v8332 = vmul.f32 %v8204, 0.5
        %v8333 = vmul.f32 %v8205, 0.5
        %v8334 = vmul.f32 %v8206, 0.5
        %v8335 = vmul.f32 %v8207, 0.5
        %v8336 = vmul.f32 %v8208, 0.5
        %v8337 = vmul.f32 %v8209, 0.5
        %v8338 = vmul.f32 %v8210, 0.5
        %v8339 = vmul.f32 %v8211, 0.5
        %v8340 = vmul.f32 %v8212, 0.5
        %v8341 = vmul.f32 %v8213, 0.5
        %v8342 = vmul.f32 %v8214, 0.5
        %v8343 = vmul.f32 %v8215, 0.5
        %v8344 = vmul.f32 %v8216, 0.5
        %v8345 = vmul.f32 %v8217, 0.5
        %v8346 = vmul.f32 %v8218, 0.5
        %v8347 = vmul.f32 %v8219, 0.5
        %v8348 = vmul.f32 %v8220, 0.5
        %v8349 = vmul.f32 %v8221, 0.5
        %v8350 = vmul.f32 %v8222, 0.5
        %v8351 = vmul.f32 %v8223, 0.5
        %v8352 = vmul.f32 %v8224, 0.5
        %v8353 = vmul.f32 %v8225, 0.5
        %v8354 = vmul.f32 %v8226, 0.5
        %v8355 = vmul.f32 %v8227, 0.5
        %v8356 = vmul.f32 %v8228, 0.5
        %v8357 = vmul.f32 %v8229, 0.5
        %v8358 = vmul.f32 %v8230, 0.5
        %v8359 = vmul.f32 %v8231, 0.5
        %v8360 = vmul.f32 %v8232, 0.5
        %v8361 = vmul.f32 %v8233, 0.5
        %v8362 = vmul.f32 %v8234, 0.5
        %v8363 = vmul.f32 %v8235, 0.5
        %v8364 = vmul.f32 %v8236, 0.5
        %v8365 = vmul.f32 %v8237, 0.5
        %v8366 = vmul.f32 %v8238, 0.5
        %v8367 = vmul.f32 %v8239, 0.5
        %v8368 = vmul.f32 %v8240, 0.5
        %v8369 = vmul.f32 %v8241, 0.5
        %v8370 = vmul.f32 %v8242, 0.5
        %v8371 = vmul.f32 %v8243, 0.5
        %v8372 = vmul.f32 %v8244, 0.5
        %v8373 = vmul.f32 %v8245, 0.5
        %v8374 = vmul.f32 %v8246, 0.5
        %v8375 = vmul.f32 %v8247, 0.5
        %v8376 = vmul.f32 %v8248, 0.5
        %v8377 = vmul.f32 %v8249, 0.5
        %v8378 = vmul.f32 %v8250, 0.5
        %v8379 = vmul.f32 %v8251, 0.5
        %v8380 = vrcp.pop %v6844
        %v8381 = vrcp.pop %v6845
        %v8382 = vrcp.pop %v6846
        %v8383 = vrcp.pop %v6847
        %v8384 = vrcp.pop %v6848
        %v8385 = vrcp.pop %v6849
        %v8386 = vrcp.pop %v6850
        %v8387 = vrcp.pop %v6851
        %v8388 = vrcp.pop %v6852
        %v8389 = vrcp.pop %v6853
        %v8390 = vrcp.pop %v6854
        %v8391 = vrcp.pop %v6855
        %v8392 = vrcp.pop %v6856
        %v8393 = vrcp.pop %v6857
        %v8394 = vrcp.pop %v6858
        %v8395 = vrcp.pop %v6859
        %v8396 = vrcp.pop %v6860
        %v8397 = vrcp.pop %v6861
        %v8398 = vrcp.pop %v6862
        %v8399 = vrcp.pop %v6863
        %v8400 = vrcp.pop %v6864
        %v8401 = vrcp.pop %v6865
        %v8402 = vrcp.pop %v6866
        %v8403 = vrcp.pop %v6867
        %v8404 = vrcp.pop %v6868
        %v8405 = vrcp.pop %v6869
        %v8406 = vrcp.pop %v6870
        %v8407 = vrcp.pop %v6871
        %v8408 = vrcp.pop %v6872
        %v8409 = vrcp.pop %v6873
        %v8410 = vrcp.pop %v6874
        %v8411 = vrcp.pop %v6875
        %v8412 = vrcp.pop %v6876
        %v8413 = vrcp.pop %v6877
        %v8414 = vrcp.pop %v6878
        %v8415 = vrcp.pop %v6879
        %v8416 = vrcp.pop %v6880
        %v8417 = vrcp.pop %v6881
        %v8418 = vrcp.pop %v6882
        %v8419 = vrcp.pop %v6883
        %v8420 = vrcp.pop %v6884
        %v8421 = vrcp.pop %v6885
        %v8422 = vrcp.pop %v6886
        %v8423 = vrcp.pop %v6887
        %v8424 = vrcp.pop %v6888
        %v8425 = vrcp.pop %v6889
        %v8426 = vrcp.pop %v6890
        %v8427 = vrcp.pop %v6891
        %v8428 = vrcp.pop %v6892
        %v8429 = vrcp.pop %v6893
        %v8430 = vrcp.pop %v6894
        %v8431 = vrcp.pop %v6895
        %v8432 = vrcp.pop %v6896
        %v8433 = vrcp.pop %v6897
        %v8434 = vrcp.pop %v6898
        %v8435 = vrcp.pop %v6899
        %v8436 = vrcp.pop %v6900
        %v8437 = vrcp.pop %v6901
        %v8438 = vrcp.pop %v6902
        %v8439 = vrcp.pop %v6903
        %v8440 = vrcp.pop %v6904
        %v8441 = vrcp.pop %v6905
        %v8442 = vrcp.pop %v6906
        %v8443 = vrcp.pop %v6907
        %v8444 = vrcp.pop %v6908
        %v8445 = vrcp.pop %v6909
        %v8446 = vrcp.pop %v6910
        %v8447 = vrcp.pop %v6911
        %v8448 = vrcp.pop %v6912
        %v8449 = vrcp.pop %v6913
        %v8450 = vrcp.pop %v6914
        %v8451 = vrcp.pop %v6915
        %v8452 = vrcp.pop %v6916
        %v8453 = vrcp.pop %v6917
        %v8454 = vrcp.pop %v6918
        %v8455 = vrcp.pop %v6919
        %v8456 = vrcp.pop %v6920
        %v8457 = vrcp.pop %v6921
        %v8458 = vrcp.pop %v6922
        %v8459 = vrcp.pop %v6923
        %v8460 = vrcp.pop %v6924
        %v8461 = vrcp.pop %v6925
        %v8462 = vrcp.pop %v6926
        %v8463 = vrcp.pop %v6927
        %v8464 = vrcp.pop %v6928
        %v8465 = vrcp.pop %v6929
        %v8466 = vrcp.pop %v6930
        %v8467 = vrcp.pop %v6931
        %v8468 = vrcp.pop %v6932
        %v8469 = vrcp.pop %v6933
        %v8470 = vrcp.pop %v6934
        %v8471 = vrcp.pop %v6935
        %v8472 = vrcp.pop %v6936
        %v8473 = vrcp.pop %v6937
        %v8474 = vrcp.pop %v6938
        %v8475 = vrcp.pop %v6939
        %v8476 = vrcp.pop %v6940
        %v8477 = vrcp.pop %v6941
        %v8478 = vrcp.pop %v6942
        %v8479 = vrcp.pop %v6943
        %v8480 = vrcp.pop %v6944
        %v8481 = vrcp.pop %v6945
        %v8482 = vrcp.pop %v6946
        %v8483 = vrcp.pop %v6947
        %v8484 = vrcp.pop %v6948
        %v8485 = vrcp.pop %v6949
        %v8486 = vrcp.pop %v6950
        %v8487 = vrcp.pop %v6951
        %v8488 = vrcp.pop %v6952
        %v8489 = vrcp.pop %v6953
        %v8490 = vrcp.pop %v6954
        %v8491 = vrcp.pop %v6955
        %v8492 = vrcp.pop %v6956
        %v8493 = vrcp.pop %v6957
        %v8494 = vrcp.pop %v6958
        %v8495 = vrcp.pop %v6959
        %v8496 = vrcp.pop %v6960
        %v8497 = vrcp.pop %v6961
        %v8498 = vrcp.pop %v6962
        %v8499 = vrcp.pop %v6963
        %v8500 = vrcp.pop %v6964
        %v8501 = vrcp.pop %v6965
        %v8502 = vrcp.pop %v6966
        %v8503 = vrcp.pop %v6967
        %v8504 = vrcp.pop %v6968
        %v8505 = vrcp.pop %v6969
        %v8506 = vrcp.pop %v6970
        %v8507 = vrcp.pop %v6971
        %v8508 = vmul.f32 %v7612, %v8380
        %v8509 = vmul.f32 %v7613, %v8381
        %v8510 = vmul.f32 %v7614, %v8382
        %v8511 = vmul.f32 %v7615, %v8383
        %v8512 = vmul.f32 %v7616, %v8384
        %v8513 = vmul.f32 %v7617, %v8385
        %v8514 = vmul.f32 %v7618, %v8386
        %v8515 = vmul.f32 %v7619, %v8387
        %v8516 = vmul.f32 %v7620, %v8388
        %v8517 = vmul.f32 %v7621, %v8389
        %v8518 = vmul.f32 %v7622, %v8390
        %v8519 = vmul.f32 %v7623, %v8391
        %v8520 = vmul.f32 %v7624, %v8392
        %v8521 = vmul.f32 %v7625, %v8393
        %v8522 = vmul.f32 %v7626, %v8394
        %v8523 = vmul.f32 %v7627, %v8395
        %v8524 = vmul.f32 %v7628, %v8396
        %v8525 = vmul.f32 %v7629, %v8397
        %v8526 = vmul.f32 %v7630, %v8398
        %v8527 = vmul.f32 %v7631, %v8399
        %v8528 = vmul.f32 %v7632, %v8400
        %v8529 = vmul.f32 %v7633, %v8401
        %v8530 = vmul.f32 %v7634, %v8402
        %v8531 = vmul.f32 %v7635, %v8403
        %v8532 = vmul.f32 %v7636, %v8404
        %v8533 = vmul.f32 %v7637, %v8405
        %v8534 = vmul.f32 %v7638, %v8406
        %v8535 = vmul.f32 %v7639, %v8407
        %v8536 = vmul.f32 %v7640, %v8408
        %v8537 = vmul.f32 %v7641, %v8409
        %v8538 = vmul.f32 %v7642, %v8410
        %v8539 = vmul.f32 %v7643, %v8411
        %v8540 = vmul.f32 %v7644, %v8412
        %v8541 = vmul.f32 %v7645, %v8413
        %v8542 = vmul.f32 %v7646, %v8414
        %v8543 = vmul.f32 %v7647, %v8415
        %v8544 = vmul.f32 %v7648, %v8416
        %v8545 = vmul.f32 %v7649, %v8417
        %v8546 = vmul.f32 %v7650, %v8418
        %v8547 = vmul.f32 %v7651, %v8419
        %v8548 = vmul.f32 %v7652, %v8420
        %v8549 = vmul.f32 %v7653, %v8421
        %v8550 = vmul.f32 %v7654, %v8422
        %v8551 = vmul.f32 %v7655, %v8423
        %v8552 = vmul.f32 %v7656, %v8424
        %v8553 = vmul.f32 %v7657, %v8425
        %v8554 = vmul.f32 %v7658, %v8426
        %v8555 = vmul.f32 %v7659, %v8427
        %v8556 = vmul.f32 %v7660, %v8428
        %v8557 = vmul.f32 %v7661, %v8429
        %v8558 = vmul.f32 %v7662, %v8430
        %v8559 = vmul.f32 %v7663, %v8431
        %v8560 = vmul.f32 %v7664, %v8432
        %v8561 = vmul.f32 %v7665, %v8433
        %v8562 = vmul.f32 %v7666, %v8434
        %v8563 = vmul.f32 %v7667, %v8435
        %v8564 = vmul.f32 %v7668, %v8436
        %v8565 = vmul.f32 %v7669, %v8437
        %v8566 = vmul.f32 %v7670, %v8438
        %v8567 = vmul.f32 %v7671, %v8439
        %v8568 = vmul.f32 %v7672, %v8440
        %v8569 = vmul.f32 %v7673, %v8441
        %v8570 = vmul.f32 %v7674, %v8442
        %v8571 = vmul.f32 %v7675, %v8443
        %v8572 = vmul.f32 %v7676, %v8444
        %v8573 = vmul.f32 %v7677, %v8445
        %v8574 = vmul.f32 %v7678, %v8446
        %v8575 = vmul.f32 %v7679, %v8447
        %v8576 = vmul.f32 %v7680, %v8448
        %v8577 = vmul.f32 %v7681, %v8449
        %v8578 = vmul.f32 %v7682, %v8450
        %v8579 = vmul.f32 %v7683, %v8451
        %v8580 = vmul.f32 %v7684, %v8452
        %v8581 = vmul.f32 %v7685, %v8453
        %v8582 = vmul.f32 %v7686, %v8454
        %v8583 = vmul.f32 %v7687, %v8455
        %v8584 = vmul.f32 %v7688, %v8456
        %v8585 = vmul.f32 %v7689, %v8457
        %v8586 = vmul.f32 %v7690, %v8458
        %v8587 = vmul.f32 %v7691, %v8459
        %v8588 = vmul.f32 %v7692, %v8460
        %v8589 = vmul.f32 %v7693, %v8461
        %v8590 = vmul.f32 %v7694, %v8462
        %v8591 = vmul.f32 %v7695, %v8463
        %v8592 = vmul.f32 %v7696, %v8464
        %v8593 = vmul.f32 %v7697, %v8465
        %v8594 = vmul.f32 %v7698, %v8466
        %v8595 = vmul.f32 %v7699, %v8467
        %v8596 = vmul.f32 %v7700, %v8468
        %v8597 = vmul.f32 %v7701, %v8469
        %v8598 = vmul.f32 %v7702, %v8470
        %v8599 = vmul.f32 %v7703, %v8471
        %v8600 = vmul.f32 %v7704, %v8472
        %v8601 = vmul.f32 %v7705, %v8473
        %v8602 = vmul.f32 %v7706, %v8474
        %v8603 = vmul.f32 %v7707, %v8475
        %v8604 = vmul.f32 %v7708, %v8476
        %v8605 = vmul.f32 %v7709, %v8477
        %v8606 = vmul.f32 %v7710, %v8478
        %v8607 = vmul.f32 %v7711, %v8479
        %v8608 = vmul.f32 %v7712, %v8480
        %v8609 = vmul.f32 %v7713, %v8481
        %v8610 = vmul.f32 %v7714, %v8482
        %v8611 = vmul.f32 %v7715, %v8483
        %v8612 = vmul.f32 %v7716, %v8484
        %v8613 = vmul.f32 %v7717, %v8485
        %v8614 = vmul.f32 %v7718, %v8486
        %v8615 = vmul.f32 %v7719, %v8487
        %v8616 = vmul.f32 %v7720, %v8488
        %v8617 = vmul.f32 %v7721, %v8489
        %v8618 = vmul.f32 %v7722, %v8490
        %v8619 = vmul.f32 %v7723, %v8491
        %v8620 = vmul.f32 %v7724, %v8492
        %v8621 = vmul.f32 %v7725, %v8493
        %v8622 = vmul.f32 %v7726, %v8494
        %v8623 = vmul.f32 %v7727, %v8495
        %v8624 = vmul.f32 %v7728, %v8496
        %v8625 = vmul.f32 %v7729, %v8497
        %v8626 = vmul.f32 %v7730, %v8498
        %v8627 = vmul.f32 %v7731, %v8499
        %v8628 = vmul.f32 %v7732, %v8500
        %v8629 = vmul.f32 %v7733, %v8501
        %v8630 = vmul.f32 %v7734, %v8502
        %v8631 = vmul.f32 %v7735, %v8503
        %v8632 = vmul.f32 %v7736, %v8504
        %v8633 = vmul.f32 %v7737, %v8505
        %v8634 = vmul.f32 %v7738, %v8506
        %v8635 = vmul.f32 %v7739, %v8507
        %v8636 = vmul.f32 %v8252, %v8508
        %v8637 = vmul.f32 %v8253, %v8509
        %v8638 = vmul.f32 %v8254, %v8510
        %v8639 = vmul.f32 %v8255, %v8511
        %v8640 = vmul.f32 %v8256, %v8512
        %v8641 = vmul.f32 %v8257, %v8513
        %v8642 = vmul.f32 %v8258, %v8514
        %v8643 = vmul.f32 %v8259, %v8515
        %v8644 = vmul.f32 %v8260, %v8516
        %v8645 = vmul.f32 %v8261, %v8517
        %v8646 = vmul.f32 %v8262, %v8518
        %v8647 = vmul.f32 %v8263, %v8519
        %v8648 = vmul.f32 %v8264, %v8520
        %v8649 = vmul.f32 %v8265, %v8521
        %v8650 = vmul.f32 %v8266, %v8522
        %v8651 = vmul.f32 %v8267, %v8523
        %v8652 = vmul.f32 %v8268, %v8524
        %v8653 = vmul.f32 %v8269, %v8525
        %v8654 = vmul.f32 %v8270, %v8526
        %v8655 = vmul.f32 %v8271, %v8527
        %v8656 = vmul.f32 %v8272, %v8528
        %v8657 = vmul.f32 %v8273, %v8529
        %v8658 = vmul.f32 %v8274, %v8530
        %v8659 = vmul.f32 %v8275, %v8531
        %v8660 = vmul.f32 %v8276, %v8532
        %v8661 = vmul.f32 %v8277, %v8533
        %v8662 = vmul.f32 %v8278, %v8534
        %v8663 = vmul.f32 %v8279, %v8535
        %v8664 = vmul.f32 %v8280, %v8536
        %v8665 = vmul.f32 %v8281, %v8537
        %v8666 = vmul.f32 %v8282, %v8538
        %v8667 = vmul.f32 %v8283, %v8539
        %v8668 = vmul.f32 %v8284, %v8540
        %v8669 = vmul.f32 %v8285, %v8541
        %v8670 = vmul.f32 %v8286, %v8542
        %v8671 = vmul.f32 %v8287, %v8543
        %v8672 = vmul.f32 %v8288, %v8544
        %v8673 = vmul.f32 %v8289, %v8545
        %v8674 = vmul.f32 %v8290, %v8546
        %v8675 = vmul.f32 %v8291, %v8547
        %v8676 = vmul.f32 %v8292, %v8548
        %v8677 = vmul.f32 %v8293, %v8549
        %v8678 = vmul.f32 %v8294, %v8550
        %v8679 = vmul.f32 %v8295, %v8551
        %v8680 = vmul.f32 %v8296, %v8552
        %v8681 = vmul.f32 %v8297, %v8553
        %v8682 = vmul.f32 %v8298, %v8554
        %v8683 = vmul.f32 %v8299, %v8555
        %v8684 = vmul.f32 %v8300, %v8556
        %v8685 = vmul.f32 %v8301, %v8557
        %v8686 = vmul.f32 %v8302, %v8558
        %v8687 = vmul.f32 %v8303, %v8559
        %v8688 = vmul.f32 %v8304, %v8560
        %v8689 = vmul.f32 %v8305, %v8561
        %v8690 = vmul.f32 %v8306, %v8562
        %v8691 = vmul.f32 %v8307, %v8563
        %v8692 = vmul.f32 %v8308, %v8564
        %v8693 = vmul.f32 %v8309, %v8565
        %v8694 = vmul.f32 %v8310, %v8566
        %v8695 = vmul.f32 %v8311, %v8567
        %v8696 = vmul.f32 %v8312, %v8568
        %v8697 = vmul.f32 %v8313, %v8569
        %v8698 = vmul.f32 %v8314, %v8570
        %v8699 = vmul.f32 %v8315, %v8571
        %v8700 = vmul.f32 %v8316, %v8572
        %v8701 = vmul.f32 %v8317, %v8573
        %v8702 = vmul.f32 %v8318, %v8574
        %v8703 = vmul.f32 %v8319, %v8575
        %v8704 = vmul.f32 %v8320, %v8576
        %v8705 = vmul.f32 %v8321, %v8577
        %v8706 = vmul.f32 %v8322, %v8578
        %v8707 = vmul.f32 %v8323, %v8579
        %v8708 = vmul.f32 %v8324, %v8580
        %v8709 = vmul.f32 %v8325, %v8581
        %v8710 = vmul.f32 %v8326, %v8582
        %v8711 = vmul.f32 %v8327, %v8583
        %v8712 = vmul.f32 %v8328, %v8584
        %v8713 = vmul.f32 %v8329, %v8585
        %v8714 = vmul.f32 %v8330, %v8586
        %v8715 = vmul.f32 %v8331, %v8587
        %v8716 = vmul.f32 %v8332, %v8588
        %v8717 = vmul.f32 %v8333, %v8589
        %v8718 = vmul.f32 %v8334, %v8590
        %v8719 = vmul.f32 %v8335, %v8591
        %v8720 = vmul.f32 %v8336, %v8592
        %v8721 = vmul.f32 %v8337, %v8593
        %v8722 = vmul.f32 %v8338, %v8594
        %v8723 = vmul.f32 %v8339, %v8595
        %v8724 = vmul.f32 %v8340, %v8596
        %v8725 = vmul.f32 %v8341, %v8597
        %v8726 = vmul.f32 %v8342, %v8598
        %v8727 = vmul.f32 %v8343, %v8599
        %v8728 = vmul.f32 %v8344, %v8600
        %v8729 = vmul.f32 %v8345, %v8601
        %v8730 = vmul.f32 %v8346, %v8602
        %v8731 = vmul.f32 %v8347, %v8603
        %v8732 = vmul.f32 %v8348, %v8604
        %v8733 = vmul.f32 %v8349, %v8605
        %v8734 = vmul.f32 %v8350, %v8606
        %v8735 = vmul.f32 %v8351, %v8607
        %v8736 = vmul.f32 %v8352, %v8608
        %v8737 = vmul.f32 %v8353, %v8609
        %v8738 = vmul.f32 %v8354, %v8610
        %v8739 = vmul.f32 %v8355, %v8611
        %v8740 = vmul.f32 %v8356, %v8612
        %v8741 = vmul.f32 %v8357, %v8613
        %v8742 = vmul.f32 %v8358, %v8614
        %v8743 = vmul.f32 %v8359, %v8615
        %v8744 = vmul.f32 %v8360, %v8616
        %v8745 = vmul.f32 %v8361, %v8617
        %v8746 = vmul.f32 %v8362, %v8618
        %v8747 = vmul.f32 %v8363, %v8619
        %v8748 = vmul.f32 %v8364, %v8620
        %v8749 = vmul.f32 %v8365, %v8621
        %v8750 = vmul.f32 %v8366, %v8622
        %v8751 = vmul.f32 %v8367, %v8623
        %v8752 = vmul.f32 %v8368, %v8624
        %v8753 = vmul.f32 %v8369, %v8625
        %v8754 = vmul.f32 %v8370, %v8626
        %v8755 = vmul.f32 %v8371, %v8627
        %v8756 = vmul.f32 %v8372, %v8628
        %v8757 = vmul.f32 %v8373, %v8629
        %v8758 = vmul.f32 %v8374, %v8630
        %v8759 = vmul.f32 %v8375, %v8631
        %v8760 = vmul.f32 %v8376, %v8632
        %v8761 = vmul.f32 %v8377, %v8633
        %v8762 = vmul.f32 %v8378, %v8634
        %v8763 = vmul.f32 %v8379, %v8635
        %v8764 = vpack.c.bf16 %v8638, %v8636
        %v8765 = vpack.c.bf16 %v8639, %v8637
        %v8766 = vpack.c.bf16 %v8642, %v8640
        %v8767 = vpack.c.bf16 %v8643, %v8641
        %v8768 = vpack.c.bf16 %v8646, %v8644
        %v8769 = vpack.c.bf16 %v8647, %v8645
        %v8770 = vpack.c.bf16 %v8650, %v8648
        %v8771 = vpack.c.bf16 %v8651, %v8649
        %v8772 = vpack.c.bf16 %v8654, %v8652
        %v8773 = vpack.c.bf16 %v8655, %v8653
        %v8774 = vpack.c.bf16 %v8658, %v8656
        %v8775 = vpack.c.bf16 %v8659, %v8657
        %v8776 = vpack.c.bf16 %v8662, %v8660
        %v8777 = vpack.c.bf16 %v8663, %v8661
        %v8778 = vpack.c.bf16 %v8666, %v8664
        %v8779 = vpack.c.bf16 %v8667, %v8665
        %v8780 = vpack.c.bf16 %v8670, %v8668
        %v8781 = vpack.c.bf16 %v8671, %v8669
        %v8782 = vpack.c.bf16 %v8674, %v8672
        %v8783 = vpack.c.bf16 %v8675, %v8673
        %v8784 = vpack.c.bf16 %v8678, %v8676
        %v8785 = vpack.c.bf16 %v8679, %v8677
        %v8786 = vpack.c.bf16 %v8682, %v8680
        %v8787 = vpack.c.bf16 %v8683, %v8681
        %v8788 = vpack.c.bf16 %v8686, %v8684
        %v8789 = vpack.c.bf16 %v8687, %v8685
        %v8790 = vpack.c.bf16 %v8690, %v8688
        %v8791 = vpack.c.bf16 %v8691, %v8689
        %v8792 = vpack.c.bf16 %v8694, %v8692
        %v8793 = vpack.c.bf16 %v8695, %v8693
        %v8794 = vpack.c.bf16 %v8698, %v8696
        %v8795 = vpack.c.bf16 %v8699, %v8697
        %v8796 = vpack.c.bf16 %v8702, %v8700
        %v8797 = vpack.c.bf16 %v8703, %v8701
        %v8798 = vpack.c.bf16 %v8706, %v8704
        %v8799 = vpack.c.bf16 %v8707, %v8705
        %v8800 = vpack.c.bf16 %v8710, %v8708
        %v8801 = vpack.c.bf16 %v8711, %v8709
        %v8802 = vpack.c.bf16 %v8714, %v8712
        %v8803 = vpack.c.bf16 %v8715, %v8713
        %v8804 = vpack.c.bf16 %v8718, %v8716
        %v8805 = vpack.c.bf16 %v8719, %v8717
        %v8806 = vpack.c.bf16 %v8722, %v8720
        %v8807 = vpack.c.bf16 %v8723, %v8721
        %v8808 = vpack.c.bf16 %v8726, %v8724
        %v8809 = vpack.c.bf16 %v8727, %v8725
        %v8810 = vpack.c.bf16 %v8730, %v8728
        %v8811 = vpack.c.bf16 %v8731, %v8729
        %v8812 = vpack.c.bf16 %v8734, %v8732
        %v8813 = vpack.c.bf16 %v8735, %v8733
        %v8814 = vpack.c.bf16 %v8738, %v8736
        %v8815 = vpack.c.bf16 %v8739, %v8737
        %v8816 = vpack.c.bf16 %v8742, %v8740
        %v8817 = vpack.c.bf16 %v8743, %v8741
        %v8818 = vpack.c.bf16 %v8746, %v8744
        %v8819 = vpack.c.bf16 %v8747, %v8745
        %v8820 = vpack.c.bf16 %v8750, %v8748
        %v8821 = vpack.c.bf16 %v8751, %v8749
        %v8822 = vpack.c.bf16 %v8754, %v8752
        %v8823 = vpack.c.bf16 %v8755, %v8753
        %v8824 = vpack.c.bf16 %v8758, %v8756
        %v8825 = vpack.c.bf16 %v8759, %v8757
        %v8826 = vpack.c.bf16 %v8762, %v8760
        %v8827 = vpack.c.bf16 %v8763, %v8761
        %v8892 = vunpack.c.l.b16 %v8764
        %v8893 = vunpack.c.l.b16 %v8765
        %v8894 = vunpack.c.h.b16 %v8764
        %v8895 = vunpack.c.h.b16 %v8765
        %v8896 = vunpack.c.l.b16 %v8766
        %v8897 = vunpack.c.l.b16 %v8767
        %v8898 = vunpack.c.h.b16 %v8766
        %v8899 = vunpack.c.h.b16 %v8767
        %v8900 = vunpack.c.l.b16 %v8768
        %v8901 = vunpack.c.l.b16 %v8769
        %v8902 = vunpack.c.h.b16 %v8768
        %v8903 = vunpack.c.h.b16 %v8769
        %v8904 = vunpack.c.l.b16 %v8770
        %v8905 = vunpack.c.l.b16 %v8771
        %v8906 = vunpack.c.h.b16 %v8770
        %v8907 = vunpack.c.h.b16 %v8771
        %v8908 = vunpack.c.l.b16 %v8772
        %v8909 = vunpack.c.l.b16 %v8773
        %v8910 = vunpack.c.h.b16 %v8772
        %v8911 = vunpack.c.h.b16 %v8773
        %v8912 = vunpack.c.l.b16 %v8774
        %v8913 = vunpack.c.l.b16 %v8775
        %v8914 = vunpack.c.h.b16 %v8774
        %v8915 = vunpack.c.h.b16 %v8775
        %v8916 = vunpack.c.l.b16 %v8776
        %v8917 = vunpack.c.l.b16 %v8777
        %v8918 = vunpack.c.h.b16 %v8776
        %v8919 = vunpack.c.h.b16 %v8777
        %v8920 = vunpack.c.l.b16 %v8778
        %v8921 = vunpack.c.l.b16 %v8779
        %v8922 = vunpack.c.h.b16 %v8778
        %v8923 = vunpack.c.h.b16 %v8779
        %v8924 = vunpack.c.l.b16 %v8780
        %v8925 = vunpack.c.l.b16 %v8781
        %v8926 = vunpack.c.h.b16 %v8780
        %v8927 = vunpack.c.h.b16 %v8781
        %v8928 = vunpack.c.l.b16 %v8782
        %v8929 = vunpack.c.l.b16 %v8783
        %v8930 = vunpack.c.h.b16 %v8782
        %v8931 = vunpack.c.h.b16 %v8783
        %v8932 = vunpack.c.l.b16 %v8784
        %v8933 = vunpack.c.l.b16 %v8785
        %v8934 = vunpack.c.h.b16 %v8784
        %v8935 = vunpack.c.h.b16 %v8785
        %v8936 = vunpack.c.l.b16 %v8786
        %v8937 = vunpack.c.l.b16 %v8787
        %v8938 = vunpack.c.h.b16 %v8786
        %v8939 = vunpack.c.h.b16 %v8787
        %v8940 = vunpack.c.l.b16 %v8788
        %v8941 = vunpack.c.l.b16 %v8789
        %v8942 = vunpack.c.h.b16 %v8788
        %v8943 = vunpack.c.h.b16 %v8789
        %v8944 = vunpack.c.l.b16 %v8790
        %v8945 = vunpack.c.l.b16 %v8791
        %v8946 = vunpack.c.h.b16 %v8790
        %v8947 = vunpack.c.h.b16 %v8791
        %v8948 = vunpack.c.l.b16 %v8792
        %v8949 = vunpack.c.l.b16 %v8793
        %v8950 = vunpack.c.h.b16 %v8792
        %v8951 = vunpack.c.h.b16 %v8793
        %v8952 = vunpack.c.l.b16 %v8794
        %v8953 = vunpack.c.l.b16 %v8795
        %v8954 = vunpack.c.h.b16 %v8794
        %v8955 = vunpack.c.h.b16 %v8795
        %v8956 = vunpack.c.l.b16 %v8796
        %v8957 = vunpack.c.l.b16 %v8797
        %v8958 = vunpack.c.h.b16 %v8796
        %v8959 = vunpack.c.h.b16 %v8797
        %v8960 = vunpack.c.l.b16 %v8798
        %v8961 = vunpack.c.l.b16 %v8799
        %v8962 = vunpack.c.h.b16 %v8798
        %v8963 = vunpack.c.h.b16 %v8799
        %v8964 = vunpack.c.l.b16 %v8800
        %v8965 = vunpack.c.l.b16 %v8801
        %v8966 = vunpack.c.h.b16 %v8800
        %v8967 = vunpack.c.h.b16 %v8801
        %v8968 = vunpack.c.l.b16 %v8802
        %v8969 = vunpack.c.l.b16 %v8803
        %v8970 = vunpack.c.h.b16 %v8802
        %v8971 = vunpack.c.h.b16 %v8803
        %v8972 = vunpack.c.l.b16 %v8804
        %v8973 = vunpack.c.l.b16 %v8805
        %v8974 = vunpack.c.h.b16 %v8804
        %v8975 = vunpack.c.h.b16 %v8805
        %v8976 = vunpack.c.l.b16 %v8806
        %v8977 = vunpack.c.l.b16 %v8807
        %v8978 = vunpack.c.h.b16 %v8806
        %v8979 = vunpack.c.h.b16 %v8807
        %v8980 = vunpack.c.l.b16 %v8808
        %v8981 = vunpack.c.l.b16 %v8809
        %v8982 = vunpack.c.h.b16 %v8808
        %v8983 = vunpack.c.h.b16 %v8809
        %v8984 = vunpack.c.l.b16 %v8810
        %v8985 = vunpack.c.l.b16 %v8811
        %v8986 = vunpack.c.h.b16 %v8810
        %v8987 = vunpack.c.h.b16 %v8811
        %v8988 = vunpack.c.l.b16 %v8812
        %v8989 = vunpack.c.l.b16 %v8813
        %v8990 = vunpack.c.h.b16 %v8812
        %v8991 = vunpack.c.h.b16 %v8813
        %v8992 = vunpack.c.l.b16 %v8814
        %v8993 = vunpack.c.l.b16 %v8815
        %v8994 = vunpack.c.h.b16 %v8814
        %v8995 = vunpack.c.h.b16 %v8815
        %v8996 = vunpack.c.l.b16 %v8816
        %v8997 = vunpack.c.l.b16 %v8817
        %v8998 = vunpack.c.h.b16 %v8816
        %v8999 = vunpack.c.h.b16 %v8817
        %v9000 = vunpack.c.l.b16 %v8818
        %v9001 = vunpack.c.l.b16 %v8819
        %v9002 = vunpack.c.h.b16 %v8818
        %v9003 = vunpack.c.h.b16 %v8819
        %v9004 = vunpack.c.l.b16 %v8820
        %v9005 = vunpack.c.l.b16 %v8821
        %v9006 = vunpack.c.h.b16 %v8820
        %v9007 = vunpack.c.h.b16 %v8821
        %v9008 = vunpack.c.l.b16 %v8822
        %v9009 = vunpack.c.l.b16 %v8823
        %v9010 = vunpack.c.h.b16 %v8822
        %v9011 = vunpack.c.h.b16 %v8823
        %v9012 = vunpack.c.l.b16 %v8824
        %v9013 = vunpack.c.l.b16 %v8825
        %v9014 = vunpack.c.h.b16 %v8824
        %v9015 = vunpack.c.h.b16 %v8825
        %v9016 = vunpack.c.l.b16 %v8826
        %v9017 = vunpack.c.l.b16 %v8827
        %v9018 = vunpack.c.h.b16 %v8826
        %v9019 = vunpack.c.h.b16 %v8827
        %v9020 = vpack.c.b16 %v8893, %v8892
        %v9021 = vpack.c.b16 %v8895, %v8894
        %v9022 = vpack.c.b16 %v8897, %v8896
        %v9023 = vpack.c.b16 %v8899, %v8898
        %v9024 = vpack.c.b16 %v8901, %v8900
        %v9025 = vpack.c.b16 %v8903, %v8902
        %v9026 = vpack.c.b16 %v8905, %v8904
        %v9027 = vpack.c.b16 %v8907, %v8906
        %v9028 = vpack.c.b16 %v8909, %v8908
        %v9029 = vpack.c.b16 %v8911, %v8910
        %v9030 = vpack.c.b16 %v8913, %v8912
        %v9031 = vpack.c.b16 %v8915, %v8914
        %v9032 = vpack.c.b16 %v8917, %v8916
        %v9033 = vpack.c.b16 %v8919, %v8918
        %v9034 = vpack.c.b16 %v8921, %v8920
        %v9035 = vpack.c.b16 %v8923, %v8922
        %v9036 = vpack.c.b16 %v8925, %v8924
        %v9037 = vpack.c.b16 %v8927, %v8926
        %v9038 = vpack.c.b16 %v8929, %v8928
        %v9039 = vpack.c.b16 %v8931, %v8930
        %v9040 = vpack.c.b16 %v8933, %v8932
        %v9041 = vpack.c.b16 %v8935, %v8934
        %v9042 = vpack.c.b16 %v8937, %v8936
        %v9043 = vpack.c.b16 %v8939, %v8938
        %v9044 = vpack.c.b16 %v8941, %v8940
        %v9045 = vpack.c.b16 %v8943, %v8942
        %v9046 = vpack.c.b16 %v8945, %v8944
        %v9047 = vpack.c.b16 %v8947, %v8946
        %v9048 = vpack.c.b16 %v8949, %v8948
        %v9049 = vpack.c.b16 %v8951, %v8950
        %v9050 = vpack.c.b16 %v8953, %v8952
        %v9051 = vpack.c.b16 %v8955, %v8954
        %v9052 = vpack.c.b16 %v8957, %v8956
        %v9053 = vpack.c.b16 %v8959, %v8958
        %v9054 = vpack.c.b16 %v8961, %v8960
        %v9055 = vpack.c.b16 %v8963, %v8962
        %v9056 = vpack.c.b16 %v8965, %v8964
        %v9057 = vpack.c.b16 %v8967, %v8966
        %v9058 = vpack.c.b16 %v8969, %v8968
        %v9059 = vpack.c.b16 %v8971, %v8970
        %v9060 = vpack.c.b16 %v8973, %v8972
        %v9061 = vpack.c.b16 %v8975, %v8974
        %v9062 = vpack.c.b16 %v8977, %v8976
        %v9063 = vpack.c.b16 %v8979, %v8978
        %v9064 = vpack.c.b16 %v8981, %v8980
        %v9065 = vpack.c.b16 %v8983, %v8982
        %v9066 = vpack.c.b16 %v8985, %v8984
        %v9067 = vpack.c.b16 %v8987, %v8986
        %v9068 = vpack.c.b16 %v8989, %v8988
        %v9069 = vpack.c.b16 %v8991, %v8990
        %v9070 = vpack.c.b16 %v8993, %v8992
        %v9071 = vpack.c.b16 %v8995, %v8994
        %v9072 = vpack.c.b16 %v8997, %v8996
        %v9073 = vpack.c.b16 %v8999, %v8998
        %v9074 = vpack.c.b16 %v9001, %v9000
        %v9075 = vpack.c.b16 %v9003, %v9002
        %v9076 = vpack.c.b16 %v9005, %v9004
        %v9077 = vpack.c.b16 %v9007, %v9006
        %v9078 = vpack.c.b16 %v9009, %v9008
        %v9079 = vpack.c.b16 %v9011, %v9010
        %v9080 = vpack.c.b16 %v9013, %v9012
        %v9081 = vpack.c.b16 %v9015, %v9014
        %v9082 = vpack.c.b16 %v9017, %v9016
        %v9083 = vpack.c.b16 %v9019, %v9018
        %9148 = vst [vmem:[%s562] sm:$0xff] %v9020
        %9149 = vst [vmem:[%s562 + $0x8] sm:$0xff] %v9021
        %9150 = vst [vmem:[%s562 + $0x10] sm:$0xff] %v9022
        %9151 = vst [vmem:[%s562 + $0x18] sm:$0xff] %v9023
        %9152 = vst [vmem:[%s562 + $0x20] sm:$0xff] %v9024
        %9153 = vst [vmem:[%s562 + $0x28] sm:$0xff] %v9025
        %9154 = vst [vmem:[%s562 + $0x30] sm:$0xff] %v9026
        %9155 = vst [vmem:[%s562 + $0x38] sm:$0xff] %v9027
        %9156 = vst [vmem:[%s562 + $0x40] sm:$0xff] %v9028
        %9157 = vst [vmem:[%s562 + $0x48] sm:$0xff] %v9029
        %9158 = vst [vmem:[%s562 + $0x50] sm:$0xff] %v9030
        %9159 = vst [vmem:[%s562 + $0x58] sm:$0xff] %v9031
        %9160 = vst [vmem:[%s562 + $0x60] sm:$0xff] %v9032
        %9161 = vst [vmem:[%s562 + $0x68] sm:$0xff] %v9033
        %9162 = vst [vmem:[%s562 + $0x70] sm:$0xff] %v9034
        %9163 = vst [vmem:[%s562 + $0x78] sm:$0xff] %v9035
        %9164 = vst [vmem:[%s562 + $0x80] sm:$0xff] %v9036
        %9165 = vst [vmem:[%s562 + $0x88] sm:$0xff] %v9037
        %9166 = vst [vmem:[%s562 + $0x90] sm:$0xff] %v9038
        %9167 = vst [vmem:[%s562 + $0x98] sm:$0xff] %v9039
        %9168 = vst [vmem:[%s562 + $0xa0] sm:$0xff] %v9040
        %9169 = vst [vmem:[%s562 + $0xa8] sm:$0xff] %v9041
        %9170 = vst [vmem:[%s562 + $0xb0] sm:$0xff] %v9042
        %9171 = vst [vmem:[%s562 + $0xb8] sm:$0xff] %v9043
        %9172 = vst [vmem:[%s562 + $0xc0] sm:$0xff] %v9044
        %9173 = vst [vmem:[%s562 + $0xc8] sm:$0xff] %v9045
        %9174 = vst [vmem:[%s562 + $0xd0] sm:$0xff] %v9046
        %9175 = vst [vmem:[%s562 + $0xd8] sm:$0xff] %v9047
        %9176 = vst [vmem:[%s562 + $0xe0] sm:$0xff] %v9048
        %9177 = vst [vmem:[%s562 + $0xe8] sm:$0xff] %v9049
        %9178 = vst [vmem:[%s562 + $0xf0] sm:$0xff] %v9050
        %9179 = vst [vmem:[%s562 + $0xf8] sm:$0xff] %v9051
        %9180 = vst [vmem:[%s562 + $0x100] sm:$0xff] %v9052
        %9181 = vst [vmem:[%s562 + $0x108] sm:$0xff] %v9053
        %9182 = vst [vmem:[%s562 + $0x110] sm:$0xff] %v9054
        %9183 = vst [vmem:[%s562 + $0x118] sm:$0xff] %v9055
        %9184 = vst [vmem:[%s562 + $0x120] sm:$0xff] %v9056
        %9185 = vst [vmem:[%s562 + $0x128] sm:$0xff] %v9057
        %9186 = vst [vmem:[%s562 + $0x130] sm:$0xff] %v9058
        %9187 = vst [vmem:[%s562 + $0x138] sm:$0xff] %v9059
        %9188 = vst [vmem:[%s562 + $0x140] sm:$0xff] %v9060
        %9189 = vst [vmem:[%s562 + $0x148] sm:$0xff] %v9061
        %9190 = vst [vmem:[%s562 + $0x150] sm:$0xff] %v9062
        %9191 = vst [vmem:[%s562 + $0x158] sm:$0xff] %v9063
        %9192 = vst [vmem:[%s562 + $0x160] sm:$0xff] %v9064
        %9193 = vst [vmem:[%s562 + $0x168] sm:$0xff] %v9065
        %9194 = vst [vmem:[%s562 + $0x170] sm:$0xff] %v9066
        %9195 = vst [vmem:[%s562 + $0x178] sm:$0xff] %v9067
        %9196 = vst [vmem:[%s562 + $0x180] sm:$0xff] %v9068
        %9197 = vst [vmem:[%s562 + $0x188] sm:$0xff] %v9069
        %9198 = vst [vmem:[%s562 + $0x190] sm:$0xff] %v9070
        %9199 = vst [vmem:[%s562 + $0x198] sm:$0xff] %v9071
        %9200 = vst [vmem:[%s562 + $0x1a0] sm:$0xff] %v9072
        %9201 = vst [vmem:[%s562 + $0x1a8] sm:$0xff] %v9073
        %9202 = vst [vmem:[%s562 + $0x1b0] sm:$0xff] %v9074
        %9203 = vst [vmem:[%s562 + $0x1b8] sm:$0xff] %v9075
        %9204 = vst [vmem:[%s562 + $0x1c0] sm:$0xff] %v9076
        %9205 = vst [vmem:[%s562 + $0x1c8] sm:$0xff] %v9077
        %9206 = vst [vmem:[%s562 + $0x1d0] sm:$0xff] %v9078
        %9207 = vst [vmem:[%s562 + $0x1d8] sm:$0xff] %v9079
        %9208 = vst [vmem:[%s562 + $0x1e0] sm:$0xff] %v9080
        %9209 = vst [vmem:[%s562 + $0x1e8] sm:$0xff] %v9081
        %9210 = vst [vmem:[%s562 + $0x1f0] sm:$0xff] %v9082
        %9211 = vst [vmem:[%s562 + $0x1f8] sm:$0xff] %v9083
        %s9212 = sand.u32 %s242, 1
        %s9213 = scalar_lea.sflag [#allocation4], %s9212
        %s9214 = sand.u32 %s242, 1
        %s9215 = smul.addr %s9214, 1024
        %s9216 = scalar_lea.vmem [#allocation10], %s9215
        %s9217 = sand.u32 %s41, 1
        %s9218 = scalar_lea.sflag [#allocation12], %s9217
        %s9219 = sand.u32 %s268, 1
        %s9220 = smul.addr %s9219, 1024
        %s9221 = scalar_lea.vmem [#allocation11], %s9220
        %s9222 = sand.u32 %s41, 1
        %s9223 = scalar_lea.sflag [#allocation12], %s9222
        %s9224 = sand.u32 %s294, 1
        %s9225 = smul.addr %s9224, 512
        %s9226 = scalar_lea.vmem [#allocation13], %s9225
        %s9227 = sand.u32 %s320, 1
        %s9228 = scalar_lea.sflag [#allocation15], %s9227
        %s9229 = sand.u32 %s320, 1
        %s9230 = smul.addr %s9229, 1024
        %s9231 = scalar_lea.vmem [#allocation14], %s9230
        // Predicated region
        $region69: #{custom_lstm_cell.1} parent=51 // pred_check
          %p9232 = pneg %p252
        $region70: #{custom_lstm_cell.1} parent=51 // pred_check_branch
          %9234 = sbr.rel (%p9232) target = $region72
        $region71: #{custom_lstm_cell.1} parent=51 // pred_region
          %s9235 = smul.u32 64, %s41
          %s9237 = ssub.s32 16384, 16384
          %9238 = vsyncadd %s9213, %s9237
          %s9239 = smul.addr %s9235, 2
          %s9240 = smul.addr %s9239, 128
          %s9241 = scalar_lea.hbm %s8, %s9240
          %s9242 = sshll.u32 %s9216, 4
          %s9243 = int_to_ptr.vmem [resolvable:$true] %s9242
          %9248 = dma.vmem_to_hbm [thread:$0]  %s9243, 16384, %s9241, %s9213, 256, 256, 16
        $region72: #{custom_lstm_cell.1} parent=51 // pred_fallthru
          _
        // Predicated region
        $region73: #{custom_lstm_cell.1} parent=51 // pred_check
          %p9249 = pneg %p278
        $region74: #{custom_lstm_cell.1} parent=51 // pred_check_branch
          %9251 = sbr.rel (%p9249) target = $region76
        $region75: #{custom_lstm_cell.1} parent=51 // pred_region
          %s9252 = smul.u32 64, %s41
          %s9254 = ssub.s32 16384, 16384
          %9255 = vsyncadd %s9218, %s9254
          %s9256 = smul.addr %s9252, 2
          %s9257 = smul.addr %s9256, 128
          %s9258 = scalar_lea.hbm %s9, %s9257
          %s9259 = sshll.u32 %s9221, 4
          %s9260 = int_to_ptr.vmem [resolvable:$true] %s9259
          %9265 = dma.vmem_to_hbm [thread:$0]  %s9260, 16384, %s9258, %s9218, 256, 256, 16
        $region76: #{custom_lstm_cell.1} parent=51 // pred_fallthru
          _
        // Predicated region
        $region77: #{custom_lstm_cell.1} parent=51 // pred_check
          %p9266 = pneg %p304
        $region78: #{custom_lstm_cell.1} parent=51 // pred_check_branch
          %9268 = sbr.rel (%p9266) target = $region80
        $region79: #{custom_lstm_cell.1} parent=51 // pred_region
          %s9269 = smul.u32 64, %s41
          %s9271 = ssub.s32 8192, 8192
          %9272 = vsyncadd %s9223, %s9271
          %s9273 = smul.addr %s9269, 2
          %s9274 = smul.addr %s9273, 64
          %s9275 = scalar_lea.hbm %s10, %s9274
          %s9276 = sshll.u32 %s9226, 4
          %s9277 = int_to_ptr.vmem [resolvable:$true] %s9276
          %9282 = dma.vmem_to_hbm [thread:$0]  %s9277, 8192, %s9275, %s9223, 128, 128, 8
        $region80: #{custom_lstm_cell.1} parent=51 // pred_fallthru
          _
        // Predicated region
        $region81: #{custom_lstm_cell.1} parent=51 // pred_check
          %p9283 = pneg %p330
        $region82: #{custom_lstm_cell.1} parent=51 // pred_check_branch
          %9285 = sbr.rel (%p9283) target = $region84
        $region83: #{custom_lstm_cell.1} parent=51 // pred_region
          %s9286 = smul.u32 64, %s41
          %s9288 = ssub.s32 16384, 16384
          %9289 = vsyncadd %s9228, %s9288
          %s9290 = smul.addr %s9286, 2
          %s9291 = smul.addr %s9290, 128
          %s9292 = scalar_lea.hbm %s11, %s9291
          %s9293 = sshll.u32 %s9231, 4
          %s9294 = int_to_ptr.vmem [resolvable:$true] %s9293
          %9299 = dma.vmem_to_hbm [thread:$0]  %s9294, 16384, %s9292, %s9228, 256, 256, 16
        $region84: #{custom_lstm_cell.1} parent=51 // pred_fallthru
          _
      $region52: #{custom_lstm_cell.1} parent=5 // pred_fallthru
        _
      %p9300 = scmp.le.s32.totalorder 2, %s36
      // Predicated region
      $region85: #{custom_lstm_cell.1} parent=5 // pred_check
        %p9301 = pneg %p9300
      $region86: #{custom_lstm_cell.1} parent=5 // pred_check_branch
        %9303 = sbr.rel (%p9301) target = $region88
      $region87: #{custom_lstm_cell.1} parent=5 // pred_region
        %s9304 = ssub.s32 %s36, 2
        // Predicated region
        $region89: #{custom_lstm_cell.1} parent=87 // pred_check
          %p9305 = pneg %p258
        $region90: #{custom_lstm_cell.1} parent=87 // pred_check_branch
          %9307 = sbr.rel (%p9305) target = $region92
        $region91: #{custom_lstm_cell.1} parent=87 // pred_region
          %s9308 = sand.u32 %s243, 1
          %s9309 = scalar_lea.sflag [#allocation4], %s9308
          %s9310 = sand.u32 %s243, 1
          %s9311 = smul.addr %s9310, 1024
          %s9312 = scalar_lea.vmem [#allocation10], %s9311
          %9313 = dma.done %s9309, 16384
        $region92: #{custom_lstm_cell.1} parent=87 // pred_fallthru
          _
        // Predicated region
        $region93: #{custom_lstm_cell.1} parent=87 // pred_check
          %p9314 = pneg %p284
        $region94: #{custom_lstm_cell.1} parent=87 // pred_check_branch
          %9316 = sbr.rel (%p9314) target = $region96
        $region95: #{custom_lstm_cell.1} parent=87 // pred_region
          %s9317 = sand.u32 %s42, 1
          %s9318 = scalar_lea.sflag [#allocation12], %s9317
          %s9319 = sand.u32 %s269, 1
          %s9320 = smul.addr %s9319, 1024
          %s9321 = scalar_lea.vmem [#allocation11], %s9320
          %9322 = dma.done %s9318, 16384
        $region96: #{custom_lstm_cell.1} parent=87 // pred_fallthru
          _
        // Predicated region
        $region97: #{custom_lstm_cell.1} parent=87 // pred_check
          %p9323 = pneg %p310
        $region98: #{custom_lstm_cell.1} parent=87 // pred_check_branch
          %9325 = sbr.rel (%p9323) target = $region100
        $region99: #{custom_lstm_cell.1} parent=87 // pred_region
          %s9326 = sand.u32 %s42, 1
          %s9327 = scalar_lea.sflag [#allocation12], %s9326
          %s9328 = sand.u32 %s295, 1
          %s9329 = smul.addr %s9328, 512
          %s9330 = scalar_lea.vmem [#allocation13], %s9329
          %9331 = dma.done %s9327, 8192
        $region100: #{custom_lstm_cell.1} parent=87 // pred_fallthru
          _
        // Predicated region
        $region101: #{custom_lstm_cell.1} parent=87 // pred_check
          %p9332 = pneg %p336
        $region102: #{custom_lstm_cell.1} parent=87 // pred_check_branch
          %9334 = sbr.rel (%p9332) target = $region104
        $region103: #{custom_lstm_cell.1} parent=87 // pred_region
          %s9335 = sand.u32 %s321, 1
          %s9336 = scalar_lea.sflag [#allocation15], %s9335
          %s9337 = sand.u32 %s321, 1
          %s9338 = smul.addr %s9337, 1024
          %s9339 = scalar_lea.vmem [#allocation14], %s9338
          %9340 = dma.done %s9336, 16384
        $region104: #{custom_lstm_cell.1} parent=87 // pred_fallthru
          _
      $region88: #{custom_lstm_cell.1} parent=5 // pred_fallthru
        _
    $region6: #{custom_lstm_cell.1} parent=1 // loop_footer
      %s40 = sadd.s32 1, %s36
    $region7: #{custom_lstm_cell.1} parent=1 // loop_footer_branch
      %35 = sbr.rel target = $region3
    $region8: #{custom_lstm_cell.1} parent=1 // loop_exit
      _
    %9341 = vsyncpa [#allocation3], 1
    %s9342 = scalar_lea.sflag [#allocation3], 1
    %9343 = vsyncpa %s9342, 1
    %9344 = vsyncpa [#allocation6], 1
    %s9345 = scalar_lea.sflag [#allocation6], 1
    %9346 = vsyncpa %s9345, 1
    %9347 = vsyncpa [#allocation9], 1
    %s9348 = scalar_lea.sflag [#allocation9], 1
    %9349 = vsyncpa %s9348, 1
    %9350 = vsyncpa [#allocation4], 1
    %s9351 = scalar_lea.sflag [#allocation4], 1
    %9352 = vsyncpa %s9351, 1
    %9353 = vsyncpa [#allocation12], 1
    %s9354 = scalar_lea.sflag [#allocation12], 1
    %9355 = vsyncpa %s9354, 1
    %9356 = vsyncpa [#allocation15], 1
    %s9357 = scalar_lea.sflag [#allocation15], 1
    %9358 = vsyncpa %s9357, 1

</llo_original>
